<compile_context>
chip_gen: v5e
topology: v5e:2x2
jax: 0.10.0
libtpu: 0.0.40
codegen_flags: <defaults>
</compile_context>

<pallas_src>
import functools

import numpy as np
import jax
import jax.numpy as jnp
from jax.experimental import pallas as pl
from jax.experimental.pallas import tpu as pltpu

LANE = 128


def _round_up(n, m):
    return ((n + m - 1) // m) * m


# ----------------------------------------------------------------------------
# Synthetic cfg (what parse_cfg would return), small shapes.
# ----------------------------------------------------------------------------
BLOCKS = [
    {'type': 'net', 'height': '16', 'width': '16', 'channels': '3'},
    {'type': 'convolutional', 'batch_normalize': '1', 'filters': '8',
     'size': '3', 'stride': '1', 'pad': '1', 'activation': 'leaky'},
    {'type': 'convolutional', 'batch_normalize': '1', 'filters': '16',
     'size': '3', 'stride': '2', 'pad': '1', 'activation': 'leaky'},
    {'type': 'convolutional', 'batch_normalize': '1', 'filters': '16',
     'size': '3', 'stride': '1', 'pad': '1', 'activation': 'leaky'},
    {'type': 'shortcut', 'from': '-2', 'activation': 'linear'},
    {'type': 'convolutional', 'filters': '21', 'size': '1', 'stride': '1',
     'pad': '1', 'activation': 'linear'},
    {'type': 'yolo', 'mask': '0,1,2',
     'anchors': '10,13, 16,30, 33,23, 30,61, 62,45, 59,119',
     'classes': '2', 'num': '6'},
    {'type': 'route', 'layers': '-3'},
    {'type': 'convolutional', 'batch_normalize': '1', 'filters': '8',
     'size': '1', 'stride': '1', 'pad': '1', 'activation': 'leaky'},
    {'type': 'upsample', 'stride': '2'},
    {'type': 'route', 'layers': '-1,-9'},
    {'type': 'convolutional', 'filters': '21', 'size': '1', 'stride': '1',
     'pad': '1', 'activation': 'linear'},
    {'type': 'yolo', 'mask': '3,4,5',
     'anchors': '10,13, 16,30, 33,23, 30,61, 62,45, 59,119',
     'classes': '2', 'num': '6'},
]

# ~2 MiB of VMEM is actually used per kernel; explicit budget well under every
# generation's scoped limit.  Re-derive tiling (K grid axis + this limit) for
# v7x's 64 MiB VMEM at production layer sizes.
_COMPILER_PARAMS = pltpu.CompilerParams(vmem_limit_bytes=32 * 1024 * 1024)


# ----------------------------------------------------------------------------
# Pallas kernels
# ----------------------------------------------------------------------------
def _yolo_decode(y, yaux_ref, stride_px):
    """Elementwise YOLOv3 prediction transform on an (N, G, G, Cpad) block.

    Lane layout: lane = a * (5 + classes) + b.  yaux_ref rows hold per-lane
    constants [is_x, is_y, is_wh, anchor_px]; grid offsets come from in-kernel
    iotas over the spatial dims (no materialized aux tensor).
    """
    is_x = yaux_ref[0:1, :]          # (1, Cpad)
    is_y = yaux_ref[1:2, :]
    is_wh = yaux_ref[2:3, :]
    anch = yaux_ref[3:4, :]
    gx = jax.lax.broadcasted_iota(jnp.int32, y.shape, 2).astype(jnp.float32)
    gy = jax.lax.broadcasted_iota(jnp.int32, y.shape, 1).astype(jnp.float32)
    sig = jax.nn.sigmoid(y)
    is_xy = is_x + is_y
    box_xy = (sig + is_x * gx + is_y * gy) * stride_px
    box_wh = jnp.exp(y * is_wh) * anch        # exp gated by mask -> no inf*0
    return is_xy * box_xy + is_wh * box_wh + (1.0 - is_xy - is_wh) * sig


def _conv_kernel(*refs, k, s, leaky, stride_px, has_res, has_yolo):
    """Fused conv (+folded BN) [+LeakyReLU] [+residual add] [+YOLO decode].

    refs = (xs, wmat, bias, [residual], [yolo_aux], out)
      xs   : (s*s, N, Hs, Ws, Cpi)  phase-split, spatially padded NHWC input
      wmat : (k*k, Cpi, Cpo)        scale-folded, lane-padded weights
      bias : (1, Cpo)
      out  : (N, OH, OW, Cpo)       lane-dense (Cpo % 128 == 0, unmasked vst)
    The k*k taps are accumulated as shifted matmuls on VMEM-resident slices;
    the im2col patches never exist in HBM.
    """
    xs_ref, w_ref, b_ref = refs[0], refs[1], refs[2]
    pos = 3
    res_ref = None
    yaux_ref = None
    if has_res:
        res_ref = refs[pos]
        pos += 1
    if has_yolo:
        yaux_ref = refs[pos]
        pos += 1
    o_ref = refs[pos]

    N, OH, OW, Cpo = o_ref.shape
    M = N * OH * OW

    acc = None
    for t in range(k * k):               # static, fully unrolled tap loop
        ky, kx = t // k, t % k
        phase = (ky % s) * s + (kx % s)
        ry, rx = ky // s, kx // s
        x_tap = xs_ref[phase, :, ry:ry + OH, rx:rx + OW, :]   # (N, OH, OW, Cpi)
        a2 = x_tap.reshape(M, x_tap.shape[-1])
        part = jnp.dot(a2, w_ref[t], preferred_element_type=jnp.float32)
        acc = part if acc is None else acc + part

    y = acc + b_ref[...]
    if leaky:
        y = jnp.where(y > 0, y, 0.1 * y)
    y = y.reshape(N, OH, OW, Cpo)
    if has_res:
        y = y + res_ref[...]
    if has_yolo:
        y = _yolo_decode(y, yaux_ref, stride_px)
    o_ref[...] = y.astype(o_ref.dtype)


def _add_kernel(a_ref, b_ref, o_ref):
    o_ref[...] = a_ref[...] + b_ref[...]


def _yolo_kernel(x_ref, yaux_ref, o_ref, *, stride_px):
    o_ref[...] = _yolo_decode(x_ref[...], yaux_ref, stride_px)


# ----------------------------------------------------------------------------
# Wrappers around the Pallas kernels
# ----------------------------------------------------------------------------
def _phase_split(xp, s):
    """(N, Hp, Wp, C) -> (s*s, N, ceil(Hp/s), ceil(Wp/s), C).

    Space-to-batch phase decomposition: total bytes equal the padded input
    (no k*k inflation), and every tap of a strided conv becomes a unit-stride
    slice of one phase inside the kernel.
    """
    if s == 1:
        return xp[None]
    N, Hp, Wp, C = xp.shape
    Hs, Ws = -(-Hp // s), -(-Wp // s)
    phases = []
    for a in range(s):
        for b in range(s):
            ph = xp[:, a::s, b::s, :]
            ph = jnp.pad(ph, ((0, 0), (0, Hs - ph.shape[1]),
                              (0, Ws - ph.shape[2]), (0, 0)))
            phases.append(ph)
    return jnp.stack(phases, axis=0)


def conv_layer(x, p, k, s, pad, leaky, residual=None, yolo_aux=None, inp_dim=None):
    """x: NHWC activations; channels beyond the real count are zero."""
    N, H, W, C = x.shape
    cpi, cpo = p['wmat'].shape[1], p['wmat'].shape[2]
    assert C <= cpi
    OH = (H + 2 * pad - k) // s + 1
    OW = (W + 2 * pad - k) // s + 1
    # One pad op: spatial halo + channel lane-padding to the weight's Cin pad.
    xp = jnp.pad(x, ((0, 0), (pad, pad), (pad, pad), (0, cpi - C)))
    xs = _phase_split(xp, s)

    has_res = residual is not None
    has_yolo = yolo_aux is not None
    stride_px = float(inp_dim // OH) if has_yolo else 1.0
    args = [xs, p['wmat'], p['bias']]
    if has_res:
        args.append(residual)
    if has_yolo:
        args.append(yolo_aux)

    # No grid: one full-array block per operand (everything fits VMEM easily at
    # these sizes -> single pipeline stage, no per-grid-step overhead).
    return pl.pallas_call(
        functools.partial(_conv_kernel, k=k, s=s, leaky=leaky,
                          stride_px=stride_px, has_res=has_res,
                          has_yolo=has_yolo),
        out_shape=jax.ShapeDtypeStruct((N, OH, OW, cpo), jnp.float32),
        compiler_params=_COMPILER_PARAMS,
    )(*args)


def shortcut_add(a, b):
    # Unfused fallback: lane-dense (..., 128) elementwise residual add.
    return pl.pallas_call(
        _add_kernel,
        out_shape=jax.ShapeDtypeStruct(a.shape, a.dtype),
        compiler_params=_COMPILER_PARAMS,
    )(a, b)


def _make_yolo_aux(anchors, num_classes, cpad):
    bbox = 5 + num_classes
    aux = np.zeros((4, cpad), np.float32)
    for a, (aw, ah) in enumerate(anchors):
        base = a * bbox
        aux[0, base + 0] = 1.0           # x lane
        aux[1, base + 1] = 1.0           # y lane
        aux[2, base + 2] = 1.0           # w lane
        aux[2, base + 3] = 1.0           # h lane
        aux[3, base + 2] = float(aw)     # anchor in pixels (== (a/stride)*stride)
        aux[3, base + 3] = float(ah)
    return jnp.asarray(aux)


def _assemble_detections(decoded, num_anchors, bbox):
    # (N, G, G, Cpad) -> (N, G*G*A, 5+classes): same (grid-major, anchor, attr)
    # ordering as util.transform_pred; a pure reshape in NHWC.
    N, G, _, _ = decoded.shape
    return decoded[..., :num_anchors * bbox].reshape(N, G * G * num_anchors, bbox)


def yolo_layer(x, anchors, num_classes, inp_dim):
    # Unfused fallback decode on a lane-padded NHWC conv output.
    N, G, _, Cp = x.shape
    bbox = 5 + num_classes
    yaux = _make_yolo_aux(anchors, num_classes, Cp)
    dec = pl.pallas_call(
        functools.partial(_yolo_kernel, stride_px=float(inp_dim // G)),
        out_shape=jax.ShapeDtypeStruct(x.shape, jnp.float32),
        compiler_params=_COMPILER_PARAMS,
    )(x, yaux)
    return _assemble_detections(dec, len(anchors), bbox)


# ----------------------------------------------------------------------------
# Deterministic parameter construction (mirrors create_modules channel logic);
# BN scale is folded into the weights, weights are pre-transposed to
# (k*k, Cin, Cout) and lane-padded once here.
# ----------------------------------------------------------------------------
def build_params(blocks, key):
    params = {}
    prev_filters = int(blocks[0].get('channels', 3))
    output_filters = []
    for index, blk in enumerate(blocks[1:]):
        filters = prev_filters
        if blk['type'] == 'convolutional':
            bn = int(blk.get('batch_normalize', 0))
            k = int(blk['size'])
            filters = int(blk['filters'])
            key, k1, k2, k3, k4, k5, k6 = jax.random.split(key, 7)
            w = 0.05 * jax.random.normal(k1, (filters, prev_filters, k, k),
                                         jnp.float32)
            if bn:
                gamma = 1.0 + 0.1 * jax.random.normal(k2, (filters,), jnp.float32)
                beta = 0.1 * jax.random.normal(k3, (filters,), jnp.float32)
                mean = 0.1 * jax.random.normal(k4, (filters,), jnp.float32)
                var = 1.0 + 0.1 * jnp.abs(jax.random.normal(k5, (filters,),
                                                            jnp.float32))
                scale = gamma / jnp.sqrt(var + 1e-5)    # eval-mode BN folded
                bias = beta - mean * scale
            else:
                scale = jnp.ones((filters,), jnp.float32)
                bias = 0.1 * jax.random.normal(k6, (filters,), jnp.float32)
            cpi = _round_up(prev_filters, LANE)
            cpo = _round_up(filters, LANE)
            wmat = jnp.transpose(w, (2, 3, 1, 0)).reshape(k * k, prev_filters,
                                                          filters)
            wmat = wmat * scale[None, None, :]          # fold BN scale
            wmat = jnp.pad(wmat, ((0, 0), (0, cpi - prev_filters),
                                  (0, cpo - filters)))
            biasp = jnp.pad(bias, (0, cpo - filters)).reshape(1, cpo)
            params[index] = {'wmat': wmat, 'bias': biasp}
        elif blk['type'] == 'route':
            layers = [int(a) for a in blk['layers'].split(',')]
            start = layers[0]
            end = layers[1] if len(layers) > 1 else 0
            if start > 0:
                start -= index
            if end > 0:
                end -= index
            if end < 0:
                filters = output_filters[index + start] + output_filters[index + end]
            else:
                filters = output_filters[index + start]
        prev_filters = filters
        output_filters.append(filters)
    return params


# ----------------------------------------------------------------------------
# Static cfg analysis for safe epilogue fusion
# ----------------------------------------------------------------------------
def _yolo_anchors(module):
    a = [int(v) for v in module['anchors'].split(',')]
    allp = [(a[j], a[j + 1]) for j in range(0, len(a), 2)]
    mask = [int(m) for m in module['mask'].split(',')]
    return [allp[m] for m in mask]


def _resolve_route_layers(module, i):
    ls = [int(a) for a in module['layers'].split(',')]
    return [i + l if l < 0 else l for l in ls]


def _output_readers(mods):
    readers = {}
    for j, m in enumerate(mods):
        if m['type'] == 'route':
            for t in _resolve_route_layers(m, j):
                readers.setdefault(t, []).append(('route', j))
        elif m['type'] == 'shortcut':
            frm = int(m['from'])
            readers.setdefault(j - 1, []).append(('shortcut', j))
            readers.setdefault(j + frm, []).append(('shortcut', j))
    return readers


def _can_fuse_shortcut(i, readers):
    for kind, j in readers.get(i, []):
        if kind == 'route' or (kind == 'shortcut' and j != i + 1):
            return False
    return True


def _can_fuse_yolo(i, readers):
    return len(readers.get(i, [])) == 0


# ----------------------------------------------------------------------------
# Forward pass (mirrors DarkNet.forward)
# ----------------------------------------------------------------------------
def darknet_forward(blocks, params, x_nchw):
    net_info = blocks[0]
    mods = blocks[1:]
    readers = _output_readers(mods)
    inp_dim = int(net_info['height'])

    x = jnp.transpose(x_nchw, (0, 2, 3, 1))      # NCHW -> NHWC, exactly once
    outputs, real_c = {}, {}
    detections = None
    skip = set()

    for i, module in enumerate(mods):
        t = module['type']
        if i in skip:                  # produced by a fused conv epilogue
            x = outputs[i]
            continue

        if t == 'convolutional':
            k = int(module['size'])
            s = int(module['stride'])
            pad = (k - 1) // 2 if int(module['pad']) else 0
            leaky = module['activation'] == 'leaky'
            cout = int(module['filters'])

            nxt = mods[i + 1] if i + 1 < len(mods) else None
            fuse = None
            residual = None
            yolo_aux = None
            if (nxt is not None and nxt['type'] == 'shortcut'
                    and _can_fuse_shortcut(i, readers)):
                ridx = (i + 1) + int(nxt['from'])
                if ridx != i and ridx in outputs:
                    residual = outputs[ridx]
                    fuse = 'shortcut'
            elif (nxt is not None and nxt['type'] == 'yolo'
                  and _can_fuse_yolo(i, readers)):
                anchors = _yolo_anchors(nxt)
                bbox = 5 + int(nxt['classes'])
                yolo_aux = _make_yolo_aux(anchors, int(nxt['classes']),
                                          params[i]['wmat'].shape[2])
                fuse = 'yolo'

            out = conv_layer(x, params[i], k, s, pad, leaky,
                             residual=residual, yolo_aux=yolo_aux,
                             inp_dim=inp_dim)
            outputs[i] = out
            real_c[i] = cout
            x = out
            if fuse == 'shortcut':
                outputs[i + 1] = out
                real_c[i + 1] = cout
                skip.add(i + 1)
            elif fuse == 'yolo':
                det = _assemble_detections(out, len(anchors), bbox)
                detections = det if detections is None else jnp.concatenate(
                    [detections, det], axis=1)
                outputs[i + 1] = det
                real_c[i + 1] = bbox
                skip.add(i + 1)

        elif t == 'upsample':
            factor = int(module['stride'])
            N, H, W, C = x.shape
            # TODO(synk): bilinear upsample stays in XLA (jax.image.resize,
            # half-pixel / align_corners=False); a Pallas version adds little
            # at these sizes and bit-exactness vs nn.Upsample is not guaranteed.
            x = jax.image.resize(x, (N, factor * H, factor * W, C),
                                 method='bilinear')
            outputs[i] = x
            real_c[i] = real_c[i - 1]

        elif t == 'shortcut':
            # Unfused fallback (producing conv was referenced elsewhere).
            frm = int(module['from'])
            x = shortcut_add(outputs[i - 1], outputs[i + frm])
            outputs[i] = x
            real_c[i] = real_c[i - 1]

        elif t == 'route':
            idxs = _resolve_route_layers(module, i)
            if len(idxs) == 1:
                x = outputs[idxs[0]]
                real_c[i] = real_c[idxs[0]]
            else:
                a = outputs[idxs[0]][..., :real_c[idxs[0]]]
                b = outputs[idxs[1]][..., :real_c[idxs[1]]]
                x = jnp.concatenate([a, b], axis=-1)     # channel concat (NHWC)
                real_c[i] = real_c[idxs[0]] + real_c[idxs[1]]
            outputs[i] = x

        elif t == 'yolo':
            # Unfused fallback decode.
            anchors = _yolo_anchors(module)
            num_classes = int(module['classes'])
            x = yolo_layer(x, anchors, num_classes, inp_dim)
            detections = x if detections is None else jnp.concatenate(
                [detections, x], axis=1)
            outputs[i] = x
            real_c[i] = 5 + num_classes

    return detections


if __name__ == "__main__":
    key = jax.random.PRNGKey(0)
    kp, kx = jax.random.split(key)
    params = build_params(BLOCKS, kp)
    x = jax.random.normal(kx, (2, 3, 16, 16), jnp.float32)   # NCHW input

    fwd = jax.jit(functools.partial(darknet_forward, BLOCKS))
    det = fwd(params, x)
    det = jax.block_until_ready(det)

    assert det.shape == (2, 8 * 8 * 3 + 16 * 16 * 3, 7), det.shape
    assert bool(jnp.all(jnp.isfinite(det)))
    print("KERNEL_OK")
</pallas_src>

<mosaic_0001>
module attributes {stable_mosaic.version = 11 : i64} {
  func.func @_conv_kernel(%arg0: memref<1x2x18x18x128xf32, #tpu.memory_space<vmem>>, %arg1: memref<9x128x128xf32, #tpu.memory_space<vmem>>, %arg2: memref<1x128xf32, #tpu.memory_space<vmem>>, %arg3: memref<2x16x16x128xf32, #tpu.memory_space<vmem>>) attributes {dimension_semantics = [], scalar_prefetch = 0 : i64, scratch_operands = 0 : i64, tpu.core_type = #tpu.core_type<tc>} {
    %c0 = arith.constant 0 : index
    %c0_0 = arith.constant 0 : index
    %c0_1 = arith.constant 0 : index
    %c0_2 = arith.constant 0 : index
    %c0_3 = arith.constant 0 : index
    %0 = vector.load %arg0[%c0, %c0_0, %c0_1, %c0_2, %c0_3] : memref<1x2x18x18x128xf32, #tpu.memory_space<vmem>>, vector<1x2x16x16x128xf32>
    %1 = vector.shape_cast %0 : vector<1x2x16x16x128xf32> to vector<2x16x16x128xf32>
    %2 = vector.shape_cast %1 : vector<2x16x16x128xf32> to vector<512x128xf32>
    %c0_4 = arith.constant 0 : index
    %c0_5 = arith.constant 0 : index
    %c0_6 = arith.constant 0 : index
    %3 = vector.load %arg1[%c0_4, %c0_5, %c0_6] : memref<9x128x128xf32, #tpu.memory_space<vmem>>, vector<1x128x128xf32>
    %4 = vector.shape_cast %3 : vector<1x128x128xf32> to vector<128x128xf32>
    %cst = arith.constant dense<0.000000e+00> : vector<512x128xf32>
    %5 = tpu.matmul %2, %4, %cst {dimension_numbers = #tpu.dot_dimension_numbers<[1], [0], [0], [1], [0, 0, 1, 1], [], []>} : vector<512x128xf32>, vector<128x128xf32>, vector<512x128xf32> -> vector<512x128xf32>
    %c0_7 = arith.constant 0 : index
    %c0_8 = arith.constant 0 : index
    %c0_9 = arith.constant 0 : index
    %c1 = arith.constant 1 : index
    %c0_10 = arith.constant 0 : index
    %6 = vector.load %arg0[%c0_7, %c0_8, %c0_9, %c1, %c0_10] : memref<1x2x18x18x128xf32, #tpu.memory_space<vmem>>, vector<1x2x16x16x128xf32>
    %7 = vector.shape_cast %6 : vector<1x2x16x16x128xf32> to vector<2x16x16x128xf32>
    %8 = vector.shape_cast %7 : vector<2x16x16x128xf32> to vector<512x128xf32>
    %c1_11 = arith.constant 1 : index
    %c0_12 = arith.constant 0 : index
    %c0_13 = arith.constant 0 : index
    %9 = vector.load %arg1[%c1_11, %c0_12, %c0_13] : memref<9x128x128xf32, #tpu.memory_space<vmem>>, vector<1x128x128xf32>
    %10 = vector.shape_cast %9 : vector<1x128x128xf32> to vector<128x128xf32>
    %cst_14 = arith.constant dense<0.000000e+00> : vector<512x128xf32>
    %11 = tpu.matmul %8, %10, %cst_14 {dimension_numbers = #tpu.dot_dimension_numbers<[1], [0], [0], [1], [0, 0, 1, 1], [], []>} : vector<512x128xf32>, vector<128x128xf32>, vector<512x128xf32> -> vector<512x128xf32>
    %12 = arith.addf %5, %11 : vector<512x128xf32>
    %c0_15 = arith.constant 0 : index
    %c0_16 = arith.constant 0 : index
    %c0_17 = arith.constant 0 : index
    %c2 = arith.constant 2 : index
    %c0_18 = arith.constant 0 : index
    %13 = vector.load %arg0[%c0_15, %c0_16, %c0_17, %c2, %c0_18] : memref<1x2x18x18x128xf32, #tpu.memory_space<vmem>>, vector<1x2x16x16x128xf32>
    %14 = vector.shape_cast %13 : vector<1x2x16x16x128xf32> to vector<2x16x16x128xf32>
    %15 = vector.shape_cast %14 : vector<2x16x16x128xf32> to vector<512x128xf32>
    %c2_19 = arith.constant 2 : index
    %c0_20 = arith.constant 0 : index
    %c0_21 = arith.constant 0 : index
    %16 = vector.load %arg1[%c2_19, %c0_20, %c0_21] : memref<9x128x128xf32, #tpu.memory_space<vmem>>, vector<1x128x128xf32>
    %17 = vector.shape_cast %16 : vector<1x128x128xf32> to vector<128x128xf32>
    %cst_22 = arith.constant dense<0.000000e+00> : vector<512x128xf32>
    %18 = tpu.matmul %15, %17, %cst_22 {dimension_numbers = #tpu.dot_dimension_numbers<[1], [0], [0], [1], [0, 0, 1, 1], [], []>} : vector<512x128xf32>, vector<128x128xf32>, vector<512x128xf32> -> vector<512x128xf32>
    %19 = arith.addf %12, %18 : vector<512x128xf32>
    %c0_23 = arith.constant 0 : index
    %c0_24 = arith.constant 0 : index
    %c1_25 = arith.constant 1 : index
    %c0_26 = arith.constant 0 : index
    %c0_27 = arith.constant 0 : index
    %20 = vector.load %arg0[%c0_23, %c0_24, %c1_25, %c0_26, %c0_27] : memref<1x2x18x18x128xf32, #tpu.memory_space<vmem>>, vector<1x2x16x16x128xf32>
    %21 = vector.shape_cast %20 : vector<1x2x16x16x128xf32> to vector<2x16x16x128xf32>
    %22 = vector.shape_cast %21 : vector<2x16x16x128xf32> to vector<512x128xf32>
    %c3 = arith.constant 3 : index
    %c0_28 = arith.constant 0 : index
    %c0_29 = arith.constant 0 : index
    %23 = vector.load %arg1[%c3, %c0_28, %c0_29] : memref<9x128x128xf32, #tpu.memory_space<vmem>>, vector<1x128x128xf32>
    %24 = vector.shape_cast %23 : vector<1x128x128xf32> to vector<128x128xf32>
    %cst_30 = arith.constant dense<0.000000e+00> : vector<512x128xf32>
    %25 = tpu.matmul %22, %24, %cst_30 {dimension_numbers = #tpu.dot_dimension_numbers<[1], [0], [0], [1], [0, 0, 1, 1], [], []>} : vector<512x128xf32>, vector<128x128xf32>, vector<512x128xf32> -> vector<512x128xf32>
    %26 = arith.addf %19, %25 : vector<512x128xf32>
    %c0_31 = arith.constant 0 : index
    %c0_32 = arith.constant 0 : index
    %c1_33 = arith.constant 1 : index
    %c1_34 = arith.constant 1 : index
    %c0_35 = arith.constant 0 : index
    %27 = vector.load %arg0[%c0_31, %c0_32, %c1_33, %c1_34, %c0_35] : memref<1x2x18x18x128xf32, #tpu.memory_space<vmem>>, vector<1x2x16x16x128xf32>
    %28 = vector.shape_cast %27 : vector<1x2x16x16x128xf32> to vector<2x16x16x128xf32>
    %29 = vector.shape_cast %28 : vector<2x16x16x128xf32> to vector<512x128xf32>
    %c4 = arith.constant 4 : index
    %c0_36 = arith.constant 0 : index
    %c0_37 = arith.constant 0 : index
    %30 = vector.load %arg1[%c4, %c0_36, %c0_37] : memref<9x128x128xf32, #tpu.memory_space<vmem>>, vector<1x128x128xf32>
    %31 = vector.shape_cast %30 : vector<1x128x128xf32> to vector<128x128xf32>
    %cst_38 = arith.constant dense<0.000000e+00> : vector<512x128xf32>
    %32 = tpu.matmul %29, %31, %cst_38 {dimension_numbers = #tpu.dot_dimension_numbers<[1], [0], [0], [1], [0, 0, 1, 1], [], []>} : vector<512x128xf32>, vector<128x128xf32>, vector<512x128xf32> -> vector<512x128xf32>
    %33 = arith.addf %26, %32 : vector<512x128xf32>
    %c0_39 = arith.constant 0 : index
    %c0_40 = arith.constant 0 : index
    %c1_41 = arith.constant 1 : index
    %c2_42 = arith.constant 2 : index
    %c0_43 = arith.constant 0 : index
    %34 = vector.load %arg0[%c0_39, %c0_40, %c1_41, %c2_42, %c0_43] : memref<1x2x18x18x128xf32, #tpu.memory_space<vmem>>, vector<1x2x16x16x128xf32>
    %35 = vector.shape_cast %34 : vector<1x2x16x16x128xf32> to vector<2x16x16x128xf32>
    %36 = vector.shape_cast %35 : vector<2x16x16x128xf32> to vector<512x128xf32>
    %c5 = arith.constant 5 : index
    %c0_44 = arith.constant 0 : index
    %c0_45 = arith.constant 0 : index
    %37 = vector.load %arg1[%c5, %c0_44, %c0_45] : memref<9x128x128xf32, #tpu.memory_space<vmem>>, vector<1x128x128xf32>
    %38 = vector.shape_cast %37 : vector<1x128x128xf32> to vector<128x128xf32>
    %cst_46 = arith.constant dense<0.000000e+00> : vector<512x128xf32>
    %39 = tpu.matmul %36, %38, %cst_46 {dimension_numbers = #tpu.dot_dimension_numbers<[1], [0], [0], [1], [0, 0, 1, 1], [], []>} : vector<512x128xf32>, vector<128x128xf32>, vector<512x128xf32> -> vector<512x128xf32>
    %40 = arith.addf %33, %39 : vector<512x128xf32>
    %c0_47 = arith.constant 0 : index
    %c0_48 = arith.constant 0 : index
    %c2_49 = arith.constant 2 : index
    %c0_50 = arith.constant 0 : index
    %c0_51 = arith.constant 0 : index
    %41 = vector.load %arg0[%c0_47, %c0_48, %c2_49, %c0_50, %c0_51] : memref<1x2x18x18x128xf32, #tpu.memory_space<vmem>>, vector<1x2x16x16x128xf32>
    %42 = vector.shape_cast %41 : vector<1x2x16x16x128xf32> to vector<2x16x16x128xf32>
    %43 = vector.shape_cast %42 : vector<2x16x16x128xf32> to vector<512x128xf32>
    %c6 = arith.constant 6 : index
    %c0_52 = arith.constant 0 : index
    %c0_53 = arith.constant 0 : index
    %44 = vector.load %arg1[%c6, %c0_52, %c0_53] : memref<9x128x128xf32, #tpu.memory_space<vmem>>, vector<1x128x128xf32>
    %45 = vector.shape_cast %44 : vector<1x128x128xf32> to vector<128x128xf32>
    %cst_54 = arith.constant dense<0.000000e+00> : vector<512x128xf32>
    %46 = tpu.matmul %43, %45, %cst_54 {dimension_numbers = #tpu.dot_dimension_numbers<[1], [0], [0], [1], [0, 0, 1, 1], [], []>} : vector<512x128xf32>, vector<128x128xf32>, vector<512x128xf32> -> vector<512x128xf32>
    %47 = arith.addf %40, %46 : vector<512x128xf32>
    %c0_55 = arith.constant 0 : index
    %c0_56 = arith.constant 0 : index
    %c2_57 = arith.constant 2 : index
    %c1_58 = arith.constant 1 : index
    %c0_59 = arith.constant 0 : index
    %48 = vector.load %arg0[%c0_55, %c0_56, %c2_57, %c1_58, %c0_59] : memref<1x2x18x18x128xf32, #tpu.memory_space<vmem>>, vector<1x2x16x16x128xf32>
    %49 = vector.shape_cast %48 : vector<1x2x16x16x128xf32> to vector<2x16x16x128xf32>
    %50 = vector.shape_cast %49 : vector<2x16x16x128xf32> to vector<512x128xf32>
    %c7 = arith.constant 7 : index
    %c0_60 = arith.constant 0 : index
    %c0_61 = arith.constant 0 : index
    %51 = vector.load %arg1[%c7, %c0_60, %c0_61] : memref<9x128x128xf32, #tpu.memory_space<vmem>>, vector<1x128x128xf32>
    %52 = vector.shape_cast %51 : vector<1x128x128xf32> to vector<128x128xf32>
    %cst_62 = arith.constant dense<0.000000e+00> : vector<512x128xf32>
    %53 = tpu.matmul %50, %52, %cst_62 {dimension_numbers = #tpu.dot_dimension_numbers<[1], [0], [0], [1], [0, 0, 1, 1], [], []>} : vector<512x128xf32>, vector<128x128xf32>, vector<512x128xf32> -> vector<512x128xf32>
    %54 = arith.addf %47, %53 : vector<512x128xf32>
    %c0_63 = arith.constant 0 : index
    %c0_64 = arith.constant 0 : index
    %c2_65 = arith.constant 2 : index
    %c2_66 = arith.constant 2 : index
    %c0_67 = arith.constant 0 : index
    %55 = vector.load %arg0[%c0_63, %c0_64, %c2_65, %c2_66, %c0_67] : memref<1x2x18x18x128xf32, #tpu.memory_space<vmem>>, vector<1x2x16x16x128xf32>
    %56 = vector.shape_cast %55 : vector<1x2x16x16x128xf32> to vector<2x16x16x128xf32>
    %57 = vector.shape_cast %56 : vector<2x16x16x128xf32> to vector<512x128xf32>
    %c8 = arith.constant 8 : index
    %c0_68 = arith.constant 0 : index
    %c0_69 = arith.constant 0 : index
    %58 = vector.load %arg1[%c8, %c0_68, %c0_69] : memref<9x128x128xf32, #tpu.memory_space<vmem>>, vector<1x128x128xf32>
    %59 = vector.shape_cast %58 : vector<1x128x128xf32> to vector<128x128xf32>
    %cst_70 = arith.constant dense<0.000000e+00> : vector<512x128xf32>
    %60 = tpu.matmul %57, %59, %cst_70 {dimension_numbers = #tpu.dot_dimension_numbers<[1], [0], [0], [1], [0, 0, 1, 1], [], []>} : vector<512x128xf32>, vector<128x128xf32>, vector<512x128xf32> -> vector<512x128xf32>
    %61 = arith.addf %54, %60 : vector<512x128xf32>
    %c0_71 = arith.constant 0 : index
    %c0_72 = arith.constant 0 : index
    %62 = vector.load %arg2[%c0_71, %c0_72] : memref<1x128xf32, #tpu.memory_space<vmem>>, vector<1x128xf32>
    %63 = vector.broadcast %62 : vector<1x128xf32> to vector<512x128xf32>
    %64 = arith.addf %61, %63 : vector<512x128xf32>
    %cst_73 = arith.constant 0.000000e+00 : f32
    %65 = vector.broadcast %cst_73 : f32 to vector<512x128xf32>
    %66 = arith.cmpf ogt, %64, %65 : vector<512x128xf32>
    %cst_74 = arith.constant 1.000000e-01 : f32
    %67 = vector.broadcast %cst_74 : f32 to vector<512x128xf32>
    %68 = arith.mulf %67, %64 : vector<512x128xf32>
    %69 = arith.select %66, %64, %68 : vector<512x128xi1>, vector<512x128xf32>
    %70 = vector.shape_cast %69 : vector<512x128xf32> to vector<2x16x16x128xf32>
    %c0_75 = arith.constant 0 : index
    %c0_76 = arith.constant 0 : index
    %c0_77 = arith.constant 0 : index
    %c0_78 = arith.constant 0 : index
    %71 = vector.load %arg3[%c0_75, %c0_76, %c0_77, %c0_78] : memref<2x16x16x128xf32, #tpu.memory_space<vmem>>, vector<2x16x16x128xf32>
    tpu.vector_store %arg3[%c0_75, %c0_76, %c0_77, %c0_78], %70 {strides = array<i32>} : memref<2x16x16x128xf32, #tpu.memory_space<vmem>>, vector<2x16x16x128xf32>,
    return
  }
}

module attributes {stable_mosaic.version = 11 : i64} {
  func.func @_conv_kernel(%arg0: memref<4x2x9x9x128xf32, #tpu.memory_space<vmem>>, %arg1: memref<9x128x128xf32, #tpu.memory_space<vmem>>, %arg2: memref<1x128xf32, #tpu.memory_space<vmem>>, %arg3: memref<2x8x8x128xf32, #tpu.memory_space<vmem>>) attributes {dimension_semantics = [], scalar_prefetch = 0 : i64, scratch_operands = 0 : i64, tpu.core_type = #tpu.core_type<tc>} {
    %c0 = arith.constant 0 : index
    %c0_0 = arith.constant 0 : index
    %c0_1 = arith.constant 0 : index
    %c0_2 = arith.constant 0 : index
    %c0_3 = arith.constant 0 : index
    %0 = vector.load %arg0[%c0, %c0_0, %c0_1, %c0_2, %c0_3] : memref<4x2x9x9x128xf32, #tpu.memory_space<vmem>>, vector<1x2x8x8x128xf32>
    %1 = vector.shape_cast %0 : vector<1x2x8x8x128xf32> to vector<2x8x8x128xf32>
    %2 = vector.shape_cast %1 : vector<2x8x8x128xf32> to vector<128x128xf32>
    %c0_4 = arith.constant 0 : index
    %c0_5 = arith.constant 0 : index
    %c0_6 = arith.constant 0 : index
    %3 = vector.load %arg1[%c0_4, %c0_5, %c0_6] : memref<9x128x128xf32, #tpu.memory_space<vmem>>, vector<1x128x128xf32>
    %4 = vector.shape_cast %3 : vector<1x128x128xf32> to vector<128x128xf32>
    %cst = arith.constant dense<0.000000e+00> : vector<128x128xf32>
    %5 = tpu.matmul %2, %4, %cst {dimension_numbers = #tpu.dot_dimension_numbers<[1], [0], [0], [1], [0, 0, 1, 1], [], []>} : vector<128x128xf32>, vector<128x128xf32>, vector<128x128xf32> -> vector<128x128xf32>
    %c1 = arith.constant 1 : index
    %c0_7 = arith.constant 0 : index
    %c0_8 = arith.constant 0 : index
    %c0_9 = arith.constant 0 : index
    %c0_10 = arith.constant 0 : index
    %6 = vector.load %arg0[%c1, %c0_7, %c0_8, %c0_9, %c0_10] : memref<4x2x9x9x128xf32, #tpu.memory_space<vmem>>, vector<1x2x8x8x128xf32>
    %7 = vector.shape_cast %6 : vector<1x2x8x8x128xf32> to vector<2x8x8x128xf32>
    %8 = vector.shape_cast %7 : vector<2x8x8x128xf32> to vector<128x128xf32>
    %c1_11 = arith.constant 1 : index
    %c0_12 = arith.constant 0 : index
    %c0_13 = arith.constant 0 : index
    %9 = vector.load %arg1[%c1_11, %c0_12, %c0_13] : memref<9x128x128xf32, #tpu.memory_space<vmem>>, vector<1x128x128xf32>
    %10 = vector.shape_cast %9 : vector<1x128x128xf32> to vector<128x128xf32>
    %cst_14 = arith.constant dense<0.000000e+00> : vector<128x128xf32>
    %11 = tpu.matmul %8, %10, %cst_14 {dimension_numbers = #tpu.dot_dimension_numbers<[1], [0], [0], [1], [0, 0, 1, 1], [], []>} : vector<128x128xf32>, vector<128x128xf32>, vector<128x128xf32> -> vector<128x128xf32>
    %12 = arith.addf %5, %11 : vector<128x128xf32>
    %c0_15 = arith.constant 0 : index
    %c0_16 = arith.constant 0 : index
    %c0_17 = arith.constant 0 : index
    %c1_18 = arith.constant 1 : index
    %c0_19 = arith.constant 0 : index
    %13 = vector.load %arg0[%c0_15, %c0_16, %c0_17, %c1_18, %c0_19] : memref<4x2x9x9x128xf32, #tpu.memory_space<vmem>>, vector<1x2x8x8x128xf32>
    %14 = vector.shape_cast %13 : vector<1x2x8x8x128xf32> to vector<2x8x8x128xf32>
    %15 = vector.shape_cast %14 : vector<2x8x8x128xf32> to vector<128x128xf32>
    %c2 = arith.constant 2 : index
    %c0_20 = arith.constant 0 : index
    %c0_21 = arith.constant 0 : index
    %16 = vector.load %arg1[%c2, %c0_20, %c0_21] : memref<9x128x128xf32, #tpu.memory_space<vmem>>, vector<1x128x128xf32>
    %17 = vector.shape_cast %16 : vector<1x128x128xf32> to vector<128x128xf32>
    %cst_22 = arith.constant dense<0.000000e+00> : vector<128x128xf32>
    %18 = tpu.matmul %15, %17, %cst_22 {dimension_numbers = #tpu.dot_dimension_numbers<[1], [0], [0], [1], [0, 0, 1, 1], [], []>} : vector<128x128xf32>, vector<128x128xf32>, vector<128x128xf32> -> vector<128x128xf32>
    %19 = arith.addf %12, %18 : vector<128x128xf32>
    %c2_23 = arith.constant 2 : index
    %c0_24 = arith.constant 0 : index
    %c0_25 = arith.constant 0 : index
    %c0_26 = arith.constant 0 : index
    %c0_27 = arith.constant 0 : index
    %20 = vector.load %arg0[%c2_23, %c0_24, %c0_25, %c0_26, %c0_27] : memref<4x2x9x9x128xf32, #tpu.memory_space<vmem>>, vector<1x2x8x8x128xf32>
    %21 = vector.shape_cast %20 : vector<1x2x8x8x128xf32> to vector<2x8x8x128xf32>
    %22 = vector.shape_cast %21 : vector<2x8x8x128xf32> to vector<128x128xf32>
    %c3 = arith.constant 3 : index
    %c0_28 = arith.constant 0 : index
    %c0_29 = arith.constant 0 : index
    %23 = vector.load %arg1[%c3, %c0_28, %c0_29] : memref<9x128x128xf32, #tpu.memory_space<vmem>>, vector<1x128x128xf32>
    %24 = vector.shape_cast %23 : vector<1x128x128xf32> to vector<128x128xf32>
    %cst_30 = arith.constant dense<0.000000e+00> : vector<128x128xf32>
    %25 = tpu.matmul %22, %24, %cst_30 {dimension_numbers = #tpu.dot_dimension_numbers<[1], [0], [0], [1], [0, 0, 1, 1], [], []>} : vector<128x128xf32>, vector<128x128xf32>, vector<128x128xf32> -> vector<128x128xf32>
    %26 = arith.addf %19, %25 : vector<128x128xf32>
    %c3_31 = arith.constant 3 : index
    %c0_32 = arith.constant 0 : index
    %c0_33 = arith.constant 0 : index
    %c0_34 = arith.constant 0 : index
    %c0_35 = arith.constant 0 : index
    %27 = vector.load %arg0[%c3_31, %c0_32, %c0_33, %c0_34, %c0_35] : memref<4x2x9x9x128xf32, #tpu.memory_space<vmem>>, vector<1x2x8x8x128xf32>
    %28 = vector.shape_cast %27 : vector<1x2x8x8x128xf32> to vector<2x8x8x128xf32>
    %29 = vector.shape_cast %28 : vector<2x8x8x128xf32> to vector<128x128xf32>
    %c4 = arith.constant 4 : index
    %c0_36 = arith.constant 0 : index
    %c0_37 = arith.constant 0 : index
    %30 = vector.load %arg1[%c4, %c0_36, %c0_37] : memref<9x128x128xf32, #tpu.memory_space<vmem>>, vector<1x128x128xf32>
    %31 = vector.shape_cast %30 : vector<1x128x128xf32> to vector<128x128xf32>
    %cst_38 = arith.constant dense<0.000000e+00> : vector<128x128xf32>
    %32 = tpu.matmul %29, %31, %cst_38 {dimension_numbers = #tpu.dot_dimension_numbers<[1], [0], [0], [1], [0, 0, 1, 1], [], []>} : vector<128x128xf32>, vector<128x128xf32>, vector<128x128xf32> -> vector<128x128xf32>
    %33 = arith.addf %26, %32 : vector<128x128xf32>
    %c2_39 = arith.constant 2 : index
    %c0_40 = arith.constant 0 : index
    %c0_41 = arith.constant 0 : index
    %c1_42 = arith.constant 1 : index
    %c0_43 = arith.constant 0 : index
    %34 = vector.load %arg0[%c2_39, %c0_40, %c0_41, %c1_42, %c0_43] : memref<4x2x9x9x128xf32, #tpu.memory_space<vmem>>, vector<1x2x8x8x128xf32>
    %35 = vector.shape_cast %34 : vector<1x2x8x8x128xf32> to vector<2x8x8x128xf32>
    %36 = vector.shape_cast %35 : vector<2x8x8x128xf32> to vector<128x128xf32>
    %c5 = arith.constant 5 : index
    %c0_44 = arith.constant 0 : index
    %c0_45 = arith.constant 0 : index
    %37 = vector.load %arg1[%c5, %c0_44, %c0_45] : memref<9x128x128xf32, #tpu.memory_space<vmem>>, vector<1x128x128xf32>
    %38 = vector.shape_cast %37 : vector<1x128x128xf32> to vector<128x128xf32>
    %cst_46 = arith.constant dense<0.000000e+00> : vector<128x128xf32>
    %39 = tpu.matmul %36, %38, %cst_46 {dimension_numbers = #tpu.dot_dimension_numbers<[1], [0], [0], [1], [0, 0, 1, 1], [], []>} : vector<128x128xf32>, vector<128x128xf32>, vector<128x128xf32> -> vector<128x128xf32>
    %40 = arith.addf %33, %39 : vector<128x128xf32>
    %c0_47 = arith.constant 0 : index
    %c0_48 = arith.constant 0 : index
    %c1_49 = arith.constant 1 : index
    %c0_50 = arith.constant 0 : index
    %c0_51 = arith.constant 0 : index
    %41 = vector.load %arg0[%c0_47, %c0_48, %c1_49, %c0_50, %c0_51] : memref<4x2x9x9x128xf32, #tpu.memory_space<vmem>>, vector<1x2x8x8x128xf32>
    %42 = vector.shape_cast %41 : vector<1x2x8x8x128xf32> to vector<2x8x8x128xf32>
    %43 = vector.shape_cast %42 : vector<2x8x8x128xf32> to vector<128x128xf32>
    %c6 = arith.constant 6 : index
    %c0_52 = arith.constant 0 : index
    %c0_53 = arith.constant 0 : index
    %44 = vector.load %arg1[%c6, %c0_52, %c0_53] : memref<9x128x128xf32, #tpu.memory_space<vmem>>, vector<1x128x128xf32>
    %45 = vector.shape_cast %44 : vector<1x128x128xf32> to vector<128x128xf32>
    %cst_54 = arith.constant dense<0.000000e+00> : vector<128x128xf32>
    %46 = tpu.matmul %43, %45, %cst_54 {dimension_numbers = #tpu.dot_dimension_numbers<[1], [0], [0], [1], [0, 0, 1, 1], [], []>} : vector<128x128xf32>, vector<128x128xf32>, vector<128x128xf32> -> vector<128x128xf32>
    %47 = arith.addf %40, %46 : vector<128x128xf32>
    %c1_55 = arith.constant 1 : index
    %c0_56 = arith.constant 0 : index
    %c1_57 = arith.constant 1 : index
    %c0_58 = arith.constant 0 : index
    %c0_59 = arith.constant 0 : index
    %48 = vector.load %arg0[%c1_55, %c0_56, %c1_57, %c0_58, %c0_59] : memref<4x2x9x9x128xf32, #tpu.memory_space<vmem>>, vector<1x2x8x8x128xf32>
    %49 = vector.shape_cast %48 : vector<1x2x8x8x128xf32> to vector<2x8x8x128xf32>
    %50 = vector.shape_cast %49 : vector<2x8x8x128xf32> to vector<128x128xf32>
    %c7 = arith.constant 7 : index
    %c0_60 = arith.constant 0 : index
    %c0_61 = arith.constant 0 : index
    %51 = vector.load %arg1[%c7, %c0_60, %c0_61] : memref<9x128x128xf32, #tpu.memory_space<vmem>>, vector<1x128x128xf32>
    %52 = vector.shape_cast %51 : vector<1x128x128xf32> to vector<128x128xf32>
    %cst_62 = arith.constant dense<0.000000e+00> : vector<128x128xf32>
    %53 = tpu.matmul %50, %52, %cst_62 {dimension_numbers = #tpu.dot_dimension_numbers<[1], [0], [0], [1], [0, 0, 1, 1], [], []>} : vector<128x128xf32>, vector<128x128xf32>, vector<128x128xf32> -> vector<128x128xf32>
    %54 = arith.addf %47, %53 : vector<128x128xf32>
    %c0_63 = arith.constant 0 : index
    %c0_64 = arith.constant 0 : index
    %c1_65 = arith.constant 1 : index
    %c1_66 = arith.constant 1 : index
    %c0_67 = arith.constant 0 : index
    %55 = vector.load %arg0[%c0_63, %c0_64, %c1_65, %c1_66, %c0_67] : memref<4x2x9x9x128xf32, #tpu.memory_space<vmem>>, vector<1x2x8x8x128xf32>
    %56 = vector.shape_cast %55 : vector<1x2x8x8x128xf32> to vector<2x8x8x128xf32>
    %57 = vector.shape_cast %56 : vector<2x8x8x128xf32> to vector<128x128xf32>
    %c8 = arith.constant 8 : index
    %c0_68 = arith.constant 0 : index
    %c0_69 = arith.constant 0 : index
    %58 = vector.load %arg1[%c8, %c0_68, %c0_69] : memref<9x128x128xf32, #tpu.memory_space<vmem>>, vector<1x128x128xf32>
    %59 = vector.shape_cast %58 : vector<1x128x128xf32> to vector<128x128xf32>
    %cst_70 = arith.constant dense<0.000000e+00> : vector<128x128xf32>
    %60 = tpu.matmul %57, %59, %cst_70 {dimension_numbers = #tpu.dot_dimension_numbers<[1], [0], [0], [1], [0, 0, 1, 1], [], []>} : vector<128x128xf32>, vector<128x128xf32>, vector<128x128xf32> -> vector<128x128xf32>
    %61 = arith.addf %54, %60 : vector<128x128xf32>
    %c0_71 = arith.constant 0 : index
    %c0_72 = arith.constant 0 : index
    %62 = vector.load %arg2[%c0_71, %c0_72] : memref<1x128xf32, #tpu.memory_space<vmem>>, vector<1x128xf32>
    %63 = vector.broadcast %62 : vector<1x128xf32> to vector<128x128xf32>
    %64 = arith.addf %61, %63 : vector<128x128xf32>
    %cst_73 = arith.constant 0.000000e+00 : f32
    %65 = vector.broadcast %cst_73 : f32 to vector<128x128xf32>
    %66 = arith.cmpf ogt, %64, %65 : vector<128x128xf32>
    %cst_74 = arith.constant 1.000000e-01 : f32
    %67 = vector.broadcast %cst_74 : f32 to vector<128x128xf32>
    %68 = arith.mulf %67, %64 : vector<128x128xf32>
    %69 = arith.select %66, %64, %68 : vector<128x128xi1>, vector<128x128xf32>
    %70 = vector.shape_cast %69 : vector<128x128xf32> to vector<2x8x8x128xf32>
    %c0_75 = arith.constant 0 : index
    %c0_76 = arith.constant 0 : index
    %c0_77 = arith.constant 0 : index
    %c0_78 = arith.constant 0 : index
    %71 = vector.load %arg3[%c0_75, %c0_76, %c0_77, %c0_78] : memref<2x8x8x128xf32, #tpu.memory_space<vmem>>, vector<2x8x8x128xf32>
    tpu.vector_store %arg3[%c0_75, %c0_76, %c0_77, %c0_78], %70 {strides = array<i32>} : memref<2x8x8x128xf32, #tpu.memory_space<vmem>>, vector<2x8x8x128xf32>,
    return
  }
}

module attributes {stable_mosaic.version = 11 : i64} {
  func.func @_conv_kernel(%arg0: memref<1x2x10x10x128xf32, #tpu.memory_space<vmem>>, %arg1: memref<9x128x128xf32, #tpu.memory_space<vmem>>, %arg2: memref<1x128xf32, #tpu.memory_space<vmem>>, %arg3: memref<2x8x8x128xf32, #tpu.memory_space<vmem>>, %arg4: memref<2x8x8x128xf32, #tpu.memory_space<vmem>>) attributes {dimension_semantics = [], scalar_prefetch = 0 : i64, scratch_operands = 0 : i64, tpu.core_type = #tpu.core_type<tc>} {
    %c0 = arith.constant 0 : index
    %c0_0 = arith.constant 0 : index
    %c0_1 = arith.constant 0 : index
    %c0_2 = arith.constant 0 : index
    %c0_3 = arith.constant 0 : index
    %0 = vector.load %arg0[%c0, %c0_0, %c0_1, %c0_2, %c0_3] : memref<1x2x10x10x128xf32, #tpu.memory_space<vmem>>, vector<1x2x8x8x128xf32>
    %1 = vector.shape_cast %0 : vector<1x2x8x8x128xf32> to vector<2x8x8x128xf32>
    %2 = vector.shape_cast %1 : vector<2x8x8x128xf32> to vector<128x128xf32>
    %c0_4 = arith.constant 0 : index
    %c0_5 = arith.constant 0 : index
    %c0_6 = arith.constant 0 : index
    %3 = vector.load %arg1[%c0_4, %c0_5, %c0_6] : memref<9x128x128xf32, #tpu.memory_space<vmem>>, vector<1x128x128xf32>
    %4 = vector.shape_cast %3 : vector<1x128x128xf32> to vector<128x128xf32>
    %cst = arith.constant dense<0.000000e+00> : vector<128x128xf32>
    %5 = tpu.matmul %2, %4, %cst {dimension_numbers = #tpu.dot_dimension_numbers<[1], [0], [0], [1], [0, 0, 1, 1], [], []>} : vector<128x128xf32>, vector<128x128xf32>, vector<128x128xf32> -> vector<128x128xf32>
    %c0_7 = arith.constant 0 : index
    %c0_8 = arith.constant 0 : index
    %c0_9 = arith.constant 0 : index
    %c1 = arith.constant 1 : index
    %c0_10 = arith.constant 0 : index
    %6 = vector.load %arg0[%c0_7, %c0_8, %c0_9, %c1, %c0_10] : memref<1x2x10x10x128xf32, #tpu.memory_space<vmem>>, vector<1x2x8x8x128xf32>
    %7 = vector.shape_cast %6 : vector<1x2x8x8x128xf32> to vector<2x8x8x128xf32>
    %8 = vector.shape_cast %7 : vector<2x8x8x128xf32> to vector<128x128xf32>
    %c1_11 = arith.constant 1 : index
    %c0_12 = arith.constant 0 : index
    %c0_13 = arith.constant 0 : index
    %9 = vector.load %arg1[%c1_11, %c0_12, %c0_13] : memref<9x128x128xf32, #tpu.memory_space<vmem>>, vector<1x128x128xf32>
    %10 = vector.shape_cast %9 : vector<1x128x128xf32> to vector<128x128xf32>
    %cst_14 = arith.constant dense<0.000000e+00> : vector<128x128xf32>
    %11 = tpu.matmul %8, %10, %cst_14 {dimension_numbers = #tpu.dot_dimension_numbers<[1], [0], [0], [1], [0, 0, 1, 1], [], []>} : vector<128x128xf32>, vector<128x128xf32>, vector<128x128xf32> -> vector<128x128xf32>
    %12 = arith.addf %5, %11 : vector<128x128xf32>
    %c0_15 = arith.constant 0 : index
    %c0_16 = arith.constant 0 : index
    %c0_17 = arith.constant 0 : index
    %c2 = arith.constant 2 : index
    %c0_18 = arith.constant 0 : index
    %13 = vector.load %arg0[%c0_15, %c0_16, %c0_17, %c2, %c0_18] : memref<1x2x10x10x128xf32, #tpu.memory_space<vmem>>, vector<1x2x8x8x128xf32>
    %14 = vector.shape_cast %13 : vector<1x2x8x8x128xf32> to vector<2x8x8x128xf32>
    %15 = vector.shape_cast %14 : vector<2x8x8x128xf32> to vector<128x128xf32>
    %c2_19 = arith.constant 2 : index
    %c0_20 = arith.constant 0 : index
    %c0_21 = arith.constant 0 : index
    %16 = vector.load %arg1[%c2_19, %c0_20, %c0_21] : memref<9x128x128xf32, #tpu.memory_space<vmem>>, vector<1x128x128xf32>
    %17 = vector.shape_cast %16 : vector<1x128x128xf32> to vector<128x128xf32>
    %cst_22 = arith.constant dense<0.000000e+00> : vector<128x128xf32>
    %18 = tpu.matmul %15, %17, %cst_22 {dimension_numbers = #tpu.dot_dimension_numbers<[1], [0], [0], [1], [0, 0, 1, 1], [], []>} : vector<128x128xf32>, vector<128x128xf32>, vector<128x128xf32> -> vector<128x128xf32>
    %19 = arith.addf %12, %18 : vector<128x128xf32>
    %c0_23 = arith.constant 0 : index
    %c0_24 = arith.constant 0 : index
    %c1_25 = arith.constant 1 : index
    %c0_26 = arith.constant 0 : index
    %c0_27 = arith.constant 0 : index
    %20 = vector.load %arg0[%c0_23, %c0_24, %c1_25, %c0_26, %c0_27] : memref<1x2x10x10x128xf32, #tpu.memory_space<vmem>>, vector<1x2x8x8x128xf32>
    %21 = vector.shape_cast %20 : vector<1x2x8x8x128xf32> to vector<2x8x8x128xf32>
    %22 = vector.shape_cast %21 : vector<2x8x8x128xf32> to vector<128x128xf32>
    %c3 = arith.constant 3 : index
    %c0_28 = arith.constant 0 : index
    %c0_29 = arith.constant 0 : index
    %23 = vector.load %arg1[%c3, %c0_28, %c0_29] : memref<9x128x128xf32, #tpu.memory_space<vmem>>, vector<1x128x128xf32>
    %24 = vector.shape_cast %23 : vector<1x128x128xf32> to vector<128x128xf32>
    %cst_30 = arith.constant dense<0.000000e+00> : vector<128x128xf32>
    %25 = tpu.matmul %22, %24, %cst_30 {dimension_numbers = #tpu.dot_dimension_numbers<[1], [0], [0], [1], [0, 0, 1, 1], [], []>} : vector<128x128xf32>, vector<128x128xf32>, vector<128x128xf32> -> vector<128x128xf32>
    %26 = arith.addf %19, %25 : vector<128x128xf32>
    %c0_31 = arith.constant 0 : index
    %c0_32 = arith.constant 0 : index
    %c1_33 = arith.constant 1 : index
    %c1_34 = arith.constant 1 : index
    %c0_35 = arith.constant 0 : index
    %27 = vector.load %arg0[%c0_31, %c0_32, %c1_33, %c1_34, %c0_35] : memref<1x2x10x10x128xf32, #tpu.memory_space<vmem>>, vector<1x2x8x8x128xf32>
    %28 = vector.shape_cast %27 : vector<1x2x8x8x128xf32> to vector<2x8x8x128xf32>
    %29 = vector.shape_cast %28 : vector<2x8x8x128xf32> to vector<128x128xf32>
    %c4 = arith.constant 4 : index
    %c0_36 = arith.constant 0 : index
    %c0_37 = arith.constant 0 : index
    %30 = vector.load %arg1[%c4, %c0_36, %c0_37] : memref<9x128x128xf32, #tpu.memory_space<vmem>>, vector<1x128x128xf32>
    %31 = vector.shape_cast %30 : vector<1x128x128xf32> to vector<128x128xf32>
    %cst_38 = arith.constant dense<0.000000e+00> : vector<128x128xf32>
    %32 = tpu.matmul %29, %31, %cst_38 {dimension_numbers = #tpu.dot_dimension_numbers<[1], [0], [0], [1], [0, 0, 1, 1], [], []>} : vector<128x128xf32>, vector<128x128xf32>, vector<128x128xf32> -> vector<128x128xf32>
    %33 = arith.addf %26, %32 : vector<128x128xf32>
    %c0_39 = arith.constant 0 : index
    %c0_40 = arith.constant 0 : index
    %c1_41 = arith.constant 1 : index
    %c2_42 = arith.constant 2 : index
    %c0_43 = arith.constant 0 : index
    %34 = vector.load %arg0[%c0_39, %c0_40, %c1_41, %c2_42, %c0_43] : memref<1x2x10x10x128xf32, #tpu.memory_space<vmem>>, vector<1x2x8x8x128xf32>
    %35 = vector.shape_cast %34 : vector<1x2x8x8x128xf32> to vector<2x8x8x128xf32>
    %36 = vector.shape_cast %35 : vector<2x8x8x128xf32> to vector<128x128xf32>
    %c5 = arith.constant 5 : index
    %c0_44 = arith.constant 0 : index
    %c0_45 = arith.constant 0 : index
    %37 = vector.load %arg1[%c5, %c0_44, %c0_45] : memref<9x128x128xf32, #tpu.memory_space<vmem>>, vector<1x128x128xf32>
    %38 = vector.shape_cast %37 : vector<1x128x128xf32> to vector<128x128xf32>
    %cst_46 = arith.constant dense<0.000000e+00> : vector<128x128xf32>
    %39 = tpu.matmul %36, %38, %cst_46 {dimension_numbers = #tpu.dot_dimension_numbers<[1], [0], [0], [1], [0, 0, 1, 1], [], []>} : vector<128x128xf32>, vector<128x128xf32>, vector<128x128xf32> -> vector<128x128xf32>
    %40 = arith.addf %33, %39 : vector<128x128xf32>
    %c0_47 = arith.constant 0 : index
    %c0_48 = arith.constant 0 : index
    %c2_49 = arith.constant 2 : index
    %c0_50 = arith.constant 0 : index
    %c0_51 = arith.constant 0 : index
    %41 = vector.load %arg0[%c0_47, %c0_48, %c2_49, %c0_50, %c0_51] : memref<1x2x10x10x128xf32, #tpu.memory_space<vmem>>, vector<1x2x8x8x128xf32>
    %42 = vector.shape_cast %41 : vector<1x2x8x8x128xf32> to vector<2x8x8x128xf32>
    %43 = vector.shape_cast %42 : vector<2x8x8x128xf32> to vector<128x128xf32>
    %c6 = arith.constant 6 : index
    %c0_52 = arith.constant 0 : index
    %c0_53 = arith.constant 0 : index
    %44 = vector.load %arg1[%c6, %c0_52, %c0_53] : memref<9x128x128xf32, #tpu.memory_space<vmem>>, vector<1x128x128xf32>
    %45 = vector.shape_cast %44 : vector<1x128x128xf32> to vector<128x128xf32>
    %cst_54 = arith.constant dense<0.000000e+00> : vector<128x128xf32>
    %46 = tpu.matmul %43, %45, %cst_54 {dimension_numbers = #tpu.dot_dimension_numbers<[1], [0], [0], [1], [0, 0, 1, 1], [], []>} : vector<128x128xf32>, vector<128x128xf32>, vector<128x128xf32> -> vector<128x128xf32>
    %47 = arith.addf %40, %46 : vector<128x128xf32>
    %c0_55 = arith.constant 0 : index
    %c0_56 = arith.constant 0 : index
    %c2_57 = arith.constant 2 : index
    %c1_58 = arith.constant 1 : index
    %c0_59 = arith.constant 0 : index
    %48 = vector.load %arg0[%c0_55, %c0_56, %c2_57, %c1_58, %c0_59] : memref<1x2x10x10x128xf32, #tpu.memory_space<vmem>>, vector<1x2x8x8x128xf32>
    %49 = vector.shape_cast %48 : vector<1x2x8x8x128xf32> to vector<2x8x8x128xf32>
    %50 = vector.shape_cast %49 : vector<2x8x8x128xf32> to vector<128x128xf32>
    %c7 = arith.constant 7 : index
    %c0_60 = arith.constant 0 : index
    %c0_61 = arith.constant 0 : index
    %51 = vector.load %arg1[%c7, %c0_60, %c0_61] : memref<9x128x128xf32, #tpu.memory_space<vmem>>, vector<1x128x128xf32>
    %52 = vector.shape_cast %51 : vector<1x128x128xf32> to vector<128x128xf32>
    %cst_62 = arith.constant dense<0.000000e+00> : vector<128x128xf32>
    %53 = tpu.matmul %50, %52, %cst_62 {dimension_numbers = #tpu.dot_dimension_numbers<[1], [0], [0], [1], [0, 0, 1, 1], [], []>} : vector<128x128xf32>, vector<128x128xf32>, vector<128x128xf32> -> vector<128x128xf32>
    %54 = arith.addf %47, %53 : vector<128x128xf32>
    %c0_63 = arith.constant 0 : index
    %c0_64 = arith.constant 0 : index
    %c2_65 = arith.constant 2 : index
    %c2_66 = arith.constant 2 : index
    %c0_67 = arith.constant 0 : index
    %55 = vector.load %arg0[%c0_63, %c0_64, %c2_65, %c2_66, %c0_67] : memref<1x2x10x10x128xf32, #tpu.memory_space<vmem>>, vector<1x2x8x8x128xf32>
    %56 = vector.shape_cast %55 : vector<1x2x8x8x128xf32> to vector<2x8x8x128xf32>
    %57 = vector.shape_cast %56 : vector<2x8x8x128xf32> to vector<128x128xf32>
    %c8 = arith.constant 8 : index
    %c0_68 = arith.constant 0 : index
    %c0_69 = arith.constant 0 : index
    %58 = vector.load %arg1[%c8, %c0_68, %c0_69] : memref<9x128x128xf32, #tpu.memory_space<vmem>>, vector<1x128x128xf32>
    %59 = vector.shape_cast %58 : vector<1x128x128xf32> to vector<128x128xf32>
    %cst_70 = arith.constant dense<0.000000e+00> : vector<128x128xf32>
    %60 = tpu.matmul %57, %59, %cst_70 {dimension_numbers = #tpu.dot_dimension_numbers<[1], [0], [0], [1], [0, 0, 1, 1], [], []>} : vector<128x128xf32>, vector<128x128xf32>, vector<128x128xf32> -> vector<128x128xf32>
    %61 = arith.addf %54, %60 : vector<128x128xf32>
    %c0_71 = arith.constant 0 : index
    %c0_72 = arith.constant 0 : index
    %62 = vector.load %arg2[%c0_71, %c0_72] : memref<1x128xf32, #tpu.memory_space<vmem>>, vector<1x128xf32>
    %63 = vector.broadcast %62 : vector<1x128xf32> to vector<128x128xf32>
    %64 = arith.addf %61, %63 : vector<128x128xf32>
    %cst_73 = arith.constant 0.000000e+00 : f32
    %65 = vector.broadcast %cst_73 : f32 to vector<128x128xf32>
    %66 = arith.cmpf ogt, %64, %65 : vector<128x128xf32>
    %cst_74 = arith.constant 1.000000e-01 : f32
    %67 = vector.broadcast %cst_74 : f32 to vector<128x128xf32>
    %68 = arith.mulf %67, %64 : vector<128x128xf32>
    %69 = arith.select %66, %64, %68 : vector<128x128xi1>, vector<128x128xf32>
    %70 = vector.shape_cast %69 : vector<128x128xf32> to vector<2x8x8x128xf32>
    %c0_75 = arith.constant 0 : index
    %c0_76 = arith.constant 0 : index
    %c0_77 = arith.constant 0 : index
    %c0_78 = arith.constant 0 : index
    %71 = vector.load %arg3[%c0_75, %c0_76, %c0_77, %c0_78] : memref<2x8x8x128xf32, #tpu.memory_space<vmem>>, vector<2x8x8x128xf32>
    %72 = arith.addf %70, %71 : vector<2x8x8x128xf32>
    %c0_79 = arith.constant 0 : index
    %c0_80 = arith.constant 0 : index
    %c0_81 = arith.constant 0 : index
    %c0_82 = arith.constant 0 : index
    %73 = vector.load %arg4[%c0_79, %c0_80, %c0_81, %c0_82] : memref<2x8x8x128xf32, #tpu.memory_space<vmem>>, vector<2x8x8x128xf32>
    tpu.vector_store %arg4[%c0_79, %c0_80, %c0_81, %c0_82], %72 {strides = array<i32>} : memref<2x8x8x128xf32, #tpu.memory_space<vmem>>, vector<2x8x8x128xf32>,
    return
  }
}

module attributes {stable_mosaic.version = 11 : i64} {
  func.func @_conv_kernel(%arg0: memref<1x2x8x8x128xf32, #tpu.memory_space<vmem>>, %arg1: memref<1x128x128xf32, #tpu.memory_space<vmem>>, %arg2: memref<1x128xf32, #tpu.memory_space<vmem>>, %arg3: memref<2x8x8x128xf32, #tpu.memory_space<vmem>>) attributes {dimension_semantics = [], scalar_prefetch = 0 : i64, scratch_operands = 0 : i64, tpu.core_type = #tpu.core_type<tc>} {
    %c0 = arith.constant 0 : index
    %c0_0 = arith.constant 0 : index
    %c0_1 = arith.constant 0 : index
    %c0_2 = arith.constant 0 : index
    %c0_3 = arith.constant 0 : index
    %0 = vector.load %arg0[%c0, %c0_0, %c0_1, %c0_2, %c0_3] : memref<1x2x8x8x128xf32, #tpu.memory_space<vmem>>, vector<1x2x8x8x128xf32>
    %1 = vector.shape_cast %0 : vector<1x2x8x8x128xf32> to vector<2x8x8x128xf32>
    %2 = vector.shape_cast %1 : vector<2x8x8x128xf32> to vector<128x128xf32>
    %c0_4 = arith.constant 0 : index
    %c0_5 = arith.constant 0 : index
    %c0_6 = arith.constant 0 : index
    %3 = vector.load %arg1[%c0_4, %c0_5, %c0_6] : memref<1x128x128xf32, #tpu.memory_space<vmem>>, vector<1x128x128xf32>
    %4 = vector.shape_cast %3 : vector<1x128x128xf32> to vector<128x128xf32>
    %cst = arith.constant dense<0.000000e+00> : vector<128x128xf32>
    %5 = tpu.matmul %2, %4, %cst {dimension_numbers = #tpu.dot_dimension_numbers<[1], [0], [0], [1], [0, 0, 1, 1], [], []>} : vector<128x128xf32>, vector<128x128xf32>, vector<128x128xf32> -> vector<128x128xf32>
    %c0_7 = arith.constant 0 : index
    %c0_8 = arith.constant 0 : index
    %6 = vector.load %arg2[%c0_7, %c0_8] : memref<1x128xf32, #tpu.memory_space<vmem>>, vector<1x128xf32>
    %7 = vector.broadcast %6 : vector<1x128xf32> to vector<128x128xf32>
    %8 = arith.addf %5, %7 : vector<128x128xf32>
    %cst_9 = arith.constant 0.000000e+00 : f32
    %9 = vector.broadcast %cst_9 : f32 to vector<128x128xf32>
    %10 = arith.cmpf ogt, %8, %9 : vector<128x128xf32>
    %cst_10 = arith.constant 1.000000e-01 : f32
    %11 = vector.broadcast %cst_10 : f32 to vector<128x128xf32>
    %12 = arith.mulf %11, %8 : vector<128x128xf32>
    %13 = arith.select %10, %8, %12 : vector<128x128xi1>, vector<128x128xf32>
    %14 = vector.shape_cast %13 : vector<128x128xf32> to vector<2x8x8x128xf32>
    %c0_11 = arith.constant 0 : index
    %c0_12 = arith.constant 0 : index
    %c0_13 = arith.constant 0 : index
    %c0_14 = arith.constant 0 : index
    %15 = vector.load %arg3[%c0_11, %c0_12, %c0_13, %c0_14] : memref<2x8x8x128xf32, #tpu.memory_space<vmem>>, vector<2x8x8x128xf32>
    tpu.vector_store %arg3[%c0_11, %c0_12, %c0_13, %c0_14], %14 {strides = array<i32>} : memref<2x8x8x128xf32, #tpu.memory_space<vmem>>, vector<2x8x8x128xf32>,
    return
  }
}

module attributes {stable_mosaic.version = 11 : i64} {
  func.func @_conv_kernel(%arg0: memref<1x2x16x16x128xf32, #tpu.memory_space<vmem>>, %arg1: memref<1x128x128xf32, #tpu.memory_space<vmem>>, %arg2: memref<1x128xf32, #tpu.memory_space<vmem>>, %arg3: memref<4x128xf32, #tpu.memory_space<vmem>>, %arg4: memref<2x16x16x128xf32, #tpu.memory_space<vmem>>) attributes {dimension_semantics = [], scalar_prefetch = 0 : i64, scratch_operands = 0 : i64, tpu.core_type = #tpu.core_type<tc>} {
    %c0 = arith.constant 0 : index
    %c0_0 = arith.constant 0 : index
    %c0_1 = arith.constant 0 : index
    %c0_2 = arith.constant 0 : index
    %c0_3 = arith.constant 0 : index
    %0 = vector.load %arg0[%c0, %c0_0, %c0_1, %c0_2, %c0_3] : memref<1x2x16x16x128xf32, #tpu.memory_space<vmem>>, vector<1x2x16x16x128xf32>
    %1 = vector.shape_cast %0 : vector<1x2x16x16x128xf32> to vector<2x16x16x128xf32>
    %2 = vector.shape_cast %1 : vector<2x16x16x128xf32> to vector<512x128xf32>
    %c0_4 = arith.constant 0 : index
    %c0_5 = arith.constant 0 : index
    %c0_6 = arith.constant 0 : index
    %3 = vector.load %arg1[%c0_4, %c0_5, %c0_6] : memref<1x128x128xf32, #tpu.memory_space<vmem>>, vector<1x128x128xf32>
    %4 = vector.shape_cast %3 : vector<1x128x128xf32> to vector<128x128xf32>
    %cst = arith.constant dense<0.000000e+00> : vector<512x128xf32>
    %5 = tpu.matmul %2, %4, %cst {dimension_numbers = #tpu.dot_dimension_numbers<[1], [0], [0], [1], [0, 0, 1, 1], [], []>} : vector<512x128xf32>, vector<128x128xf32>, vector<512x128xf32> -> vector<512x128xf32>
    %c0_7 = arith.constant 0 : index
    %c0_8 = arith.constant 0 : index
    %6 = vector.load %arg2[%c0_7, %c0_8] : memref<1x128xf32, #tpu.memory_space<vmem>>, vector<1x128xf32>
    %7 = vector.broadcast %6 : vector<1x128xf32> to vector<512x128xf32>
    %8 = arith.addf %5, %7 : vector<512x128xf32>
    %9 = vector.shape_cast %8 : vector<512x128xf32> to vector<2x16x16x128xf32>
    %c0_9 = arith.constant 0 : index
    %c0_10 = arith.constant 0 : index
    %10 = vector.load %arg3[%c0_9, %c0_10] : memref<4x128xf32, #tpu.memory_space<vmem>>, vector<1x128xf32>
    %c1 = arith.constant 1 : index
    %c0_11 = arith.constant 0 : index
    %11 = vector.load %arg3[%c1, %c0_11] : memref<4x128xf32, #tpu.memory_space<vmem>>, vector<1x128xf32>
    %c2 = arith.constant 2 : index
    %c0_12 = arith.constant 0 : index
    %12 = vector.load %arg3[%c2, %c0_12] : memref<4x128xf32, #tpu.memory_space<vmem>>, vector<1x128xf32>
    %c3 = arith.constant 3 : index
    %c0_13 = arith.constant 0 : index
    %13 = vector.load %arg3[%c3, %c0_13] : memref<4x128xf32, #tpu.memory_space<vmem>>, vector<1x128xf32>
    %14 = tpu.iota {dimensions = array<i32: 2>} : vector<2x16x16x128xi32>
    %15 = arith.sitofp %14 : vector<2x16x16x128xi32> to vector<2x16x16x128xf32>
    %16 = tpu.iota {dimensions = array<i32: 1>} : vector<2x16x16x128xi32>
    %17 = arith.sitofp %16 : vector<2x16x16x128xi32> to vector<2x16x16x128xf32>
    %18 = arith.negf %9 : vector<2x16x16x128xf32>
    %19 = math.exp %18 : vector<2x16x16x128xf32>
    %cst_14 = arith.constant 1.000000e+00 : f32
    %20 = vector.broadcast %cst_14 : f32 to vector<2x16x16x128xf32>
    %21 = arith.addf %20, %19 : vector<2x16x16x128xf32>
    %22 = arith.divf %20, %21 : vector<2x16x16x128xf32>
    %23 = arith.addf %10, %11 : vector<1x128xf32>
    %24 = vector.shape_cast %10 : vector<1x128xf32> to vector<1x1x1x128xf32>
    %25 = vector.broadcast %24 : vector<1x1x1x128xf32> to vector<2x16x16x128xf32>
    %26 = arith.mulf %25, %15 : vector<2x16x16x128xf32>
    %27 = arith.addf %22, %26 : vector<2x16x16x128xf32>
    %28 = vector.shape_cast %11 : vector<1x128xf32> to vector<1x1x1x128xf32>
    %29 = vector.broadcast %28 : vector<1x1x1x128xf32> to vector<2x16x16x128xf32>
    %30 = arith.mulf %29, %17 : vector<2x16x16x128xf32>
    %31 = arith.addf %27, %30 : vector<2x16x16x128xf32>
    %cst_15 = arith.constant 1.000000e+00 : f32
    %32 = vector.broadcast %cst_15 : f32 to vector<2x16x16x128xf32>
    %33 = arith.mulf %31, %32 : vector<2x16x16x128xf32>
    %34 = vector.shape_cast %12 : vector<1x128xf32> to vector<1x1x1x128xf32>
    %35 = vector.broadcast %34 : vector<1x1x1x128xf32> to vector<2x16x16x128xf32>
    %36 = arith.mulf %9, %35 : vector<2x16x16x128xf32>
    %37 = math.exp %36 : vector<2x16x16x128xf32>
    %38 = vector.shape_cast %13 : vector<1x128xf32> to vector<1x1x1x128xf32>
    %39 = vector.broadcast %38 : vector<1x1x1x128xf32> to vector<2x16x16x128xf32>
    %40 = arith.mulf %37, %39 : vector<2x16x16x128xf32>
    %41 = vector.shape_cast %23 : vector<1x128xf32> to vector<1x1x1x128xf32>
    %42 = vector.broadcast %41 : vector<1x1x1x128xf32> to vector<2x16x16x128xf32>
    %43 = arith.mulf %42, %33 : vector<2x16x16x128xf32>
    %44 = vector.shape_cast %12 : vector<1x128xf32> to vector<1x1x1x128xf32>
    %45 = vector.broadcast %44 : vector<1x1x1x128xf32> to vector<2x16x16x128xf32>
    %46 = arith.mulf %45, %40 : vector<2x16x16x128xf32>
    %47 = arith.addf %43, %46 : vector<2x16x16x128xf32>
    %cst_16 = arith.constant 1.000000e+00 : f32
    %48 = vector.broadcast %cst_16 : f32 to vector<1x128xf32>
    %49 = arith.subf %48, %23 : vector<1x128xf32>
    %50 = arith.subf %49, %12 : vector<1x128xf32>
    %51 = vector.shape_cast %50 : vector<1x128xf32> to vector<1x1x1x128xf32>
    %52 = vector.broadcast %51 : vector<1x1x1x128xf32> to vector<2x16x16x128xf32>
    %53 = arith.mulf %52, %22 : vector<2x16x16x128xf32>
    %54 = arith.addf %47, %53 : vector<2x16x16x128xf32>
    %c0_17 = arith.constant 0 : index
    %c0_18 = arith.constant 0 : index
    %c0_19 = arith.constant 0 : index
    %c0_20 = arith.constant 0 : index
    %55 = vector.load %arg4[%c0_17, %c0_18, %c0_19, %c0_20] : memref<2x16x16x128xf32, #tpu.memory_space<vmem>>, vector<2x16x16x128xf32>
    tpu.vector_store %arg4[%c0_17, %c0_18, %c0_19, %c0_20], %54 {strides = array<i32>} : memref<2x16x16x128xf32, #tpu.memory_space<vmem>>, vector<2x16x16x128xf32>,
    return
  }
}

module attributes {stable_mosaic.version = 11 : i64} {
  func.func @_conv_kernel(%arg0: memref<1x2x8x8x128xf32, #tpu.memory_space<vmem>>, %arg1: memref<1x128x128xf32, #tpu.memory_space<vmem>>, %arg2: memref<1x128xf32, #tpu.memory_space<vmem>>, %arg3: memref<4x128xf32, #tpu.memory_space<vmem>>, %arg4: memref<2x8x8x128xf32, #tpu.memory_space<vmem>>) attributes {dimension_semantics = [], scalar_prefetch = 0 : i64, scratch_operands = 0 : i64, tpu.core_type = #tpu.core_type<tc>} {
    %c0 = arith.constant 0 : index
    %c0_0 = arith.constant 0 : index
    %c0_1 = arith.constant 0 : index
    %c0_2 = arith.constant 0 : index
    %c0_3 = arith.constant 0 : index
    %0 = vector.load %arg0[%c0, %c0_0, %c0_1, %c0_2, %c0_3] : memref<1x2x8x8x128xf32, #tpu.memory_space<vmem>>, vector<1x2x8x8x128xf32>
    %1 = vector.shape_cast %0 : vector<1x2x8x8x128xf32> to vector<2x8x8x128xf32>
    %2 = vector.shape_cast %1 : vector<2x8x8x128xf32> to vector<128x128xf32>
    %c0_4 = arith.constant 0 : index
    %c0_5 = arith.constant 0 : index
    %c0_6 = arith.constant 0 : index
    %3 = vector.load %arg1[%c0_4, %c0_5, %c0_6] : memref<1x128x128xf32, #tpu.memory_space<vmem>>, vector<1x128x128xf32>
    %4 = vector.shape_cast %3 : vector<1x128x128xf32> to vector<128x128xf32>
    %cst = arith.constant dense<0.000000e+00> : vector<128x128xf32>
    %5 = tpu.matmul %2, %4, %cst {dimension_numbers = #tpu.dot_dimension_numbers<[1], [0], [0], [1], [0, 0, 1, 1], [], []>} : vector<128x128xf32>, vector<128x128xf32>, vector<128x128xf32> -> vector<128x128xf32>
    %c0_7 = arith.constant 0 : index
    %c0_8 = arith.constant 0 : index
    %6 = vector.load %arg2[%c0_7, %c0_8] : memref<1x128xf32, #tpu.memory_space<vmem>>, vector<1x128xf32>
    %7 = vector.broadcast %6 : vector<1x128xf32> to vector<128x128xf32>
    %8 = arith.addf %5, %7 : vector<128x128xf32>
    %9 = vector.shape_cast %8 : vector<128x128xf32> to vector<2x8x8x128xf32>
    %c0_9 = arith.constant 0 : index
    %c0_10 = arith.constant 0 : index
    %10 = vector.load %arg3[%c0_9, %c0_10] : memref<4x128xf32, #tpu.memory_space<vmem>>, vector<1x128xf32>
    %c1 = arith.constant 1 : index
    %c0_11 = arith.constant 0 : index
    %11 = vector.load %arg3[%c1, %c0_11] : memref<4x128xf32, #tpu.memory_space<vmem>>, vector<1x128xf32>
    %c2 = arith.constant 2 : index
    %c0_12 = arith.constant 0 : index
    %12 = vector.load %arg3[%c2, %c0_12] : memref<4x128xf32, #tpu.memory_space<vmem>>, vector<1x128xf32>
    %c3 = arith.constant 3 : index
    %c0_13 = arith.constant 0 : index
    %13 = vector.load %arg3[%c3, %c0_13] : memref<4x128xf32, #tpu.memory_space<vmem>>, vector<1x128xf32>
    %14 = tpu.iota {dimensions = array<i32: 2>} : vector<2x8x8x128xi32>
    %15 = arith.sitofp %14 : vector<2x8x8x128xi32> to vector<2x8x8x128xf32>
    %16 = tpu.iota {dimensions = array<i32: 1>} : vector<2x8x8x128xi32>
    %17 = arith.sitofp %16 : vector<2x8x8x128xi32> to vector<2x8x8x128xf32>
    %18 = arith.negf %9 : vector<2x8x8x128xf32>
    %19 = math.exp %18 : vector<2x8x8x128xf32>
    %cst_14 = arith.constant 1.000000e+00 : f32
    %20 = vector.broadcast %cst_14 : f32 to vector<2x8x8x128xf32>
    %21 = arith.addf %20, %19 : vector<2x8x8x128xf32>
    %22 = arith.divf %20, %21 : vector<2x8x8x128xf32>
    %23 = arith.addf %10, %11 : vector<1x128xf32>
    %24 = vector.shape_cast %10 : vector<1x128xf32> to vector<1x1x1x128xf32>
    %25 = vector.broadcast %24 : vector<1x1x1x128xf32> to vector<2x8x8x128xf32>
    %26 = arith.mulf %25, %15 : vector<2x8x8x128xf32>
    %27 = arith.addf %22, %26 : vector<2x8x8x128xf32>
    %28 = vector.shape_cast %11 : vector<1x128xf32> to vector<1x1x1x128xf32>
    %29 = vector.broadcast %28 : vector<1x1x1x128xf32> to vector<2x8x8x128xf32>
    %30 = arith.mulf %29, %17 : vector<2x8x8x128xf32>
    %31 = arith.addf %27, %30 : vector<2x8x8x128xf32>
    %cst_15 = arith.constant 2.000000e+00 : f32
    %32 = vector.broadcast %cst_15 : f32 to vector<2x8x8x128xf32>
    %33 = arith.mulf %31, %32 : vector<2x8x8x128xf32>
    %34 = vector.shape_cast %12 : vector<1x128xf32> to vector<1x1x1x128xf32>
    %35 = vector.broadcast %34 : vector<1x1x1x128xf32> to vector<2x8x8x128xf32>
    %36 = arith.mulf %9, %35 : vector<2x8x8x128xf32>
    %37 = math.exp %36 : vector<2x8x8x128xf32>
    %38 = vector.shape_cast %13 : vector<1x128xf32> to vector<1x1x1x128xf32>
    %39 = vector.broadcast %38 : vector<1x1x1x128xf32> to vector<2x8x8x128xf32>
    %40 = arith.mulf %37, %39 : vector<2x8x8x128xf32>
    %41 = vector.shape_cast %23 : vector<1x128xf32> to vector<1x1x1x128xf32>
    %42 = vector.broadcast %41 : vector<1x1x1x128xf32> to vector<2x8x8x128xf32>
    %43 = arith.mulf %42, %33 : vector<2x8x8x128xf32>
    %44 = vector.shape_cast %12 : vector<1x128xf32> to vector<1x1x1x128xf32>
    %45 = vector.broadcast %44 : vector<1x1x1x128xf32> to vector<2x8x8x128xf32>
    %46 = arith.mulf %45, %40 : vector<2x8x8x128xf32>
    %47 = arith.addf %43, %46 : vector<2x8x8x128xf32>
    %cst_16 = arith.constant 1.000000e+00 : f32
    %48 = vector.broadcast %cst_16 : f32 to vector<1x128xf32>
    %49 = arith.subf %48, %23 : vector<1x128xf32>
    %50 = arith.subf %49, %12 : vector<1x128xf32>
    %51 = vector.shape_cast %50 : vector<1x128xf32> to vector<1x1x1x128xf32>
    %52 = vector.broadcast %51 : vector<1x1x1x128xf32> to vector<2x8x8x128xf32>
    %53 = arith.mulf %52, %22 : vector<2x8x8x128xf32>
    %54 = arith.addf %47, %53 : vector<2x8x8x128xf32>
    %c0_17 = arith.constant 0 : index
    %c0_18 = arith.constant 0 : index
    %c0_19 = arith.constant 0 : index
    %c0_20 = arith.constant 0 : index
    %55 = vector.load %arg4[%c0_17, %c0_18, %c0_19, %c0_20] : memref<2x8x8x128xf32, #tpu.memory_space<vmem>>, vector<2x8x8x128xf32>
    tpu.vector_store %arg4[%c0_17, %c0_18, %c0_19, %c0_20], %54 {strides = array<i32>} : memref<2x8x8x128xf32, #tpu.memory_space<vmem>>, vector<2x8x8x128xf32>,
    return
  }
}

</mosaic_0001>

<llo_original>
// kernel: darknet_forward.10
$region0: #{darknet_forward.10}
  #allocation0 [shape = 'u32[]', space=smem, size = 0x4, offset = 0x4, fixed_abs, tag = 'smem constant byte address 0x4 - core index']
  #allocation1 [shape = 'u32[72,128]{1,0:T(1,128)}', space=vmem, size = 0x9000, scoped, tag = 'internal scratch']
  %s0 = inlined_call_operand.vmem [shape: f32[1,2,8,8,128], index: 0, kind: input, shape index: {}]
  %s1 = inlined_call_operand.vmem [shape: f32[1,128,128], index: 1, kind: input, shape index: {}]
  %s2 = inlined_call_operand.vmem [shape: f32[1,128], index: 2, kind: input, shape index: {}]
  %s3 = inlined_call_operand.vmem [shape: f32[2,8,8,128], index: 3, kind: output, shape index: {}]
  %s4 = sld [smem:[#allocation0]]
  $region22: #{darknet_forward.10} parent=0
    _
  %s6 = ssub.s32 1, %s4
  %s7 = scalar_select 0, %s6, %s4
  // Predicated region
  $region2: #{darknet_forward.10} parent=0 // pred_check
    _
  $region3: #{darknet_forward.10} parent=0 // pred_check_branch
    %9 = sbr.rel (0) target = $region5
  $region4: #{darknet_forward.10} parent=0 // pred_region
    _
  $region5: #{darknet_forward.10} parent=0 // pred_fallthru
    _
  // Predicated region
  $region6: #{darknet_forward.10} parent=0 // pred_check
    _
  $region7: #{darknet_forward.10} parent=0 // pred_check_branch
    %11 = sbr.rel (0) target = $region9
  $region8: #{darknet_forward.10} parent=0 // pred_region
    _
  $region9: #{darknet_forward.10} parent=0 // pred_fallthru
    _
  // Predicated region
  $region10: #{darknet_forward.10} parent=0 // pred_check
    _
  $region11: #{darknet_forward.10} parent=0 // pred_check_branch
    %13 = sbr.rel (0) target = $region13
  $region12: #{darknet_forward.10} parent=0 // pred_region
    _
  $region13: #{darknet_forward.10} parent=0 // pred_fallthru
    _
  %v14 = vld [vmem:[%s0] sm:$0xff]
  %v15 = vld [vmem:[%s0 + $0x8] sm:$0xff]
  %v16 = vld [vmem:[%s0 + $0x10] sm:$0xff]
  %v17 = vld [vmem:[%s0 + $0x18] sm:$0xff]
  %v18 = vld [vmem:[%s0 + $0x20] sm:$0xff]
  %v19 = vld [vmem:[%s0 + $0x28] sm:$0xff]
  %v20 = vld [vmem:[%s0 + $0x30] sm:$0xff]
  %v21 = vld [vmem:[%s0 + $0x38] sm:$0xff]
  %v22 = vld [vmem:[%s0 + $0x40] sm:$0xff]
  %v23 = vld [vmem:[%s0 + $0x48] sm:$0xff]
  %v24 = vld [vmem:[%s0 + $0x50] sm:$0xff]
  %v25 = vld [vmem:[%s0 + $0x58] sm:$0xff]
  %v26 = vld [vmem:[%s0 + $0x60] sm:$0xff]
  %v27 = vld [vmem:[%s0 + $0x68] sm:$0xff]
  %v28 = vld [vmem:[%s0 + $0x70] sm:$0xff]
  %v29 = vld [vmem:[%s0 + $0x78] sm:$0xff]
  %v30 = vld [vmem:[%s1] sm:$0xff]
  %v31 = vld [vmem:[%s1 + $0x8] sm:$0xff]
  %v32 = vld [vmem:[%s1 + $0x10] sm:$0xff]
  %v33 = vld [vmem:[%s1 + $0x18] sm:$0xff]
  %v34 = vld [vmem:[%s1 + $0x20] sm:$0xff]
  %v35 = vld [vmem:[%s1 + $0x28] sm:$0xff]
  %v36 = vld [vmem:[%s1 + $0x30] sm:$0xff]
  %v37 = vld [vmem:[%s1 + $0x38] sm:$0xff]
  %v38 = vld [vmem:[%s1 + $0x40] sm:$0xff]
  %v39 = vld [vmem:[%s1 + $0x48] sm:$0xff]
  %v40 = vld [vmem:[%s1 + $0x50] sm:$0xff]
  %v41 = vld [vmem:[%s1 + $0x58] sm:$0xff]
  %v42 = vld [vmem:[%s1 + $0x60] sm:$0xff]
  %v43 = vld [vmem:[%s1 + $0x68] sm:$0xff]
  %v44 = vld [vmem:[%s1 + $0x70] sm:$0xff]
  %v45 = vld [vmem:[%s1 + $0x78] sm:$0xff]
  %v46 = vld [vmem:[%s2] sm:$0x1]
  %v48 = vperm.slane %v46, 0
  %50 = vmatpush.msra.mxu0 %v45
  %51 = vmatpush.msra.mxu0 %v44
  %52 = vmatpush.msra.mxu0 %v43
  %53 = vmatpush.msra.mxu0 %v42
  %54 = vmatpush.msra.mxu0 %v41
  %55 = vmatpush.msra.mxu0 %v40
  %56 = vmatpush.msra.mxu0 %v39
  %57 = vmatpush.msra.mxu0 %v38
  %58 = vmatpush.msra.mxu0 %v37
  %59 = vmatpush.msra.mxu0 %v36
  %60 = vmatpush.msra.mxu0 %v35
  %61 = vmatpush.msra.mxu0 %v34
  %62 = vmatpush.msra.mxu0 %v33
  %63 = vmatpush.msra.mxu0 %v32
  %64 = vmatpush.msra.mxu0 %v31
  %65 = vmatpush.msra.mxu0 %v30
  %66 = vmatmul.f32.gmra.mxu0 %v14
  %v67 = vpop.f32.mrf.mxu0
  %v68 = vadd.f32 %v48, %v67
  %69 = vmatmul.f32.gmra.mxu0 %v15
  %v70 = vpop.f32.mrf.mxu0
  %v71 = vadd.f32 %v48, %v70
  %72 = vmatmul.f32.gmra.mxu0 %v16
  %v73 = vpop.f32.mrf.mxu0
  %v74 = vadd.f32 %v48, %v73
  %75 = vmatmul.f32.gmra.mxu0 %v17
  %v76 = vpop.f32.mrf.mxu0
  %v77 = vadd.f32 %v48, %v76
  %78 = vmatmul.f32.gmra.mxu0 %v18
  %v79 = vpop.f32.mrf.mxu0
  %v80 = vadd.f32 %v48, %v79
  %81 = vmatmul.f32.gmra.mxu0 %v19
  %v82 = vpop.f32.mrf.mxu0
  %v83 = vadd.f32 %v48, %v82
  %84 = vmatmul.f32.gmra.mxu0 %v20
  %v85 = vpop.f32.mrf.mxu0
  %v86 = vadd.f32 %v48, %v85
  %87 = vmatmul.f32.gmra.mxu0 %v21
  %v88 = vpop.f32.mrf.mxu0
  %v89 = vadd.f32 %v48, %v88
  %90 = vmatmul.f32.gmra.mxu0 %v22
  %v91 = vpop.f32.mrf.mxu0
  %v92 = vadd.f32 %v48, %v91
  %93 = vmatmul.f32.gmra.mxu0 %v23
  %v94 = vpop.f32.mrf.mxu0
  %v95 = vadd.f32 %v48, %v94
  %96 = vmatmul.f32.gmra.mxu0 %v24
  %v97 = vpop.f32.mrf.mxu0
  %v98 = vadd.f32 %v48, %v97
  %99 = vmatmul.f32.gmra.mxu0 %v25
  %v100 = vpop.f32.mrf.mxu0
  %v101 = vadd.f32 %v48, %v100
  %102 = vmatmul.f32.gmra.mxu0 %v26
  %v103 = vpop.f32.mrf.mxu0
  %v104 = vadd.f32 %v48, %v103
  %105 = vmatmul.f32.gmra.mxu0 %v27
  %v106 = vpop.f32.mrf.mxu0
  %v107 = vadd.f32 %v48, %v106
  %108 = vmatmul.f32.gmra.mxu0 %v28
  %v109 = vpop.f32.mrf.mxu0
  %v110 = vadd.f32 %v48, %v109
  %111 = vmatmul.f32.gmra.mxu0 %v29
  %v112 = vpop.f32.mrf.mxu0
  %v113 = vadd.f32 %v48, %v112
  %114 = vdwg.mxu0
  %vm115 = vcmp.gt.f32.partialorder %v68, 0.0
  %vm116 = vcmp.gt.f32.partialorder %v71, 0.0
  %vm117 = vcmp.gt.f32.partialorder %v74, 0.0
  %vm118 = vcmp.gt.f32.partialorder %v77, 0.0
  %vm119 = vcmp.gt.f32.partialorder %v80, 0.0
  %vm120 = vcmp.gt.f32.partialorder %v83, 0.0
  %vm121 = vcmp.gt.f32.partialorder %v86, 0.0
  %vm122 = vcmp.gt.f32.partialorder %v89, 0.0
  %vm123 = vcmp.gt.f32.partialorder %v92, 0.0
  %vm124 = vcmp.gt.f32.partialorder %v95, 0.0
  %vm125 = vcmp.gt.f32.partialorder %v98, 0.0
  %vm126 = vcmp.gt.f32.partialorder %v101, 0.0
  %vm127 = vcmp.gt.f32.partialorder %v104, 0.0
  %vm128 = vcmp.gt.f32.partialorder %v107, 0.0
  %vm129 = vcmp.gt.f32.partialorder %v110, 0.0
  %vm130 = vcmp.gt.f32.partialorder %v113, 0.0
  %v131 = vmul.f32 %v68, 0.1
  %v132 = vmul.f32 %v71, 0.1
  %v133 = vmul.f32 %v74, 0.1
  %v134 = vmul.f32 %v77, 0.1
  %v135 = vmul.f32 %v80, 0.1
  %v136 = vmul.f32 %v83, 0.1
  %v137 = vmul.f32 %v86, 0.1
  %v138 = vmul.f32 %v89, 0.1
  %v139 = vmul.f32 %v92, 0.1
  %v140 = vmul.f32 %v95, 0.1
  %v141 = vmul.f32 %v98, 0.1
  %v142 = vmul.f32 %v101, 0.1
  %v143 = vmul.f32 %v104, 0.1
  %v144 = vmul.f32 %v107, 0.1
  %v145 = vmul.f32 %v110, 0.1
  %v146 = vmul.f32 %v113, 0.1
  %v147 = vsel %vm115, %v68, %v131
  %v148 = vsel %vm116, %v71, %v132
  %v149 = vsel %vm117, %v74, %v133
  %v150 = vsel %vm118, %v77, %v134
  %v151 = vsel %vm119, %v80, %v135
  %v152 = vsel %vm120, %v83, %v136
  %v153 = vsel %vm121, %v86, %v137
  %v154 = vsel %vm122, %v89, %v138
  %v155 = vsel %vm123, %v92, %v139
  %v156 = vsel %vm124, %v95, %v140
  %v157 = vsel %vm125, %v98, %v141
  %v158 = vsel %vm126, %v101, %v142
  %v159 = vsel %vm127, %v104, %v143
  %v160 = vsel %vm128, %v107, %v144
  %v161 = vsel %vm129, %v110, %v145
  %v162 = vsel %vm130, %v113, %v146
  %163 = vst [vmem:[%s3] sm:$0xff] %v147
  %164 = vst [vmem:[%s3 + $0x8] sm:$0xff] %v148
  %165 = vst [vmem:[%s3 + $0x10] sm:$0xff] %v149
  %166 = vst [vmem:[%s3 + $0x18] sm:$0xff] %v150
  %167 = vst [vmem:[%s3 + $0x20] sm:$0xff] %v151
  %168 = vst [vmem:[%s3 + $0x28] sm:$0xff] %v152
  %169 = vst [vmem:[%s3 + $0x30] sm:$0xff] %v153
  %170 = vst [vmem:[%s3 + $0x38] sm:$0xff] %v154
  %171 = vst [vmem:[%s3 + $0x40] sm:$0xff] %v155
  %172 = vst [vmem:[%s3 + $0x48] sm:$0xff] %v156
  %173 = vst [vmem:[%s3 + $0x50] sm:$0xff] %v157
  %174 = vst [vmem:[%s3 + $0x58] sm:$0xff] %v158
  %175 = vst [vmem:[%s3 + $0x60] sm:$0xff] %v159
  %176 = vst [vmem:[%s3 + $0x68] sm:$0xff] %v160
  %177 = vst [vmem:[%s3 + $0x70] sm:$0xff] %v161
  %178 = vst [vmem:[%s3 + $0x78] sm:$0xff] %v162
  // Predicated region
  $region14: #{darknet_forward.10} parent=0 // pred_check
    _
  $region15: #{darknet_forward.10} parent=0 // pred_check_branch
    %180 = sbr.rel (0) target = $region17
  $region16: #{darknet_forward.10} parent=0 // pred_region
    _
  $region17: #{darknet_forward.10} parent=0 // pred_fallthru
    _
  // Predicated region
  $region18: #{darknet_forward.10} parent=0 // pred_check
    _
  $region19: #{darknet_forward.10} parent=0 // pred_check_branch
    %182 = sbr.rel (0) target = $region21
  $region20: #{darknet_forward.10} parent=0 // pred_region
    _
  $region21: #{darknet_forward.10} parent=0 // pred_fallthru
    _

// kernel: darknet_forward.7
$region0: #{darknet_forward.7}
  #allocation0 [shape = 'u32[]', space=smem, size = 0x4, offset = 0x4, fixed_abs, tag = 'smem constant byte address 0x4 - core index']
  #allocation1 [shape = 'u32[72,128]{1,0:T(1,128)}', space=vmem, size = 0x9000, scoped, tag = 'internal scratch']
  %s0 = inlined_call_operand.vmem [shape: f32[4,2,9,9,128], index: 0, kind: input, shape index: {}]
  %s1 = inlined_call_operand.vmem [shape: f32[9,128,128], index: 1, kind: input, shape index: {}]
  %s2 = inlined_call_operand.vmem [shape: f32[1,128], index: 2, kind: input, shape index: {}]
  %s3 = inlined_call_operand.vmem [shape: f32[2,8,8,128], index: 3, kind: output, shape index: {}]
  %s4 = sld [smem:[#allocation0]]
  $region22: #{darknet_forward.7} parent=0
    _
  %s6 = ssub.s32 1, %s4
  %s7 = scalar_select 0, %s6, %s4
  // Predicated region
  $region2: #{darknet_forward.7} parent=0 // pred_check
    _
  $region3: #{darknet_forward.7} parent=0 // pred_check_branch
    %9 = sbr.rel (0) target = $region5
  $region4: #{darknet_forward.7} parent=0 // pred_region
    _
  $region5: #{darknet_forward.7} parent=0 // pred_fallthru
    _
  // Predicated region
  $region6: #{darknet_forward.7} parent=0 // pred_check
    _
  $region7: #{darknet_forward.7} parent=0 // pred_check_branch
    %11 = sbr.rel (0) target = $region9
  $region8: #{darknet_forward.7} parent=0 // pred_region
    _
  $region9: #{darknet_forward.7} parent=0 // pred_fallthru
    _
  // Predicated region
  $region10: #{darknet_forward.7} parent=0 // pred_check
    _
  $region11: #{darknet_forward.7} parent=0 // pred_check_branch
    %13 = sbr.rel (0) target = $region13
  $region12: #{darknet_forward.7} parent=0 // pred_region
    _
  $region13: #{darknet_forward.7} parent=0 // pred_fallthru
    _
  %v14 = vld [vmem:[%s0] sm:$0xff]
  %v15 = vld [vmem:[%s0 + $0x10] sm:$0xff]
  %v16 = vld [vmem:[%s0 + $0x20] sm:$0xff]
  %v17 = vld [vmem:[%s0 + $0x30] sm:$0xff]
  %v18 = vld [vmem:[%s0 + $0x40] sm:$0xff]
  %v19 = vld [vmem:[%s0 + $0x50] sm:$0xff]
  %v20 = vld [vmem:[%s0 + $0x60] sm:$0xff]
  %v21 = vld [vmem:[%s0 + $0x70] sm:$0xff]
  %v22 = vld [vmem:[%s0 + $0x90] sm:$0xff]
  %v23 = vld [vmem:[%s0 + $0xa0] sm:$0xff]
  %v24 = vld [vmem:[%s0 + $0xb0] sm:$0xff]
  %v25 = vld [vmem:[%s0 + $0xc0] sm:$0xff]
  %v26 = vld [vmem:[%s0 + $0xd0] sm:$0xff]
  %v27 = vld [vmem:[%s0 + $0xe0] sm:$0xff]
  %v28 = vld [vmem:[%s0 + $0xf0] sm:$0xff]
  %v29 = vld [vmem:[%s0 + $0x100] sm:$0xff]
  %v30 = vld [vmem:[%s1] sm:$0xff]
  %v31 = vld [vmem:[%s1 + $0x8] sm:$0xff]
  %v32 = vld [vmem:[%s1 + $0x10] sm:$0xff]
  %v33 = vld [vmem:[%s1 + $0x18] sm:$0xff]
  %v34 = vld [vmem:[%s1 + $0x20] sm:$0xff]
  %v35 = vld [vmem:[%s1 + $0x28] sm:$0xff]
  %v36 = vld [vmem:[%s1 + $0x30] sm:$0xff]
  %v37 = vld [vmem:[%s1 + $0x38] sm:$0xff]
  %v38 = vld [vmem:[%s1 + $0x40] sm:$0xff]
  %v39 = vld [vmem:[%s1 + $0x48] sm:$0xff]
  %v40 = vld [vmem:[%s1 + $0x50] sm:$0xff]
  %v41 = vld [vmem:[%s1 + $0x58] sm:$0xff]
  %v42 = vld [vmem:[%s1 + $0x60] sm:$0xff]
  %v43 = vld [vmem:[%s1 + $0x68] sm:$0xff]
  %v44 = vld [vmem:[%s1 + $0x70] sm:$0xff]
  %v45 = vld [vmem:[%s1 + $0x78] sm:$0xff]
  %s46 = scalar_lea.vmem %s0, 288
  %v47 = vld [vmem:[%s46] sm:$0xff]
  %v48 = vld [vmem:[%s46 + $0x10] sm:$0xff]
  %v49 = vld [vmem:[%s46 + $0x20] sm:$0xff]
  %v50 = vld [vmem:[%s46 + $0x30] sm:$0xff]
  %v51 = vld [vmem:[%s46 + $0x40] sm:$0xff]
  %v52 = vld [vmem:[%s46 + $0x50] sm:$0xff]
  %v53 = vld [vmem:[%s46 + $0x60] sm:$0xff]
  %v54 = vld [vmem:[%s46 + $0x70] sm:$0xff]
  %v55 = vld [vmem:[%s46 + $0x90] sm:$0xff]
  %v56 = vld [vmem:[%s46 + $0xa0] sm:$0xff]
  %v57 = vld [vmem:[%s46 + $0xb0] sm:$0xff]
  %v58 = vld [vmem:[%s46 + $0xc0] sm:$0xff]
  %v59 = vld [vmem:[%s46 + $0xd0] sm:$0xff]
  %v60 = vld [vmem:[%s46 + $0xe0] sm:$0xff]
  %v61 = vld [vmem:[%s46 + $0xf0] sm:$0xff]
  %v62 = vld [vmem:[%s46 + $0x100] sm:$0xff]
  %s63 = scalar_lea.vmem %s1, 128
  %v64 = vld [vmem:[%s63] sm:$0xff]
  %v65 = vld [vmem:[%s63 + $0x8] sm:$0xff]
  %v66 = vld [vmem:[%s63 + $0x10] sm:$0xff]
  %v67 = vld [vmem:[%s63 + $0x18] sm:$0xff]
  %v68 = vld [vmem:[%s63 + $0x20] sm:$0xff]
  %v69 = vld [vmem:[%s63 + $0x28] sm:$0xff]
  %v70 = vld [vmem:[%s63 + $0x30] sm:$0xff]
  %v71 = vld [vmem:[%s63 + $0x38] sm:$0xff]
  %v72 = vld [vmem:[%s63 + $0x40] sm:$0xff]
  %v73 = vld [vmem:[%s63 + $0x48] sm:$0xff]
  %v74 = vld [vmem:[%s63 + $0x50] sm:$0xff]
  %v75 = vld [vmem:[%s63 + $0x58] sm:$0xff]
  %v76 = vld [vmem:[%s63 + $0x60] sm:$0xff]
  %v77 = vld [vmem:[%s63 + $0x68] sm:$0xff]
  %v78 = vld [vmem:[%s63 + $0x70] sm:$0xff]
  %v79 = vld [vmem:[%s63 + $0x78] sm:$0xff]
  %80 = vmatpush.msra.mxu0 %v79
  %81 = vmatpush.msra.mxu0 %v78
  %82 = vmatpush.msra.mxu0 %v77
  %83 = vmatpush.msra.mxu0 %v76
  %84 = vmatpush.msra.mxu0 %v75
  %85 = vmatpush.msra.mxu0 %v74
  %86 = vmatpush.msra.mxu0 %v73
  %87 = vmatpush.msra.mxu0 %v72
  %88 = vmatpush.msra.mxu0 %v71
  %89 = vmatpush.msra.mxu0 %v70
  %90 = vmatpush.msra.mxu0 %v69
  %91 = vmatpush.msra.mxu0 %v68
  %92 = vmatpush.msra.mxu0 %v67
  %93 = vmatpush.msra.mxu0 %v66
  %94 = vmatpush.msra.mxu0 %v65
  %95 = vmatpush.msra.mxu0 %v64
  %96 = vmatmul.f32.gmra.mxu0 %v47
  %v97 = vpop.f32.mrf.mxu0
  %v98 = vadd.f32 0.0, %v97
  %99 = vmatmul.f32.gmra.mxu0 %v48
  %v100 = vpop.f32.mrf.mxu0
  %v101 = vadd.f32 0.0, %v100
  %102 = vmatmul.f32.gmra.mxu0 %v49
  %v103 = vpop.f32.mrf.mxu0
  %v104 = vadd.f32 0.0, %v103
  %105 = vmatmul.f32.gmra.mxu0 %v50
  %v106 = vpop.f32.mrf.mxu0
  %v107 = vadd.f32 0.0, %v106
  %108 = vmatmul.f32.gmra.mxu0 %v51
  %v109 = vpop.f32.mrf.mxu0
  %v110 = vadd.f32 0.0, %v109
  %111 = vmatmul.f32.gmra.mxu0 %v52
  %v112 = vpop.f32.mrf.mxu0
  %v113 = vadd.f32 0.0, %v112
  %114 = vmatmul.f32.gmra.mxu0 %v53
  %v115 = vpop.f32.mrf.mxu0
  %v116 = vadd.f32 0.0, %v115
  %117 = vmatmul.f32.gmra.mxu0 %v54
  %v118 = vpop.f32.mrf.mxu0
  %v119 = vadd.f32 0.0, %v118
  %120 = vmatmul.f32.gmra.mxu0 %v55
  %v121 = vpop.f32.mrf.mxu0
  %v122 = vadd.f32 0.0, %v121
  %123 = vmatmul.f32.gmra.mxu0 %v56
  %v124 = vpop.f32.mrf.mxu0
  %v125 = vadd.f32 0.0, %v124
  %126 = vmatmul.f32.gmra.mxu0 %v57
  %v127 = vpop.f32.mrf.mxu0
  %v128 = vadd.f32 0.0, %v127
  %129 = vmatmul.f32.gmra.mxu0 %v58
  %v130 = vpop.f32.mrf.mxu0
  %v131 = vadd.f32 0.0, %v130
  %132 = vmatmul.f32.gmra.mxu0 %v59
  %v133 = vpop.f32.mrf.mxu0
  %v134 = vadd.f32 0.0, %v133
  %135 = vmatmul.f32.gmra.mxu0 %v60
  %v136 = vpop.f32.mrf.mxu0
  %v137 = vadd.f32 0.0, %v136
  %138 = vmatmul.f32.gmra.mxu0 %v61
  %v139 = vpop.f32.mrf.mxu0
  %v140 = vadd.f32 0.0, %v139
  %141 = vmatmul.f32.gmra.mxu0 %v62
  %v142 = vpop.f32.mrf.mxu0
  %v143 = vadd.f32 0.0, %v142
  %144 = vdwg.mxu0
  %145 = vmatpush.msra.mxu0 %v45
  %146 = vmatpush.msra.mxu0 %v44
  %147 = vmatpush.msra.mxu0 %v43
  %148 = vmatpush.msra.mxu0 %v42
  %149 = vmatpush.msra.mxu0 %v41
  %150 = vmatpush.msra.mxu0 %v40
  %151 = vmatpush.msra.mxu0 %v39
  %152 = vmatpush.msra.mxu0 %v38
  %153 = vmatpush.msra.mxu0 %v37
  %154 = vmatpush.msra.mxu0 %v36
  %155 = vmatpush.msra.mxu0 %v35
  %156 = vmatpush.msra.mxu0 %v34
  %157 = vmatpush.msra.mxu0 %v33
  %158 = vmatpush.msra.mxu0 %v32
  %159 = vmatpush.msra.mxu0 %v31
  %160 = vmatpush.msra.mxu0 %v30
  %161 = vmatmul.f32.gmra.mxu0 %v14
  %v162 = vpop.f32.mrf.mxu0
  %v163 = vadd.f32 %v98, %v162
  %164 = vmatmul.f32.gmra.mxu0 %v15
  %v165 = vpop.f32.mrf.mxu0
  %v166 = vadd.f32 %v101, %v165
  %167 = vmatmul.f32.gmra.mxu0 %v16
  %v168 = vpop.f32.mrf.mxu0
  %v169 = vadd.f32 %v104, %v168
  %170 = vmatmul.f32.gmra.mxu0 %v17
  %v171 = vpop.f32.mrf.mxu0
  %v172 = vadd.f32 %v107, %v171
  %173 = vmatmul.f32.gmra.mxu0 %v18
  %v174 = vpop.f32.mrf.mxu0
  %v175 = vadd.f32 %v110, %v174
  %176 = vmatmul.f32.gmra.mxu0 %v19
  %v177 = vpop.f32.mrf.mxu0
  %v178 = vadd.f32 %v113, %v177
  %179 = vmatmul.f32.gmra.mxu0 %v20
  %v180 = vpop.f32.mrf.mxu0
  %v181 = vadd.f32 %v116, %v180
  %182 = vmatmul.f32.gmra.mxu0 %v21
  %v183 = vpop.f32.mrf.mxu0
  %v184 = vadd.f32 %v119, %v183
  %185 = vmatmul.f32.gmra.mxu0 %v22
  %v186 = vpop.f32.mrf.mxu0
  %v187 = vadd.f32 %v122, %v186
  %188 = vmatmul.f32.gmra.mxu0 %v23
  %v189 = vpop.f32.mrf.mxu0
  %v190 = vadd.f32 %v125, %v189
  %191 = vmatmul.f32.gmra.mxu0 %v24
  %v192 = vpop.f32.mrf.mxu0
  %v193 = vadd.f32 %v128, %v192
  %194 = vmatmul.f32.gmra.mxu0 %v25
  %v195 = vpop.f32.mrf.mxu0
  %v196 = vadd.f32 %v131, %v195
  %197 = vmatmul.f32.gmra.mxu0 %v26
  %v198 = vpop.f32.mrf.mxu0
  %v199 = vadd.f32 %v134, %v198
  %200 = vmatmul.f32.gmra.mxu0 %v27
  %v201 = vpop.f32.mrf.mxu0
  %v202 = vadd.f32 %v137, %v201
  %203 = vmatmul.f32.gmra.mxu0 %v28
  %v204 = vpop.f32.mrf.mxu0
  %v205 = vadd.f32 %v140, %v204
  %206 = vmatmul.f32.gmra.mxu0 %v29
  %v207 = vpop.f32.mrf.mxu0
  %v208 = vadd.f32 %v143, %v207
  %209 = vdwg.mxu0
  %v210 = vld [vmem:[%s0 + $0x1] sm:$0xff]
  %v211 = vld [vmem:[%s0 + $0x11] sm:$0xff]
  %v212 = vld [vmem:[%s0 + $0x21] sm:$0xff]
  %v213 = vld [vmem:[%s0 + $0x31] sm:$0xff]
  %v214 = vld [vmem:[%s0 + $0x41] sm:$0xff]
  %v215 = vld [vmem:[%s0 + $0x51] sm:$0xff]
  %v216 = vld [vmem:[%s0 + $0x61] sm:$0xff]
  %v217 = vld [vmem:[%s0 + $0x71] sm:$0xff]
  %v218 = vld [vmem:[%s0 + $0x91] sm:$0xff]
  %v219 = vld [vmem:[%s0 + $0xa1] sm:$0xff]
  %v220 = vld [vmem:[%s0 + $0xb1] sm:$0xff]
  %v221 = vld [vmem:[%s0 + $0xc1] sm:$0xff]
  %v222 = vld [vmem:[%s0 + $0xd1] sm:$0xff]
  %v223 = vld [vmem:[%s0 + $0xe1] sm:$0xff]
  %v224 = vld [vmem:[%s0 + $0xf1] sm:$0xff]
  %v225 = vld [vmem:[%s0 + $0x101] sm:$0xff]
  %s226 = scalar_lea.vmem %s1, 256
  %v227 = vld [vmem:[%s226] sm:$0xff]
  %v228 = vld [vmem:[%s226 + $0x8] sm:$0xff]
  %v229 = vld [vmem:[%s226 + $0x10] sm:$0xff]
  %v230 = vld [vmem:[%s226 + $0x18] sm:$0xff]
  %v231 = vld [vmem:[%s226 + $0x20] sm:$0xff]
  %v232 = vld [vmem:[%s226 + $0x28] sm:$0xff]
  %v233 = vld [vmem:[%s226 + $0x30] sm:$0xff]
  %v234 = vld [vmem:[%s226 + $0x38] sm:$0xff]
  %v235 = vld [vmem:[%s226 + $0x40] sm:$0xff]
  %v236 = vld [vmem:[%s226 + $0x48] sm:$0xff]
  %v237 = vld [vmem:[%s226 + $0x50] sm:$0xff]
  %v238 = vld [vmem:[%s226 + $0x58] sm:$0xff]
  %v239 = vld [vmem:[%s226 + $0x60] sm:$0xff]
  %v240 = vld [vmem:[%s226 + $0x68] sm:$0xff]
  %v241 = vld [vmem:[%s226 + $0x70] sm:$0xff]
  %v242 = vld [vmem:[%s226 + $0x78] sm:$0xff]
  %243 = vmatpush.msra.mxu0 %v242
  %244 = vmatpush.msra.mxu0 %v241
  %245 = vmatpush.msra.mxu0 %v240
  %246 = vmatpush.msra.mxu0 %v239
  %247 = vmatpush.msra.mxu0 %v238
  %248 = vmatpush.msra.mxu0 %v237
  %249 = vmatpush.msra.mxu0 %v236
  %250 = vmatpush.msra.mxu0 %v235
  %251 = vmatpush.msra.mxu0 %v234
  %252 = vmatpush.msra.mxu0 %v233
  %253 = vmatpush.msra.mxu0 %v232
  %254 = vmatpush.msra.mxu0 %v231
  %255 = vmatpush.msra.mxu0 %v230
  %256 = vmatpush.msra.mxu0 %v229
  %257 = vmatpush.msra.mxu0 %v228
  %258 = vmatpush.msra.mxu0 %v227
  %259 = vmatmul.f32.gmra.mxu0 %v210
  %v260 = vpop.f32.mrf.mxu0
  %v261 = vadd.f32 0.0, %v260
  %262 = vmatmul.f32.gmra.mxu0 %v211
  %v263 = vpop.f32.mrf.mxu0
  %v264 = vadd.f32 0.0, %v263
  %265 = vmatmul.f32.gmra.mxu0 %v212
  %v266 = vpop.f32.mrf.mxu0
  %v267 = vadd.f32 0.0, %v266
  %268 = vmatmul.f32.gmra.mxu0 %v213
  %v269 = vpop.f32.mrf.mxu0
  %v270 = vadd.f32 0.0, %v269
  %271 = vmatmul.f32.gmra.mxu0 %v214
  %v272 = vpop.f32.mrf.mxu0
  %v273 = vadd.f32 0.0, %v272
  %274 = vmatmul.f32.gmra.mxu0 %v215
  %v275 = vpop.f32.mrf.mxu0
  %v276 = vadd.f32 0.0, %v275
  %277 = vmatmul.f32.gmra.mxu0 %v216
  %v278 = vpop.f32.mrf.mxu0
  %v279 = vadd.f32 0.0, %v278
  %280 = vmatmul.f32.gmra.mxu0 %v217
  %v281 = vpop.f32.mrf.mxu0
  %v282 = vadd.f32 0.0, %v281
  %283 = vmatmul.f32.gmra.mxu0 %v218
  %v284 = vpop.f32.mrf.mxu0
  %v285 = vadd.f32 0.0, %v284
  %286 = vmatmul.f32.gmra.mxu0 %v219
  %v287 = vpop.f32.mrf.mxu0
  %v288 = vadd.f32 0.0, %v287
  %289 = vmatmul.f32.gmra.mxu0 %v220
  %v290 = vpop.f32.mrf.mxu0
  %v291 = vadd.f32 0.0, %v290
  %292 = vmatmul.f32.gmra.mxu0 %v221
  %v293 = vpop.f32.mrf.mxu0
  %v294 = vadd.f32 0.0, %v293
  %295 = vmatmul.f32.gmra.mxu0 %v222
  %v296 = vpop.f32.mrf.mxu0
  %v297 = vadd.f32 0.0, %v296
  %298 = vmatmul.f32.gmra.mxu0 %v223
  %v299 = vpop.f32.mrf.mxu0
  %v300 = vadd.f32 0.0, %v299
  %301 = vmatmul.f32.gmra.mxu0 %v224
  %v302 = vpop.f32.mrf.mxu0
  %v303 = vadd.f32 0.0, %v302
  %304 = vmatmul.f32.gmra.mxu0 %v225
  %v305 = vpop.f32.mrf.mxu0
  %v306 = vadd.f32 0.0, %v305
  %307 = vdwg.mxu0
  %v308 = vadd.f32 %v163, %v261
  %v309 = vadd.f32 %v166, %v264
  %v310 = vadd.f32 %v169, %v267
  %v311 = vadd.f32 %v172, %v270
  %v312 = vadd.f32 %v175, %v273
  %v313 = vadd.f32 %v178, %v276
  %v314 = vadd.f32 %v181, %v279
  %v315 = vadd.f32 %v184, %v282
  %v316 = vadd.f32 %v187, %v285
  %v317 = vadd.f32 %v190, %v288
  %v318 = vadd.f32 %v193, %v291
  %v319 = vadd.f32 %v196, %v294
  %v320 = vadd.f32 %v199, %v297
  %v321 = vadd.f32 %v202, %v300
  %v322 = vadd.f32 %v205, %v303
  %v323 = vadd.f32 %v208, %v306
  %s324 = scalar_lea.vmem %s0, 576
  %v325 = vld [vmem:[%s324] sm:$0xff]
  %v326 = vld [vmem:[%s324 + $0x10] sm:$0xff]
  %v327 = vld [vmem:[%s324 + $0x20] sm:$0xff]
  %v328 = vld [vmem:[%s324 + $0x30] sm:$0xff]
  %v329 = vld [vmem:[%s324 + $0x40] sm:$0xff]
  %v330 = vld [vmem:[%s324 + $0x50] sm:$0xff]
  %v331 = vld [vmem:[%s324 + $0x60] sm:$0xff]
  %v332 = vld [vmem:[%s324 + $0x70] sm:$0xff]
  %v333 = vld [vmem:[%s324 + $0x90] sm:$0xff]
  %v334 = vld [vmem:[%s324 + $0xa0] sm:$0xff]
  %v335 = vld [vmem:[%s324 + $0xb0] sm:$0xff]
  %v336 = vld [vmem:[%s324 + $0xc0] sm:$0xff]
  %v337 = vld [vmem:[%s324 + $0xd0] sm:$0xff]
  %v338 = vld [vmem:[%s324 + $0xe0] sm:$0xff]
  %v339 = vld [vmem:[%s324 + $0xf0] sm:$0xff]
  %v340 = vld [vmem:[%s324 + $0x100] sm:$0xff]
  %s341 = scalar_lea.vmem %s1, 384
  %v342 = vld [vmem:[%s341] sm:$0xff]
  %v343 = vld [vmem:[%s341 + $0x8] sm:$0xff]
  %v344 = vld [vmem:[%s341 + $0x10] sm:$0xff]
  %v345 = vld [vmem:[%s341 + $0x18] sm:$0xff]
  %v346 = vld [vmem:[%s341 + $0x20] sm:$0xff]
  %v347 = vld [vmem:[%s341 + $0x28] sm:$0xff]
  %v348 = vld [vmem:[%s341 + $0x30] sm:$0xff]
  %v349 = vld [vmem:[%s341 + $0x38] sm:$0xff]
  %v350 = vld [vmem:[%s341 + $0x40] sm:$0xff]
  %v351 = vld [vmem:[%s341 + $0x48] sm:$0xff]
  %v352 = vld [vmem:[%s341 + $0x50] sm:$0xff]
  %v353 = vld [vmem:[%s341 + $0x58] sm:$0xff]
  %v354 = vld [vmem:[%s341 + $0x60] sm:$0xff]
  %v355 = vld [vmem:[%s341 + $0x68] sm:$0xff]
  %v356 = vld [vmem:[%s341 + $0x70] sm:$0xff]
  %v357 = vld [vmem:[%s341 + $0x78] sm:$0xff]
  %358 = vmatpush.msra.mxu0 %v357
  %359 = vmatpush.msra.mxu0 %v356
  %360 = vmatpush.msra.mxu0 %v355
  %361 = vmatpush.msra.mxu0 %v354
  %362 = vmatpush.msra.mxu0 %v353
  %363 = vmatpush.msra.mxu0 %v352
  %364 = vmatpush.msra.mxu0 %v351
  %365 = vmatpush.msra.mxu0 %v350
  %366 = vmatpush.msra.mxu0 %v349
  %367 = vmatpush.msra.mxu0 %v348
  %368 = vmatpush.msra.mxu0 %v347
  %369 = vmatpush.msra.mxu0 %v346
  %370 = vmatpush.msra.mxu0 %v345
  %371 = vmatpush.msra.mxu0 %v344
  %372 = vmatpush.msra.mxu0 %v343
  %373 = vmatpush.msra.mxu0 %v342
  %374 = vmatmul.f32.gmra.mxu0 %v325
  %v375 = vpop.f32.mrf.mxu0
  %v376 = vadd.f32 0.0, %v375
  %377 = vmatmul.f32.gmra.mxu0 %v326
  %v378 = vpop.f32.mrf.mxu0
  %v379 = vadd.f32 0.0, %v378
  %380 = vmatmul.f32.gmra.mxu0 %v327
  %v381 = vpop.f32.mrf.mxu0
  %v382 = vadd.f32 0.0, %v381
  %383 = vmatmul.f32.gmra.mxu0 %v328
  %v384 = vpop.f32.mrf.mxu0
  %v385 = vadd.f32 0.0, %v384
  %386 = vmatmul.f32.gmra.mxu0 %v329
  %v387 = vpop.f32.mrf.mxu0
  %v388 = vadd.f32 0.0, %v387
  %389 = vmatmul.f32.gmra.mxu0 %v330
  %v390 = vpop.f32.mrf.mxu0
  %v391 = vadd.f32 0.0, %v390
  %392 = vmatmul.f32.gmra.mxu0 %v331
  %v393 = vpop.f32.mrf.mxu0
  %v394 = vadd.f32 0.0, %v393
  %395 = vmatmul.f32.gmra.mxu0 %v332
  %v396 = vpop.f32.mrf.mxu0
  %v397 = vadd.f32 0.0, %v396
  %398 = vmatmul.f32.gmra.mxu0 %v333
  %v399 = vpop.f32.mrf.mxu0
  %v400 = vadd.f32 0.0, %v399
  %401 = vmatmul.f32.gmra.mxu0 %v334
  %v402 = vpop.f32.mrf.mxu0
  %v403 = vadd.f32 0.0, %v402
  %404 = vmatmul.f32.gmra.mxu0 %v335
  %v405 = vpop.f32.mrf.mxu0
  %v406 = vadd.f32 0.0, %v405
  %407 = vmatmul.f32.gmra.mxu0 %v336
  %v408 = vpop.f32.mrf.mxu0
  %v409 = vadd.f32 0.0, %v408
  %410 = vmatmul.f32.gmra.mxu0 %v337
  %v411 = vpop.f32.mrf.mxu0
  %v412 = vadd.f32 0.0, %v411
  %413 = vmatmul.f32.gmra.mxu0 %v338
  %v414 = vpop.f32.mrf.mxu0
  %v415 = vadd.f32 0.0, %v414
  %416 = vmatmul.f32.gmra.mxu0 %v339
  %v417 = vpop.f32.mrf.mxu0
  %v418 = vadd.f32 0.0, %v417
  %419 = vmatmul.f32.gmra.mxu0 %v340
  %v420 = vpop.f32.mrf.mxu0
  %v421 = vadd.f32 0.0, %v420
  %422 = vdwg.mxu0
  %v423 = vadd.f32 %v308, %v376
  %v424 = vadd.f32 %v309, %v379
  %v425 = vadd.f32 %v310, %v382
  %v426 = vadd.f32 %v311, %v385
  %v427 = vadd.f32 %v312, %v388
  %v428 = vadd.f32 %v313, %v391
  %v429 = vadd.f32 %v314, %v394
  %v430 = vadd.f32 %v315, %v397
  %v431 = vadd.f32 %v316, %v400
  %v432 = vadd.f32 %v317, %v403
  %v433 = vadd.f32 %v318, %v406
  %v434 = vadd.f32 %v319, %v409
  %v435 = vadd.f32 %v320, %v412
  %v436 = vadd.f32 %v321, %v415
  %v437 = vadd.f32 %v322, %v418
  %v438 = vadd.f32 %v323, %v421
  %s439 = scalar_lea.vmem %s0, 864
  %v440 = vld [vmem:[%s439] sm:$0xff]
  %v441 = vld [vmem:[%s439 + $0x10] sm:$0xff]
  %v442 = vld [vmem:[%s439 + $0x20] sm:$0xff]
  %v443 = vld [vmem:[%s439 + $0x30] sm:$0xff]
  %v444 = vld [vmem:[%s439 + $0x40] sm:$0xff]
  %v445 = vld [vmem:[%s439 + $0x50] sm:$0xff]
  %v446 = vld [vmem:[%s439 + $0x60] sm:$0xff]
  %v447 = vld [vmem:[%s439 + $0x70] sm:$0xff]
  %v448 = vld [vmem:[%s439 + $0x90] sm:$0xff]
  %v449 = vld [vmem:[%s439 + $0xa0] sm:$0xff]
  %v450 = vld [vmem:[%s439 + $0xb0] sm:$0xff]
  %v451 = vld [vmem:[%s439 + $0xc0] sm:$0xff]
  %v452 = vld [vmem:[%s439 + $0xd0] sm:$0xff]
  %v453 = vld [vmem:[%s439 + $0xe0] sm:$0xff]
  %v454 = vld [vmem:[%s439 + $0xf0] sm:$0xff]
  %v455 = vld [vmem:[%s439 + $0x100] sm:$0xff]
  %s456 = scalar_lea.vmem %s1, 512
  %v457 = vld [vmem:[%s456] sm:$0xff]
  %v458 = vld [vmem:[%s456 + $0x8] sm:$0xff]
  %v459 = vld [vmem:[%s456 + $0x10] sm:$0xff]
  %v460 = vld [vmem:[%s456 + $0x18] sm:$0xff]
  %v461 = vld [vmem:[%s456 + $0x20] sm:$0xff]
  %v462 = vld [vmem:[%s456 + $0x28] sm:$0xff]
  %v463 = vld [vmem:[%s456 + $0x30] sm:$0xff]
  %v464 = vld [vmem:[%s456 + $0x38] sm:$0xff]
  %v465 = vld [vmem:[%s456 + $0x40] sm:$0xff]
  %v466 = vld [vmem:[%s456 + $0x48] sm:$0xff]
  %v467 = vld [vmem:[%s456 + $0x50] sm:$0xff]
  %v468 = vld [vmem:[%s456 + $0x58] sm:$0xff]
  %v469 = vld [vmem:[%s456 + $0x60] sm:$0xff]
  %v470 = vld [vmem:[%s456 + $0x68] sm:$0xff]
  %v471 = vld [vmem:[%s456 + $0x70] sm:$0xff]
  %v472 = vld [vmem:[%s456 + $0x78] sm:$0xff]
  %473 = vmatpush.msra.mxu0 %v472
  %474 = vmatpush.msra.mxu0 %v471
  %475 = vmatpush.msra.mxu0 %v470
  %476 = vmatpush.msra.mxu0 %v469
  %477 = vmatpush.msra.mxu0 %v468
  %478 = vmatpush.msra.mxu0 %v467
  %479 = vmatpush.msra.mxu0 %v466
  %480 = vmatpush.msra.mxu0 %v465
  %481 = vmatpush.msra.mxu0 %v464
  %482 = vmatpush.msra.mxu0 %v463
  %483 = vmatpush.msra.mxu0 %v462
  %484 = vmatpush.msra.mxu0 %v461
  %485 = vmatpush.msra.mxu0 %v460
  %486 = vmatpush.msra.mxu0 %v459
  %487 = vmatpush.msra.mxu0 %v458
  %488 = vmatpush.msra.mxu0 %v457
  %489 = vmatmul.f32.gmra.mxu0 %v440
  %v490 = vpop.f32.mrf.mxu0
  %v491 = vadd.f32 0.0, %v490
  %492 = vmatmul.f32.gmra.mxu0 %v441
  %v493 = vpop.f32.mrf.mxu0
  %v494 = vadd.f32 0.0, %v493
  %495 = vmatmul.f32.gmra.mxu0 %v442
  %v496 = vpop.f32.mrf.mxu0
  %v497 = vadd.f32 0.0, %v496
  %498 = vmatmul.f32.gmra.mxu0 %v443
  %v499 = vpop.f32.mrf.mxu0
  %v500 = vadd.f32 0.0, %v499
  %501 = vmatmul.f32.gmra.mxu0 %v444
  %v502 = vpop.f32.mrf.mxu0
  %v503 = vadd.f32 0.0, %v502
  %504 = vmatmul.f32.gmra.mxu0 %v445
  %v505 = vpop.f32.mrf.mxu0
  %v506 = vadd.f32 0.0, %v505
  %507 = vmatmul.f32.gmra.mxu0 %v446
  %v508 = vpop.f32.mrf.mxu0
  %v509 = vadd.f32 0.0, %v508
  %510 = vmatmul.f32.gmra.mxu0 %v447
  %v511 = vpop.f32.mrf.mxu0
  %v512 = vadd.f32 0.0, %v511
  %513 = vmatmul.f32.gmra.mxu0 %v448
  %v514 = vpop.f32.mrf.mxu0
  %v515 = vadd.f32 0.0, %v514
  %516 = vmatmul.f32.gmra.mxu0 %v449
  %v517 = vpop.f32.mrf.mxu0
  %v518 = vadd.f32 0.0, %v517
  %519 = vmatmul.f32.gmra.mxu0 %v450
  %v520 = vpop.f32.mrf.mxu0
  %v521 = vadd.f32 0.0, %v520
  %522 = vmatmul.f32.gmra.mxu0 %v451
  %v523 = vpop.f32.mrf.mxu0
  %v524 = vadd.f32 0.0, %v523
  %525 = vmatmul.f32.gmra.mxu0 %v452
  %v526 = vpop.f32.mrf.mxu0
  %v527 = vadd.f32 0.0, %v526
  %528 = vmatmul.f32.gmra.mxu0 %v453
  %v529 = vpop.f32.mrf.mxu0
  %v530 = vadd.f32 0.0, %v529
  %531 = vmatmul.f32.gmra.mxu0 %v454
  %v532 = vpop.f32.mrf.mxu0
  %v533 = vadd.f32 0.0, %v532
  %534 = vmatmul.f32.gmra.mxu0 %v455
  %v535 = vpop.f32.mrf.mxu0
  %v536 = vadd.f32 0.0, %v535
  %537 = vdwg.mxu0
  %v538 = vadd.f32 %v423, %v491
  %v539 = vadd.f32 %v424, %v494
  %v540 = vadd.f32 %v425, %v497
  %v541 = vadd.f32 %v426, %v500
  %v542 = vadd.f32 %v427, %v503
  %v543 = vadd.f32 %v428, %v506
  %v544 = vadd.f32 %v429, %v509
  %v545 = vadd.f32 %v430, %v512
  %v546 = vadd.f32 %v431, %v515
  %v547 = vadd.f32 %v432, %v518
  %v548 = vadd.f32 %v433, %v521
  %v549 = vadd.f32 %v434, %v524
  %v550 = vadd.f32 %v435, %v527
  %v551 = vadd.f32 %v436, %v530
  %v552 = vadd.f32 %v437, %v533
  %v553 = vadd.f32 %v438, %v536
  %v554 = vld [vmem:[%s324 + $0x1] sm:$0xff]
  %v555 = vld [vmem:[%s324 + $0x11] sm:$0xff]
  %v556 = vld [vmem:[%s324 + $0x21] sm:$0xff]
  %v557 = vld [vmem:[%s324 + $0x31] sm:$0xff]
  %v558 = vld [vmem:[%s324 + $0x41] sm:$0xff]
  %v559 = vld [vmem:[%s324 + $0x51] sm:$0xff]
  %v560 = vld [vmem:[%s324 + $0x61] sm:$0xff]
  %v561 = vld [vmem:[%s324 + $0x71] sm:$0xff]
  %v562 = vld [vmem:[%s324 + $0x91] sm:$0xff]
  %v563 = vld [vmem:[%s324 + $0xa1] sm:$0xff]
  %v564 = vld [vmem:[%s324 + $0xb1] sm:$0xff]
  %v565 = vld [vmem:[%s324 + $0xc1] sm:$0xff]
  %v566 = vld [vmem:[%s324 + $0xd1] sm:$0xff]
  %v567 = vld [vmem:[%s324 + $0xe1] sm:$0xff]
  %v568 = vld [vmem:[%s324 + $0xf1] sm:$0xff]
  %v569 = vld [vmem:[%s324 + $0x101] sm:$0xff]
  %s570 = scalar_lea.vmem %s1, 640
  %v571 = vld [vmem:[%s570] sm:$0xff]
  %v572 = vld [vmem:[%s570 + $0x8] sm:$0xff]
  %v573 = vld [vmem:[%s570 + $0x10] sm:$0xff]
  %v574 = vld [vmem:[%s570 + $0x18] sm:$0xff]
  %v575 = vld [vmem:[%s570 + $0x20] sm:$0xff]
  %v576 = vld [vmem:[%s570 + $0x28] sm:$0xff]
  %v577 = vld [vmem:[%s570 + $0x30] sm:$0xff]
  %v578 = vld [vmem:[%s570 + $0x38] sm:$0xff]
  %v579 = vld [vmem:[%s570 + $0x40] sm:$0xff]
  %v580 = vld [vmem:[%s570 + $0x48] sm:$0xff]
  %v581 = vld [vmem:[%s570 + $0x50] sm:$0xff]
  %v582 = vld [vmem:[%s570 + $0x58] sm:$0xff]
  %v583 = vld [vmem:[%s570 + $0x60] sm:$0xff]
  %v584 = vld [vmem:[%s570 + $0x68] sm:$0xff]
  %v585 = vld [vmem:[%s570 + $0x70] sm:$0xff]
  %v586 = vld [vmem:[%s570 + $0x78] sm:$0xff]
  %587 = vmatpush.msra.mxu0 %v586
  %588 = vmatpush.msra.mxu0 %v585
  %589 = vmatpush.msra.mxu0 %v584
  %590 = vmatpush.msra.mxu0 %v583
  %591 = vmatpush.msra.mxu0 %v582
  %592 = vmatpush.msra.mxu0 %v581
  %593 = vmatpush.msra.mxu0 %v580
  %594 = vmatpush.msra.mxu0 %v579
  %595 = vmatpush.msra.mxu0 %v578
  %596 = vmatpush.msra.mxu0 %v577
  %597 = vmatpush.msra.mxu0 %v576
  %598 = vmatpush.msra.mxu0 %v575
  %599 = vmatpush.msra.mxu0 %v574
  %600 = vmatpush.msra.mxu0 %v573
  %601 = vmatpush.msra.mxu0 %v572
  %602 = vmatpush.msra.mxu0 %v571
  %603 = vmatmul.f32.gmra.mxu0 %v554
  %v604 = vpop.f32.mrf.mxu0
  %v605 = vadd.f32 0.0, %v604
  %606 = vmatmul.f32.gmra.mxu0 %v555
  %v607 = vpop.f32.mrf.mxu0
  %v608 = vadd.f32 0.0, %v607
  %609 = vmatmul.f32.gmra.mxu0 %v556
  %v610 = vpop.f32.mrf.mxu0
  %v611 = vadd.f32 0.0, %v610
  %612 = vmatmul.f32.gmra.mxu0 %v557
  %v613 = vpop.f32.mrf.mxu0
  %v614 = vadd.f32 0.0, %v613
  %615 = vmatmul.f32.gmra.mxu0 %v558
  %v616 = vpop.f32.mrf.mxu0
  %v617 = vadd.f32 0.0, %v616
  %618 = vmatmul.f32.gmra.mxu0 %v559
  %v619 = vpop.f32.mrf.mxu0
  %v620 = vadd.f32 0.0, %v619
  %621 = vmatmul.f32.gmra.mxu0 %v560
  %v622 = vpop.f32.mrf.mxu0
  %v623 = vadd.f32 0.0, %v622
  %624 = vmatmul.f32.gmra.mxu0 %v561
  %v625 = vpop.f32.mrf.mxu0
  %v626 = vadd.f32 0.0, %v625
  %627 = vmatmul.f32.gmra.mxu0 %v562
  %v628 = vpop.f32.mrf.mxu0
  %v629 = vadd.f32 0.0, %v628
  %630 = vmatmul.f32.gmra.mxu0 %v563
  %v631 = vpop.f32.mrf.mxu0
  %v632 = vadd.f32 0.0, %v631
  %633 = vmatmul.f32.gmra.mxu0 %v564
  %v634 = vpop.f32.mrf.mxu0
  %v635 = vadd.f32 0.0, %v634
  %636 = vmatmul.f32.gmra.mxu0 %v565
  %v637 = vpop.f32.mrf.mxu0
  %v638 = vadd.f32 0.0, %v637
  %639 = vmatmul.f32.gmra.mxu0 %v566
  %v640 = vpop.f32.mrf.mxu0
  %v641 = vadd.f32 0.0, %v640
  %642 = vmatmul.f32.gmra.mxu0 %v567
  %v643 = vpop.f32.mrf.mxu0
  %v644 = vadd.f32 0.0, %v643
  %645 = vmatmul.f32.gmra.mxu0 %v568
  %v646 = vpop.f32.mrf.mxu0
  %v647 = vadd.f32 0.0, %v646
  %648 = vmatmul.f32.gmra.mxu0 %v569
  %v649 = vpop.f32.mrf.mxu0
  %v650 = vadd.f32 0.0, %v649
  %651 = vdwg.mxu0
  %v652 = vadd.f32 %v538, %v605
  %v653 = vadd.f32 %v539, %v608
  %v654 = vadd.f32 %v540, %v611
  %v655 = vadd.f32 %v541, %v614
  %v656 = vadd.f32 %v542, %v617
  %v657 = vadd.f32 %v543, %v620
  %v658 = vadd.f32 %v544, %v623
  %v659 = vadd.f32 %v545, %v626
  %v660 = vadd.f32 %v546, %v629
  %v661 = vadd.f32 %v547, %v632
  %v662 = vadd.f32 %v548, %v635
  %v663 = vadd.f32 %v549, %v638
  %v664 = vadd.f32 %v550, %v641
  %v665 = vadd.f32 %v551, %v644
  %v666 = vadd.f32 %v552, %v647
  %v667 = vadd.f32 %v553, %v650
  %s668 = scalar_lea.vmem %s0, 16
  %v669 = vld [vmem:[%s668] sm:$0xff]
  %v670 = vld [vmem:[%s668 + $0x10] sm:$0xff]
  %v671 = vld [vmem:[%s668 + $0x20] sm:$0xff]
  %v672 = vld [vmem:[%s668 + $0x30] sm:$0xff]
  %v673 = vld [vmem:[%s668 + $0x40] sm:$0xff]
  %v674 = vld [vmem:[%s668 + $0x50] sm:$0xff]
  %v675 = vld [vmem:[%s668 + $0x60] sm:$0xff]
  %v676 = vld [vmem:[%s668 + $0x70] sm:$0xff]
  %v677 = vld [vmem:[%s668 + $0x90] sm:$0xff]
  %v678 = vld [vmem:[%s668 + $0xa0] sm:$0xff]
  %v679 = vld [vmem:[%s668 + $0xb0] sm:$0xff]
  %v680 = vld [vmem:[%s668 + $0xc0] sm:$0xff]
  %v681 = vld [vmem:[%s668 + $0xd0] sm:$0xff]
  %v682 = vld [vmem:[%s668 + $0xe0] sm:$0xff]
  %v683 = vld [vmem:[%s668 + $0xf0] sm:$0xff]
  %v684 = vld [vmem:[%s668 + $0x100] sm:$0xff]
  %s685 = scalar_lea.vmem %s1, 768
  %v686 = vld [vmem:[%s685] sm:$0xff]
  %v687 = vld [vmem:[%s685 + $0x8] sm:$0xff]
  %v688 = vld [vmem:[%s685 + $0x10] sm:$0xff]
  %v689 = vld [vmem:[%s685 + $0x18] sm:$0xff]
  %v690 = vld [vmem:[%s685 + $0x20] sm:$0xff]
  %v691 = vld [vmem:[%s685 + $0x28] sm:$0xff]
  %v692 = vld [vmem:[%s685 + $0x30] sm:$0xff]
  %v693 = vld [vmem:[%s685 + $0x38] sm:$0xff]
  %v694 = vld [vmem:[%s685 + $0x40] sm:$0xff]
  %v695 = vld [vmem:[%s685 + $0x48] sm:$0xff]
  %v696 = vld [vmem:[%s685 + $0x50] sm:$0xff]
  %v697 = vld [vmem:[%s685 + $0x58] sm:$0xff]
  %v698 = vld [vmem:[%s685 + $0x60] sm:$0xff]
  %v699 = vld [vmem:[%s685 + $0x68] sm:$0xff]
  %v700 = vld [vmem:[%s685 + $0x70] sm:$0xff]
  %v701 = vld [vmem:[%s685 + $0x78] sm:$0xff]
  %702 = vmatpush.msra.mxu0 %v701
  %703 = vmatpush.msra.mxu0 %v700
  %704 = vmatpush.msra.mxu0 %v699
  %705 = vmatpush.msra.mxu0 %v698
  %706 = vmatpush.msra.mxu0 %v697
  %707 = vmatpush.msra.mxu0 %v696
  %708 = vmatpush.msra.mxu0 %v695
  %709 = vmatpush.msra.mxu0 %v694
  %710 = vmatpush.msra.mxu0 %v693
  %711 = vmatpush.msra.mxu0 %v692
  %712 = vmatpush.msra.mxu0 %v691
  %713 = vmatpush.msra.mxu0 %v690
  %714 = vmatpush.msra.mxu0 %v689
  %715 = vmatpush.msra.mxu0 %v688
  %716 = vmatpush.msra.mxu0 %v687
  %717 = vmatpush.msra.mxu0 %v686
  %718 = vmatmul.f32.gmra.mxu0 %v669
  %v719 = vpop.f32.mrf.mxu0
  %v720 = vadd.f32 0.0, %v719
  %721 = vmatmul.f32.gmra.mxu0 %v670
  %v722 = vpop.f32.mrf.mxu0
  %v723 = vadd.f32 0.0, %v722
  %724 = vmatmul.f32.gmra.mxu0 %v671
  %v725 = vpop.f32.mrf.mxu0
  %v726 = vadd.f32 0.0, %v725
  %727 = vmatmul.f32.gmra.mxu0 %v672
  %v728 = vpop.f32.mrf.mxu0
  %v729 = vadd.f32 0.0, %v728
  %730 = vmatmul.f32.gmra.mxu0 %v673
  %v731 = vpop.f32.mrf.mxu0
  %v732 = vadd.f32 0.0, %v731
  %733 = vmatmul.f32.gmra.mxu0 %v674
  %v734 = vpop.f32.mrf.mxu0
  %v735 = vadd.f32 0.0, %v734
  %736 = vmatmul.f32.gmra.mxu0 %v675
  %v737 = vpop.f32.mrf.mxu0
  %v738 = vadd.f32 0.0, %v737
  %739 = vmatmul.f32.gmra.mxu0 %v676
  %v740 = vpop.f32.mrf.mxu0
  %v741 = vadd.f32 0.0, %v740
  %742 = vmatmul.f32.gmra.mxu0 %v677
  %v743 = vpop.f32.mrf.mxu0
  %v744 = vadd.f32 0.0, %v743
  %745 = vmatmul.f32.gmra.mxu0 %v678
  %v746 = vpop.f32.mrf.mxu0
  %v747 = vadd.f32 0.0, %v746
  %748 = vmatmul.f32.gmra.mxu0 %v679
  %v749 = vpop.f32.mrf.mxu0
  %v750 = vadd.f32 0.0, %v749
  %751 = vmatmul.f32.gmra.mxu0 %v680
  %v752 = vpop.f32.mrf.mxu0
  %v753 = vadd.f32 0.0, %v752
  %754 = vmatmul.f32.gmra.mxu0 %v681
  %v755 = vpop.f32.mrf.mxu0
  %v756 = vadd.f32 0.0, %v755
  %757 = vmatmul.f32.gmra.mxu0 %v682
  %v758 = vpop.f32.mrf.mxu0
  %v759 = vadd.f32 0.0, %v758
  %760 = vmatmul.f32.gmra.mxu0 %v683
  %v761 = vpop.f32.mrf.mxu0
  %v762 = vadd.f32 0.0, %v761
  %763 = vmatmul.f32.gmra.mxu0 %v684
  %v764 = vpop.f32.mrf.mxu0
  %v765 = vadd.f32 0.0, %v764
  %766 = vdwg.mxu0
  %v767 = vadd.f32 %v652, %v720
  %v768 = vadd.f32 %v653, %v723
  %v769 = vadd.f32 %v654, %v726
  %v770 = vadd.f32 %v655, %v729
  %v771 = vadd.f32 %v656, %v732
  %v772 = vadd.f32 %v657, %v735
  %v773 = vadd.f32 %v658, %v738
  %v774 = vadd.f32 %v659, %v741
  %v775 = vadd.f32 %v660, %v744
  %v776 = vadd.f32 %v661, %v747
  %v777 = vadd.f32 %v662, %v750
  %v778 = vadd.f32 %v663, %v753
  %v779 = vadd.f32 %v664, %v756
  %v780 = vadd.f32 %v665, %v759
  %v781 = vadd.f32 %v666, %v762
  %v782 = vadd.f32 %v667, %v765
  %s783 = scalar_lea.vmem %s0, 304
  %v784 = vld [vmem:[%s783] sm:$0xff]
  %v785 = vld [vmem:[%s783 + $0x10] sm:$0xff]
  %v786 = vld [vmem:[%s783 + $0x20] sm:$0xff]
  %v787 = vld [vmem:[%s783 + $0x30] sm:$0xff]
  %v788 = vld [vmem:[%s783 + $0x40] sm:$0xff]
  %v789 = vld [vmem:[%s783 + $0x50] sm:$0xff]
  %v790 = vld [vmem:[%s783 + $0x60] sm:$0xff]
  %v791 = vld [vmem:[%s783 + $0x70] sm:$0xff]
  %v792 = vld [vmem:[%s783 + $0x90] sm:$0xff]
  %v793 = vld [vmem:[%s783 + $0xa0] sm:$0xff]
  %v794 = vld [vmem:[%s783 + $0xb0] sm:$0xff]
  %v795 = vld [vmem:[%s783 + $0xc0] sm:$0xff]
  %v796 = vld [vmem:[%s783 + $0xd0] sm:$0xff]
  %v797 = vld [vmem:[%s783 + $0xe0] sm:$0xff]
  %v798 = vld [vmem:[%s783 + $0xf0] sm:$0xff]
  %v799 = vld [vmem:[%s783 + $0x100] sm:$0xff]
  %s800 = scalar_lea.vmem %s1, 896
  %v801 = vld [vmem:[%s800] sm:$0xff]
  %v802 = vld [vmem:[%s800 + $0x8] sm:$0xff]
  %v803 = vld [vmem:[%s800 + $0x10] sm:$0xff]
  %v804 = vld [vmem:[%s800 + $0x18] sm:$0xff]
  %v805 = vld [vmem:[%s800 + $0x20] sm:$0xff]
  %v806 = vld [vmem:[%s800 + $0x28] sm:$0xff]
  %v807 = vld [vmem:[%s800 + $0x30] sm:$0xff]
  %v808 = vld [vmem:[%s800 + $0x38] sm:$0xff]
  %v809 = vld [vmem:[%s800 + $0x40] sm:$0xff]
  %v810 = vld [vmem:[%s800 + $0x48] sm:$0xff]
  %v811 = vld [vmem:[%s800 + $0x50] sm:$0xff]
  %v812 = vld [vmem:[%s800 + $0x58] sm:$0xff]
  %v813 = vld [vmem:[%s800 + $0x60] sm:$0xff]
  %v814 = vld [vmem:[%s800 + $0x68] sm:$0xff]
  %v815 = vld [vmem:[%s800 + $0x70] sm:$0xff]
  %v816 = vld [vmem:[%s800 + $0x78] sm:$0xff]
  %817 = vmatpush.msra.mxu0 %v816
  %818 = vmatpush.msra.mxu0 %v815
  %819 = vmatpush.msra.mxu0 %v814
  %820 = vmatpush.msra.mxu0 %v813
  %821 = vmatpush.msra.mxu0 %v812
  %822 = vmatpush.msra.mxu0 %v811
  %823 = vmatpush.msra.mxu0 %v810
  %824 = vmatpush.msra.mxu0 %v809
  %825 = vmatpush.msra.mxu0 %v808
  %826 = vmatpush.msra.mxu0 %v807
  %827 = vmatpush.msra.mxu0 %v806
  %828 = vmatpush.msra.mxu0 %v805
  %829 = vmatpush.msra.mxu0 %v804
  %830 = vmatpush.msra.mxu0 %v803
  %831 = vmatpush.msra.mxu0 %v802
  %832 = vmatpush.msra.mxu0 %v801
  %833 = vmatmul.f32.gmra.mxu0 %v784
  %v834 = vpop.f32.mrf.mxu0
  %v835 = vadd.f32 0.0, %v834
  %836 = vmatmul.f32.gmra.mxu0 %v785
  %v837 = vpop.f32.mrf.mxu0
  %v838 = vadd.f32 0.0, %v837
  %839 = vmatmul.f32.gmra.mxu0 %v786
  %v840 = vpop.f32.mrf.mxu0
  %v841 = vadd.f32 0.0, %v840
  %842 = vmatmul.f32.gmra.mxu0 %v787
  %v843 = vpop.f32.mrf.mxu0
  %v844 = vadd.f32 0.0, %v843
  %845 = vmatmul.f32.gmra.mxu0 %v788
  %v846 = vpop.f32.mrf.mxu0
  %v847 = vadd.f32 0.0, %v846
  %848 = vmatmul.f32.gmra.mxu0 %v789
  %v849 = vpop.f32.mrf.mxu0
  %v850 = vadd.f32 0.0, %v849
  %851 = vmatmul.f32.gmra.mxu0 %v790
  %v852 = vpop.f32.mrf.mxu0
  %v853 = vadd.f32 0.0, %v852
  %854 = vmatmul.f32.gmra.mxu0 %v791
  %v855 = vpop.f32.mrf.mxu0
  %v856 = vadd.f32 0.0, %v855
  %857 = vmatmul.f32.gmra.mxu0 %v792
  %v858 = vpop.f32.mrf.mxu0
  %v859 = vadd.f32 0.0, %v858
  %860 = vmatmul.f32.gmra.mxu0 %v793
  %v861 = vpop.f32.mrf.mxu0
  %v862 = vadd.f32 0.0, %v861
  %863 = vmatmul.f32.gmra.mxu0 %v794
  %v864 = vpop.f32.mrf.mxu0
  %v865 = vadd.f32 0.0, %v864
  %866 = vmatmul.f32.gmra.mxu0 %v795
  %v867 = vpop.f32.mrf.mxu0
  %v868 = vadd.f32 0.0, %v867
  %869 = vmatmul.f32.gmra.mxu0 %v796
  %v870 = vpop.f32.mrf.mxu0
  %v871 = vadd.f32 0.0, %v870
  %872 = vmatmul.f32.gmra.mxu0 %v797
  %v873 = vpop.f32.mrf.mxu0
  %v874 = vadd.f32 0.0, %v873
  %875 = vmatmul.f32.gmra.mxu0 %v798
  %v876 = vpop.f32.mrf.mxu0
  %v877 = vadd.f32 0.0, %v876
  %878 = vmatmul.f32.gmra.mxu0 %v799
  %v879 = vpop.f32.mrf.mxu0
  %v880 = vadd.f32 0.0, %v879
  %881 = vdwg.mxu0
  %v882 = vadd.f32 %v767, %v835
  %v883 = vadd.f32 %v768, %v838
  %v884 = vadd.f32 %v769, %v841
  %v885 = vadd.f32 %v770, %v844
  %v886 = vadd.f32 %v771, %v847
  %v887 = vadd.f32 %v772, %v850
  %v888 = vadd.f32 %v773, %v853
  %v889 = vadd.f32 %v774, %v856
  %v890 = vadd.f32 %v775, %v859
  %v891 = vadd.f32 %v776, %v862
  %v892 = vadd.f32 %v777, %v865
  %v893 = vadd.f32 %v778, %v868
  %v894 = vadd.f32 %v779, %v871
  %v895 = vadd.f32 %v780, %v874
  %v896 = vadd.f32 %v781, %v877
  %v897 = vadd.f32 %v782, %v880
  %v898 = vld [vmem:[%s668 + $0x1] sm:$0xff]
  %v899 = vld [vmem:[%s668 + $0x11] sm:$0xff]
  %v900 = vld [vmem:[%s668 + $0x21] sm:$0xff]
  %v901 = vld [vmem:[%s668 + $0x31] sm:$0xff]
  %v902 = vld [vmem:[%s668 + $0x41] sm:$0xff]
  %v903 = vld [vmem:[%s668 + $0x51] sm:$0xff]
  %v904 = vld [vmem:[%s668 + $0x61] sm:$0xff]
  %v905 = vld [vmem:[%s668 + $0x71] sm:$0xff]
  %v906 = vld [vmem:[%s668 + $0x91] sm:$0xff]
  %v907 = vld [vmem:[%s668 + $0xa1] sm:$0xff]
  %v908 = vld [vmem:[%s668 + $0xb1] sm:$0xff]
  %v909 = vld [vmem:[%s668 + $0xc1] sm:$0xff]
  %v910 = vld [vmem:[%s668 + $0xd1] sm:$0xff]
  %v911 = vld [vmem:[%s668 + $0xe1] sm:$0xff]
  %v912 = vld [vmem:[%s668 + $0xf1] sm:$0xff]
  %v913 = vld [vmem:[%s668 + $0x101] sm:$0xff]
  %s914 = scalar_lea.vmem %s1, 1024
  %v915 = vld [vmem:[%s914] sm:$0xff]
  %v916 = vld [vmem:[%s914 + $0x8] sm:$0xff]
  %v917 = vld [vmem:[%s914 + $0x10] sm:$0xff]
  %v918 = vld [vmem:[%s914 + $0x18] sm:$0xff]
  %v919 = vld [vmem:[%s914 + $0x20] sm:$0xff]
  %v920 = vld [vmem:[%s914 + $0x28] sm:$0xff]
  %v921 = vld [vmem:[%s914 + $0x30] sm:$0xff]
  %v922 = vld [vmem:[%s914 + $0x38] sm:$0xff]
  %v923 = vld [vmem:[%s914 + $0x40] sm:$0xff]
  %v924 = vld [vmem:[%s914 + $0x48] sm:$0xff]
  %v925 = vld [vmem:[%s914 + $0x50] sm:$0xff]
  %v926 = vld [vmem:[%s914 + $0x58] sm:$0xff]
  %v927 = vld [vmem:[%s914 + $0x60] sm:$0xff]
  %v928 = vld [vmem:[%s914 + $0x68] sm:$0xff]
  %v929 = vld [vmem:[%s914 + $0x70] sm:$0xff]
  %v930 = vld [vmem:[%s914 + $0x78] sm:$0xff]
  %931 = vmatpush.msra.mxu0 %v930
  %932 = vmatpush.msra.mxu0 %v929
  %933 = vmatpush.msra.mxu0 %v928
  %934 = vmatpush.msra.mxu0 %v927
  %935 = vmatpush.msra.mxu0 %v926
  %936 = vmatpush.msra.mxu0 %v925
  %937 = vmatpush.msra.mxu0 %v924
  %938 = vmatpush.msra.mxu0 %v923
  %939 = vmatpush.msra.mxu0 %v922
  %940 = vmatpush.msra.mxu0 %v921
  %941 = vmatpush.msra.mxu0 %v920
  %942 = vmatpush.msra.mxu0 %v919
  %943 = vmatpush.msra.mxu0 %v918
  %944 = vmatpush.msra.mxu0 %v917
  %945 = vmatpush.msra.mxu0 %v916
  %946 = vmatpush.msra.mxu0 %v915
  %947 = vmatmul.f32.gmra.mxu0 %v898
  %v948 = vpop.f32.mrf.mxu0
  %v949 = vadd.f32 0.0, %v948
  %950 = vmatmul.f32.gmra.mxu0 %v899
  %v951 = vpop.f32.mrf.mxu0
  %v952 = vadd.f32 0.0, %v951
  %953 = vmatmul.f32.gmra.mxu0 %v900
  %v954 = vpop.f32.mrf.mxu0
  %v955 = vadd.f32 0.0, %v954
  %956 = vmatmul.f32.gmra.mxu0 %v901
  %v957 = vpop.f32.mrf.mxu0
  %v958 = vadd.f32 0.0, %v957
  %959 = vmatmul.f32.gmra.mxu0 %v902
  %v960 = vpop.f32.mrf.mxu0
  %v961 = vadd.f32 0.0, %v960
  %962 = vmatmul.f32.gmra.mxu0 %v903
  %v963 = vpop.f32.mrf.mxu0
  %v964 = vadd.f32 0.0, %v963
  %965 = vmatmul.f32.gmra.mxu0 %v904
  %v966 = vpop.f32.mrf.mxu0
  %v967 = vadd.f32 0.0, %v966
  %968 = vmatmul.f32.gmra.mxu0 %v905
  %v969 = vpop.f32.mrf.mxu0
  %v970 = vadd.f32 0.0, %v969
  %971 = vmatmul.f32.gmra.mxu0 %v906
  %v972 = vpop.f32.mrf.mxu0
  %v973 = vadd.f32 0.0, %v972
  %974 = vmatmul.f32.gmra.mxu0 %v907
  %v975 = vpop.f32.mrf.mxu0
  %v976 = vadd.f32 0.0, %v975
  %977 = vmatmul.f32.gmra.mxu0 %v908
  %v978 = vpop.f32.mrf.mxu0
  %v979 = vadd.f32 0.0, %v978
  %980 = vmatmul.f32.gmra.mxu0 %v909
  %v981 = vpop.f32.mrf.mxu0
  %v982 = vadd.f32 0.0, %v981
  %983 = vmatmul.f32.gmra.mxu0 %v910
  %v984 = vpop.f32.mrf.mxu0
  %v985 = vadd.f32 0.0, %v984
  %986 = vmatmul.f32.gmra.mxu0 %v911
  %v987 = vpop.f32.mrf.mxu0
  %v988 = vadd.f32 0.0, %v987
  %989 = vmatmul.f32.gmra.mxu0 %v912
  %v990 = vpop.f32.mrf.mxu0
  %v991 = vadd.f32 0.0, %v990
  %992 = vmatmul.f32.gmra.mxu0 %v913
  %v993 = vpop.f32.mrf.mxu0
  %v994 = vadd.f32 0.0, %v993
  %995 = vdwg.mxu0
  %v996 = vadd.f32 %v882, %v949
  %v997 = vadd.f32 %v883, %v952
  %v998 = vadd.f32 %v884, %v955
  %v999 = vadd.f32 %v885, %v958
  %v1000 = vadd.f32 %v886, %v961
  %v1001 = vadd.f32 %v887, %v964
  %v1002 = vadd.f32 %v888, %v967
  %v1003 = vadd.f32 %v889, %v970
  %v1004 = vadd.f32 %v890, %v973
  %v1005 = vadd.f32 %v891, %v976
  %v1006 = vadd.f32 %v892, %v979
  %v1007 = vadd.f32 %v893, %v982
  %v1008 = vadd.f32 %v894, %v985
  %v1009 = vadd.f32 %v895, %v988
  %v1010 = vadd.f32 %v896, %v991
  %v1011 = vadd.f32 %v897, %v994
  %v1012 = vld [vmem:[%s2] sm:$0x1]
  %v1014 = vperm.slane %v1012, 0
  %v1016 = vadd.f32 %v996, %v1014
  %v1017 = vadd.f32 %v997, %v1014
  %v1018 = vadd.f32 %v998, %v1014
  %v1019 = vadd.f32 %v999, %v1014
  %v1020 = vadd.f32 %v1000, %v1014
  %v1021 = vadd.f32 %v1001, %v1014
  %v1022 = vadd.f32 %v1002, %v1014
  %v1023 = vadd.f32 %v1003, %v1014
  %v1024 = vadd.f32 %v1004, %v1014
  %v1025 = vadd.f32 %v1005, %v1014
  %v1026 = vadd.f32 %v1006, %v1014
  %v1027 = vadd.f32 %v1007, %v1014
  %v1028 = vadd.f32 %v1008, %v1014
  %v1029 = vadd.f32 %v1009, %v1014
  %v1030 = vadd.f32 %v1010, %v1014
  %v1031 = vadd.f32 %v1011, %v1014
  %vm1032 = vcmp.gt.f32.partialorder %v1016, 0.0
  %vm1033 = vcmp.gt.f32.partialorder %v1017, 0.0
  %vm1034 = vcmp.gt.f32.partialorder %v1018, 0.0
  %vm1035 = vcmp.gt.f32.partialorder %v1019, 0.0
  %vm1036 = vcmp.gt.f32.partialorder %v1020, 0.0
  %vm1037 = vcmp.gt.f32.partialorder %v1021, 0.0
  %vm1038 = vcmp.gt.f32.partialorder %v1022, 0.0
  %vm1039 = vcmp.gt.f32.partialorder %v1023, 0.0
  %vm1040 = vcmp.gt.f32.partialorder %v1024, 0.0
  %vm1041 = vcmp.gt.f32.partialorder %v1025, 0.0
  %vm1042 = vcmp.gt.f32.partialorder %v1026, 0.0
  %vm1043 = vcmp.gt.f32.partialorder %v1027, 0.0
  %vm1044 = vcmp.gt.f32.partialorder %v1028, 0.0
  %vm1045 = vcmp.gt.f32.partialorder %v1029, 0.0
  %vm1046 = vcmp.gt.f32.partialorder %v1030, 0.0
  %vm1047 = vcmp.gt.f32.partialorder %v1031, 0.0
  %v1048 = vmul.f32 %v1016, 0.1
  %v1049 = vmul.f32 %v1017, 0.1
  %v1050 = vmul.f32 %v1018, 0.1
  %v1051 = vmul.f32 %v1019, 0.1
  %v1052 = vmul.f32 %v1020, 0.1
  %v1053 = vmul.f32 %v1021, 0.1
  %v1054 = vmul.f32 %v1022, 0.1
  %v1055 = vmul.f32 %v1023, 0.1
  %v1056 = vmul.f32 %v1024, 0.1
  %v1057 = vmul.f32 %v1025, 0.1
  %v1058 = vmul.f32 %v1026, 0.1
  %v1059 = vmul.f32 %v1027, 0.1
  %v1060 = vmul.f32 %v1028, 0.1
  %v1061 = vmul.f32 %v1029, 0.1
  %v1062 = vmul.f32 %v1030, 0.1
  %v1063 = vmul.f32 %v1031, 0.1
  %v1064 = vsel %vm1032, %v1016, %v1048
  %v1065 = vsel %vm1033, %v1017, %v1049
  %v1066 = vsel %vm1034, %v1018, %v1050
  %v1067 = vsel %vm1035, %v1019, %v1051
  %v1068 = vsel %vm1036, %v1020, %v1052
  %v1069 = vsel %vm1037, %v1021, %v1053
  %v1070 = vsel %vm1038, %v1022, %v1054
  %v1071 = vsel %vm1039, %v1023, %v1055
  %v1072 = vsel %vm1040, %v1024, %v1056
  %v1073 = vsel %vm1041, %v1025, %v1057
  %v1074 = vsel %vm1042, %v1026, %v1058
  %v1075 = vsel %vm1043, %v1027, %v1059
  %v1076 = vsel %vm1044, %v1028, %v1060
  %v1077 = vsel %vm1045, %v1029, %v1061
  %v1078 = vsel %vm1046, %v1030, %v1062
  %v1079 = vsel %vm1047, %v1031, %v1063
  %1080 = vst [vmem:[%s3] sm:$0xff] %v1064
  %1081 = vst [vmem:[%s3 + $0x8] sm:$0xff] %v1065
  %1082 = vst [vmem:[%s3 + $0x10] sm:$0xff] %v1066
  %1083 = vst [vmem:[%s3 + $0x18] sm:$0xff] %v1067
  %1084 = vst [vmem:[%s3 + $0x20] sm:$0xff] %v1068
  %1085 = vst [vmem:[%s3 + $0x28] sm:$0xff] %v1069
  %1086 = vst [vmem:[%s3 + $0x30] sm:$0xff] %v1070
  %1087 = vst [vmem:[%s3 + $0x38] sm:$0xff] %v1071
  %1088 = vst [vmem:[%s3 + $0x40] sm:$0xff] %v1072
  %1089 = vst [vmem:[%s3 + $0x48] sm:$0xff] %v1073
  %1090 = vst [vmem:[%s3 + $0x50] sm:$0xff] %v1074
  %1091 = vst [vmem:[%s3 + $0x58] sm:$0xff] %v1075
  %1092 = vst [vmem:[%s3 + $0x60] sm:$0xff] %v1076
  %1093 = vst [vmem:[%s3 + $0x68] sm:$0xff] %v1077
  %1094 = vst [vmem:[%s3 + $0x70] sm:$0xff] %v1078
  %1095 = vst [vmem:[%s3 + $0x78] sm:$0xff] %v1079
  // Predicated region
  $region14: #{darknet_forward.7} parent=0 // pred_check
    _
  $region15: #{darknet_forward.7} parent=0 // pred_check_branch
    %1097 = sbr.rel (0) target = $region17
  $region16: #{darknet_forward.7} parent=0 // pred_region
    _
  $region17: #{darknet_forward.7} parent=0 // pred_fallthru
    _
  // Predicated region
  $region18: #{darknet_forward.7} parent=0 // pred_check
    _
  $region19: #{darknet_forward.7} parent=0 // pred_check_branch
    %1099 = sbr.rel (0) target = $region21
  $region20: #{darknet_forward.7} parent=0 // pred_region
    _
  $region21: #{darknet_forward.7} parent=0 // pred_fallthru
    _

// kernel: darknet_forward.8
$region0: #{darknet_forward.8}
  #allocation0 [shape = 'u32[]', space=smem, size = 0x4, offset = 0x4, fixed_abs, tag = 'smem constant byte address 0x4 - core index']
  #allocation1 [shape = 'u32[72,128]{1,0:T(1,128)}', space=vmem, size = 0x9000, scoped, tag = 'internal scratch']
  %s0 = inlined_call_operand.vmem [shape: f32[1,2,10,10,128], index: 0, kind: input, shape index: {}]
  %s1 = inlined_call_operand.vmem [shape: f32[9,128,128], index: 1, kind: input, shape index: {}]
  %s2 = inlined_call_operand.vmem [shape: f32[1,128], index: 2, kind: input, shape index: {}]
  %s3 = inlined_call_operand.vmem [shape: f32[2,8,8,128], index: 3, kind: input, shape index: {}]
  %s4 = inlined_call_operand.vmem [shape: f32[2,8,8,128], index: 4, kind: output, shape index: {}]
  %s5 = sld [smem:[#allocation0]]
  $region26: #{darknet_forward.8} parent=0
    _
  %s7 = ssub.s32 1, %s5
  %s8 = scalar_select 0, %s7, %s5
  // Predicated region
  $region2: #{darknet_forward.8} parent=0 // pred_check
    _
  $region3: #{darknet_forward.8} parent=0 // pred_check_branch
    %10 = sbr.rel (0) target = $region5
  $region4: #{darknet_forward.8} parent=0 // pred_region
    _
  $region5: #{darknet_forward.8} parent=0 // pred_fallthru
    _
  // Predicated region
  $region6: #{darknet_forward.8} parent=0 // pred_check
    _
  $region7: #{darknet_forward.8} parent=0 // pred_check_branch
    %12 = sbr.rel (0) target = $region9
  $region8: #{darknet_forward.8} parent=0 // pred_region
    _
  $region9: #{darknet_forward.8} parent=0 // pred_fallthru
    _
  // Predicated region
  $region10: #{darknet_forward.8} parent=0 // pred_check
    _
  $region11: #{darknet_forward.8} parent=0 // pred_check_branch
    %14 = sbr.rel (0) target = $region13
  $region12: #{darknet_forward.8} parent=0 // pred_region
    _
  $region13: #{darknet_forward.8} parent=0 // pred_fallthru
    _
  // Predicated region
  $region14: #{darknet_forward.8} parent=0 // pred_check
    _
  $region15: #{darknet_forward.8} parent=0 // pred_check_branch
    %16 = sbr.rel (0) target = $region17
  $region16: #{darknet_forward.8} parent=0 // pred_region
    _
  $region17: #{darknet_forward.8} parent=0 // pred_fallthru
    _
  %v17 = vld [vmem:[%s0] sm:$0xff]
  %v18 = vld [vmem:[%s0 + $0x10] sm:$0xff]
  %v19 = vld [vmem:[%s0 + $0x20] sm:$0xff]
  %v20 = vld [vmem:[%s0 + $0x30] sm:$0xff]
  %v21 = vld [vmem:[%s0 + $0x40] sm:$0xff]
  %v22 = vld [vmem:[%s0 + $0x50] sm:$0xff]
  %v23 = vld [vmem:[%s0 + $0x60] sm:$0xff]
  %v24 = vld [vmem:[%s0 + $0x70] sm:$0xff]
  %v25 = vld [vmem:[%s0 + $0xa0] sm:$0xff]
  %v26 = vld [vmem:[%s0 + $0xb0] sm:$0xff]
  %v27 = vld [vmem:[%s0 + $0xc0] sm:$0xff]
  %v28 = vld [vmem:[%s0 + $0xd0] sm:$0xff]
  %v29 = vld [vmem:[%s0 + $0xe0] sm:$0xff]
  %v30 = vld [vmem:[%s0 + $0xf0] sm:$0xff]
  %v31 = vld [vmem:[%s0 + $0x100] sm:$0xff]
  %v32 = vld [vmem:[%s0 + $0x110] sm:$0xff]
  %v33 = vld [vmem:[%s1] sm:$0xff]
  %v34 = vld [vmem:[%s1 + $0x8] sm:$0xff]
  %v35 = vld [vmem:[%s1 + $0x10] sm:$0xff]
  %v36 = vld [vmem:[%s1 + $0x18] sm:$0xff]
  %v37 = vld [vmem:[%s1 + $0x20] sm:$0xff]
  %v38 = vld [vmem:[%s1 + $0x28] sm:$0xff]
  %v39 = vld [vmem:[%s1 + $0x30] sm:$0xff]
  %v40 = vld [vmem:[%s1 + $0x38] sm:$0xff]
  %v41 = vld [vmem:[%s1 + $0x40] sm:$0xff]
  %v42 = vld [vmem:[%s1 + $0x48] sm:$0xff]
  %v43 = vld [vmem:[%s1 + $0x50] sm:$0xff]
  %v44 = vld [vmem:[%s1 + $0x58] sm:$0xff]
  %v45 = vld [vmem:[%s1 + $0x60] sm:$0xff]
  %v46 = vld [vmem:[%s1 + $0x68] sm:$0xff]
  %v47 = vld [vmem:[%s1 + $0x70] sm:$0xff]
  %v48 = vld [vmem:[%s1 + $0x78] sm:$0xff]
  %v49 = vld [vmem:[%s0 + $0x1] sm:$0xff]
  %v50 = vld [vmem:[%s0 + $0x11] sm:$0xff]
  %v51 = vld [vmem:[%s0 + $0x21] sm:$0xff]
  %v52 = vld [vmem:[%s0 + $0x31] sm:$0xff]
  %v53 = vld [vmem:[%s0 + $0x41] sm:$0xff]
  %v54 = vld [vmem:[%s0 + $0x51] sm:$0xff]
  %v55 = vld [vmem:[%s0 + $0x61] sm:$0xff]
  %v56 = vld [vmem:[%s0 + $0x71] sm:$0xff]
  %v57 = vld [vmem:[%s0 + $0xa1] sm:$0xff]
  %v58 = vld [vmem:[%s0 + $0xb1] sm:$0xff]
  %v59 = vld [vmem:[%s0 + $0xc1] sm:$0xff]
  %v60 = vld [vmem:[%s0 + $0xd1] sm:$0xff]
  %v61 = vld [vmem:[%s0 + $0xe1] sm:$0xff]
  %v62 = vld [vmem:[%s0 + $0xf1] sm:$0xff]
  %v63 = vld [vmem:[%s0 + $0x101] sm:$0xff]
  %v64 = vld [vmem:[%s0 + $0x111] sm:$0xff]
  %s65 = scalar_lea.vmem %s1, 128
  %v66 = vld [vmem:[%s65] sm:$0xff]
  %v67 = vld [vmem:[%s65 + $0x8] sm:$0xff]
  %v68 = vld [vmem:[%s65 + $0x10] sm:$0xff]
  %v69 = vld [vmem:[%s65 + $0x18] sm:$0xff]
  %v70 = vld [vmem:[%s65 + $0x20] sm:$0xff]
  %v71 = vld [vmem:[%s65 + $0x28] sm:$0xff]
  %v72 = vld [vmem:[%s65 + $0x30] sm:$0xff]
  %v73 = vld [vmem:[%s65 + $0x38] sm:$0xff]
  %v74 = vld [vmem:[%s65 + $0x40] sm:$0xff]
  %v75 = vld [vmem:[%s65 + $0x48] sm:$0xff]
  %v76 = vld [vmem:[%s65 + $0x50] sm:$0xff]
  %v77 = vld [vmem:[%s65 + $0x58] sm:$0xff]
  %v78 = vld [vmem:[%s65 + $0x60] sm:$0xff]
  %v79 = vld [vmem:[%s65 + $0x68] sm:$0xff]
  %v80 = vld [vmem:[%s65 + $0x70] sm:$0xff]
  %v81 = vld [vmem:[%s65 + $0x78] sm:$0xff]
  %82 = vmatpush.msra.mxu0 %v81
  %83 = vmatpush.msra.mxu0 %v80
  %84 = vmatpush.msra.mxu0 %v79
  %85 = vmatpush.msra.mxu0 %v78
  %86 = vmatpush.msra.mxu0 %v77
  %87 = vmatpush.msra.mxu0 %v76
  %88 = vmatpush.msra.mxu0 %v75
  %89 = vmatpush.msra.mxu0 %v74
  %90 = vmatpush.msra.mxu0 %v73
  %91 = vmatpush.msra.mxu0 %v72
  %92 = vmatpush.msra.mxu0 %v71
  %93 = vmatpush.msra.mxu0 %v70
  %94 = vmatpush.msra.mxu0 %v69
  %95 = vmatpush.msra.mxu0 %v68
  %96 = vmatpush.msra.mxu0 %v67
  %97 = vmatpush.msra.mxu0 %v66
  %98 = vmatmul.f32.gmra.mxu0 %v49
  %v99 = vpop.f32.mrf.mxu0
  %v100 = vadd.f32 0.0, %v99
  %101 = vmatmul.f32.gmra.mxu0 %v50
  %v102 = vpop.f32.mrf.mxu0
  %v103 = vadd.f32 0.0, %v102
  %104 = vmatmul.f32.gmra.mxu0 %v51
  %v105 = vpop.f32.mrf.mxu0
  %v106 = vadd.f32 0.0, %v105
  %107 = vmatmul.f32.gmra.mxu0 %v52
  %v108 = vpop.f32.mrf.mxu0
  %v109 = vadd.f32 0.0, %v108
  %110 = vmatmul.f32.gmra.mxu0 %v53
  %v111 = vpop.f32.mrf.mxu0
  %v112 = vadd.f32 0.0, %v111
  %113 = vmatmul.f32.gmra.mxu0 %v54
  %v114 = vpop.f32.mrf.mxu0
  %v115 = vadd.f32 0.0, %v114
  %116 = vmatmul.f32.gmra.mxu0 %v55
  %v117 = vpop.f32.mrf.mxu0
  %v118 = vadd.f32 0.0, %v117
  %119 = vmatmul.f32.gmra.mxu0 %v56
  %v120 = vpop.f32.mrf.mxu0
  %v121 = vadd.f32 0.0, %v120
  %122 = vmatmul.f32.gmra.mxu0 %v57
  %v123 = vpop.f32.mrf.mxu0
  %v124 = vadd.f32 0.0, %v123
  %125 = vmatmul.f32.gmra.mxu0 %v58
  %v126 = vpop.f32.mrf.mxu0
  %v127 = vadd.f32 0.0, %v126
  %128 = vmatmul.f32.gmra.mxu0 %v59
  %v129 = vpop.f32.mrf.mxu0
  %v130 = vadd.f32 0.0, %v129
  %131 = vmatmul.f32.gmra.mxu0 %v60
  %v132 = vpop.f32.mrf.mxu0
  %v133 = vadd.f32 0.0, %v132
  %134 = vmatmul.f32.gmra.mxu0 %v61
  %v135 = vpop.f32.mrf.mxu0
  %v136 = vadd.f32 0.0, %v135
  %137 = vmatmul.f32.gmra.mxu0 %v62
  %v138 = vpop.f32.mrf.mxu0
  %v139 = vadd.f32 0.0, %v138
  %140 = vmatmul.f32.gmra.mxu0 %v63
  %v141 = vpop.f32.mrf.mxu0
  %v142 = vadd.f32 0.0, %v141
  %143 = vmatmul.f32.gmra.mxu0 %v64
  %v144 = vpop.f32.mrf.mxu0
  %v145 = vadd.f32 0.0, %v144
  %146 = vdwg.mxu0
  %147 = vmatpush.msra.mxu0 %v48
  %148 = vmatpush.msra.mxu0 %v47
  %149 = vmatpush.msra.mxu0 %v46
  %150 = vmatpush.msra.mxu0 %v45
  %151 = vmatpush.msra.mxu0 %v44
  %152 = vmatpush.msra.mxu0 %v43
  %153 = vmatpush.msra.mxu0 %v42
  %154 = vmatpush.msra.mxu0 %v41
  %155 = vmatpush.msra.mxu0 %v40
  %156 = vmatpush.msra.mxu0 %v39
  %157 = vmatpush.msra.mxu0 %v38
  %158 = vmatpush.msra.mxu0 %v37
  %159 = vmatpush.msra.mxu0 %v36
  %160 = vmatpush.msra.mxu0 %v35
  %161 = vmatpush.msra.mxu0 %v34
  %162 = vmatpush.msra.mxu0 %v33
  %163 = vmatmul.f32.gmra.mxu0 %v17
  %v164 = vpop.f32.mrf.mxu0
  %v165 = vadd.f32 %v100, %v164
  %166 = vmatmul.f32.gmra.mxu0 %v18
  %v167 = vpop.f32.mrf.mxu0
  %v168 = vadd.f32 %v103, %v167
  %169 = vmatmul.f32.gmra.mxu0 %v19
  %v170 = vpop.f32.mrf.mxu0
  %v171 = vadd.f32 %v106, %v170
  %172 = vmatmul.f32.gmra.mxu0 %v20
  %v173 = vpop.f32.mrf.mxu0
  %v174 = vadd.f32 %v109, %v173
  %175 = vmatmul.f32.gmra.mxu0 %v21
  %v176 = vpop.f32.mrf.mxu0
  %v177 = vadd.f32 %v112, %v176
  %178 = vmatmul.f32.gmra.mxu0 %v22
  %v179 = vpop.f32.mrf.mxu0
  %v180 = vadd.f32 %v115, %v179
  %181 = vmatmul.f32.gmra.mxu0 %v23
  %v182 = vpop.f32.mrf.mxu0
  %v183 = vadd.f32 %v118, %v182
  %184 = vmatmul.f32.gmra.mxu0 %v24
  %v185 = vpop.f32.mrf.mxu0
  %v186 = vadd.f32 %v121, %v185
  %187 = vmatmul.f32.gmra.mxu0 %v25
  %v188 = vpop.f32.mrf.mxu0
  %v189 = vadd.f32 %v124, %v188
  %190 = vmatmul.f32.gmra.mxu0 %v26
  %v191 = vpop.f32.mrf.mxu0
  %v192 = vadd.f32 %v127, %v191
  %193 = vmatmul.f32.gmra.mxu0 %v27
  %v194 = vpop.f32.mrf.mxu0
  %v195 = vadd.f32 %v130, %v194
  %196 = vmatmul.f32.gmra.mxu0 %v28
  %v197 = vpop.f32.mrf.mxu0
  %v198 = vadd.f32 %v133, %v197
  %199 = vmatmul.f32.gmra.mxu0 %v29
  %v200 = vpop.f32.mrf.mxu0
  %v201 = vadd.f32 %v136, %v200
  %202 = vmatmul.f32.gmra.mxu0 %v30
  %v203 = vpop.f32.mrf.mxu0
  %v204 = vadd.f32 %v139, %v203
  %205 = vmatmul.f32.gmra.mxu0 %v31
  %v206 = vpop.f32.mrf.mxu0
  %v207 = vadd.f32 %v142, %v206
  %208 = vmatmul.f32.gmra.mxu0 %v32
  %v209 = vpop.f32.mrf.mxu0
  %v210 = vadd.f32 %v145, %v209
  %211 = vdwg.mxu0
  %v212 = vld [vmem:[%s0 + $0x2] sm:$0xff]
  %v213 = vld [vmem:[%s0 + $0x12] sm:$0xff]
  %v214 = vld [vmem:[%s0 + $0x22] sm:$0xff]
  %v215 = vld [vmem:[%s0 + $0x32] sm:$0xff]
  %v216 = vld [vmem:[%s0 + $0x42] sm:$0xff]
  %v217 = vld [vmem:[%s0 + $0x52] sm:$0xff]
  %v218 = vld [vmem:[%s0 + $0x62] sm:$0xff]
  %v219 = vld [vmem:[%s0 + $0x72] sm:$0xff]
  %v220 = vld [vmem:[%s0 + $0xa2] sm:$0xff]
  %v221 = vld [vmem:[%s0 + $0xb2] sm:$0xff]
  %v222 = vld [vmem:[%s0 + $0xc2] sm:$0xff]
  %v223 = vld [vmem:[%s0 + $0xd2] sm:$0xff]
  %v224 = vld [vmem:[%s0 + $0xe2] sm:$0xff]
  %v225 = vld [vmem:[%s0 + $0xf2] sm:$0xff]
  %v226 = vld [vmem:[%s0 + $0x102] sm:$0xff]
  %v227 = vld [vmem:[%s0 + $0x112] sm:$0xff]
  %s228 = scalar_lea.vmem %s1, 256
  %v229 = vld [vmem:[%s228] sm:$0xff]
  %v230 = vld [vmem:[%s228 + $0x8] sm:$0xff]
  %v231 = vld [vmem:[%s228 + $0x10] sm:$0xff]
  %v232 = vld [vmem:[%s228 + $0x18] sm:$0xff]
  %v233 = vld [vmem:[%s228 + $0x20] sm:$0xff]
  %v234 = vld [vmem:[%s228 + $0x28] sm:$0xff]
  %v235 = vld [vmem:[%s228 + $0x30] sm:$0xff]
  %v236 = vld [vmem:[%s228 + $0x38] sm:$0xff]
  %v237 = vld [vmem:[%s228 + $0x40] sm:$0xff]
  %v238 = vld [vmem:[%s228 + $0x48] sm:$0xff]
  %v239 = vld [vmem:[%s228 + $0x50] sm:$0xff]
  %v240 = vld [vmem:[%s228 + $0x58] sm:$0xff]
  %v241 = vld [vmem:[%s228 + $0x60] sm:$0xff]
  %v242 = vld [vmem:[%s228 + $0x68] sm:$0xff]
  %v243 = vld [vmem:[%s228 + $0x70] sm:$0xff]
  %v244 = vld [vmem:[%s228 + $0x78] sm:$0xff]
  %245 = vmatpush.msra.mxu0 %v244
  %246 = vmatpush.msra.mxu0 %v243
  %247 = vmatpush.msra.mxu0 %v242
  %248 = vmatpush.msra.mxu0 %v241
  %249 = vmatpush.msra.mxu0 %v240
  %250 = vmatpush.msra.mxu0 %v239
  %251 = vmatpush.msra.mxu0 %v238
  %252 = vmatpush.msra.mxu0 %v237
  %253 = vmatpush.msra.mxu0 %v236
  %254 = vmatpush.msra.mxu0 %v235
  %255 = vmatpush.msra.mxu0 %v234
  %256 = vmatpush.msra.mxu0 %v233
  %257 = vmatpush.msra.mxu0 %v232
  %258 = vmatpush.msra.mxu0 %v231
  %259 = vmatpush.msra.mxu0 %v230
  %260 = vmatpush.msra.mxu0 %v229
  %261 = vmatmul.f32.gmra.mxu0 %v212
  %v262 = vpop.f32.mrf.mxu0
  %v263 = vadd.f32 0.0, %v262
  %264 = vmatmul.f32.gmra.mxu0 %v213
  %v265 = vpop.f32.mrf.mxu0
  %v266 = vadd.f32 0.0, %v265
  %267 = vmatmul.f32.gmra.mxu0 %v214
  %v268 = vpop.f32.mrf.mxu0
  %v269 = vadd.f32 0.0, %v268
  %270 = vmatmul.f32.gmra.mxu0 %v215
  %v271 = vpop.f32.mrf.mxu0
  %v272 = vadd.f32 0.0, %v271
  %273 = vmatmul.f32.gmra.mxu0 %v216
  %v274 = vpop.f32.mrf.mxu0
  %v275 = vadd.f32 0.0, %v274
  %276 = vmatmul.f32.gmra.mxu0 %v217
  %v277 = vpop.f32.mrf.mxu0
  %v278 = vadd.f32 0.0, %v277
  %279 = vmatmul.f32.gmra.mxu0 %v218
  %v280 = vpop.f32.mrf.mxu0
  %v281 = vadd.f32 0.0, %v280
  %282 = vmatmul.f32.gmra.mxu0 %v219
  %v283 = vpop.f32.mrf.mxu0
  %v284 = vadd.f32 0.0, %v283
  %285 = vmatmul.f32.gmra.mxu0 %v220
  %v286 = vpop.f32.mrf.mxu0
  %v287 = vadd.f32 0.0, %v286
  %288 = vmatmul.f32.gmra.mxu0 %v221
  %v289 = vpop.f32.mrf.mxu0
  %v290 = vadd.f32 0.0, %v289
  %291 = vmatmul.f32.gmra.mxu0 %v222
  %v292 = vpop.f32.mrf.mxu0
  %v293 = vadd.f32 0.0, %v292
  %294 = vmatmul.f32.gmra.mxu0 %v223
  %v295 = vpop.f32.mrf.mxu0
  %v296 = vadd.f32 0.0, %v295
  %297 = vmatmul.f32.gmra.mxu0 %v224
  %v298 = vpop.f32.mrf.mxu0
  %v299 = vadd.f32 0.0, %v298
  %300 = vmatmul.f32.gmra.mxu0 %v225
  %v301 = vpop.f32.mrf.mxu0
  %v302 = vadd.f32 0.0, %v301
  %303 = vmatmul.f32.gmra.mxu0 %v226
  %v304 = vpop.f32.mrf.mxu0
  %v305 = vadd.f32 0.0, %v304
  %306 = vmatmul.f32.gmra.mxu0 %v227
  %v307 = vpop.f32.mrf.mxu0
  %v308 = vadd.f32 0.0, %v307
  %309 = vdwg.mxu0
  %v310 = vadd.f32 %v165, %v263
  %v311 = vadd.f32 %v168, %v266
  %v312 = vadd.f32 %v171, %v269
  %v313 = vadd.f32 %v174, %v272
  %v314 = vadd.f32 %v177, %v275
  %v315 = vadd.f32 %v180, %v278
  %v316 = vadd.f32 %v183, %v281
  %v317 = vadd.f32 %v186, %v284
  %v318 = vadd.f32 %v189, %v287
  %v319 = vadd.f32 %v192, %v290
  %v320 = vadd.f32 %v195, %v293
  %v321 = vadd.f32 %v198, %v296
  %v322 = vadd.f32 %v201, %v299
  %v323 = vadd.f32 %v204, %v302
  %v324 = vadd.f32 %v207, %v305
  %v325 = vadd.f32 %v210, %v308
  %s326 = scalar_lea.vmem %s0, 16
  %v327 = vld [vmem:[%s326] sm:$0xff]
  %v328 = vld [vmem:[%s326 + $0x10] sm:$0xff]
  %v329 = vld [vmem:[%s326 + $0x20] sm:$0xff]
  %v330 = vld [vmem:[%s326 + $0x30] sm:$0xff]
  %v331 = vld [vmem:[%s326 + $0x40] sm:$0xff]
  %v332 = vld [vmem:[%s326 + $0x50] sm:$0xff]
  %v333 = vld [vmem:[%s326 + $0x60] sm:$0xff]
  %v334 = vld [vmem:[%s326 + $0x70] sm:$0xff]
  %v335 = vld [vmem:[%s326 + $0xa0] sm:$0xff]
  %v336 = vld [vmem:[%s326 + $0xb0] sm:$0xff]
  %v337 = vld [vmem:[%s326 + $0xc0] sm:$0xff]
  %v338 = vld [vmem:[%s326 + $0xd0] sm:$0xff]
  %v339 = vld [vmem:[%s326 + $0xe0] sm:$0xff]
  %v340 = vld [vmem:[%s326 + $0xf0] sm:$0xff]
  %v341 = vld [vmem:[%s326 + $0x100] sm:$0xff]
  %v342 = vld [vmem:[%s326 + $0x110] sm:$0xff]
  %s343 = scalar_lea.vmem %s1, 384
  %v344 = vld [vmem:[%s343] sm:$0xff]
  %v345 = vld [vmem:[%s343 + $0x8] sm:$0xff]
  %v346 = vld [vmem:[%s343 + $0x10] sm:$0xff]
  %v347 = vld [vmem:[%s343 + $0x18] sm:$0xff]
  %v348 = vld [vmem:[%s343 + $0x20] sm:$0xff]
  %v349 = vld [vmem:[%s343 + $0x28] sm:$0xff]
  %v350 = vld [vmem:[%s343 + $0x30] sm:$0xff]
  %v351 = vld [vmem:[%s343 + $0x38] sm:$0xff]
  %v352 = vld [vmem:[%s343 + $0x40] sm:$0xff]
  %v353 = vld [vmem:[%s343 + $0x48] sm:$0xff]
  %v354 = vld [vmem:[%s343 + $0x50] sm:$0xff]
  %v355 = vld [vmem:[%s343 + $0x58] sm:$0xff]
  %v356 = vld [vmem:[%s343 + $0x60] sm:$0xff]
  %v357 = vld [vmem:[%s343 + $0x68] sm:$0xff]
  %v358 = vld [vmem:[%s343 + $0x70] sm:$0xff]
  %v359 = vld [vmem:[%s343 + $0x78] sm:$0xff]
  %360 = vmatpush.msra.mxu0 %v359
  %361 = vmatpush.msra.mxu0 %v358
  %362 = vmatpush.msra.mxu0 %v357
  %363 = vmatpush.msra.mxu0 %v356
  %364 = vmatpush.msra.mxu0 %v355
  %365 = vmatpush.msra.mxu0 %v354
  %366 = vmatpush.msra.mxu0 %v353
  %367 = vmatpush.msra.mxu0 %v352
  %368 = vmatpush.msra.mxu0 %v351
  %369 = vmatpush.msra.mxu0 %v350
  %370 = vmatpush.msra.mxu0 %v349
  %371 = vmatpush.msra.mxu0 %v348
  %372 = vmatpush.msra.mxu0 %v347
  %373 = vmatpush.msra.mxu0 %v346
  %374 = vmatpush.msra.mxu0 %v345
  %375 = vmatpush.msra.mxu0 %v344
  %376 = vmatmul.f32.gmra.mxu0 %v327
  %v377 = vpop.f32.mrf.mxu0
  %v378 = vadd.f32 0.0, %v377
  %379 = vmatmul.f32.gmra.mxu0 %v328
  %v380 = vpop.f32.mrf.mxu0
  %v381 = vadd.f32 0.0, %v380
  %382 = vmatmul.f32.gmra.mxu0 %v329
  %v383 = vpop.f32.mrf.mxu0
  %v384 = vadd.f32 0.0, %v383
  %385 = vmatmul.f32.gmra.mxu0 %v330
  %v386 = vpop.f32.mrf.mxu0
  %v387 = vadd.f32 0.0, %v386
  %388 = vmatmul.f32.gmra.mxu0 %v331
  %v389 = vpop.f32.mrf.mxu0
  %v390 = vadd.f32 0.0, %v389
  %391 = vmatmul.f32.gmra.mxu0 %v332
  %v392 = vpop.f32.mrf.mxu0
  %v393 = vadd.f32 0.0, %v392
  %394 = vmatmul.f32.gmra.mxu0 %v333
  %v395 = vpop.f32.mrf.mxu0
  %v396 = vadd.f32 0.0, %v395
  %397 = vmatmul.f32.gmra.mxu0 %v334
  %v398 = vpop.f32.mrf.mxu0
  %v399 = vadd.f32 0.0, %v398
  %400 = vmatmul.f32.gmra.mxu0 %v335
  %v401 = vpop.f32.mrf.mxu0
  %v402 = vadd.f32 0.0, %v401
  %403 = vmatmul.f32.gmra.mxu0 %v336
  %v404 = vpop.f32.mrf.mxu0
  %v405 = vadd.f32 0.0, %v404
  %406 = vmatmul.f32.gmra.mxu0 %v337
  %v407 = vpop.f32.mrf.mxu0
  %v408 = vadd.f32 0.0, %v407
  %409 = vmatmul.f32.gmra.mxu0 %v338
  %v410 = vpop.f32.mrf.mxu0
  %v411 = vadd.f32 0.0, %v410
  %412 = vmatmul.f32.gmra.mxu0 %v339
  %v413 = vpop.f32.mrf.mxu0
  %v414 = vadd.f32 0.0, %v413
  %415 = vmatmul.f32.gmra.mxu0 %v340
  %v416 = vpop.f32.mrf.mxu0
  %v417 = vadd.f32 0.0, %v416
  %418 = vmatmul.f32.gmra.mxu0 %v341
  %v419 = vpop.f32.mrf.mxu0
  %v420 = vadd.f32 0.0, %v419
  %421 = vmatmul.f32.gmra.mxu0 %v342
  %v422 = vpop.f32.mrf.mxu0
  %v423 = vadd.f32 0.0, %v422
  %424 = vdwg.mxu0
  %v425 = vadd.f32 %v310, %v378
  %v426 = vadd.f32 %v311, %v381
  %v427 = vadd.f32 %v312, %v384
  %v428 = vadd.f32 %v313, %v387
  %v429 = vadd.f32 %v314, %v390
  %v430 = vadd.f32 %v315, %v393
  %v431 = vadd.f32 %v316, %v396
  %v432 = vadd.f32 %v317, %v399
  %v433 = vadd.f32 %v318, %v402
  %v434 = vadd.f32 %v319, %v405
  %v435 = vadd.f32 %v320, %v408
  %v436 = vadd.f32 %v321, %v411
  %v437 = vadd.f32 %v322, %v414
  %v438 = vadd.f32 %v323, %v417
  %v439 = vadd.f32 %v324, %v420
  %v440 = vadd.f32 %v325, %v423
  %v441 = vld [vmem:[%s326 + $0x1] sm:$0xff]
  %v442 = vld [vmem:[%s326 + $0x11] sm:$0xff]
  %v443 = vld [vmem:[%s326 + $0x21] sm:$0xff]
  %v444 = vld [vmem:[%s326 + $0x31] sm:$0xff]
  %v445 = vld [vmem:[%s326 + $0x41] sm:$0xff]
  %v446 = vld [vmem:[%s326 + $0x51] sm:$0xff]
  %v447 = vld [vmem:[%s326 + $0x61] sm:$0xff]
  %v448 = vld [vmem:[%s326 + $0x71] sm:$0xff]
  %v449 = vld [vmem:[%s326 + $0xa1] sm:$0xff]
  %v450 = vld [vmem:[%s326 + $0xb1] sm:$0xff]
  %v451 = vld [vmem:[%s326 + $0xc1] sm:$0xff]
  %v452 = vld [vmem:[%s326 + $0xd1] sm:$0xff]
  %v453 = vld [vmem:[%s326 + $0xe1] sm:$0xff]
  %v454 = vld [vmem:[%s326 + $0xf1] sm:$0xff]
  %v455 = vld [vmem:[%s326 + $0x101] sm:$0xff]
  %v456 = vld [vmem:[%s326 + $0x111] sm:$0xff]
  %s457 = scalar_lea.vmem %s1, 512
  %v458 = vld [vmem:[%s457] sm:$0xff]
  %v459 = vld [vmem:[%s457 + $0x8] sm:$0xff]
  %v460 = vld [vmem:[%s457 + $0x10] sm:$0xff]
  %v461 = vld [vmem:[%s457 + $0x18] sm:$0xff]
  %v462 = vld [vmem:[%s457 + $0x20] sm:$0xff]
  %v463 = vld [vmem:[%s457 + $0x28] sm:$0xff]
  %v464 = vld [vmem:[%s457 + $0x30] sm:$0xff]
  %v465 = vld [vmem:[%s457 + $0x38] sm:$0xff]
  %v466 = vld [vmem:[%s457 + $0x40] sm:$0xff]
  %v467 = vld [vmem:[%s457 + $0x48] sm:$0xff]
  %v468 = vld [vmem:[%s457 + $0x50] sm:$0xff]
  %v469 = vld [vmem:[%s457 + $0x58] sm:$0xff]
  %v470 = vld [vmem:[%s457 + $0x60] sm:$0xff]
  %v471 = vld [vmem:[%s457 + $0x68] sm:$0xff]
  %v472 = vld [vmem:[%s457 + $0x70] sm:$0xff]
  %v473 = vld [vmem:[%s457 + $0x78] sm:$0xff]
  %474 = vmatpush.msra.mxu0 %v473
  %475 = vmatpush.msra.mxu0 %v472
  %476 = vmatpush.msra.mxu0 %v471
  %477 = vmatpush.msra.mxu0 %v470
  %478 = vmatpush.msra.mxu0 %v469
  %479 = vmatpush.msra.mxu0 %v468
  %480 = vmatpush.msra.mxu0 %v467
  %481 = vmatpush.msra.mxu0 %v466
  %482 = vmatpush.msra.mxu0 %v465
  %483 = vmatpush.msra.mxu0 %v464
  %484 = vmatpush.msra.mxu0 %v463
  %485 = vmatpush.msra.mxu0 %v462
  %486 = vmatpush.msra.mxu0 %v461
  %487 = vmatpush.msra.mxu0 %v460
  %488 = vmatpush.msra.mxu0 %v459
  %489 = vmatpush.msra.mxu0 %v458
  %490 = vmatmul.f32.gmra.mxu0 %v441
  %v491 = vpop.f32.mrf.mxu0
  %v492 = vadd.f32 0.0, %v491
  %493 = vmatmul.f32.gmra.mxu0 %v442
  %v494 = vpop.f32.mrf.mxu0
  %v495 = vadd.f32 0.0, %v494
  %496 = vmatmul.f32.gmra.mxu0 %v443
  %v497 = vpop.f32.mrf.mxu0
  %v498 = vadd.f32 0.0, %v497
  %499 = vmatmul.f32.gmra.mxu0 %v444
  %v500 = vpop.f32.mrf.mxu0
  %v501 = vadd.f32 0.0, %v500
  %502 = vmatmul.f32.gmra.mxu0 %v445
  %v503 = vpop.f32.mrf.mxu0
  %v504 = vadd.f32 0.0, %v503
  %505 = vmatmul.f32.gmra.mxu0 %v446
  %v506 = vpop.f32.mrf.mxu0
  %v507 = vadd.f32 0.0, %v506
  %508 = vmatmul.f32.gmra.mxu0 %v447
  %v509 = vpop.f32.mrf.mxu0
  %v510 = vadd.f32 0.0, %v509
  %511 = vmatmul.f32.gmra.mxu0 %v448
  %v512 = vpop.f32.mrf.mxu0
  %v513 = vadd.f32 0.0, %v512
  %514 = vmatmul.f32.gmra.mxu0 %v449
  %v515 = vpop.f32.mrf.mxu0
  %v516 = vadd.f32 0.0, %v515
  %517 = vmatmul.f32.gmra.mxu0 %v450
  %v518 = vpop.f32.mrf.mxu0
  %v519 = vadd.f32 0.0, %v518
  %520 = vmatmul.f32.gmra.mxu0 %v451
  %v521 = vpop.f32.mrf.mxu0
  %v522 = vadd.f32 0.0, %v521
  %523 = vmatmul.f32.gmra.mxu0 %v452
  %v524 = vpop.f32.mrf.mxu0
  %v525 = vadd.f32 0.0, %v524
  %526 = vmatmul.f32.gmra.mxu0 %v453
  %v527 = vpop.f32.mrf.mxu0
  %v528 = vadd.f32 0.0, %v527
  %529 = vmatmul.f32.gmra.mxu0 %v454
  %v530 = vpop.f32.mrf.mxu0
  %v531 = vadd.f32 0.0, %v530
  %532 = vmatmul.f32.gmra.mxu0 %v455
  %v533 = vpop.f32.mrf.mxu0
  %v534 = vadd.f32 0.0, %v533
  %535 = vmatmul.f32.gmra.mxu0 %v456
  %v536 = vpop.f32.mrf.mxu0
  %v537 = vadd.f32 0.0, %v536
  %538 = vdwg.mxu0
  %v539 = vadd.f32 %v425, %v492
  %v540 = vadd.f32 %v426, %v495
  %v541 = vadd.f32 %v427, %v498
  %v542 = vadd.f32 %v428, %v501
  %v543 = vadd.f32 %v429, %v504
  %v544 = vadd.f32 %v430, %v507
  %v545 = vadd.f32 %v431, %v510
  %v546 = vadd.f32 %v432, %v513
  %v547 = vadd.f32 %v433, %v516
  %v548 = vadd.f32 %v434, %v519
  %v549 = vadd.f32 %v435, %v522
  %v550 = vadd.f32 %v436, %v525
  %v551 = vadd.f32 %v437, %v528
  %v552 = vadd.f32 %v438, %v531
  %v553 = vadd.f32 %v439, %v534
  %v554 = vadd.f32 %v440, %v537
  %v555 = vld [vmem:[%s326 + $0x2] sm:$0xff]
  %v556 = vld [vmem:[%s326 + $0x12] sm:$0xff]
  %v557 = vld [vmem:[%s326 + $0x22] sm:$0xff]
  %v558 = vld [vmem:[%s326 + $0x32] sm:$0xff]
  %v559 = vld [vmem:[%s326 + $0x42] sm:$0xff]
  %v560 = vld [vmem:[%s326 + $0x52] sm:$0xff]
  %v561 = vld [vmem:[%s326 + $0x62] sm:$0xff]
  %v562 = vld [vmem:[%s326 + $0x72] sm:$0xff]
  %v563 = vld [vmem:[%s326 + $0xa2] sm:$0xff]
  %v564 = vld [vmem:[%s326 + $0xb2] sm:$0xff]
  %v565 = vld [vmem:[%s326 + $0xc2] sm:$0xff]
  %v566 = vld [vmem:[%s326 + $0xd2] sm:$0xff]
  %v567 = vld [vmem:[%s326 + $0xe2] sm:$0xff]
  %v568 = vld [vmem:[%s326 + $0xf2] sm:$0xff]
  %v569 = vld [vmem:[%s326 + $0x102] sm:$0xff]
  %v570 = vld [vmem:[%s326 + $0x112] sm:$0xff]
  %s571 = scalar_lea.vmem %s1, 640
  %v572 = vld [vmem:[%s571] sm:$0xff]
  %v573 = vld [vmem:[%s571 + $0x8] sm:$0xff]
  %v574 = vld [vmem:[%s571 + $0x10] sm:$0xff]
  %v575 = vld [vmem:[%s571 + $0x18] sm:$0xff]
  %v576 = vld [vmem:[%s571 + $0x20] sm:$0xff]
  %v577 = vld [vmem:[%s571 + $0x28] sm:$0xff]
  %v578 = vld [vmem:[%s571 + $0x30] sm:$0xff]
  %v579 = vld [vmem:[%s571 + $0x38] sm:$0xff]
  %v580 = vld [vmem:[%s571 + $0x40] sm:$0xff]
  %v581 = vld [vmem:[%s571 + $0x48] sm:$0xff]
  %v582 = vld [vmem:[%s571 + $0x50] sm:$0xff]
  %v583 = vld [vmem:[%s571 + $0x58] sm:$0xff]
  %v584 = vld [vmem:[%s571 + $0x60] sm:$0xff]
  %v585 = vld [vmem:[%s571 + $0x68] sm:$0xff]
  %v586 = vld [vmem:[%s571 + $0x70] sm:$0xff]
  %v587 = vld [vmem:[%s571 + $0x78] sm:$0xff]
  %588 = vmatpush.msra.mxu0 %v587
  %589 = vmatpush.msra.mxu0 %v586
  %590 = vmatpush.msra.mxu0 %v585
  %591 = vmatpush.msra.mxu0 %v584
  %592 = vmatpush.msra.mxu0 %v583
  %593 = vmatpush.msra.mxu0 %v582
  %594 = vmatpush.msra.mxu0 %v581
  %595 = vmatpush.msra.mxu0 %v580
  %596 = vmatpush.msra.mxu0 %v579
  %597 = vmatpush.msra.mxu0 %v578
  %598 = vmatpush.msra.mxu0 %v577
  %599 = vmatpush.msra.mxu0 %v576
  %600 = vmatpush.msra.mxu0 %v575
  %601 = vmatpush.msra.mxu0 %v574
  %602 = vmatpush.msra.mxu0 %v573
  %603 = vmatpush.msra.mxu0 %v572
  %604 = vmatmul.f32.gmra.mxu0 %v555
  %v605 = vpop.f32.mrf.mxu0
  %v606 = vadd.f32 0.0, %v605
  %607 = vmatmul.f32.gmra.mxu0 %v556
  %v608 = vpop.f32.mrf.mxu0
  %v609 = vadd.f32 0.0, %v608
  %610 = vmatmul.f32.gmra.mxu0 %v557
  %v611 = vpop.f32.mrf.mxu0
  %v612 = vadd.f32 0.0, %v611
  %613 = vmatmul.f32.gmra.mxu0 %v558
  %v614 = vpop.f32.mrf.mxu0
  %v615 = vadd.f32 0.0, %v614
  %616 = vmatmul.f32.gmra.mxu0 %v559
  %v617 = vpop.f32.mrf.mxu0
  %v618 = vadd.f32 0.0, %v617
  %619 = vmatmul.f32.gmra.mxu0 %v560
  %v620 = vpop.f32.mrf.mxu0
  %v621 = vadd.f32 0.0, %v620
  %622 = vmatmul.f32.gmra.mxu0 %v561
  %v623 = vpop.f32.mrf.mxu0
  %v624 = vadd.f32 0.0, %v623
  %625 = vmatmul.f32.gmra.mxu0 %v562
  %v626 = vpop.f32.mrf.mxu0
  %v627 = vadd.f32 0.0, %v626
  %628 = vmatmul.f32.gmra.mxu0 %v563
  %v629 = vpop.f32.mrf.mxu0
  %v630 = vadd.f32 0.0, %v629
  %631 = vmatmul.f32.gmra.mxu0 %v564
  %v632 = vpop.f32.mrf.mxu0
  %v633 = vadd.f32 0.0, %v632
  %634 = vmatmul.f32.gmra.mxu0 %v565
  %v635 = vpop.f32.mrf.mxu0
  %v636 = vadd.f32 0.0, %v635
  %637 = vmatmul.f32.gmra.mxu0 %v566
  %v638 = vpop.f32.mrf.mxu0
  %v639 = vadd.f32 0.0, %v638
  %640 = vmatmul.f32.gmra.mxu0 %v567
  %v641 = vpop.f32.mrf.mxu0
  %v642 = vadd.f32 0.0, %v641
  %643 = vmatmul.f32.gmra.mxu0 %v568
  %v644 = vpop.f32.mrf.mxu0
  %v645 = vadd.f32 0.0, %v644
  %646 = vmatmul.f32.gmra.mxu0 %v569
  %v647 = vpop.f32.mrf.mxu0
  %v648 = vadd.f32 0.0, %v647
  %649 = vmatmul.f32.gmra.mxu0 %v570
  %v650 = vpop.f32.mrf.mxu0
  %v651 = vadd.f32 0.0, %v650
  %652 = vdwg.mxu0
  %v653 = vadd.f32 %v539, %v606
  %v654 = vadd.f32 %v540, %v609
  %v655 = vadd.f32 %v541, %v612
  %v656 = vadd.f32 %v542, %v615
  %v657 = vadd.f32 %v543, %v618
  %v658 = vadd.f32 %v544, %v621
  %v659 = vadd.f32 %v545, %v624
  %v660 = vadd.f32 %v546, %v627
  %v661 = vadd.f32 %v547, %v630
  %v662 = vadd.f32 %v548, %v633
  %v663 = vadd.f32 %v549, %v636
  %v664 = vadd.f32 %v550, %v639
  %v665 = vadd.f32 %v551, %v642
  %v666 = vadd.f32 %v552, %v645
  %v667 = vadd.f32 %v553, %v648
  %v668 = vadd.f32 %v554, %v651
  %s669 = scalar_lea.vmem %s0, 32
  %v670 = vld [vmem:[%s669] sm:$0xff]
  %v671 = vld [vmem:[%s669 + $0x10] sm:$0xff]
  %v672 = vld [vmem:[%s669 + $0x20] sm:$0xff]
  %v673 = vld [vmem:[%s669 + $0x30] sm:$0xff]
  %v674 = vld [vmem:[%s669 + $0x40] sm:$0xff]
  %v675 = vld [vmem:[%s669 + $0x50] sm:$0xff]
  %v676 = vld [vmem:[%s669 + $0x60] sm:$0xff]
  %v677 = vld [vmem:[%s669 + $0x70] sm:$0xff]
  %v678 = vld [vmem:[%s669 + $0xa0] sm:$0xff]
  %v679 = vld [vmem:[%s669 + $0xb0] sm:$0xff]
  %v680 = vld [vmem:[%s669 + $0xc0] sm:$0xff]
  %v681 = vld [vmem:[%s669 + $0xd0] sm:$0xff]
  %v682 = vld [vmem:[%s669 + $0xe0] sm:$0xff]
  %v683 = vld [vmem:[%s669 + $0xf0] sm:$0xff]
  %v684 = vld [vmem:[%s669 + $0x100] sm:$0xff]
  %v685 = vld [vmem:[%s669 + $0x110] sm:$0xff]
  %s686 = scalar_lea.vmem %s1, 768
  %v687 = vld [vmem:[%s686] sm:$0xff]
  %v688 = vld [vmem:[%s686 + $0x8] sm:$0xff]
  %v689 = vld [vmem:[%s686 + $0x10] sm:$0xff]
  %v690 = vld [vmem:[%s686 + $0x18] sm:$0xff]
  %v691 = vld [vmem:[%s686 + $0x20] sm:$0xff]
  %v692 = vld [vmem:[%s686 + $0x28] sm:$0xff]
  %v693 = vld [vmem:[%s686 + $0x30] sm:$0xff]
  %v694 = vld [vmem:[%s686 + $0x38] sm:$0xff]
  %v695 = vld [vmem:[%s686 + $0x40] sm:$0xff]
  %v696 = vld [vmem:[%s686 + $0x48] sm:$0xff]
  %v697 = vld [vmem:[%s686 + $0x50] sm:$0xff]
  %v698 = vld [vmem:[%s686 + $0x58] sm:$0xff]
  %v699 = vld [vmem:[%s686 + $0x60] sm:$0xff]
  %v700 = vld [vmem:[%s686 + $0x68] sm:$0xff]
  %v701 = vld [vmem:[%s686 + $0x70] sm:$0xff]
  %v702 = vld [vmem:[%s686 + $0x78] sm:$0xff]
  %703 = vmatpush.msra.mxu0 %v702
  %704 = vmatpush.msra.mxu0 %v701
  %705 = vmatpush.msra.mxu0 %v700
  %706 = vmatpush.msra.mxu0 %v699
  %707 = vmatpush.msra.mxu0 %v698
  %708 = vmatpush.msra.mxu0 %v697
  %709 = vmatpush.msra.mxu0 %v696
  %710 = vmatpush.msra.mxu0 %v695
  %711 = vmatpush.msra.mxu0 %v694
  %712 = vmatpush.msra.mxu0 %v693
  %713 = vmatpush.msra.mxu0 %v692
  %714 = vmatpush.msra.mxu0 %v691
  %715 = vmatpush.msra.mxu0 %v690
  %716 = vmatpush.msra.mxu0 %v689
  %717 = vmatpush.msra.mxu0 %v688
  %718 = vmatpush.msra.mxu0 %v687
  %719 = vmatmul.f32.gmra.mxu0 %v670
  %v720 = vpop.f32.mrf.mxu0
  %v721 = vadd.f32 0.0, %v720
  %722 = vmatmul.f32.gmra.mxu0 %v671
  %v723 = vpop.f32.mrf.mxu0
  %v724 = vadd.f32 0.0, %v723
  %725 = vmatmul.f32.gmra.mxu0 %v672
  %v726 = vpop.f32.mrf.mxu0
  %v727 = vadd.f32 0.0, %v726
  %728 = vmatmul.f32.gmra.mxu0 %v673
  %v729 = vpop.f32.mrf.mxu0
  %v730 = vadd.f32 0.0, %v729
  %731 = vmatmul.f32.gmra.mxu0 %v674
  %v732 = vpop.f32.mrf.mxu0
  %v733 = vadd.f32 0.0, %v732
  %734 = vmatmul.f32.gmra.mxu0 %v675
  %v735 = vpop.f32.mrf.mxu0
  %v736 = vadd.f32 0.0, %v735
  %737 = vmatmul.f32.gmra.mxu0 %v676
  %v738 = vpop.f32.mrf.mxu0
  %v739 = vadd.f32 0.0, %v738
  %740 = vmatmul.f32.gmra.mxu0 %v677
  %v741 = vpop.f32.mrf.mxu0
  %v742 = vadd.f32 0.0, %v741
  %743 = vmatmul.f32.gmra.mxu0 %v678
  %v744 = vpop.f32.mrf.mxu0
  %v745 = vadd.f32 0.0, %v744
  %746 = vmatmul.f32.gmra.mxu0 %v679
  %v747 = vpop.f32.mrf.mxu0
  %v748 = vadd.f32 0.0, %v747
  %749 = vmatmul.f32.gmra.mxu0 %v680
  %v750 = vpop.f32.mrf.mxu0
  %v751 = vadd.f32 0.0, %v750
  %752 = vmatmul.f32.gmra.mxu0 %v681
  %v753 = vpop.f32.mrf.mxu0
  %v754 = vadd.f32 0.0, %v753
  %755 = vmatmul.f32.gmra.mxu0 %v682
  %v756 = vpop.f32.mrf.mxu0
  %v757 = vadd.f32 0.0, %v756
  %758 = vmatmul.f32.gmra.mxu0 %v683
  %v759 = vpop.f32.mrf.mxu0
  %v760 = vadd.f32 0.0, %v759
  %761 = vmatmul.f32.gmra.mxu0 %v684
  %v762 = vpop.f32.mrf.mxu0
  %v763 = vadd.f32 0.0, %v762
  %764 = vmatmul.f32.gmra.mxu0 %v685
  %v765 = vpop.f32.mrf.mxu0
  %v766 = vadd.f32 0.0, %v765
  %767 = vdwg.mxu0
  %v768 = vadd.f32 %v653, %v721
  %v769 = vadd.f32 %v654, %v724
  %v770 = vadd.f32 %v655, %v727
  %v771 = vadd.f32 %v656, %v730
  %v772 = vadd.f32 %v657, %v733
  %v773 = vadd.f32 %v658, %v736
  %v774 = vadd.f32 %v659, %v739
  %v775 = vadd.f32 %v660, %v742
  %v776 = vadd.f32 %v661, %v745
  %v777 = vadd.f32 %v662, %v748
  %v778 = vadd.f32 %v663, %v751
  %v779 = vadd.f32 %v664, %v754
  %v780 = vadd.f32 %v665, %v757
  %v781 = vadd.f32 %v666, %v760
  %v782 = vadd.f32 %v667, %v763
  %v783 = vadd.f32 %v668, %v766
  %v784 = vld [vmem:[%s669 + $0x1] sm:$0xff]
  %v785 = vld [vmem:[%s669 + $0x11] sm:$0xff]
  %v786 = vld [vmem:[%s669 + $0x21] sm:$0xff]
  %v787 = vld [vmem:[%s669 + $0x31] sm:$0xff]
  %v788 = vld [vmem:[%s669 + $0x41] sm:$0xff]
  %v789 = vld [vmem:[%s669 + $0x51] sm:$0xff]
  %v790 = vld [vmem:[%s669 + $0x61] sm:$0xff]
  %v791 = vld [vmem:[%s669 + $0x71] sm:$0xff]
  %v792 = vld [vmem:[%s669 + $0xa1] sm:$0xff]
  %v793 = vld [vmem:[%s669 + $0xb1] sm:$0xff]
  %v794 = vld [vmem:[%s669 + $0xc1] sm:$0xff]
  %v795 = vld [vmem:[%s669 + $0xd1] sm:$0xff]
  %v796 = vld [vmem:[%s669 + $0xe1] sm:$0xff]
  %v797 = vld [vmem:[%s669 + $0xf1] sm:$0xff]
  %v798 = vld [vmem:[%s669 + $0x101] sm:$0xff]
  %v799 = vld [vmem:[%s669 + $0x111] sm:$0xff]
  %s800 = scalar_lea.vmem %s1, 896
  %v801 = vld [vmem:[%s800] sm:$0xff]
  %v802 = vld [vmem:[%s800 + $0x8] sm:$0xff]
  %v803 = vld [vmem:[%s800 + $0x10] sm:$0xff]
  %v804 = vld [vmem:[%s800 + $0x18] sm:$0xff]
  %v805 = vld [vmem:[%s800 + $0x20] sm:$0xff]
  %v806 = vld [vmem:[%s800 + $0x28] sm:$0xff]
  %v807 = vld [vmem:[%s800 + $0x30] sm:$0xff]
  %v808 = vld [vmem:[%s800 + $0x38] sm:$0xff]
  %v809 = vld [vmem:[%s800 + $0x40] sm:$0xff]
  %v810 = vld [vmem:[%s800 + $0x48] sm:$0xff]
  %v811 = vld [vmem:[%s800 + $0x50] sm:$0xff]
  %v812 = vld [vmem:[%s800 + $0x58] sm:$0xff]
  %v813 = vld [vmem:[%s800 + $0x60] sm:$0xff]
  %v814 = vld [vmem:[%s800 + $0x68] sm:$0xff]
  %v815 = vld [vmem:[%s800 + $0x70] sm:$0xff]
  %v816 = vld [vmem:[%s800 + $0x78] sm:$0xff]
  %817 = vmatpush.msra.mxu0 %v816
  %818 = vmatpush.msra.mxu0 %v815
  %819 = vmatpush.msra.mxu0 %v814
  %820 = vmatpush.msra.mxu0 %v813
  %821 = vmatpush.msra.mxu0 %v812
  %822 = vmatpush.msra.mxu0 %v811
  %823 = vmatpush.msra.mxu0 %v810
  %824 = vmatpush.msra.mxu0 %v809
  %825 = vmatpush.msra.mxu0 %v808
  %826 = vmatpush.msra.mxu0 %v807
  %827 = vmatpush.msra.mxu0 %v806
  %828 = vmatpush.msra.mxu0 %v805
  %829 = vmatpush.msra.mxu0 %v804
  %830 = vmatpush.msra.mxu0 %v803
  %831 = vmatpush.msra.mxu0 %v802
  %832 = vmatpush.msra.mxu0 %v801
  %833 = vmatmul.f32.gmra.mxu0 %v784
  %v834 = vpop.f32.mrf.mxu0
  %v835 = vadd.f32 0.0, %v834
  %836 = vmatmul.f32.gmra.mxu0 %v785
  %v837 = vpop.f32.mrf.mxu0
  %v838 = vadd.f32 0.0, %v837
  %839 = vmatmul.f32.gmra.mxu0 %v786
  %v840 = vpop.f32.mrf.mxu0
  %v841 = vadd.f32 0.0, %v840
  %842 = vmatmul.f32.gmra.mxu0 %v787
  %v843 = vpop.f32.mrf.mxu0
  %v844 = vadd.f32 0.0, %v843
  %845 = vmatmul.f32.gmra.mxu0 %v788
  %v846 = vpop.f32.mrf.mxu0
  %v847 = vadd.f32 0.0, %v846
  %848 = vmatmul.f32.gmra.mxu0 %v789
  %v849 = vpop.f32.mrf.mxu0
  %v850 = vadd.f32 0.0, %v849
  %851 = vmatmul.f32.gmra.mxu0 %v790
  %v852 = vpop.f32.mrf.mxu0
  %v853 = vadd.f32 0.0, %v852
  %854 = vmatmul.f32.gmra.mxu0 %v791
  %v855 = vpop.f32.mrf.mxu0
  %v856 = vadd.f32 0.0, %v855
  %857 = vmatmul.f32.gmra.mxu0 %v792
  %v858 = vpop.f32.mrf.mxu0
  %v859 = vadd.f32 0.0, %v858
  %860 = vmatmul.f32.gmra.mxu0 %v793
  %v861 = vpop.f32.mrf.mxu0
  %v862 = vadd.f32 0.0, %v861
  %863 = vmatmul.f32.gmra.mxu0 %v794
  %v864 = vpop.f32.mrf.mxu0
  %v865 = vadd.f32 0.0, %v864
  %866 = vmatmul.f32.gmra.mxu0 %v795
  %v867 = vpop.f32.mrf.mxu0
  %v868 = vadd.f32 0.0, %v867
  %869 = vmatmul.f32.gmra.mxu0 %v796
  %v870 = vpop.f32.mrf.mxu0
  %v871 = vadd.f32 0.0, %v870
  %872 = vmatmul.f32.gmra.mxu0 %v797
  %v873 = vpop.f32.mrf.mxu0
  %v874 = vadd.f32 0.0, %v873
  %875 = vmatmul.f32.gmra.mxu0 %v798
  %v876 = vpop.f32.mrf.mxu0
  %v877 = vadd.f32 0.0, %v876
  %878 = vmatmul.f32.gmra.mxu0 %v799
  %v879 = vpop.f32.mrf.mxu0
  %v880 = vadd.f32 0.0, %v879
  %881 = vdwg.mxu0
  %v882 = vadd.f32 %v768, %v835
  %v883 = vadd.f32 %v769, %v838
  %v884 = vadd.f32 %v770, %v841
  %v885 = vadd.f32 %v771, %v844
  %v886 = vadd.f32 %v772, %v847
  %v887 = vadd.f32 %v773, %v850
  %v888 = vadd.f32 %v774, %v853
  %v889 = vadd.f32 %v775, %v856
  %v890 = vadd.f32 %v776, %v859
  %v891 = vadd.f32 %v777, %v862
  %v892 = vadd.f32 %v778, %v865
  %v893 = vadd.f32 %v779, %v868
  %v894 = vadd.f32 %v780, %v871
  %v895 = vadd.f32 %v781, %v874
  %v896 = vadd.f32 %v782, %v877
  %v897 = vadd.f32 %v783, %v880
  %v898 = vld [vmem:[%s669 + $0x2] sm:$0xff]
  %v899 = vld [vmem:[%s669 + $0x12] sm:$0xff]
  %v900 = vld [vmem:[%s669 + $0x22] sm:$0xff]
  %v901 = vld [vmem:[%s669 + $0x32] sm:$0xff]
  %v902 = vld [vmem:[%s669 + $0x42] sm:$0xff]
  %v903 = vld [vmem:[%s669 + $0x52] sm:$0xff]
  %v904 = vld [vmem:[%s669 + $0x62] sm:$0xff]
  %v905 = vld [vmem:[%s669 + $0x72] sm:$0xff]
  %v906 = vld [vmem:[%s669 + $0xa2] sm:$0xff]
  %v907 = vld [vmem:[%s669 + $0xb2] sm:$0xff]
  %v908 = vld [vmem:[%s669 + $0xc2] sm:$0xff]
  %v909 = vld [vmem:[%s669 + $0xd2] sm:$0xff]
  %v910 = vld [vmem:[%s669 + $0xe2] sm:$0xff]
  %v911 = vld [vmem:[%s669 + $0xf2] sm:$0xff]
  %v912 = vld [vmem:[%s669 + $0x102] sm:$0xff]
  %v913 = vld [vmem:[%s669 + $0x112] sm:$0xff]
  %s914 = scalar_lea.vmem %s1, 1024
  %v915 = vld [vmem:[%s914] sm:$0xff]
  %v916 = vld [vmem:[%s914 + $0x8] sm:$0xff]
  %v917 = vld [vmem:[%s914 + $0x10] sm:$0xff]
  %v918 = vld [vmem:[%s914 + $0x18] sm:$0xff]
  %v919 = vld [vmem:[%s914 + $0x20] sm:$0xff]
  %v920 = vld [vmem:[%s914 + $0x28] sm:$0xff]
  %v921 = vld [vmem:[%s914 + $0x30] sm:$0xff]
  %v922 = vld [vmem:[%s914 + $0x38] sm:$0xff]
  %v923 = vld [vmem:[%s914 + $0x40] sm:$0xff]
  %v924 = vld [vmem:[%s914 + $0x48] sm:$0xff]
  %v925 = vld [vmem:[%s914 + $0x50] sm:$0xff]
  %v926 = vld [vmem:[%s914 + $0x58] sm:$0xff]
  %v927 = vld [vmem:[%s914 + $0x60] sm:$0xff]
  %v928 = vld [vmem:[%s914 + $0x68] sm:$0xff]
  %v929 = vld [vmem:[%s914 + $0x70] sm:$0xff]
  %v930 = vld [vmem:[%s914 + $0x78] sm:$0xff]
  %931 = vmatpush.msra.mxu0 %v930
  %932 = vmatpush.msra.mxu0 %v929
  %933 = vmatpush.msra.mxu0 %v928
  %934 = vmatpush.msra.mxu0 %v927
  %935 = vmatpush.msra.mxu0 %v926
  %936 = vmatpush.msra.mxu0 %v925
  %937 = vmatpush.msra.mxu0 %v924
  %938 = vmatpush.msra.mxu0 %v923
  %939 = vmatpush.msra.mxu0 %v922
  %940 = vmatpush.msra.mxu0 %v921
  %941 = vmatpush.msra.mxu0 %v920
  %942 = vmatpush.msra.mxu0 %v919
  %943 = vmatpush.msra.mxu0 %v918
  %944 = vmatpush.msra.mxu0 %v917
  %945 = vmatpush.msra.mxu0 %v916
  %946 = vmatpush.msra.mxu0 %v915
  %947 = vmatmul.f32.gmra.mxu0 %v898
  %v948 = vpop.f32.mrf.mxu0
  %v949 = vadd.f32 0.0, %v948
  %950 = vmatmul.f32.gmra.mxu0 %v899
  %v951 = vpop.f32.mrf.mxu0
  %v952 = vadd.f32 0.0, %v951
  %953 = vmatmul.f32.gmra.mxu0 %v900
  %v954 = vpop.f32.mrf.mxu0
  %v955 = vadd.f32 0.0, %v954
  %956 = vmatmul.f32.gmra.mxu0 %v901
  %v957 = vpop.f32.mrf.mxu0
  %v958 = vadd.f32 0.0, %v957
  %959 = vmatmul.f32.gmra.mxu0 %v902
  %v960 = vpop.f32.mrf.mxu0
  %v961 = vadd.f32 0.0, %v960
  %962 = vmatmul.f32.gmra.mxu0 %v903
  %v963 = vpop.f32.mrf.mxu0
  %v964 = vadd.f32 0.0, %v963
  %965 = vmatmul.f32.gmra.mxu0 %v904
  %v966 = vpop.f32.mrf.mxu0
  %v967 = vadd.f32 0.0, %v966
  %968 = vmatmul.f32.gmra.mxu0 %v905
  %v969 = vpop.f32.mrf.mxu0
  %v970 = vadd.f32 0.0, %v969
  %971 = vmatmul.f32.gmra.mxu0 %v906
  %v972 = vpop.f32.mrf.mxu0
  %v973 = vadd.f32 0.0, %v972
  %974 = vmatmul.f32.gmra.mxu0 %v907
  %v975 = vpop.f32.mrf.mxu0
  %v976 = vadd.f32 0.0, %v975
  %977 = vmatmul.f32.gmra.mxu0 %v908
  %v978 = vpop.f32.mrf.mxu0
  %v979 = vadd.f32 0.0, %v978
  %980 = vmatmul.f32.gmra.mxu0 %v909
  %v981 = vpop.f32.mrf.mxu0
  %v982 = vadd.f32 0.0, %v981
  %983 = vmatmul.f32.gmra.mxu0 %v910
  %v984 = vpop.f32.mrf.mxu0
  %v985 = vadd.f32 0.0, %v984
  %986 = vmatmul.f32.gmra.mxu0 %v911
  %v987 = vpop.f32.mrf.mxu0
  %v988 = vadd.f32 0.0, %v987
  %989 = vmatmul.f32.gmra.mxu0 %v912
  %v990 = vpop.f32.mrf.mxu0
  %v991 = vadd.f32 0.0, %v990
  %992 = vmatmul.f32.gmra.mxu0 %v913
  %v993 = vpop.f32.mrf.mxu0
  %v994 = vadd.f32 0.0, %v993
  %995 = vdwg.mxu0
  %v996 = vadd.f32 %v882, %v949
  %v997 = vadd.f32 %v883, %v952
  %v998 = vadd.f32 %v884, %v955
  %v999 = vadd.f32 %v885, %v958
  %v1000 = vadd.f32 %v886, %v961
  %v1001 = vadd.f32 %v887, %v964
  %v1002 = vadd.f32 %v888, %v967
  %v1003 = vadd.f32 %v889, %v970
  %v1004 = vadd.f32 %v890, %v973
  %v1005 = vadd.f32 %v891, %v976
  %v1006 = vadd.f32 %v892, %v979
  %v1007 = vadd.f32 %v893, %v982
  %v1008 = vadd.f32 %v894, %v985
  %v1009 = vadd.f32 %v895, %v988
  %v1010 = vadd.f32 %v896, %v991
  %v1011 = vadd.f32 %v897, %v994
  %v1012 = vld [vmem:[%s2] sm:$0x1]
  %v1014 = vperm.slane %v1012, 0
  %v1016 = vadd.f32 %v996, %v1014
  %v1017 = vadd.f32 %v997, %v1014
  %v1018 = vadd.f32 %v998, %v1014
  %v1019 = vadd.f32 %v999, %v1014
  %v1020 = vadd.f32 %v1000, %v1014
  %v1021 = vadd.f32 %v1001, %v1014
  %v1022 = vadd.f32 %v1002, %v1014
  %v1023 = vadd.f32 %v1003, %v1014
  %v1024 = vadd.f32 %v1004, %v1014
  %v1025 = vadd.f32 %v1005, %v1014
  %v1026 = vadd.f32 %v1006, %v1014
  %v1027 = vadd.f32 %v1007, %v1014
  %v1028 = vadd.f32 %v1008, %v1014
  %v1029 = vadd.f32 %v1009, %v1014
  %v1030 = vadd.f32 %v1010, %v1014
  %v1031 = vadd.f32 %v1011, %v1014
  %vm1032 = vcmp.gt.f32.partialorder %v1016, 0.0
  %vm1033 = vcmp.gt.f32.partialorder %v1017, 0.0
  %vm1034 = vcmp.gt.f32.partialorder %v1018, 0.0
  %vm1035 = vcmp.gt.f32.partialorder %v1019, 0.0
  %vm1036 = vcmp.gt.f32.partialorder %v1020, 0.0
  %vm1037 = vcmp.gt.f32.partialorder %v1021, 0.0
  %vm1038 = vcmp.gt.f32.partialorder %v1022, 0.0
  %vm1039 = vcmp.gt.f32.partialorder %v1023, 0.0
  %vm1040 = vcmp.gt.f32.partialorder %v1024, 0.0
  %vm1041 = vcmp.gt.f32.partialorder %v1025, 0.0
  %vm1042 = vcmp.gt.f32.partialorder %v1026, 0.0
  %vm1043 = vcmp.gt.f32.partialorder %v1027, 0.0
  %vm1044 = vcmp.gt.f32.partialorder %v1028, 0.0
  %vm1045 = vcmp.gt.f32.partialorder %v1029, 0.0
  %vm1046 = vcmp.gt.f32.partialorder %v1030, 0.0
  %vm1047 = vcmp.gt.f32.partialorder %v1031, 0.0
  %v1048 = vmul.f32 %v1016, 0.1
  %v1049 = vmul.f32 %v1017, 0.1
  %v1050 = vmul.f32 %v1018, 0.1
  %v1051 = vmul.f32 %v1019, 0.1
  %v1052 = vmul.f32 %v1020, 0.1
  %v1053 = vmul.f32 %v1021, 0.1
  %v1054 = vmul.f32 %v1022, 0.1
  %v1055 = vmul.f32 %v1023, 0.1
  %v1056 = vmul.f32 %v1024, 0.1
  %v1057 = vmul.f32 %v1025, 0.1
  %v1058 = vmul.f32 %v1026, 0.1
  %v1059 = vmul.f32 %v1027, 0.1
  %v1060 = vmul.f32 %v1028, 0.1
  %v1061 = vmul.f32 %v1029, 0.1
  %v1062 = vmul.f32 %v1030, 0.1
  %v1063 = vmul.f32 %v1031, 0.1
  %v1064 = vsel %vm1032, %v1016, %v1048
  %v1065 = vsel %vm1033, %v1017, %v1049
  %v1066 = vsel %vm1034, %v1018, %v1050
  %v1067 = vsel %vm1035, %v1019, %v1051
  %v1068 = vsel %vm1036, %v1020, %v1052
  %v1069 = vsel %vm1037, %v1021, %v1053
  %v1070 = vsel %vm1038, %v1022, %v1054
  %v1071 = vsel %vm1039, %v1023, %v1055
  %v1072 = vsel %vm1040, %v1024, %v1056
  %v1073 = vsel %vm1041, %v1025, %v1057
  %v1074 = vsel %vm1042, %v1026, %v1058
  %v1075 = vsel %vm1043, %v1027, %v1059
  %v1076 = vsel %vm1044, %v1028, %v1060
  %v1077 = vsel %vm1045, %v1029, %v1061
  %v1078 = vsel %vm1046, %v1030, %v1062
  %v1079 = vsel %vm1047, %v1031, %v1063
  %v1080 = vld [vmem:[%s3] sm:$0xff]
  %v1081 = vld [vmem:[%s3 + $0x8] sm:$0xff]
  %v1082 = vld [vmem:[%s3 + $0x10] sm:$0xff]
  %v1083 = vld [vmem:[%s3 + $0x18] sm:$0xff]
  %v1084 = vld [vmem:[%s3 + $0x20] sm:$0xff]
  %v1085 = vld [vmem:[%s3 + $0x28] sm:$0xff]
  %v1086 = vld [vmem:[%s3 + $0x30] sm:$0xff]
  %v1087 = vld [vmem:[%s3 + $0x38] sm:$0xff]
  %v1088 = vld [vmem:[%s3 + $0x40] sm:$0xff]
  %v1089 = vld [vmem:[%s3 + $0x48] sm:$0xff]
  %v1090 = vld [vmem:[%s3 + $0x50] sm:$0xff]
  %v1091 = vld [vmem:[%s3 + $0x58] sm:$0xff]
  %v1092 = vld [vmem:[%s3 + $0x60] sm:$0xff]
  %v1093 = vld [vmem:[%s3 + $0x68] sm:$0xff]
  %v1094 = vld [vmem:[%s3 + $0x70] sm:$0xff]
  %v1095 = vld [vmem:[%s3 + $0x78] sm:$0xff]
  %v1096 = vadd.f32 %v1064, %v1080
  %v1097 = vadd.f32 %v1065, %v1081
  %v1098 = vadd.f32 %v1066, %v1082
  %v1099 = vadd.f32 %v1067, %v1083
  %v1100 = vadd.f32 %v1068, %v1084
  %v1101 = vadd.f32 %v1069, %v1085
  %v1102 = vadd.f32 %v1070, %v1086
  %v1103 = vadd.f32 %v1071, %v1087
  %v1104 = vadd.f32 %v1072, %v1088
  %v1105 = vadd.f32 %v1073, %v1089
  %v1106 = vadd.f32 %v1074, %v1090
  %v1107 = vadd.f32 %v1075, %v1091
  %v1108 = vadd.f32 %v1076, %v1092
  %v1109 = vadd.f32 %v1077, %v1093
  %v1110 = vadd.f32 %v1078, %v1094
  %v1111 = vadd.f32 %v1079, %v1095
  %1112 = vst [vmem:[%s4] sm:$0xff] %v1096
  %1113 = vst [vmem:[%s4 + $0x8] sm:$0xff] %v1097
  %1114 = vst [vmem:[%s4 + $0x10] sm:$0xff] %v1098
  %1115 = vst [vmem:[%s4 + $0x18] sm:$0xff] %v1099
  %1116 = vst [vmem:[%s4 + $0x20] sm:$0xff] %v1100
  %1117 = vst [vmem:[%s4 + $0x28] sm:$0xff] %v1101
  %1118 = vst [vmem:[%s4 + $0x30] sm:$0xff] %v1102
  %1119 = vst [vmem:[%s4 + $0x38] sm:$0xff] %v1103
  %1120 = vst [vmem:[%s4 + $0x40] sm:$0xff] %v1104
  %1121 = vst [vmem:[%s4 + $0x48] sm:$0xff] %v1105
  %1122 = vst [vmem:[%s4 + $0x50] sm:$0xff] %v1106
  %1123 = vst [vmem:[%s4 + $0x58] sm:$0xff] %v1107
  %1124 = vst [vmem:[%s4 + $0x60] sm:$0xff] %v1108
  %1125 = vst [vmem:[%s4 + $0x68] sm:$0xff] %v1109
  %1126 = vst [vmem:[%s4 + $0x70] sm:$0xff] %v1110
  %1127 = vst [vmem:[%s4 + $0x78] sm:$0xff] %v1111
  // Predicated region
  $region18: #{darknet_forward.8} parent=0 // pred_check
    _
  $region19: #{darknet_forward.8} parent=0 // pred_check_branch
    %1129 = sbr.rel (0) target = $region21
  $region20: #{darknet_forward.8} parent=0 // pred_region
    _
  $region21: #{darknet_forward.8} parent=0 // pred_fallthru
    _
  // Predicated region
  $region22: #{darknet_forward.8} parent=0 // pred_check
    _
  $region23: #{darknet_forward.8} parent=0 // pred_check_branch
    %1131 = sbr.rel (0) target = $region25
  $region24: #{darknet_forward.8} parent=0 // pred_region
    _
  $region25: #{darknet_forward.8} parent=0 // pred_fallthru
    _

// kernel: darknet_forward.6
$region0: #{darknet_forward.6}
  #allocation0 [shape = 'u32[]', space=smem, size = 0x4, offset = 0x4, fixed_abs, tag = 'smem constant byte address 0x4 - core index']
  #allocation1 [shape = 'u32[72,128]{1,0:T(1,128)}', space=vmem, size = 0x9000, scoped, tag = 'internal scratch']
  %s0 = inlined_call_operand.vmem [shape: f32[1,2,18,18,128], index: 0, kind: input, shape index: {}]
  %s1 = inlined_call_operand.vmem [shape: f32[9,128,128], index: 1, kind: input, shape index: {}]
  %s2 = inlined_call_operand.vmem [shape: f32[1,128], index: 2, kind: input, shape index: {}]
  %s3 = inlined_call_operand.vmem [shape: f32[2,16,16,128], index: 3, kind: output, shape index: {}]
  %s4 = sld [smem:[#allocation0]]
  $region22: #{darknet_forward.6} parent=0
    _
  %s6 = ssub.s32 1, %s4
  %s7 = scalar_select 0, %s6, %s4
  // Predicated region
  $region2: #{darknet_forward.6} parent=0 // pred_check
    _
  $region3: #{darknet_forward.6} parent=0 // pred_check_branch
    %9 = sbr.rel (0) target = $region5
  $region4: #{darknet_forward.6} parent=0 // pred_region
    _
  $region5: #{darknet_forward.6} parent=0 // pred_fallthru
    _
  // Predicated region
  $region6: #{darknet_forward.6} parent=0 // pred_check
    _
  $region7: #{darknet_forward.6} parent=0 // pred_check_branch
    %11 = sbr.rel (0) target = $region9
  $region8: #{darknet_forward.6} parent=0 // pred_region
    _
  $region9: #{darknet_forward.6} parent=0 // pred_fallthru
    _
  // Predicated region
  $region10: #{darknet_forward.6} parent=0 // pred_check
    _
  $region11: #{darknet_forward.6} parent=0 // pred_check_branch
    %13 = sbr.rel (0) target = $region13
  $region12: #{darknet_forward.6} parent=0 // pred_region
    _
  $region13: #{darknet_forward.6} parent=0 // pred_fallthru
    _
  %v14 = vld [vmem:[%s0] sm:$0xff]
  %v15 = vld [vmem:[%s0 + $0x8] sm:$0xff]
  %v16 = vld [vmem:[%s0 + $0x18] sm:$0xff]
  %v17 = vld [vmem:[%s0 + $0x20] sm:$0xff]
  %v18 = vld [vmem:[%s0 + $0x30] sm:$0xff]
  %v19 = vld [vmem:[%s0 + $0x38] sm:$0xff]
  %v20 = vld [vmem:[%s0 + $0x48] sm:$0xff]
  %v21 = vld [vmem:[%s0 + $0x50] sm:$0xff]
  %v22 = vld [vmem:[%s0 + $0x60] sm:$0xff]
  %v23 = vld [vmem:[%s0 + $0x68] sm:$0xff]
  %v24 = vld [vmem:[%s0 + $0x78] sm:$0xff]
  %v25 = vld [vmem:[%s0 + $0x80] sm:$0xff]
  %v26 = vld [vmem:[%s0 + $0x90] sm:$0xff]
  %v27 = vld [vmem:[%s0 + $0x98] sm:$0xff]
  %v28 = vld [vmem:[%s0 + $0xa8] sm:$0xff]
  %v29 = vld [vmem:[%s0 + $0xb0] sm:$0xff]
  %v30 = vld [vmem:[%s0 + $0xc0] sm:$0xff]
  %v31 = vld [vmem:[%s0 + $0xc8] sm:$0xff]
  %v32 = vld [vmem:[%s0 + $0xd8] sm:$0xff]
  %v33 = vld [vmem:[%s0 + $0xe0] sm:$0xff]
  %v34 = vld [vmem:[%s0 + $0xf0] sm:$0xff]
  %v35 = vld [vmem:[%s0 + $0xf8] sm:$0xff]
  %v36 = vld [vmem:[%s0 + $0x108] sm:$0xff]
  %v37 = vld [vmem:[%s0 + $0x110] sm:$0xff]
  %v38 = vld [vmem:[%s0 + $0x120] sm:$0xff]
  %v39 = vld [vmem:[%s0 + $0x128] sm:$0xff]
  %v40 = vld [vmem:[%s0 + $0x138] sm:$0xff]
  %v41 = vld [vmem:[%s0 + $0x140] sm:$0xff]
  %v42 = vld [vmem:[%s0 + $0x150] sm:$0xff]
  %v43 = vld [vmem:[%s0 + $0x158] sm:$0xff]
  %v44 = vld [vmem:[%s0 + $0x168] sm:$0xff]
  %v45 = vld [vmem:[%s0 + $0x170] sm:$0xff]
  %v46 = vld [vmem:[%s0 + $0x1b0] sm:$0xff]
  %v47 = vld [vmem:[%s0 + $0x1b8] sm:$0xff]
  %v48 = vld [vmem:[%s0 + $0x1c8] sm:$0xff]
  %v49 = vld [vmem:[%s0 + $0x1d0] sm:$0xff]
  %v50 = vld [vmem:[%s0 + $0x1e0] sm:$0xff]
  %v51 = vld [vmem:[%s0 + $0x1e8] sm:$0xff]
  %v52 = vld [vmem:[%s0 + $0x1f8] sm:$0xff]
  %v53 = vld [vmem:[%s0 + $0x200] sm:$0xff]
  %v54 = vld [vmem:[%s0 + $0x210] sm:$0xff]
  %v55 = vld [vmem:[%s0 + $0x218] sm:$0xff]
  %v56 = vld [vmem:[%s0 + $0x228] sm:$0xff]
  %v57 = vld [vmem:[%s0 + $0x230] sm:$0xff]
  %v58 = vld [vmem:[%s0 + $0x240] sm:$0xff]
  %v59 = vld [vmem:[%s0 + $0x248] sm:$0xff]
  %v60 = vld [vmem:[%s0 + $0x258] sm:$0xff]
  %v61 = vld [vmem:[%s0 + $0x260] sm:$0xff]
  %v62 = vld [vmem:[%s0 + $0x270] sm:$0xff]
  %v63 = vld [vmem:[%s0 + $0x278] sm:$0xff]
  %v64 = vld [vmem:[%s0 + $0x288] sm:$0xff]
  %v65 = vld [vmem:[%s0 + $0x290] sm:$0xff]
  %v66 = vld [vmem:[%s0 + $0x2a0] sm:$0xff]
  %v67 = vld [vmem:[%s0 + $0x2a8] sm:$0xff]
  %v68 = vld [vmem:[%s0 + $0x2b8] sm:$0xff]
  %v69 = vld [vmem:[%s0 + $0x2c0] sm:$0xff]
  %v70 = vld [vmem:[%s0 + $0x2d0] sm:$0xff]
  %v71 = vld [vmem:[%s0 + $0x2d8] sm:$0xff]
  %v72 = vld [vmem:[%s0 + $0x2e8] sm:$0xff]
  %v73 = vld [vmem:[%s0 + $0x2f0] sm:$0xff]
  %v74 = vld [vmem:[%s0 + $0x300] sm:$0xff]
  %v75 = vld [vmem:[%s0 + $0x308] sm:$0xff]
  %v76 = vld [vmem:[%s0 + $0x318] sm:$0xff]
  %v77 = vld [vmem:[%s0 + $0x320] sm:$0xff]
  %v78 = vld [vmem:[%s1] sm:$0xff]
  %v79 = vld [vmem:[%s1 + $0x8] sm:$0xff]
  %v80 = vld [vmem:[%s1 + $0x10] sm:$0xff]
  %v81 = vld [vmem:[%s1 + $0x18] sm:$0xff]
  %v82 = vld [vmem:[%s1 + $0x20] sm:$0xff]
  %v83 = vld [vmem:[%s1 + $0x28] sm:$0xff]
  %v84 = vld [vmem:[%s1 + $0x30] sm:$0xff]
  %v85 = vld [vmem:[%s1 + $0x38] sm:$0xff]
  %v86 = vld [vmem:[%s1 + $0x40] sm:$0xff]
  %v87 = vld [vmem:[%s1 + $0x48] sm:$0xff]
  %v88 = vld [vmem:[%s1 + $0x50] sm:$0xff]
  %v89 = vld [vmem:[%s1 + $0x58] sm:$0xff]
  %v90 = vld [vmem:[%s1 + $0x60] sm:$0xff]
  %v91 = vld [vmem:[%s1 + $0x68] sm:$0xff]
  %v92 = vld [vmem:[%s1 + $0x70] sm:$0xff]
  %v93 = vld [vmem:[%s1 + $0x78] sm:$0xff]
  %v94 = vld [vmem:[%s0 + $0x1] sm:$0xff]
  %v95 = vld [vmem:[%s0 + $0x9] sm:$0xff]
  %v96 = vld [vmem:[%s0 + $0x19] sm:$0xff]
  %v97 = vld [vmem:[%s0 + $0x21] sm:$0xff]
  %v98 = vld [vmem:[%s0 + $0x31] sm:$0xff]
  %v99 = vld [vmem:[%s0 + $0x39] sm:$0xff]
  %v100 = vld [vmem:[%s0 + $0x49] sm:$0xff]
  %v101 = vld [vmem:[%s0 + $0x51] sm:$0xff]
  %v102 = vld [vmem:[%s0 + $0x61] sm:$0xff]
  %v103 = vld [vmem:[%s0 + $0x69] sm:$0xff]
  %v104 = vld [vmem:[%s0 + $0x79] sm:$0xff]
  %v105 = vld [vmem:[%s0 + $0x81] sm:$0xff]
  %v106 = vld [vmem:[%s0 + $0x91] sm:$0xff]
  %v107 = vld [vmem:[%s0 + $0x99] sm:$0xff]
  %v108 = vld [vmem:[%s0 + $0xa9] sm:$0xff]
  %v109 = vld [vmem:[%s0 + $0xb1] sm:$0xff]
  %v110 = vld [vmem:[%s0 + $0xc1] sm:$0xff]
  %v111 = vld [vmem:[%s0 + $0xc9] sm:$0xff]
  %v112 = vld [vmem:[%s0 + $0xd9] sm:$0xff]
  %v113 = vld [vmem:[%s0 + $0xe1] sm:$0xff]
  %v114 = vld [vmem:[%s0 + $0xf1] sm:$0xff]
  %v115 = vld [vmem:[%s0 + $0xf9] sm:$0xff]
  %v116 = vld [vmem:[%s0 + $0x109] sm:$0xff]
  %v117 = vld [vmem:[%s0 + $0x111] sm:$0xff]
  %v118 = vld [vmem:[%s0 + $0x121] sm:$0xff]
  %v119 = vld [vmem:[%s0 + $0x129] sm:$0xff]
  %v120 = vld [vmem:[%s0 + $0x139] sm:$0xff]
  %v121 = vld [vmem:[%s0 + $0x141] sm:$0xff]
  %v122 = vld [vmem:[%s0 + $0x151] sm:$0xff]
  %v123 = vld [vmem:[%s0 + $0x159] sm:$0xff]
  %v124 = vld [vmem:[%s0 + $0x169] sm:$0xff]
  %v125 = vld [vmem:[%s0 + $0x171] sm:$0xff]
  %v126 = vld [vmem:[%s0 + $0x1b1] sm:$0xff]
  %v127 = vld [vmem:[%s0 + $0x1b9] sm:$0xff]
  %v128 = vld [vmem:[%s0 + $0x1c9] sm:$0xff]
  %v129 = vld [vmem:[%s0 + $0x1d1] sm:$0xff]
  %v130 = vld [vmem:[%s0 + $0x1e1] sm:$0xff]
  %v131 = vld [vmem:[%s0 + $0x1e9] sm:$0xff]
  %v132 = vld [vmem:[%s0 + $0x1f9] sm:$0xff]
  %v133 = vld [vmem:[%s0 + $0x201] sm:$0xff]
  %v134 = vld [vmem:[%s0 + $0x211] sm:$0xff]
  %v135 = vld [vmem:[%s0 + $0x219] sm:$0xff]
  %v136 = vld [vmem:[%s0 + $0x229] sm:$0xff]
  %v137 = vld [vmem:[%s0 + $0x231] sm:$0xff]
  %v138 = vld [vmem:[%s0 + $0x241] sm:$0xff]
  %v139 = vld [vmem:[%s0 + $0x249] sm:$0xff]
  %v140 = vld [vmem:[%s0 + $0x259] sm:$0xff]
  %v141 = vld [vmem:[%s0 + $0x261] sm:$0xff]
  %v142 = vld [vmem:[%s0 + $0x271] sm:$0xff]
  %v143 = vld [vmem:[%s0 + $0x279] sm:$0xff]
  %v144 = vld [vmem:[%s0 + $0x289] sm:$0xff]
  %v145 = vld [vmem:[%s0 + $0x291] sm:$0xff]
  %v146 = vld [vmem:[%s0 + $0x2a1] sm:$0xff]
  %v147 = vld [vmem:[%s0 + $0x2a9] sm:$0xff]
  %v148 = vld [vmem:[%s0 + $0x2b9] sm:$0xff]
  %v149 = vld [vmem:[%s0 + $0x2c1] sm:$0xff]
  %v150 = vld [vmem:[%s0 + $0x2d1] sm:$0xff]
  %v151 = vld [vmem:[%s0 + $0x2d9] sm:$0xff]
  %v152 = vld [vmem:[%s0 + $0x2e9] sm:$0xff]
  %v153 = vld [vmem:[%s0 + $0x2f1] sm:$0xff]
  %v154 = vld [vmem:[%s0 + $0x301] sm:$0xff]
  %v155 = vld [vmem:[%s0 + $0x309] sm:$0xff]
  %v156 = vld [vmem:[%s0 + $0x319] sm:$0xff]
  %v157 = vld [vmem:[%s0 + $0x321] sm:$0xff]
  %s158 = scalar_lea.vmem %s1, 128
  %v159 = vld [vmem:[%s158] sm:$0xff]
  %v160 = vld [vmem:[%s158 + $0x8] sm:$0xff]
  %v161 = vld [vmem:[%s158 + $0x10] sm:$0xff]
  %v162 = vld [vmem:[%s158 + $0x18] sm:$0xff]
  %v163 = vld [vmem:[%s158 + $0x20] sm:$0xff]
  %v164 = vld [vmem:[%s158 + $0x28] sm:$0xff]
  %v165 = vld [vmem:[%s158 + $0x30] sm:$0xff]
  %v166 = vld [vmem:[%s158 + $0x38] sm:$0xff]
  %v167 = vld [vmem:[%s158 + $0x40] sm:$0xff]
  %v168 = vld [vmem:[%s158 + $0x48] sm:$0xff]
  %v169 = vld [vmem:[%s158 + $0x50] sm:$0xff]
  %v170 = vld [vmem:[%s158 + $0x58] sm:$0xff]
  %v171 = vld [vmem:[%s158 + $0x60] sm:$0xff]
  %v172 = vld [vmem:[%s158 + $0x68] sm:$0xff]
  %v173 = vld [vmem:[%s158 + $0x70] sm:$0xff]
  %v174 = vld [vmem:[%s158 + $0x78] sm:$0xff]
  %175 = vmatpush.msra.mxu0 %v174
  %176 = vmatpush.msra.mxu0 %v173
  %177 = vmatpush.msra.mxu0 %v172
  %178 = vmatpush.msra.mxu0 %v171
  %179 = vmatpush.msra.mxu0 %v170
  %180 = vmatpush.msra.mxu0 %v169
  %181 = vmatpush.msra.mxu0 %v168
  %182 = vmatpush.msra.mxu0 %v167
  %183 = vmatpush.msra.mxu0 %v166
  %184 = vmatpush.msra.mxu0 %v165
  %185 = vmatpush.msra.mxu0 %v164
  %186 = vmatpush.msra.mxu0 %v163
  %187 = vmatpush.msra.mxu0 %v162
  %188 = vmatpush.msra.mxu0 %v161
  %189 = vmatpush.msra.mxu0 %v160
  %190 = vmatpush.msra.mxu0 %v159
  %191 = vmatmul.f32.gmra.mxu0 %v94
  %v192 = vpop.f32.mrf.mxu0
  %v193 = vadd.f32 0.0, %v192
  %194 = vmatmul.f32.gmra.mxu0 %v95
  %v195 = vpop.f32.mrf.mxu0
  %v196 = vadd.f32 0.0, %v195
  %197 = vmatmul.f32.gmra.mxu0 %v96
  %v198 = vpop.f32.mrf.mxu0
  %v199 = vadd.f32 0.0, %v198
  %200 = vmatmul.f32.gmra.mxu0 %v97
  %v201 = vpop.f32.mrf.mxu0
  %v202 = vadd.f32 0.0, %v201
  %203 = vmatmul.f32.gmra.mxu0 %v98
  %v204 = vpop.f32.mrf.mxu0
  %v205 = vadd.f32 0.0, %v204
  %206 = vmatmul.f32.gmra.mxu0 %v99
  %v207 = vpop.f32.mrf.mxu0
  %v208 = vadd.f32 0.0, %v207
  %209 = vmatmul.f32.gmra.mxu0 %v100
  %v210 = vpop.f32.mrf.mxu0
  %v211 = vadd.f32 0.0, %v210
  %212 = vmatmul.f32.gmra.mxu0 %v101
  %v213 = vpop.f32.mrf.mxu0
  %v214 = vadd.f32 0.0, %v213
  %215 = vmatmul.f32.gmra.mxu0 %v102
  %v216 = vpop.f32.mrf.mxu0
  %v217 = vadd.f32 0.0, %v216
  %218 = vmatmul.f32.gmra.mxu0 %v103
  %v219 = vpop.f32.mrf.mxu0
  %v220 = vadd.f32 0.0, %v219
  %221 = vmatmul.f32.gmra.mxu0 %v104
  %v222 = vpop.f32.mrf.mxu0
  %v223 = vadd.f32 0.0, %v222
  %224 = vmatmul.f32.gmra.mxu0 %v105
  %v225 = vpop.f32.mrf.mxu0
  %v226 = vadd.f32 0.0, %v225
  %227 = vmatmul.f32.gmra.mxu0 %v106
  %v228 = vpop.f32.mrf.mxu0
  %v229 = vadd.f32 0.0, %v228
  %230 = vmatmul.f32.gmra.mxu0 %v107
  %v231 = vpop.f32.mrf.mxu0
  %v232 = vadd.f32 0.0, %v231
  %233 = vmatmul.f32.gmra.mxu0 %v108
  %v234 = vpop.f32.mrf.mxu0
  %v235 = vadd.f32 0.0, %v234
  %236 = vmatmul.f32.gmra.mxu0 %v109
  %v237 = vpop.f32.mrf.mxu0
  %v238 = vadd.f32 0.0, %v237
  %239 = vmatmul.f32.gmra.mxu0 %v110
  %v240 = vpop.f32.mrf.mxu0
  %v241 = vadd.f32 0.0, %v240
  %242 = vmatmul.f32.gmra.mxu0 %v111
  %v243 = vpop.f32.mrf.mxu0
  %v244 = vadd.f32 0.0, %v243
  %245 = vmatmul.f32.gmra.mxu0 %v112
  %v246 = vpop.f32.mrf.mxu0
  %v247 = vadd.f32 0.0, %v246
  %248 = vmatmul.f32.gmra.mxu0 %v113
  %v249 = vpop.f32.mrf.mxu0
  %v250 = vadd.f32 0.0, %v249
  %251 = vmatmul.f32.gmra.mxu0 %v114
  %v252 = vpop.f32.mrf.mxu0
  %v253 = vadd.f32 0.0, %v252
  %254 = vmatmul.f32.gmra.mxu0 %v115
  %v255 = vpop.f32.mrf.mxu0
  %v256 = vadd.f32 0.0, %v255
  %257 = vmatmul.f32.gmra.mxu0 %v116
  %v258 = vpop.f32.mrf.mxu0
  %v259 = vadd.f32 0.0, %v258
  %260 = vmatmul.f32.gmra.mxu0 %v117
  %v261 = vpop.f32.mrf.mxu0
  %v262 = vadd.f32 0.0, %v261
  %263 = vmatmul.f32.gmra.mxu0 %v118
  %v264 = vpop.f32.mrf.mxu0
  %v265 = vadd.f32 0.0, %v264
  %266 = vmatmul.f32.gmra.mxu0 %v119
  %v267 = vpop.f32.mrf.mxu0
  %v268 = vadd.f32 0.0, %v267
  %269 = vmatmul.f32.gmra.mxu0 %v120
  %v270 = vpop.f32.mrf.mxu0
  %v271 = vadd.f32 0.0, %v270
  %272 = vmatmul.f32.gmra.mxu0 %v121
  %v273 = vpop.f32.mrf.mxu0
  %v274 = vadd.f32 0.0, %v273
  %275 = vmatmul.f32.gmra.mxu0 %v122
  %v276 = vpop.f32.mrf.mxu0
  %v277 = vadd.f32 0.0, %v276
  %278 = vmatmul.f32.gmra.mxu0 %v123
  %v279 = vpop.f32.mrf.mxu0
  %v280 = vadd.f32 0.0, %v279
  %281 = vmatmul.f32.gmra.mxu0 %v124
  %v282 = vpop.f32.mrf.mxu0
  %v283 = vadd.f32 0.0, %v282
  %284 = vmatmul.f32.gmra.mxu0 %v125
  %v285 = vpop.f32.mrf.mxu0
  %v286 = vadd.f32 0.0, %v285
  %287 = vmatmul.f32.gmra.mxu0 %v126
  %v288 = vpop.f32.mrf.mxu0
  %v289 = vadd.f32 0.0, %v288
  %290 = vmatmul.f32.gmra.mxu0 %v127
  %v291 = vpop.f32.mrf.mxu0
  %v292 = vadd.f32 0.0, %v291
  %293 = vmatmul.f32.gmra.mxu0 %v128
  %v294 = vpop.f32.mrf.mxu0
  %v295 = vadd.f32 0.0, %v294
  %296 = vmatmul.f32.gmra.mxu0 %v129
  %v297 = vpop.f32.mrf.mxu0
  %v298 = vadd.f32 0.0, %v297
  %299 = vmatmul.f32.gmra.mxu0 %v130
  %v300 = vpop.f32.mrf.mxu0
  %v301 = vadd.f32 0.0, %v300
  %302 = vmatmul.f32.gmra.mxu0 %v131
  %v303 = vpop.f32.mrf.mxu0
  %v304 = vadd.f32 0.0, %v303
  %305 = vmatmul.f32.gmra.mxu0 %v132
  %v306 = vpop.f32.mrf.mxu0
  %v307 = vadd.f32 0.0, %v306
  %308 = vmatmul.f32.gmra.mxu0 %v133
  %v309 = vpop.f32.mrf.mxu0
  %v310 = vadd.f32 0.0, %v309
  %311 = vmatmul.f32.gmra.mxu0 %v134
  %v312 = vpop.f32.mrf.mxu0
  %v313 = vadd.f32 0.0, %v312
  %314 = vmatmul.f32.gmra.mxu0 %v135
  %v315 = vpop.f32.mrf.mxu0
  %v316 = vadd.f32 0.0, %v315
  %317 = vmatmul.f32.gmra.mxu0 %v136
  %v318 = vpop.f32.mrf.mxu0
  %v319 = vadd.f32 0.0, %v318
  %320 = vmatmul.f32.gmra.mxu0 %v137
  %v321 = vpop.f32.mrf.mxu0
  %v322 = vadd.f32 0.0, %v321
  %323 = vmatmul.f32.gmra.mxu0 %v138
  %v324 = vpop.f32.mrf.mxu0
  %v325 = vadd.f32 0.0, %v324
  %326 = vmatmul.f32.gmra.mxu0 %v139
  %v327 = vpop.f32.mrf.mxu0
  %v328 = vadd.f32 0.0, %v327
  %329 = vmatmul.f32.gmra.mxu0 %v140
  %v330 = vpop.f32.mrf.mxu0
  %v331 = vadd.f32 0.0, %v330
  %332 = vmatmul.f32.gmra.mxu0 %v141
  %v333 = vpop.f32.mrf.mxu0
  %v334 = vadd.f32 0.0, %v333
  %335 = vmatmul.f32.gmra.mxu0 %v142
  %v336 = vpop.f32.mrf.mxu0
  %v337 = vadd.f32 0.0, %v336
  %338 = vmatmul.f32.gmra.mxu0 %v143
  %v339 = vpop.f32.mrf.mxu0
  %v340 = vadd.f32 0.0, %v339
  %341 = vmatmul.f32.gmra.mxu0 %v144
  %v342 = vpop.f32.mrf.mxu0
  %v343 = vadd.f32 0.0, %v342
  %344 = vmatmul.f32.gmra.mxu0 %v145
  %v345 = vpop.f32.mrf.mxu0
  %v346 = vadd.f32 0.0, %v345
  %347 = vmatmul.f32.gmra.mxu0 %v146
  %v348 = vpop.f32.mrf.mxu0
  %v349 = vadd.f32 0.0, %v348
  %350 = vmatmul.f32.gmra.mxu0 %v147
  %v351 = vpop.f32.mrf.mxu0
  %v352 = vadd.f32 0.0, %v351
  %353 = vmatmul.f32.gmra.mxu0 %v148
  %v354 = vpop.f32.mrf.mxu0
  %v355 = vadd.f32 0.0, %v354
  %356 = vmatmul.f32.gmra.mxu0 %v149
  %v357 = vpop.f32.mrf.mxu0
  %v358 = vadd.f32 0.0, %v357
  %359 = vmatmul.f32.gmra.mxu0 %v150
  %v360 = vpop.f32.mrf.mxu0
  %v361 = vadd.f32 0.0, %v360
  %362 = vmatmul.f32.gmra.mxu0 %v151
  %v363 = vpop.f32.mrf.mxu0
  %v364 = vadd.f32 0.0, %v363
  %365 = vmatmul.f32.gmra.mxu0 %v152
  %v366 = vpop.f32.mrf.mxu0
  %v367 = vadd.f32 0.0, %v366
  %368 = vmatmul.f32.gmra.mxu0 %v153
  %v369 = vpop.f32.mrf.mxu0
  %v370 = vadd.f32 0.0, %v369
  %371 = vmatmul.f32.gmra.mxu0 %v154
  %v372 = vpop.f32.mrf.mxu0
  %v373 = vadd.f32 0.0, %v372
  %374 = vmatmul.f32.gmra.mxu0 %v155
  %v375 = vpop.f32.mrf.mxu0
  %v376 = vadd.f32 0.0, %v375
  %377 = vmatmul.f32.gmra.mxu0 %v156
  %v378 = vpop.f32.mrf.mxu0
  %v379 = vadd.f32 0.0, %v378
  %380 = vmatmul.f32.gmra.mxu0 %v157
  %v381 = vpop.f32.mrf.mxu0
  %v382 = vadd.f32 0.0, %v381
  %383 = vdwg.mxu0
  %384 = vmatpush.msra.mxu0 %v93
  %385 = vmatpush.msra.mxu0 %v92
  %386 = vmatpush.msra.mxu0 %v91
  %387 = vmatpush.msra.mxu0 %v90
  %388 = vmatpush.msra.mxu0 %v89
  %389 = vmatpush.msra.mxu0 %v88
  %390 = vmatpush.msra.mxu0 %v87
  %391 = vmatpush.msra.mxu0 %v86
  %392 = vmatpush.msra.mxu0 %v85
  %393 = vmatpush.msra.mxu0 %v84
  %394 = vmatpush.msra.mxu0 %v83
  %395 = vmatpush.msra.mxu0 %v82
  %396 = vmatpush.msra.mxu0 %v81
  %397 = vmatpush.msra.mxu0 %v80
  %398 = vmatpush.msra.mxu0 %v79
  %399 = vmatpush.msra.mxu0 %v78
  %400 = vmatmul.f32.gmra.mxu0 %v14
  %v401 = vpop.f32.mrf.mxu0
  %v402 = vadd.f32 %v193, %v401
  %403 = vmatmul.f32.gmra.mxu0 %v15
  %v404 = vpop.f32.mrf.mxu0
  %v405 = vadd.f32 %v196, %v404
  %406 = vmatmul.f32.gmra.mxu0 %v16
  %v407 = vpop.f32.mrf.mxu0
  %v408 = vadd.f32 %v199, %v407
  %409 = vmatmul.f32.gmra.mxu0 %v17
  %v410 = vpop.f32.mrf.mxu0
  %v411 = vadd.f32 %v202, %v410
  %412 = vmatmul.f32.gmra.mxu0 %v18
  %v413 = vpop.f32.mrf.mxu0
  %v414 = vadd.f32 %v205, %v413
  %415 = vmatmul.f32.gmra.mxu0 %v19
  %v416 = vpop.f32.mrf.mxu0
  %v417 = vadd.f32 %v208, %v416
  %418 = vmatmul.f32.gmra.mxu0 %v20
  %v419 = vpop.f32.mrf.mxu0
  %v420 = vadd.f32 %v211, %v419
  %421 = vmatmul.f32.gmra.mxu0 %v21
  %v422 = vpop.f32.mrf.mxu0
  %v423 = vadd.f32 %v214, %v422
  %424 = vmatmul.f32.gmra.mxu0 %v22
  %v425 = vpop.f32.mrf.mxu0
  %v426 = vadd.f32 %v217, %v425
  %427 = vmatmul.f32.gmra.mxu0 %v23
  %v428 = vpop.f32.mrf.mxu0
  %v429 = vadd.f32 %v220, %v428
  %430 = vmatmul.f32.gmra.mxu0 %v24
  %v431 = vpop.f32.mrf.mxu0
  %v432 = vadd.f32 %v223, %v431
  %433 = vmatmul.f32.gmra.mxu0 %v25
  %v434 = vpop.f32.mrf.mxu0
  %v435 = vadd.f32 %v226, %v434
  %436 = vmatmul.f32.gmra.mxu0 %v26
  %v437 = vpop.f32.mrf.mxu0
  %v438 = vadd.f32 %v229, %v437
  %439 = vmatmul.f32.gmra.mxu0 %v27
  %v440 = vpop.f32.mrf.mxu0
  %v441 = vadd.f32 %v232, %v440
  %442 = vmatmul.f32.gmra.mxu0 %v28
  %v443 = vpop.f32.mrf.mxu0
  %v444 = vadd.f32 %v235, %v443
  %445 = vmatmul.f32.gmra.mxu0 %v29
  %v446 = vpop.f32.mrf.mxu0
  %v447 = vadd.f32 %v238, %v446
  %448 = vmatmul.f32.gmra.mxu0 %v30
  %v449 = vpop.f32.mrf.mxu0
  %v450 = vadd.f32 %v241, %v449
  %451 = vmatmul.f32.gmra.mxu0 %v31
  %v452 = vpop.f32.mrf.mxu0
  %v453 = vadd.f32 %v244, %v452
  %454 = vmatmul.f32.gmra.mxu0 %v32
  %v455 = vpop.f32.mrf.mxu0
  %v456 = vadd.f32 %v247, %v455
  %457 = vmatmul.f32.gmra.mxu0 %v33
  %v458 = vpop.f32.mrf.mxu0
  %v459 = vadd.f32 %v250, %v458
  %460 = vmatmul.f32.gmra.mxu0 %v34
  %v461 = vpop.f32.mrf.mxu0
  %v462 = vadd.f32 %v253, %v461
  %463 = vmatmul.f32.gmra.mxu0 %v35
  %v464 = vpop.f32.mrf.mxu0
  %v465 = vadd.f32 %v256, %v464
  %466 = vmatmul.f32.gmra.mxu0 %v36
  %v467 = vpop.f32.mrf.mxu0
  %v468 = vadd.f32 %v259, %v467
  %469 = vmatmul.f32.gmra.mxu0 %v37
  %v470 = vpop.f32.mrf.mxu0
  %v471 = vadd.f32 %v262, %v470
  %472 = vmatmul.f32.gmra.mxu0 %v38
  %v473 = vpop.f32.mrf.mxu0
  %v474 = vadd.f32 %v265, %v473
  %475 = vmatmul.f32.gmra.mxu0 %v39
  %v476 = vpop.f32.mrf.mxu0
  %v477 = vadd.f32 %v268, %v476
  %478 = vmatmul.f32.gmra.mxu0 %v40
  %v479 = vpop.f32.mrf.mxu0
  %v480 = vadd.f32 %v271, %v479
  %481 = vmatmul.f32.gmra.mxu0 %v41
  %v482 = vpop.f32.mrf.mxu0
  %v483 = vadd.f32 %v274, %v482
  %484 = vmatmul.f32.gmra.mxu0 %v42
  %v485 = vpop.f32.mrf.mxu0
  %v486 = vadd.f32 %v277, %v485
  %487 = vmatmul.f32.gmra.mxu0 %v43
  %v488 = vpop.f32.mrf.mxu0
  %v489 = vadd.f32 %v280, %v488
  %490 = vmatmul.f32.gmra.mxu0 %v44
  %v491 = vpop.f32.mrf.mxu0
  %v492 = vadd.f32 %v283, %v491
  %493 = vmatmul.f32.gmra.mxu0 %v45
  %v494 = vpop.f32.mrf.mxu0
  %v495 = vadd.f32 %v286, %v494
  %496 = vmatmul.f32.gmra.mxu0 %v46
  %v497 = vpop.f32.mrf.mxu0
  %v498 = vadd.f32 %v289, %v497
  %499 = vmatmul.f32.gmra.mxu0 %v47
  %v500 = vpop.f32.mrf.mxu0
  %v501 = vadd.f32 %v292, %v500
  %502 = vmatmul.f32.gmra.mxu0 %v48
  %v503 = vpop.f32.mrf.mxu0
  %v504 = vadd.f32 %v295, %v503
  %505 = vmatmul.f32.gmra.mxu0 %v49
  %v506 = vpop.f32.mrf.mxu0
  %v507 = vadd.f32 %v298, %v506
  %508 = vmatmul.f32.gmra.mxu0 %v50
  %v509 = vpop.f32.mrf.mxu0
  %v510 = vadd.f32 %v301, %v509
  %511 = vmatmul.f32.gmra.mxu0 %v51
  %v512 = vpop.f32.mrf.mxu0
  %v513 = vadd.f32 %v304, %v512
  %514 = vmatmul.f32.gmra.mxu0 %v52
  %v515 = vpop.f32.mrf.mxu0
  %v516 = vadd.f32 %v307, %v515
  %517 = vmatmul.f32.gmra.mxu0 %v53
  %v518 = vpop.f32.mrf.mxu0
  %v519 = vadd.f32 %v310, %v518
  %520 = vmatmul.f32.gmra.mxu0 %v54
  %v521 = vpop.f32.mrf.mxu0
  %v522 = vadd.f32 %v313, %v521
  %523 = vmatmul.f32.gmra.mxu0 %v55
  %v524 = vpop.f32.mrf.mxu0
  %v525 = vadd.f32 %v316, %v524
  %526 = vmatmul.f32.gmra.mxu0 %v56
  %v527 = vpop.f32.mrf.mxu0
  %v528 = vadd.f32 %v319, %v527
  %529 = vmatmul.f32.gmra.mxu0 %v57
  %v530 = vpop.f32.mrf.mxu0
  %v531 = vadd.f32 %v322, %v530
  %532 = vmatmul.f32.gmra.mxu0 %v58
  %v533 = vpop.f32.mrf.mxu0
  %v534 = vadd.f32 %v325, %v533
  %535 = vmatmul.f32.gmra.mxu0 %v59
  %v536 = vpop.f32.mrf.mxu0
  %v537 = vadd.f32 %v328, %v536
  %538 = vmatmul.f32.gmra.mxu0 %v60
  %v539 = vpop.f32.mrf.mxu0
  %v540 = vadd.f32 %v331, %v539
  %541 = vmatmul.f32.gmra.mxu0 %v61
  %v542 = vpop.f32.mrf.mxu0
  %v543 = vadd.f32 %v334, %v542
  %544 = vmatmul.f32.gmra.mxu0 %v62
  %v545 = vpop.f32.mrf.mxu0
  %v546 = vadd.f32 %v337, %v545
  %547 = vmatmul.f32.gmra.mxu0 %v63
  %v548 = vpop.f32.mrf.mxu0
  %v549 = vadd.f32 %v340, %v548
  %550 = vmatmul.f32.gmra.mxu0 %v64
  %v551 = vpop.f32.mrf.mxu0
  %v552 = vadd.f32 %v343, %v551
  %553 = vmatmul.f32.gmra.mxu0 %v65
  %v554 = vpop.f32.mrf.mxu0
  %v555 = vadd.f32 %v346, %v554
  %556 = vmatmul.f32.gmra.mxu0 %v66
  %v557 = vpop.f32.mrf.mxu0
  %v558 = vadd.f32 %v349, %v557
  %559 = vmatmul.f32.gmra.mxu0 %v67
  %v560 = vpop.f32.mrf.mxu0
  %v561 = vadd.f32 %v352, %v560
  %562 = vmatmul.f32.gmra.mxu0 %v68
  %v563 = vpop.f32.mrf.mxu0
  %v564 = vadd.f32 %v355, %v563
  %565 = vmatmul.f32.gmra.mxu0 %v69
  %v566 = vpop.f32.mrf.mxu0
  %v567 = vadd.f32 %v358, %v566
  %568 = vmatmul.f32.gmra.mxu0 %v70
  %v569 = vpop.f32.mrf.mxu0
  %v570 = vadd.f32 %v361, %v569
  %571 = vmatmul.f32.gmra.mxu0 %v71
  %v572 = vpop.f32.mrf.mxu0
  %v573 = vadd.f32 %v364, %v572
  %574 = vmatmul.f32.gmra.mxu0 %v72
  %v575 = vpop.f32.mrf.mxu0
  %v576 = vadd.f32 %v367, %v575
  %577 = vmatmul.f32.gmra.mxu0 %v73
  %v578 = vpop.f32.mrf.mxu0
  %v579 = vadd.f32 %v370, %v578
  %580 = vmatmul.f32.gmra.mxu0 %v74
  %v581 = vpop.f32.mrf.mxu0
  %v582 = vadd.f32 %v373, %v581
  %583 = vmatmul.f32.gmra.mxu0 %v75
  %v584 = vpop.f32.mrf.mxu0
  %v585 = vadd.f32 %v376, %v584
  %586 = vmatmul.f32.gmra.mxu0 %v76
  %v587 = vpop.f32.mrf.mxu0
  %v588 = vadd.f32 %v379, %v587
  %589 = vmatmul.f32.gmra.mxu0 %v77
  %v590 = vpop.f32.mrf.mxu0
  %v591 = vadd.f32 %v382, %v590
  %592 = vdwg.mxu0
  %v593 = vld [vmem:[%s0 + $0x2] sm:$0xff]
  %v594 = vld [vmem:[%s0 + $0xa] sm:$0xff]
  %v595 = vld [vmem:[%s0 + $0x1a] sm:$0xff]
  %v596 = vld [vmem:[%s0 + $0x22] sm:$0xff]
  %v597 = vld [vmem:[%s0 + $0x32] sm:$0xff]
  %v598 = vld [vmem:[%s0 + $0x3a] sm:$0xff]
  %v599 = vld [vmem:[%s0 + $0x4a] sm:$0xff]
  %v600 = vld [vmem:[%s0 + $0x52] sm:$0xff]
  %v601 = vld [vmem:[%s0 + $0x62] sm:$0xff]
  %v602 = vld [vmem:[%s0 + $0x6a] sm:$0xff]
  %v603 = vld [vmem:[%s0 + $0x7a] sm:$0xff]
  %v604 = vld [vmem:[%s0 + $0x82] sm:$0xff]
  %v605 = vld [vmem:[%s0 + $0x92] sm:$0xff]
  %v606 = vld [vmem:[%s0 + $0x9a] sm:$0xff]
  %v607 = vld [vmem:[%s0 + $0xaa] sm:$0xff]
  %v608 = vld [vmem:[%s0 + $0xb2] sm:$0xff]
  %v609 = vld [vmem:[%s0 + $0xc2] sm:$0xff]
  %v610 = vld [vmem:[%s0 + $0xca] sm:$0xff]
  %v611 = vld [vmem:[%s0 + $0xda] sm:$0xff]
  %v612 = vld [vmem:[%s0 + $0xe2] sm:$0xff]
  %v613 = vld [vmem:[%s0 + $0xf2] sm:$0xff]
  %v614 = vld [vmem:[%s0 + $0xfa] sm:$0xff]
  %v615 = vld [vmem:[%s0 + $0x10a] sm:$0xff]
  %v616 = vld [vmem:[%s0 + $0x112] sm:$0xff]
  %v617 = vld [vmem:[%s0 + $0x122] sm:$0xff]
  %v618 = vld [vmem:[%s0 + $0x12a] sm:$0xff]
  %v619 = vld [vmem:[%s0 + $0x13a] sm:$0xff]
  %v620 = vld [vmem:[%s0 + $0x142] sm:$0xff]
  %v621 = vld [vmem:[%s0 + $0x152] sm:$0xff]
  %v622 = vld [vmem:[%s0 + $0x15a] sm:$0xff]
  %v623 = vld [vmem:[%s0 + $0x16a] sm:$0xff]
  %v624 = vld [vmem:[%s0 + $0x172] sm:$0xff]
  %v625 = vld [vmem:[%s0 + $0x1b2] sm:$0xff]
  %v626 = vld [vmem:[%s0 + $0x1ba] sm:$0xff]
  %v627 = vld [vmem:[%s0 + $0x1ca] sm:$0xff]
  %v628 = vld [vmem:[%s0 + $0x1d2] sm:$0xff]
  %v629 = vld [vmem:[%s0 + $0x1e2] sm:$0xff]
  %v630 = vld [vmem:[%s0 + $0x1ea] sm:$0xff]
  %v631 = vld [vmem:[%s0 + $0x1fa] sm:$0xff]
  %v632 = vld [vmem:[%s0 + $0x202] sm:$0xff]
  %v633 = vld [vmem:[%s0 + $0x212] sm:$0xff]
  %v634 = vld [vmem:[%s0 + $0x21a] sm:$0xff]
  %v635 = vld [vmem:[%s0 + $0x22a] sm:$0xff]
  %v636 = vld [vmem:[%s0 + $0x232] sm:$0xff]
  %v637 = vld [vmem:[%s0 + $0x242] sm:$0xff]
  %v638 = vld [vmem:[%s0 + $0x24a] sm:$0xff]
  %v639 = vld [vmem:[%s0 + $0x25a] sm:$0xff]
  %v640 = vld [vmem:[%s0 + $0x262] sm:$0xff]
  %v641 = vld [vmem:[%s0 + $0x272] sm:$0xff]
  %v642 = vld [vmem:[%s0 + $0x27a] sm:$0xff]
  %v643 = vld [vmem:[%s0 + $0x28a] sm:$0xff]
  %v644 = vld [vmem:[%s0 + $0x292] sm:$0xff]
  %v645 = vld [vmem:[%s0 + $0x2a2] sm:$0xff]
  %v646 = vld [vmem:[%s0 + $0x2aa] sm:$0xff]
  %v647 = vld [vmem:[%s0 + $0x2ba] sm:$0xff]
  %v648 = vld [vmem:[%s0 + $0x2c2] sm:$0xff]
  %v649 = vld [vmem:[%s0 + $0x2d2] sm:$0xff]
  %v650 = vld [vmem:[%s0 + $0x2da] sm:$0xff]
  %v651 = vld [vmem:[%s0 + $0x2ea] sm:$0xff]
  %v652 = vld [vmem:[%s0 + $0x2f2] sm:$0xff]
  %v653 = vld [vmem:[%s0 + $0x302] sm:$0xff]
  %v654 = vld [vmem:[%s0 + $0x30a] sm:$0xff]
  %v655 = vld [vmem:[%s0 + $0x31a] sm:$0xff]
  %v656 = vld [vmem:[%s0 + $0x322] sm:$0xff]
  %s657 = scalar_lea.vmem %s1, 256
  %v658 = vld [vmem:[%s657] sm:$0xff]
  %v659 = vld [vmem:[%s657 + $0x8] sm:$0xff]
  %v660 = vld [vmem:[%s657 + $0x10] sm:$0xff]
  %v661 = vld [vmem:[%s657 + $0x18] sm:$0xff]
  %v662 = vld [vmem:[%s657 + $0x20] sm:$0xff]
  %v663 = vld [vmem:[%s657 + $0x28] sm:$0xff]
  %v664 = vld [vmem:[%s657 + $0x30] sm:$0xff]
  %v665 = vld [vmem:[%s657 + $0x38] sm:$0xff]
  %v666 = vld [vmem:[%s657 + $0x40] sm:$0xff]
  %v667 = vld [vmem:[%s657 + $0x48] sm:$0xff]
  %v668 = vld [vmem:[%s657 + $0x50] sm:$0xff]
  %v669 = vld [vmem:[%s657 + $0x58] sm:$0xff]
  %v670 = vld [vmem:[%s657 + $0x60] sm:$0xff]
  %v671 = vld [vmem:[%s657 + $0x68] sm:$0xff]
  %v672 = vld [vmem:[%s657 + $0x70] sm:$0xff]
  %v673 = vld [vmem:[%s657 + $0x78] sm:$0xff]
  %674 = vmatpush.msra.mxu0 %v673
  %675 = vmatpush.msra.mxu0 %v672
  %676 = vmatpush.msra.mxu0 %v671
  %677 = vmatpush.msra.mxu0 %v670
  %678 = vmatpush.msra.mxu0 %v669
  %679 = vmatpush.msra.mxu0 %v668
  %680 = vmatpush.msra.mxu0 %v667
  %681 = vmatpush.msra.mxu0 %v666
  %682 = vmatpush.msra.mxu0 %v665
  %683 = vmatpush.msra.mxu0 %v664
  %684 = vmatpush.msra.mxu0 %v663
  %685 = vmatpush.msra.mxu0 %v662
  %686 = vmatpush.msra.mxu0 %v661
  %687 = vmatpush.msra.mxu0 %v660
  %688 = vmatpush.msra.mxu0 %v659
  %689 = vmatpush.msra.mxu0 %v658
  %690 = vmatmul.f32.gmra.mxu0 %v593
  %v691 = vpop.f32.mrf.mxu0
  %v692 = vadd.f32 0.0, %v691
  %693 = vmatmul.f32.gmra.mxu0 %v594
  %v694 = vpop.f32.mrf.mxu0
  %v695 = vadd.f32 0.0, %v694
  %696 = vmatmul.f32.gmra.mxu0 %v595
  %v697 = vpop.f32.mrf.mxu0
  %v698 = vadd.f32 0.0, %v697
  %699 = vmatmul.f32.gmra.mxu0 %v596
  %v700 = vpop.f32.mrf.mxu0
  %v701 = vadd.f32 0.0, %v700
  %702 = vmatmul.f32.gmra.mxu0 %v597
  %v703 = vpop.f32.mrf.mxu0
  %v704 = vadd.f32 0.0, %v703
  %705 = vmatmul.f32.gmra.mxu0 %v598
  %v706 = vpop.f32.mrf.mxu0
  %v707 = vadd.f32 0.0, %v706
  %708 = vmatmul.f32.gmra.mxu0 %v599
  %v709 = vpop.f32.mrf.mxu0
  %v710 = vadd.f32 0.0, %v709
  %711 = vmatmul.f32.gmra.mxu0 %v600
  %v712 = vpop.f32.mrf.mxu0
  %v713 = vadd.f32 0.0, %v712
  %714 = vmatmul.f32.gmra.mxu0 %v601
  %v715 = vpop.f32.mrf.mxu0
  %v716 = vadd.f32 0.0, %v715
  %717 = vmatmul.f32.gmra.mxu0 %v602
  %v718 = vpop.f32.mrf.mxu0
  %v719 = vadd.f32 0.0, %v718
  %720 = vmatmul.f32.gmra.mxu0 %v603
  %v721 = vpop.f32.mrf.mxu0
  %v722 = vadd.f32 0.0, %v721
  %723 = vmatmul.f32.gmra.mxu0 %v604
  %v724 = vpop.f32.mrf.mxu0
  %v725 = vadd.f32 0.0, %v724
  %726 = vmatmul.f32.gmra.mxu0 %v605
  %v727 = vpop.f32.mrf.mxu0
  %v728 = vadd.f32 0.0, %v727
  %729 = vmatmul.f32.gmra.mxu0 %v606
  %v730 = vpop.f32.mrf.mxu0
  %v731 = vadd.f32 0.0, %v730
  %732 = vmatmul.f32.gmra.mxu0 %v607
  %v733 = vpop.f32.mrf.mxu0
  %v734 = vadd.f32 0.0, %v733
  %735 = vmatmul.f32.gmra.mxu0 %v608
  %v736 = vpop.f32.mrf.mxu0
  %v737 = vadd.f32 0.0, %v736
  %738 = vmatmul.f32.gmra.mxu0 %v609
  %v739 = vpop.f32.mrf.mxu0
  %v740 = vadd.f32 0.0, %v739
  %741 = vmatmul.f32.gmra.mxu0 %v610
  %v742 = vpop.f32.mrf.mxu0
  %v743 = vadd.f32 0.0, %v742
  %744 = vmatmul.f32.gmra.mxu0 %v611
  %v745 = vpop.f32.mrf.mxu0
  %v746 = vadd.f32 0.0, %v745
  %747 = vmatmul.f32.gmra.mxu0 %v612
  %v748 = vpop.f32.mrf.mxu0
  %v749 = vadd.f32 0.0, %v748
  %750 = vmatmul.f32.gmra.mxu0 %v613
  %v751 = vpop.f32.mrf.mxu0
  %v752 = vadd.f32 0.0, %v751
  %753 = vmatmul.f32.gmra.mxu0 %v614
  %v754 = vpop.f32.mrf.mxu0
  %v755 = vadd.f32 0.0, %v754
  %756 = vmatmul.f32.gmra.mxu0 %v615
  %v757 = vpop.f32.mrf.mxu0
  %v758 = vadd.f32 0.0, %v757
  %759 = vmatmul.f32.gmra.mxu0 %v616
  %v760 = vpop.f32.mrf.mxu0
  %v761 = vadd.f32 0.0, %v760
  %762 = vmatmul.f32.gmra.mxu0 %v617
  %v763 = vpop.f32.mrf.mxu0
  %v764 = vadd.f32 0.0, %v763
  %765 = vmatmul.f32.gmra.mxu0 %v618
  %v766 = vpop.f32.mrf.mxu0
  %v767 = vadd.f32 0.0, %v766
  %768 = vmatmul.f32.gmra.mxu0 %v619
  %v769 = vpop.f32.mrf.mxu0
  %v770 = vadd.f32 0.0, %v769
  %771 = vmatmul.f32.gmra.mxu0 %v620
  %v772 = vpop.f32.mrf.mxu0
  %v773 = vadd.f32 0.0, %v772
  %774 = vmatmul.f32.gmra.mxu0 %v621
  %v775 = vpop.f32.mrf.mxu0
  %v776 = vadd.f32 0.0, %v775
  %777 = vmatmul.f32.gmra.mxu0 %v622
  %v778 = vpop.f32.mrf.mxu0
  %v779 = vadd.f32 0.0, %v778
  %780 = vmatmul.f32.gmra.mxu0 %v623
  %v781 = vpop.f32.mrf.mxu0
  %v782 = vadd.f32 0.0, %v781
  %783 = vmatmul.f32.gmra.mxu0 %v624
  %v784 = vpop.f32.mrf.mxu0
  %v785 = vadd.f32 0.0, %v784
  %786 = vmatmul.f32.gmra.mxu0 %v625
  %v787 = vpop.f32.mrf.mxu0
  %v788 = vadd.f32 0.0, %v787
  %789 = vmatmul.f32.gmra.mxu0 %v626
  %v790 = vpop.f32.mrf.mxu0
  %v791 = vadd.f32 0.0, %v790
  %792 = vmatmul.f32.gmra.mxu0 %v627
  %v793 = vpop.f32.mrf.mxu0
  %v794 = vadd.f32 0.0, %v793
  %795 = vmatmul.f32.gmra.mxu0 %v628
  %v796 = vpop.f32.mrf.mxu0
  %v797 = vadd.f32 0.0, %v796
  %798 = vmatmul.f32.gmra.mxu0 %v629
  %v799 = vpop.f32.mrf.mxu0
  %v800 = vadd.f32 0.0, %v799
  %801 = vmatmul.f32.gmra.mxu0 %v630
  %v802 = vpop.f32.mrf.mxu0
  %v803 = vadd.f32 0.0, %v802
  %804 = vmatmul.f32.gmra.mxu0 %v631
  %v805 = vpop.f32.mrf.mxu0
  %v806 = vadd.f32 0.0, %v805
  %807 = vmatmul.f32.gmra.mxu0 %v632
  %v808 = vpop.f32.mrf.mxu0
  %v809 = vadd.f32 0.0, %v808
  %810 = vmatmul.f32.gmra.mxu0 %v633
  %v811 = vpop.f32.mrf.mxu0
  %v812 = vadd.f32 0.0, %v811
  %813 = vmatmul.f32.gmra.mxu0 %v634
  %v814 = vpop.f32.mrf.mxu0
  %v815 = vadd.f32 0.0, %v814
  %816 = vmatmul.f32.gmra.mxu0 %v635
  %v817 = vpop.f32.mrf.mxu0
  %v818 = vadd.f32 0.0, %v817
  %819 = vmatmul.f32.gmra.mxu0 %v636
  %v820 = vpop.f32.mrf.mxu0
  %v821 = vadd.f32 0.0, %v820
  %822 = vmatmul.f32.gmra.mxu0 %v637
  %v823 = vpop.f32.mrf.mxu0
  %v824 = vadd.f32 0.0, %v823
  %825 = vmatmul.f32.gmra.mxu0 %v638
  %v826 = vpop.f32.mrf.mxu0
  %v827 = vadd.f32 0.0, %v826
  %828 = vmatmul.f32.gmra.mxu0 %v639
  %v829 = vpop.f32.mrf.mxu0
  %v830 = vadd.f32 0.0, %v829
  %831 = vmatmul.f32.gmra.mxu0 %v640
  %v832 = vpop.f32.mrf.mxu0
  %v833 = vadd.f32 0.0, %v832
  %834 = vmatmul.f32.gmra.mxu0 %v641
  %v835 = vpop.f32.mrf.mxu0
  %v836 = vadd.f32 0.0, %v835
  %837 = vmatmul.f32.gmra.mxu0 %v642
  %v838 = vpop.f32.mrf.mxu0
  %v839 = vadd.f32 0.0, %v838
  %840 = vmatmul.f32.gmra.mxu0 %v643
  %v841 = vpop.f32.mrf.mxu0
  %v842 = vadd.f32 0.0, %v841
  %843 = vmatmul.f32.gmra.mxu0 %v644
  %v844 = vpop.f32.mrf.mxu0
  %v845 = vadd.f32 0.0, %v844
  %846 = vmatmul.f32.gmra.mxu0 %v645
  %v847 = vpop.f32.mrf.mxu0
  %v848 = vadd.f32 0.0, %v847
  %849 = vmatmul.f32.gmra.mxu0 %v646
  %v850 = vpop.f32.mrf.mxu0
  %v851 = vadd.f32 0.0, %v850
  %852 = vmatmul.f32.gmra.mxu0 %v647
  %v853 = vpop.f32.mrf.mxu0
  %v854 = vadd.f32 0.0, %v853
  %855 = vmatmul.f32.gmra.mxu0 %v648
  %v856 = vpop.f32.mrf.mxu0
  %v857 = vadd.f32 0.0, %v856
  %858 = vmatmul.f32.gmra.mxu0 %v649
  %v859 = vpop.f32.mrf.mxu0
  %v860 = vadd.f32 0.0, %v859
  %861 = vmatmul.f32.gmra.mxu0 %v650
  %v862 = vpop.f32.mrf.mxu0
  %v863 = vadd.f32 0.0, %v862
  %864 = vmatmul.f32.gmra.mxu0 %v651
  %v865 = vpop.f32.mrf.mxu0
  %v866 = vadd.f32 0.0, %v865
  %867 = vmatmul.f32.gmra.mxu0 %v652
  %v868 = vpop.f32.mrf.mxu0
  %v869 = vadd.f32 0.0, %v868
  %870 = vmatmul.f32.gmra.mxu0 %v653
  %v871 = vpop.f32.mrf.mxu0
  %v872 = vadd.f32 0.0, %v871
  %873 = vmatmul.f32.gmra.mxu0 %v654
  %v874 = vpop.f32.mrf.mxu0
  %v875 = vadd.f32 0.0, %v874
  %876 = vmatmul.f32.gmra.mxu0 %v655
  %v877 = vpop.f32.mrf.mxu0
  %v878 = vadd.f32 0.0, %v877
  %879 = vmatmul.f32.gmra.mxu0 %v656
  %v880 = vpop.f32.mrf.mxu0
  %v881 = vadd.f32 0.0, %v880
  %882 = vdwg.mxu0
  %v883 = vadd.f32 %v402, %v692
  %v884 = vadd.f32 %v405, %v695
  %v885 = vadd.f32 %v408, %v698
  %v886 = vadd.f32 %v411, %v701
  %v887 = vadd.f32 %v414, %v704
  %v888 = vadd.f32 %v417, %v707
  %v889 = vadd.f32 %v420, %v710
  %v890 = vadd.f32 %v423, %v713
  %v891 = vadd.f32 %v426, %v716
  %v892 = vadd.f32 %v429, %v719
  %v893 = vadd.f32 %v432, %v722
  %v894 = vadd.f32 %v435, %v725
  %v895 = vadd.f32 %v438, %v728
  %v896 = vadd.f32 %v441, %v731
  %v897 = vadd.f32 %v444, %v734
  %v898 = vadd.f32 %v447, %v737
  %v899 = vadd.f32 %v450, %v740
  %v900 = vadd.f32 %v453, %v743
  %v901 = vadd.f32 %v456, %v746
  %v902 = vadd.f32 %v459, %v749
  %v903 = vadd.f32 %v462, %v752
  %v904 = vadd.f32 %v465, %v755
  %v905 = vadd.f32 %v468, %v758
  %v906 = vadd.f32 %v471, %v761
  %v907 = vadd.f32 %v474, %v764
  %v908 = vadd.f32 %v477, %v767
  %v909 = vadd.f32 %v480, %v770
  %v910 = vadd.f32 %v483, %v773
  %v911 = vadd.f32 %v486, %v776
  %v912 = vadd.f32 %v489, %v779
  %v913 = vadd.f32 %v492, %v782
  %v914 = vadd.f32 %v495, %v785
  %v915 = vadd.f32 %v498, %v788
  %v916 = vadd.f32 %v501, %v791
  %v917 = vadd.f32 %v504, %v794
  %v918 = vadd.f32 %v507, %v797
  %v919 = vadd.f32 %v510, %v800
  %v920 = vadd.f32 %v513, %v803
  %v921 = vadd.f32 %v516, %v806
  %v922 = vadd.f32 %v519, %v809
  %v923 = vadd.f32 %v522, %v812
  %v924 = vadd.f32 %v525, %v815
  %v925 = vadd.f32 %v528, %v818
  %v926 = vadd.f32 %v531, %v821
  %v927 = vadd.f32 %v534, %v824
  %v928 = vadd.f32 %v537, %v827
  %v929 = vadd.f32 %v540, %v830
  %v930 = vadd.f32 %v543, %v833
  %v931 = vadd.f32 %v546, %v836
  %v932 = vadd.f32 %v549, %v839
  %v933 = vadd.f32 %v552, %v842
  %v934 = vadd.f32 %v555, %v845
  %v935 = vadd.f32 %v558, %v848
  %v936 = vadd.f32 %v561, %v851
  %v937 = vadd.f32 %v564, %v854
  %v938 = vadd.f32 %v567, %v857
  %v939 = vadd.f32 %v570, %v860
  %v940 = vadd.f32 %v573, %v863
  %v941 = vadd.f32 %v576, %v866
  %v942 = vadd.f32 %v579, %v869
  %v943 = vadd.f32 %v582, %v872
  %v944 = vadd.f32 %v585, %v875
  %v945 = vadd.f32 %v588, %v878
  %v946 = vadd.f32 %v591, %v881
  %s947 = scalar_lea.vmem %s0, 24
  %v948 = vld [vmem:[%s947] sm:$0xff]
  %v949 = vld [vmem:[%s947 + $0x8] sm:$0xff]
  %v950 = vld [vmem:[%s947 + $0x18] sm:$0xff]
  %v951 = vld [vmem:[%s947 + $0x20] sm:$0xff]
  %v952 = vld [vmem:[%s947 + $0x30] sm:$0xff]
  %v953 = vld [vmem:[%s947 + $0x38] sm:$0xff]
  %v954 = vld [vmem:[%s947 + $0x48] sm:$0xff]
  %v955 = vld [vmem:[%s947 + $0x50] sm:$0xff]
  %v956 = vld [vmem:[%s947 + $0x60] sm:$0xff]
  %v957 = vld [vmem:[%s947 + $0x68] sm:$0xff]
  %v958 = vld [vmem:[%s947 + $0x78] sm:$0xff]
  %v959 = vld [vmem:[%s947 + $0x80] sm:$0xff]
  %v960 = vld [vmem:[%s947 + $0x90] sm:$0xff]
  %v961 = vld [vmem:[%s947 + $0x98] sm:$0xff]
  %v962 = vld [vmem:[%s947 + $0xa8] sm:$0xff]
  %v963 = vld [vmem:[%s947 + $0xb0] sm:$0xff]
  %v964 = vld [vmem:[%s947 + $0xc0] sm:$0xff]
  %v965 = vld [vmem:[%s947 + $0xc8] sm:$0xff]
  %v966 = vld [vmem:[%s947 + $0xd8] sm:$0xff]
  %v967 = vld [vmem:[%s947 + $0xe0] sm:$0xff]
  %v968 = vld [vmem:[%s947 + $0xf0] sm:$0xff]
  %v969 = vld [vmem:[%s947 + $0xf8] sm:$0xff]
  %v970 = vld [vmem:[%s947 + $0x108] sm:$0xff]
  %v971 = vld [vmem:[%s947 + $0x110] sm:$0xff]
  %v972 = vld [vmem:[%s947 + $0x120] sm:$0xff]
  %v973 = vld [vmem:[%s947 + $0x128] sm:$0xff]
  %v974 = vld [vmem:[%s947 + $0x138] sm:$0xff]
  %v975 = vld [vmem:[%s947 + $0x140] sm:$0xff]
  %v976 = vld [vmem:[%s947 + $0x150] sm:$0xff]
  %v977 = vld [vmem:[%s947 + $0x158] sm:$0xff]
  %v978 = vld [vmem:[%s947 + $0x168] sm:$0xff]
  %v979 = vld [vmem:[%s947 + $0x170] sm:$0xff]
  %v980 = vld [vmem:[%s947 + $0x1b0] sm:$0xff]
  %v981 = vld [vmem:[%s947 + $0x1b8] sm:$0xff]
  %v982 = vld [vmem:[%s947 + $0x1c8] sm:$0xff]
  %v983 = vld [vmem:[%s947 + $0x1d0] sm:$0xff]
  %v984 = vld [vmem:[%s947 + $0x1e0] sm:$0xff]
  %v985 = vld [vmem:[%s947 + $0x1e8] sm:$0xff]
  %v986 = vld [vmem:[%s947 + $0x1f8] sm:$0xff]
  %v987 = vld [vmem:[%s947 + $0x200] sm:$0xff]
  %v988 = vld [vmem:[%s947 + $0x210] sm:$0xff]
  %v989 = vld [vmem:[%s947 + $0x218] sm:$0xff]
  %v990 = vld [vmem:[%s947 + $0x228] sm:$0xff]
  %v991 = vld [vmem:[%s947 + $0x230] sm:$0xff]
  %v992 = vld [vmem:[%s947 + $0x240] sm:$0xff]
  %v993 = vld [vmem:[%s947 + $0x248] sm:$0xff]
  %v994 = vld [vmem:[%s947 + $0x258] sm:$0xff]
  %v995 = vld [vmem:[%s947 + $0x260] sm:$0xff]
  %v996 = vld [vmem:[%s947 + $0x270] sm:$0xff]
  %v997 = vld [vmem:[%s947 + $0x278] sm:$0xff]
  %v998 = vld [vmem:[%s947 + $0x288] sm:$0xff]
  %v999 = vld [vmem:[%s947 + $0x290] sm:$0xff]
  %v1000 = vld [vmem:[%s947 + $0x2a0] sm:$0xff]
  %v1001 = vld [vmem:[%s947 + $0x2a8] sm:$0xff]
  %v1002 = vld [vmem:[%s947 + $0x2b8] sm:$0xff]
  %v1003 = vld [vmem:[%s947 + $0x2c0] sm:$0xff]
  %v1004 = vld [vmem:[%s947 + $0x2d0] sm:$0xff]
  %v1005 = vld [vmem:[%s947 + $0x2d8] sm:$0xff]
  %v1006 = vld [vmem:[%s947 + $0x2e8] sm:$0xff]
  %v1007 = vld [vmem:[%s947 + $0x2f0] sm:$0xff]
  %v1008 = vld [vmem:[%s947 + $0x300] sm:$0xff]
  %v1009 = vld [vmem:[%s947 + $0x308] sm:$0xff]
  %v1010 = vld [vmem:[%s947 + $0x318] sm:$0xff]
  %v1011 = vld [vmem:[%s947 + $0x320] sm:$0xff]
  %s1012 = scalar_lea.vmem %s1, 384
  %v1013 = vld [vmem:[%s1012] sm:$0xff]
  %v1014 = vld [vmem:[%s1012 + $0x8] sm:$0xff]
  %v1015 = vld [vmem:[%s1012 + $0x10] sm:$0xff]
  %v1016 = vld [vmem:[%s1012 + $0x18] sm:$0xff]
  %v1017 = vld [vmem:[%s1012 + $0x20] sm:$0xff]
  %v1018 = vld [vmem:[%s1012 + $0x28] sm:$0xff]
  %v1019 = vld [vmem:[%s1012 + $0x30] sm:$0xff]
  %v1020 = vld [vmem:[%s1012 + $0x38] sm:$0xff]
  %v1021 = vld [vmem:[%s1012 + $0x40] sm:$0xff]
  %v1022 = vld [vmem:[%s1012 + $0x48] sm:$0xff]
  %v1023 = vld [vmem:[%s1012 + $0x50] sm:$0xff]
  %v1024 = vld [vmem:[%s1012 + $0x58] sm:$0xff]
  %v1025 = vld [vmem:[%s1012 + $0x60] sm:$0xff]
  %v1026 = vld [vmem:[%s1012 + $0x68] sm:$0xff]
  %v1027 = vld [vmem:[%s1012 + $0x70] sm:$0xff]
  %v1028 = vld [vmem:[%s1012 + $0x78] sm:$0xff]
  %1029 = vmatpush.msra.mxu0 %v1028
  %1030 = vmatpush.msra.mxu0 %v1027
  %1031 = vmatpush.msra.mxu0 %v1026
  %1032 = vmatpush.msra.mxu0 %v1025
  %1033 = vmatpush.msra.mxu0 %v1024
  %1034 = vmatpush.msra.mxu0 %v1023
  %1035 = vmatpush.msra.mxu0 %v1022
  %1036 = vmatpush.msra.mxu0 %v1021
  %1037 = vmatpush.msra.mxu0 %v1020
  %1038 = vmatpush.msra.mxu0 %v1019
  %1039 = vmatpush.msra.mxu0 %v1018
  %1040 = vmatpush.msra.mxu0 %v1017
  %1041 = vmatpush.msra.mxu0 %v1016
  %1042 = vmatpush.msra.mxu0 %v1015
  %1043 = vmatpush.msra.mxu0 %v1014
  %1044 = vmatpush.msra.mxu0 %v1013
  %1045 = vmatmul.f32.gmra.mxu0 %v948
  %v1046 = vpop.f32.mrf.mxu0
  %v1047 = vadd.f32 0.0, %v1046
  %1048 = vmatmul.f32.gmra.mxu0 %v949
  %v1049 = vpop.f32.mrf.mxu0
  %v1050 = vadd.f32 0.0, %v1049
  %1051 = vmatmul.f32.gmra.mxu0 %v950
  %v1052 = vpop.f32.mrf.mxu0
  %v1053 = vadd.f32 0.0, %v1052
  %1054 = vmatmul.f32.gmra.mxu0 %v951
  %v1055 = vpop.f32.mrf.mxu0
  %v1056 = vadd.f32 0.0, %v1055
  %1057 = vmatmul.f32.gmra.mxu0 %v952
  %v1058 = vpop.f32.mrf.mxu0
  %v1059 = vadd.f32 0.0, %v1058
  %1060 = vmatmul.f32.gmra.mxu0 %v953
  %v1061 = vpop.f32.mrf.mxu0
  %v1062 = vadd.f32 0.0, %v1061
  %1063 = vmatmul.f32.gmra.mxu0 %v954
  %v1064 = vpop.f32.mrf.mxu0
  %v1065 = vadd.f32 0.0, %v1064
  %1066 = vmatmul.f32.gmra.mxu0 %v955
  %v1067 = vpop.f32.mrf.mxu0
  %v1068 = vadd.f32 0.0, %v1067
  %1069 = vmatmul.f32.gmra.mxu0 %v956
  %v1070 = vpop.f32.mrf.mxu0
  %v1071 = vadd.f32 0.0, %v1070
  %1072 = vmatmul.f32.gmra.mxu0 %v957
  %v1073 = vpop.f32.mrf.mxu0
  %v1074 = vadd.f32 0.0, %v1073
  %1075 = vmatmul.f32.gmra.mxu0 %v958
  %v1076 = vpop.f32.mrf.mxu0
  %v1077 = vadd.f32 0.0, %v1076
  %1078 = vmatmul.f32.gmra.mxu0 %v959
  %v1079 = vpop.f32.mrf.mxu0
  %v1080 = vadd.f32 0.0, %v1079
  %1081 = vmatmul.f32.gmra.mxu0 %v960
  %v1082 = vpop.f32.mrf.mxu0
  %v1083 = vadd.f32 0.0, %v1082
  %1084 = vmatmul.f32.gmra.mxu0 %v961
  %v1085 = vpop.f32.mrf.mxu0
  %v1086 = vadd.f32 0.0, %v1085
  %1087 = vmatmul.f32.gmra.mxu0 %v962
  %v1088 = vpop.f32.mrf.mxu0
  %v1089 = vadd.f32 0.0, %v1088
  %1090 = vmatmul.f32.gmra.mxu0 %v963
  %v1091 = vpop.f32.mrf.mxu0
  %v1092 = vadd.f32 0.0, %v1091
  %1093 = vmatmul.f32.gmra.mxu0 %v964
  %v1094 = vpop.f32.mrf.mxu0
  %v1095 = vadd.f32 0.0, %v1094
  %1096 = vmatmul.f32.gmra.mxu0 %v965
  %v1097 = vpop.f32.mrf.mxu0
  %v1098 = vadd.f32 0.0, %v1097
  %1099 = vmatmul.f32.gmra.mxu0 %v966
  %v1100 = vpop.f32.mrf.mxu0
  %v1101 = vadd.f32 0.0, %v1100
  %1102 = vmatmul.f32.gmra.mxu0 %v967
  %v1103 = vpop.f32.mrf.mxu0
  %v1104 = vadd.f32 0.0, %v1103
  %1105 = vmatmul.f32.gmra.mxu0 %v968
  %v1106 = vpop.f32.mrf.mxu0
  %v1107 = vadd.f32 0.0, %v1106
  %1108 = vmatmul.f32.gmra.mxu0 %v969
  %v1109 = vpop.f32.mrf.mxu0
  %v1110 = vadd.f32 0.0, %v1109
  %1111 = vmatmul.f32.gmra.mxu0 %v970
  %v1112 = vpop.f32.mrf.mxu0
  %v1113 = vadd.f32 0.0, %v1112
  %1114 = vmatmul.f32.gmra.mxu0 %v971
  %v1115 = vpop.f32.mrf.mxu0
  %v1116 = vadd.f32 0.0, %v1115
  %1117 = vmatmul.f32.gmra.mxu0 %v972
  %v1118 = vpop.f32.mrf.mxu0
  %v1119 = vadd.f32 0.0, %v1118
  %1120 = vmatmul.f32.gmra.mxu0 %v973
  %v1121 = vpop.f32.mrf.mxu0
  %v1122 = vadd.f32 0.0, %v1121
  %1123 = vmatmul.f32.gmra.mxu0 %v974
  %v1124 = vpop.f32.mrf.mxu0
  %v1125 = vadd.f32 0.0, %v1124
  %1126 = vmatmul.f32.gmra.mxu0 %v975
  %v1127 = vpop.f32.mrf.mxu0
  %v1128 = vadd.f32 0.0, %v1127
  %1129 = vmatmul.f32.gmra.mxu0 %v976
  %v1130 = vpop.f32.mrf.mxu0
  %v1131 = vadd.f32 0.0, %v1130
  %1132 = vmatmul.f32.gmra.mxu0 %v977
  %v1133 = vpop.f32.mrf.mxu0
  %v1134 = vadd.f32 0.0, %v1133
  %1135 = vmatmul.f32.gmra.mxu0 %v978
  %v1136 = vpop.f32.mrf.mxu0
  %v1137 = vadd.f32 0.0, %v1136
  %1138 = vmatmul.f32.gmra.mxu0 %v979
  %v1139 = vpop.f32.mrf.mxu0
  %v1140 = vadd.f32 0.0, %v1139
  %1141 = vmatmul.f32.gmra.mxu0 %v980
  %v1142 = vpop.f32.mrf.mxu0
  %v1143 = vadd.f32 0.0, %v1142
  %1144 = vmatmul.f32.gmra.mxu0 %v981
  %v1145 = vpop.f32.mrf.mxu0
  %v1146 = vadd.f32 0.0, %v1145
  %1147 = vmatmul.f32.gmra.mxu0 %v982
  %v1148 = vpop.f32.mrf.mxu0
  %v1149 = vadd.f32 0.0, %v1148
  %1150 = vmatmul.f32.gmra.mxu0 %v983
  %v1151 = vpop.f32.mrf.mxu0
  %v1152 = vadd.f32 0.0, %v1151
  %1153 = vmatmul.f32.gmra.mxu0 %v984
  %v1154 = vpop.f32.mrf.mxu0
  %v1155 = vadd.f32 0.0, %v1154
  %1156 = vmatmul.f32.gmra.mxu0 %v985
  %v1157 = vpop.f32.mrf.mxu0
  %v1158 = vadd.f32 0.0, %v1157
  %1159 = vmatmul.f32.gmra.mxu0 %v986
  %v1160 = vpop.f32.mrf.mxu0
  %v1161 = vadd.f32 0.0, %v1160
  %1162 = vmatmul.f32.gmra.mxu0 %v987
  %v1163 = vpop.f32.mrf.mxu0
  %v1164 = vadd.f32 0.0, %v1163
  %1165 = vmatmul.f32.gmra.mxu0 %v988
  %v1166 = vpop.f32.mrf.mxu0
  %v1167 = vadd.f32 0.0, %v1166
  %1168 = vmatmul.f32.gmra.mxu0 %v989
  %v1169 = vpop.f32.mrf.mxu0
  %v1170 = vadd.f32 0.0, %v1169
  %1171 = vmatmul.f32.gmra.mxu0 %v990
  %v1172 = vpop.f32.mrf.mxu0
  %v1173 = vadd.f32 0.0, %v1172
  %1174 = vmatmul.f32.gmra.mxu0 %v991
  %v1175 = vpop.f32.mrf.mxu0
  %v1176 = vadd.f32 0.0, %v1175
  %1177 = vmatmul.f32.gmra.mxu0 %v992
  %v1178 = vpop.f32.mrf.mxu0
  %v1179 = vadd.f32 0.0, %v1178
  %1180 = vmatmul.f32.gmra.mxu0 %v993
  %v1181 = vpop.f32.mrf.mxu0
  %v1182 = vadd.f32 0.0, %v1181
  %1183 = vmatmul.f32.gmra.mxu0 %v994
  %v1184 = vpop.f32.mrf.mxu0
  %v1185 = vadd.f32 0.0, %v1184
  %1186 = vmatmul.f32.gmra.mxu0 %v995
  %v1187 = vpop.f32.mrf.mxu0
  %v1188 = vadd.f32 0.0, %v1187
  %1189 = vmatmul.f32.gmra.mxu0 %v996
  %v1190 = vpop.f32.mrf.mxu0
  %v1191 = vadd.f32 0.0, %v1190
  %1192 = vmatmul.f32.gmra.mxu0 %v997
  %v1193 = vpop.f32.mrf.mxu0
  %v1194 = vadd.f32 0.0, %v1193
  %1195 = vmatmul.f32.gmra.mxu0 %v998
  %v1196 = vpop.f32.mrf.mxu0
  %v1197 = vadd.f32 0.0, %v1196
  %1198 = vmatmul.f32.gmra.mxu0 %v999
  %v1199 = vpop.f32.mrf.mxu0
  %v1200 = vadd.f32 0.0, %v1199
  %1201 = vmatmul.f32.gmra.mxu0 %v1000
  %v1202 = vpop.f32.mrf.mxu0
  %v1203 = vadd.f32 0.0, %v1202
  %1204 = vmatmul.f32.gmra.mxu0 %v1001
  %v1205 = vpop.f32.mrf.mxu0
  %v1206 = vadd.f32 0.0, %v1205
  %1207 = vmatmul.f32.gmra.mxu0 %v1002
  %v1208 = vpop.f32.mrf.mxu0
  %v1209 = vadd.f32 0.0, %v1208
  %1210 = vmatmul.f32.gmra.mxu0 %v1003
  %v1211 = vpop.f32.mrf.mxu0
  %v1212 = vadd.f32 0.0, %v1211
  %1213 = vmatmul.f32.gmra.mxu0 %v1004
  %v1214 = vpop.f32.mrf.mxu0
  %v1215 = vadd.f32 0.0, %v1214
  %1216 = vmatmul.f32.gmra.mxu0 %v1005
  %v1217 = vpop.f32.mrf.mxu0
  %v1218 = vadd.f32 0.0, %v1217
  %1219 = vmatmul.f32.gmra.mxu0 %v1006
  %v1220 = vpop.f32.mrf.mxu0
  %v1221 = vadd.f32 0.0, %v1220
  %1222 = vmatmul.f32.gmra.mxu0 %v1007
  %v1223 = vpop.f32.mrf.mxu0
  %v1224 = vadd.f32 0.0, %v1223
  %1225 = vmatmul.f32.gmra.mxu0 %v1008
  %v1226 = vpop.f32.mrf.mxu0
  %v1227 = vadd.f32 0.0, %v1226
  %1228 = vmatmul.f32.gmra.mxu0 %v1009
  %v1229 = vpop.f32.mrf.mxu0
  %v1230 = vadd.f32 0.0, %v1229
  %1231 = vmatmul.f32.gmra.mxu0 %v1010
  %v1232 = vpop.f32.mrf.mxu0
  %v1233 = vadd.f32 0.0, %v1232
  %1234 = vmatmul.f32.gmra.mxu0 %v1011
  %v1235 = vpop.f32.mrf.mxu0
  %v1236 = vadd.f32 0.0, %v1235
  %1237 = vdwg.mxu0
  %v1238 = vadd.f32 %v883, %v1047
  %v1239 = vadd.f32 %v884, %v1050
  %v1240 = vadd.f32 %v885, %v1053
  %v1241 = vadd.f32 %v886, %v1056
  %v1242 = vadd.f32 %v887, %v1059
  %v1243 = vadd.f32 %v888, %v1062
  %v1244 = vadd.f32 %v889, %v1065
  %v1245 = vadd.f32 %v890, %v1068
  %v1246 = vadd.f32 %v891, %v1071
  %v1247 = vadd.f32 %v892, %v1074
  %v1248 = vadd.f32 %v893, %v1077
  %v1249 = vadd.f32 %v894, %v1080
  %v1250 = vadd.f32 %v895, %v1083
  %v1251 = vadd.f32 %v896, %v1086
  %v1252 = vadd.f32 %v897, %v1089
  %v1253 = vadd.f32 %v898, %v1092
  %v1254 = vadd.f32 %v899, %v1095
  %v1255 = vadd.f32 %v900, %v1098
  %v1256 = vadd.f32 %v901, %v1101
  %v1257 = vadd.f32 %v902, %v1104
  %v1258 = vadd.f32 %v903, %v1107
  %v1259 = vadd.f32 %v904, %v1110
  %v1260 = vadd.f32 %v905, %v1113
  %v1261 = vadd.f32 %v906, %v1116
  %v1262 = vadd.f32 %v907, %v1119
  %v1263 = vadd.f32 %v908, %v1122
  %v1264 = vadd.f32 %v909, %v1125
  %v1265 = vadd.f32 %v910, %v1128
  %v1266 = vadd.f32 %v911, %v1131
  %v1267 = vadd.f32 %v912, %v1134
  %v1268 = vadd.f32 %v913, %v1137
  %v1269 = vadd.f32 %v914, %v1140
  %v1270 = vadd.f32 %v915, %v1143
  %v1271 = vadd.f32 %v916, %v1146
  %v1272 = vadd.f32 %v917, %v1149
  %v1273 = vadd.f32 %v918, %v1152
  %v1274 = vadd.f32 %v919, %v1155
  %v1275 = vadd.f32 %v920, %v1158
  %v1276 = vadd.f32 %v921, %v1161
  %v1277 = vadd.f32 %v922, %v1164
  %v1278 = vadd.f32 %v923, %v1167
  %v1279 = vadd.f32 %v924, %v1170
  %v1280 = vadd.f32 %v925, %v1173
  %v1281 = vadd.f32 %v926, %v1176
  %v1282 = vadd.f32 %v927, %v1179
  %v1283 = vadd.f32 %v928, %v1182
  %v1284 = vadd.f32 %v929, %v1185
  %v1285 = vadd.f32 %v930, %v1188
  %v1286 = vadd.f32 %v931, %v1191
  %v1287 = vadd.f32 %v932, %v1194
  %v1288 = vadd.f32 %v933, %v1197
  %v1289 = vadd.f32 %v934, %v1200
  %v1290 = vadd.f32 %v935, %v1203
  %v1291 = vadd.f32 %v936, %v1206
  %v1292 = vadd.f32 %v937, %v1209
  %v1293 = vadd.f32 %v938, %v1212
  %v1294 = vadd.f32 %v939, %v1215
  %v1295 = vadd.f32 %v940, %v1218
  %v1296 = vadd.f32 %v941, %v1221
  %v1297 = vadd.f32 %v942, %v1224
  %v1298 = vadd.f32 %v943, %v1227
  %v1299 = vadd.f32 %v944, %v1230
  %v1300 = vadd.f32 %v945, %v1233
  %v1301 = vadd.f32 %v946, %v1236
  %v1302 = vld [vmem:[%s947 + $0x1] sm:$0xff]
  %v1303 = vld [vmem:[%s947 + $0x9] sm:$0xff]
  %v1304 = vld [vmem:[%s947 + $0x19] sm:$0xff]
  %v1305 = vld [vmem:[%s947 + $0x21] sm:$0xff]
  %v1306 = vld [vmem:[%s947 + $0x31] sm:$0xff]
  %v1307 = vld [vmem:[%s947 + $0x39] sm:$0xff]
  %v1308 = vld [vmem:[%s947 + $0x49] sm:$0xff]
  %v1309 = vld [vmem:[%s947 + $0x51] sm:$0xff]
  %v1310 = vld [vmem:[%s947 + $0x61] sm:$0xff]
  %v1311 = vld [vmem:[%s947 + $0x69] sm:$0xff]
  %v1312 = vld [vmem:[%s947 + $0x79] sm:$0xff]
  %v1313 = vld [vmem:[%s947 + $0x81] sm:$0xff]
  %v1314 = vld [vmem:[%s947 + $0x91] sm:$0xff]
  %v1315 = vld [vmem:[%s947 + $0x99] sm:$0xff]
  %v1316 = vld [vmem:[%s947 + $0xa9] sm:$0xff]
  %v1317 = vld [vmem:[%s947 + $0xb1] sm:$0xff]
  %v1318 = vld [vmem:[%s947 + $0xc1] sm:$0xff]
  %v1319 = vld [vmem:[%s947 + $0xc9] sm:$0xff]
  %v1320 = vld [vmem:[%s947 + $0xd9] sm:$0xff]
  %v1321 = vld [vmem:[%s947 + $0xe1] sm:$0xff]
  %v1322 = vld [vmem:[%s947 + $0xf1] sm:$0xff]
  %v1323 = vld [vmem:[%s947 + $0xf9] sm:$0xff]
  %v1324 = vld [vmem:[%s947 + $0x109] sm:$0xff]
  %v1325 = vld [vmem:[%s947 + $0x111] sm:$0xff]
  %v1326 = vld [vmem:[%s947 + $0x121] sm:$0xff]
  %v1327 = vld [vmem:[%s947 + $0x129] sm:$0xff]
  %v1328 = vld [vmem:[%s947 + $0x139] sm:$0xff]
  %v1329 = vld [vmem:[%s947 + $0x141] sm:$0xff]
  %v1330 = vld [vmem:[%s947 + $0x151] sm:$0xff]
  %v1331 = vld [vmem:[%s947 + $0x159] sm:$0xff]
  %v1332 = vld [vmem:[%s947 + $0x169] sm:$0xff]
  %v1333 = vld [vmem:[%s947 + $0x171] sm:$0xff]
  %v1334 = vld [vmem:[%s947 + $0x1b1] sm:$0xff]
  %v1335 = vld [vmem:[%s947 + $0x1b9] sm:$0xff]
  %v1336 = vld [vmem:[%s947 + $0x1c9] sm:$0xff]
  %v1337 = vld [vmem:[%s947 + $0x1d1] sm:$0xff]
  %v1338 = vld [vmem:[%s947 + $0x1e1] sm:$0xff]
  %v1339 = vld [vmem:[%s947 + $0x1e9] sm:$0xff]
  %v1340 = vld [vmem:[%s947 + $0x1f9] sm:$0xff]
  %v1341 = vld [vmem:[%s947 + $0x201] sm:$0xff]
  %v1342 = vld [vmem:[%s947 + $0x211] sm:$0xff]
  %v1343 = vld [vmem:[%s947 + $0x219] sm:$0xff]
  %v1344 = vld [vmem:[%s947 + $0x229] sm:$0xff]
  %v1345 = vld [vmem:[%s947 + $0x231] sm:$0xff]
  %v1346 = vld [vmem:[%s947 + $0x241] sm:$0xff]
  %v1347 = vld [vmem:[%s947 + $0x249] sm:$0xff]
  %v1348 = vld [vmem:[%s947 + $0x259] sm:$0xff]
  %v1349 = vld [vmem:[%s947 + $0x261] sm:$0xff]
  %v1350 = vld [vmem:[%s947 + $0x271] sm:$0xff]
  %v1351 = vld [vmem:[%s947 + $0x279] sm:$0xff]
  %v1352 = vld [vmem:[%s947 + $0x289] sm:$0xff]
  %v1353 = vld [vmem:[%s947 + $0x291] sm:$0xff]
  %v1354 = vld [vmem:[%s947 + $0x2a1] sm:$0xff]
  %v1355 = vld [vmem:[%s947 + $0x2a9] sm:$0xff]
  %v1356 = vld [vmem:[%s947 + $0x2b9] sm:$0xff]
  %v1357 = vld [vmem:[%s947 + $0x2c1] sm:$0xff]
  %v1358 = vld [vmem:[%s947 + $0x2d1] sm:$0xff]
  %v1359 = vld [vmem:[%s947 + $0x2d9] sm:$0xff]
  %v1360 = vld [vmem:[%s947 + $0x2e9] sm:$0xff]
  %v1361 = vld [vmem:[%s947 + $0x2f1] sm:$0xff]
  %v1362 = vld [vmem:[%s947 + $0x301] sm:$0xff]
  %v1363 = vld [vmem:[%s947 + $0x309] sm:$0xff]
  %v1364 = vld [vmem:[%s947 + $0x319] sm:$0xff]
  %v1365 = vld [vmem:[%s947 + $0x321] sm:$0xff]
  %s1366 = scalar_lea.vmem %s1, 512
  %v1367 = vld [vmem:[%s1366] sm:$0xff]
  %v1368 = vld [vmem:[%s1366 + $0x8] sm:$0xff]
  %v1369 = vld [vmem:[%s1366 + $0x10] sm:$0xff]
  %v1370 = vld [vmem:[%s1366 + $0x18] sm:$0xff]
  %v1371 = vld [vmem:[%s1366 + $0x20] sm:$0xff]
  %v1372 = vld [vmem:[%s1366 + $0x28] sm:$0xff]
  %v1373 = vld [vmem:[%s1366 + $0x30] sm:$0xff]
  %v1374 = vld [vmem:[%s1366 + $0x38] sm:$0xff]
  %v1375 = vld [vmem:[%s1366 + $0x40] sm:$0xff]
  %v1376 = vld [vmem:[%s1366 + $0x48] sm:$0xff]
  %v1377 = vld [vmem:[%s1366 + $0x50] sm:$0xff]
  %v1378 = vld [vmem:[%s1366 + $0x58] sm:$0xff]
  %v1379 = vld [vmem:[%s1366 + $0x60] sm:$0xff]
  %v1380 = vld [vmem:[%s1366 + $0x68] sm:$0xff]
  %v1381 = vld [vmem:[%s1366 + $0x70] sm:$0xff]
  %v1382 = vld [vmem:[%s1366 + $0x78] sm:$0xff]
  %1383 = vmatpush.msra.mxu0 %v1382
  %1384 = vmatpush.msra.mxu0 %v1381
  %1385 = vmatpush.msra.mxu0 %v1380
  %1386 = vmatpush.msra.mxu0 %v1379
  %1387 = vmatpush.msra.mxu0 %v1378
  %1388 = vmatpush.msra.mxu0 %v1377
  %1389 = vmatpush.msra.mxu0 %v1376
  %1390 = vmatpush.msra.mxu0 %v1375
  %1391 = vmatpush.msra.mxu0 %v1374
  %1392 = vmatpush.msra.mxu0 %v1373
  %1393 = vmatpush.msra.mxu0 %v1372
  %1394 = vmatpush.msra.mxu0 %v1371
  %1395 = vmatpush.msra.mxu0 %v1370
  %1396 = vmatpush.msra.mxu0 %v1369
  %1397 = vmatpush.msra.mxu0 %v1368
  %1398 = vmatpush.msra.mxu0 %v1367
  %1399 = vmatmul.f32.gmra.mxu0 %v1302
  %v1400 = vpop.f32.mrf.mxu0
  %v1401 = vadd.f32 0.0, %v1400
  %1402 = vmatmul.f32.gmra.mxu0 %v1303
  %v1403 = vpop.f32.mrf.mxu0
  %v1404 = vadd.f32 0.0, %v1403
  %1405 = vmatmul.f32.gmra.mxu0 %v1304
  %v1406 = vpop.f32.mrf.mxu0
  %v1407 = vadd.f32 0.0, %v1406
  %1408 = vmatmul.f32.gmra.mxu0 %v1305
  %v1409 = vpop.f32.mrf.mxu0
  %v1410 = vadd.f32 0.0, %v1409
  %1411 = vmatmul.f32.gmra.mxu0 %v1306
  %v1412 = vpop.f32.mrf.mxu0
  %v1413 = vadd.f32 0.0, %v1412
  %1414 = vmatmul.f32.gmra.mxu0 %v1307
  %v1415 = vpop.f32.mrf.mxu0
  %v1416 = vadd.f32 0.0, %v1415
  %1417 = vmatmul.f32.gmra.mxu0 %v1308
  %v1418 = vpop.f32.mrf.mxu0
  %v1419 = vadd.f32 0.0, %v1418
  %1420 = vmatmul.f32.gmra.mxu0 %v1309
  %v1421 = vpop.f32.mrf.mxu0
  %v1422 = vadd.f32 0.0, %v1421
  %1423 = vmatmul.f32.gmra.mxu0 %v1310
  %v1424 = vpop.f32.mrf.mxu0
  %v1425 = vadd.f32 0.0, %v1424
  %1426 = vmatmul.f32.gmra.mxu0 %v1311
  %v1427 = vpop.f32.mrf.mxu0
  %v1428 = vadd.f32 0.0, %v1427
  %1429 = vmatmul.f32.gmra.mxu0 %v1312
  %v1430 = vpop.f32.mrf.mxu0
  %v1431 = vadd.f32 0.0, %v1430
  %1432 = vmatmul.f32.gmra.mxu0 %v1313
  %v1433 = vpop.f32.mrf.mxu0
  %v1434 = vadd.f32 0.0, %v1433
  %1435 = vmatmul.f32.gmra.mxu0 %v1314
  %v1436 = vpop.f32.mrf.mxu0
  %v1437 = vadd.f32 0.0, %v1436
  %1438 = vmatmul.f32.gmra.mxu0 %v1315
  %v1439 = vpop.f32.mrf.mxu0
  %v1440 = vadd.f32 0.0, %v1439
  %1441 = vmatmul.f32.gmra.mxu0 %v1316
  %v1442 = vpop.f32.mrf.mxu0
  %v1443 = vadd.f32 0.0, %v1442
  %1444 = vmatmul.f32.gmra.mxu0 %v1317
  %v1445 = vpop.f32.mrf.mxu0
  %v1446 = vadd.f32 0.0, %v1445
  %1447 = vmatmul.f32.gmra.mxu0 %v1318
  %v1448 = vpop.f32.mrf.mxu0
  %v1449 = vadd.f32 0.0, %v1448
  %1450 = vmatmul.f32.gmra.mxu0 %v1319
  %v1451 = vpop.f32.mrf.mxu0
  %v1452 = vadd.f32 0.0, %v1451
  %1453 = vmatmul.f32.gmra.mxu0 %v1320
  %v1454 = vpop.f32.mrf.mxu0
  %v1455 = vadd.f32 0.0, %v1454
  %1456 = vmatmul.f32.gmra.mxu0 %v1321
  %v1457 = vpop.f32.mrf.mxu0
  %v1458 = vadd.f32 0.0, %v1457
  %1459 = vmatmul.f32.gmra.mxu0 %v1322
  %v1460 = vpop.f32.mrf.mxu0
  %v1461 = vadd.f32 0.0, %v1460
  %1462 = vmatmul.f32.gmra.mxu0 %v1323
  %v1463 = vpop.f32.mrf.mxu0
  %v1464 = vadd.f32 0.0, %v1463
  %1465 = vmatmul.f32.gmra.mxu0 %v1324
  %v1466 = vpop.f32.mrf.mxu0
  %v1467 = vadd.f32 0.0, %v1466
  %1468 = vmatmul.f32.gmra.mxu0 %v1325
  %v1469 = vpop.f32.mrf.mxu0
  %v1470 = vadd.f32 0.0, %v1469
  %1471 = vmatmul.f32.gmra.mxu0 %v1326
  %v1472 = vpop.f32.mrf.mxu0
  %v1473 = vadd.f32 0.0, %v1472
  %1474 = vmatmul.f32.gmra.mxu0 %v1327
  %v1475 = vpop.f32.mrf.mxu0
  %v1476 = vadd.f32 0.0, %v1475
  %1477 = vmatmul.f32.gmra.mxu0 %v1328
  %v1478 = vpop.f32.mrf.mxu0
  %v1479 = vadd.f32 0.0, %v1478
  %1480 = vmatmul.f32.gmra.mxu0 %v1329
  %v1481 = vpop.f32.mrf.mxu0
  %v1482 = vadd.f32 0.0, %v1481
  %1483 = vmatmul.f32.gmra.mxu0 %v1330
  %v1484 = vpop.f32.mrf.mxu0
  %v1485 = vadd.f32 0.0, %v1484
  %1486 = vmatmul.f32.gmra.mxu0 %v1331
  %v1487 = vpop.f32.mrf.mxu0
  %v1488 = vadd.f32 0.0, %v1487
  %1489 = vmatmul.f32.gmra.mxu0 %v1332
  %v1490 = vpop.f32.mrf.mxu0
  %v1491 = vadd.f32 0.0, %v1490
  %1492 = vmatmul.f32.gmra.mxu0 %v1333
  %v1493 = vpop.f32.mrf.mxu0
  %v1494 = vadd.f32 0.0, %v1493
  %1495 = vmatmul.f32.gmra.mxu0 %v1334
  %v1496 = vpop.f32.mrf.mxu0
  %v1497 = vadd.f32 0.0, %v1496
  %1498 = vmatmul.f32.gmra.mxu0 %v1335
  %v1499 = vpop.f32.mrf.mxu0
  %v1500 = vadd.f32 0.0, %v1499
  %1501 = vmatmul.f32.gmra.mxu0 %v1336
  %v1502 = vpop.f32.mrf.mxu0
  %v1503 = vadd.f32 0.0, %v1502
  %1504 = vmatmul.f32.gmra.mxu0 %v1337
  %v1505 = vpop.f32.mrf.mxu0
  %v1506 = vadd.f32 0.0, %v1505
  %1507 = vmatmul.f32.gmra.mxu0 %v1338
  %v1508 = vpop.f32.mrf.mxu0
  %v1509 = vadd.f32 0.0, %v1508
  %1510 = vmatmul.f32.gmra.mxu0 %v1339
  %v1511 = vpop.f32.mrf.mxu0
  %v1512 = vadd.f32 0.0, %v1511
  %1513 = vmatmul.f32.gmra.mxu0 %v1340
  %v1514 = vpop.f32.mrf.mxu0
  %v1515 = vadd.f32 0.0, %v1514
  %1516 = vmatmul.f32.gmra.mxu0 %v1341
  %v1517 = vpop.f32.mrf.mxu0
  %v1518 = vadd.f32 0.0, %v1517
  %1519 = vmatmul.f32.gmra.mxu0 %v1342
  %v1520 = vpop.f32.mrf.mxu0
  %v1521 = vadd.f32 0.0, %v1520
  %1522 = vmatmul.f32.gmra.mxu0 %v1343
  %v1523 = vpop.f32.mrf.mxu0
  %v1524 = vadd.f32 0.0, %v1523
  %1525 = vmatmul.f32.gmra.mxu0 %v1344
  %v1526 = vpop.f32.mrf.mxu0
  %v1527 = vadd.f32 0.0, %v1526
  %1528 = vmatmul.f32.gmra.mxu0 %v1345
  %v1529 = vpop.f32.mrf.mxu0
  %v1530 = vadd.f32 0.0, %v1529
  %1531 = vmatmul.f32.gmra.mxu0 %v1346
  %v1532 = vpop.f32.mrf.mxu0
  %v1533 = vadd.f32 0.0, %v1532
  %1534 = vmatmul.f32.gmra.mxu0 %v1347
  %v1535 = vpop.f32.mrf.mxu0
  %v1536 = vadd.f32 0.0, %v1535
  %1537 = vmatmul.f32.gmra.mxu0 %v1348
  %v1538 = vpop.f32.mrf.mxu0
  %v1539 = vadd.f32 0.0, %v1538
  %1540 = vmatmul.f32.gmra.mxu0 %v1349
  %v1541 = vpop.f32.mrf.mxu0
  %v1542 = vadd.f32 0.0, %v1541
  %1543 = vmatmul.f32.gmra.mxu0 %v1350
  %v1544 = vpop.f32.mrf.mxu0
  %v1545 = vadd.f32 0.0, %v1544
  %1546 = vmatmul.f32.gmra.mxu0 %v1351
  %v1547 = vpop.f32.mrf.mxu0
  %v1548 = vadd.f32 0.0, %v1547
  %1549 = vmatmul.f32.gmra.mxu0 %v1352
  %v1550 = vpop.f32.mrf.mxu0
  %v1551 = vadd.f32 0.0, %v1550
  %1552 = vmatmul.f32.gmra.mxu0 %v1353
  %v1553 = vpop.f32.mrf.mxu0
  %v1554 = vadd.f32 0.0, %v1553
  %1555 = vmatmul.f32.gmra.mxu0 %v1354
  %v1556 = vpop.f32.mrf.mxu0
  %v1557 = vadd.f32 0.0, %v1556
  %1558 = vmatmul.f32.gmra.mxu0 %v1355
  %v1559 = vpop.f32.mrf.mxu0
  %v1560 = vadd.f32 0.0, %v1559
  %1561 = vmatmul.f32.gmra.mxu0 %v1356
  %v1562 = vpop.f32.mrf.mxu0
  %v1563 = vadd.f32 0.0, %v1562
  %1564 = vmatmul.f32.gmra.mxu0 %v1357
  %v1565 = vpop.f32.mrf.mxu0
  %v1566 = vadd.f32 0.0, %v1565
  %1567 = vmatmul.f32.gmra.mxu0 %v1358
  %v1568 = vpop.f32.mrf.mxu0
  %v1569 = vadd.f32 0.0, %v1568
  %1570 = vmatmul.f32.gmra.mxu0 %v1359
  %v1571 = vpop.f32.mrf.mxu0
  %v1572 = vadd.f32 0.0, %v1571
  %1573 = vmatmul.f32.gmra.mxu0 %v1360
  %v1574 = vpop.f32.mrf.mxu0
  %v1575 = vadd.f32 0.0, %v1574
  %1576 = vmatmul.f32.gmra.mxu0 %v1361
  %v1577 = vpop.f32.mrf.mxu0
  %v1578 = vadd.f32 0.0, %v1577
  %1579 = vmatmul.f32.gmra.mxu0 %v1362
  %v1580 = vpop.f32.mrf.mxu0
  %v1581 = vadd.f32 0.0, %v1580
  %1582 = vmatmul.f32.gmra.mxu0 %v1363
  %v1583 = vpop.f32.mrf.mxu0
  %v1584 = vadd.f32 0.0, %v1583
  %1585 = vmatmul.f32.gmra.mxu0 %v1364
  %v1586 = vpop.f32.mrf.mxu0
  %v1587 = vadd.f32 0.0, %v1586
  %1588 = vmatmul.f32.gmra.mxu0 %v1365
  %v1589 = vpop.f32.mrf.mxu0
  %v1590 = vadd.f32 0.0, %v1589
  %1591 = vdwg.mxu0
  %v1592 = vadd.f32 %v1238, %v1401
  %v1593 = vadd.f32 %v1239, %v1404
  %v1594 = vadd.f32 %v1240, %v1407
  %v1595 = vadd.f32 %v1241, %v1410
  %v1596 = vadd.f32 %v1242, %v1413
  %v1597 = vadd.f32 %v1243, %v1416
  %v1598 = vadd.f32 %v1244, %v1419
  %v1599 = vadd.f32 %v1245, %v1422
  %v1600 = vadd.f32 %v1246, %v1425
  %v1601 = vadd.f32 %v1247, %v1428
  %v1602 = vadd.f32 %v1248, %v1431
  %v1603 = vadd.f32 %v1249, %v1434
  %v1604 = vadd.f32 %v1250, %v1437
  %v1605 = vadd.f32 %v1251, %v1440
  %v1606 = vadd.f32 %v1252, %v1443
  %v1607 = vadd.f32 %v1253, %v1446
  %v1608 = vadd.f32 %v1254, %v1449
  %v1609 = vadd.f32 %v1255, %v1452
  %v1610 = vadd.f32 %v1256, %v1455
  %v1611 = vadd.f32 %v1257, %v1458
  %v1612 = vadd.f32 %v1258, %v1461
  %v1613 = vadd.f32 %v1259, %v1464
  %v1614 = vadd.f32 %v1260, %v1467
  %v1615 = vadd.f32 %v1261, %v1470
  %v1616 = vadd.f32 %v1262, %v1473
  %v1617 = vadd.f32 %v1263, %v1476
  %v1618 = vadd.f32 %v1264, %v1479
  %v1619 = vadd.f32 %v1265, %v1482
  %v1620 = vadd.f32 %v1266, %v1485
  %v1621 = vadd.f32 %v1267, %v1488
  %v1622 = vadd.f32 %v1268, %v1491
  %v1623 = vadd.f32 %v1269, %v1494
  %v1624 = vadd.f32 %v1270, %v1497
  %v1625 = vadd.f32 %v1271, %v1500
  %v1626 = vadd.f32 %v1272, %v1503
  %v1627 = vadd.f32 %v1273, %v1506
  %v1628 = vadd.f32 %v1274, %v1509
  %v1629 = vadd.f32 %v1275, %v1512
  %v1630 = vadd.f32 %v1276, %v1515
  %v1631 = vadd.f32 %v1277, %v1518
  %v1632 = vadd.f32 %v1278, %v1521
  %v1633 = vadd.f32 %v1279, %v1524
  %v1634 = vadd.f32 %v1280, %v1527
  %v1635 = vadd.f32 %v1281, %v1530
  %v1636 = vadd.f32 %v1282, %v1533
  %v1637 = vadd.f32 %v1283, %v1536
  %v1638 = vadd.f32 %v1284, %v1539
  %v1639 = vadd.f32 %v1285, %v1542
  %v1640 = vadd.f32 %v1286, %v1545
  %v1641 = vadd.f32 %v1287, %v1548
  %v1642 = vadd.f32 %v1288, %v1551
  %v1643 = vadd.f32 %v1289, %v1554
  %v1644 = vadd.f32 %v1290, %v1557
  %v1645 = vadd.f32 %v1291, %v1560
  %v1646 = vadd.f32 %v1292, %v1563
  %v1647 = vadd.f32 %v1293, %v1566
  %v1648 = vadd.f32 %v1294, %v1569
  %v1649 = vadd.f32 %v1295, %v1572
  %v1650 = vadd.f32 %v1296, %v1575
  %v1651 = vadd.f32 %v1297, %v1578
  %v1652 = vadd.f32 %v1298, %v1581
  %v1653 = vadd.f32 %v1299, %v1584
  %v1654 = vadd.f32 %v1300, %v1587
  %v1655 = vadd.f32 %v1301, %v1590
  %v1656 = vld [vmem:[%s947 + $0x2] sm:$0xff]
  %v1657 = vld [vmem:[%s947 + $0xa] sm:$0xff]
  %v1658 = vld [vmem:[%s947 + $0x1a] sm:$0xff]
  %v1659 = vld [vmem:[%s947 + $0x22] sm:$0xff]
  %v1660 = vld [vmem:[%s947 + $0x32] sm:$0xff]
  %v1661 = vld [vmem:[%s947 + $0x3a] sm:$0xff]
  %v1662 = vld [vmem:[%s947 + $0x4a] sm:$0xff]
  %v1663 = vld [vmem:[%s947 + $0x52] sm:$0xff]
  %v1664 = vld [vmem:[%s947 + $0x62] sm:$0xff]
  %v1665 = vld [vmem:[%s947 + $0x6a] sm:$0xff]
  %v1666 = vld [vmem:[%s947 + $0x7a] sm:$0xff]
  %v1667 = vld [vmem:[%s947 + $0x82] sm:$0xff]
  %v1668 = vld [vmem:[%s947 + $0x92] sm:$0xff]
  %v1669 = vld [vmem:[%s947 + $0x9a] sm:$0xff]
  %v1670 = vld [vmem:[%s947 + $0xaa] sm:$0xff]
  %v1671 = vld [vmem:[%s947 + $0xb2] sm:$0xff]
  %v1672 = vld [vmem:[%s947 + $0xc2] sm:$0xff]
  %v1673 = vld [vmem:[%s947 + $0xca] sm:$0xff]
  %v1674 = vld [vmem:[%s947 + $0xda] sm:$0xff]
  %v1675 = vld [vmem:[%s947 + $0xe2] sm:$0xff]
  %v1676 = vld [vmem:[%s947 + $0xf2] sm:$0xff]
  %v1677 = vld [vmem:[%s947 + $0xfa] sm:$0xff]
  %v1678 = vld [vmem:[%s947 + $0x10a] sm:$0xff]
  %v1679 = vld [vmem:[%s947 + $0x112] sm:$0xff]
  %v1680 = vld [vmem:[%s947 + $0x122] sm:$0xff]
  %v1681 = vld [vmem:[%s947 + $0x12a] sm:$0xff]
  %v1682 = vld [vmem:[%s947 + $0x13a] sm:$0xff]
  %v1683 = vld [vmem:[%s947 + $0x142] sm:$0xff]
  %v1684 = vld [vmem:[%s947 + $0x152] sm:$0xff]
  %v1685 = vld [vmem:[%s947 + $0x15a] sm:$0xff]
  %v1686 = vld [vmem:[%s947 + $0x16a] sm:$0xff]
  %v1687 = vld [vmem:[%s947 + $0x172] sm:$0xff]
  %v1688 = vld [vmem:[%s947 + $0x1b2] sm:$0xff]
  %v1689 = vld [vmem:[%s947 + $0x1ba] sm:$0xff]
  %v1690 = vld [vmem:[%s947 + $0x1ca] sm:$0xff]
  %v1691 = vld [vmem:[%s947 + $0x1d2] sm:$0xff]
  %v1692 = vld [vmem:[%s947 + $0x1e2] sm:$0xff]
  %v1693 = vld [vmem:[%s947 + $0x1ea] sm:$0xff]
  %v1694 = vld [vmem:[%s947 + $0x1fa] sm:$0xff]
  %v1695 = vld [vmem:[%s947 + $0x202] sm:$0xff]
  %v1696 = vld [vmem:[%s947 + $0x212] sm:$0xff]
  %v1697 = vld [vmem:[%s947 + $0x21a] sm:$0xff]
  %v1698 = vld [vmem:[%s947 + $0x22a] sm:$0xff]
  %v1699 = vld [vmem:[%s947 + $0x232] sm:$0xff]
  %v1700 = vld [vmem:[%s947 + $0x242] sm:$0xff]
  %v1701 = vld [vmem:[%s947 + $0x24a] sm:$0xff]
  %v1702 = vld [vmem:[%s947 + $0x25a] sm:$0xff]
  %v1703 = vld [vmem:[%s947 + $0x262] sm:$0xff]
  %v1704 = vld [vmem:[%s947 + $0x272] sm:$0xff]
  %v1705 = vld [vmem:[%s947 + $0x27a] sm:$0xff]
  %v1706 = vld [vmem:[%s947 + $0x28a] sm:$0xff]
  %v1707 = vld [vmem:[%s947 + $0x292] sm:$0xff]
  %v1708 = vld [vmem:[%s947 + $0x2a2] sm:$0xff]
  %v1709 = vld [vmem:[%s947 + $0x2aa] sm:$0xff]
  %v1710 = vld [vmem:[%s947 + $0x2ba] sm:$0xff]
  %v1711 = vld [vmem:[%s947 + $0x2c2] sm:$0xff]
  %v1712 = vld [vmem:[%s947 + $0x2d2] sm:$0xff]
  %v1713 = vld [vmem:[%s947 + $0x2da] sm:$0xff]
  %v1714 = vld [vmem:[%s947 + $0x2ea] sm:$0xff]
  %v1715 = vld [vmem:[%s947 + $0x2f2] sm:$0xff]
  %v1716 = vld [vmem:[%s947 + $0x302] sm:$0xff]
  %v1717 = vld [vmem:[%s947 + $0x30a] sm:$0xff]
  %v1718 = vld [vmem:[%s947 + $0x31a] sm:$0xff]
  %v1719 = vld [vmem:[%s947 + $0x322] sm:$0xff]
  %s1720 = scalar_lea.vmem %s1, 640
  %v1721 = vld [vmem:[%s1720] sm:$0xff]
  %v1722 = vld [vmem:[%s1720 + $0x8] sm:$0xff]
  %v1723 = vld [vmem:[%s1720 + $0x10] sm:$0xff]
  %v1724 = vld [vmem:[%s1720 + $0x18] sm:$0xff]
  %v1725 = vld [vmem:[%s1720 + $0x20] sm:$0xff]
  %v1726 = vld [vmem:[%s1720 + $0x28] sm:$0xff]
  %v1727 = vld [vmem:[%s1720 + $0x30] sm:$0xff]
  %v1728 = vld [vmem:[%s1720 + $0x38] sm:$0xff]
  %v1729 = vld [vmem:[%s1720 + $0x40] sm:$0xff]
  %v1730 = vld [vmem:[%s1720 + $0x48] sm:$0xff]
  %v1731 = vld [vmem:[%s1720 + $0x50] sm:$0xff]
  %v1732 = vld [vmem:[%s1720 + $0x58] sm:$0xff]
  %v1733 = vld [vmem:[%s1720 + $0x60] sm:$0xff]
  %v1734 = vld [vmem:[%s1720 + $0x68] sm:$0xff]
  %v1735 = vld [vmem:[%s1720 + $0x70] sm:$0xff]
  %v1736 = vld [vmem:[%s1720 + $0x78] sm:$0xff]
  %1737 = vmatpush.msra.mxu0 %v1736
  %1738 = vmatpush.msra.mxu0 %v1735
  %1739 = vmatpush.msra.mxu0 %v1734
  %1740 = vmatpush.msra.mxu0 %v1733
  %1741 = vmatpush.msra.mxu0 %v1732
  %1742 = vmatpush.msra.mxu0 %v1731
  %1743 = vmatpush.msra.mxu0 %v1730
  %1744 = vmatpush.msra.mxu0 %v1729
  %1745 = vmatpush.msra.mxu0 %v1728
  %1746 = vmatpush.msra.mxu0 %v1727
  %1747 = vmatpush.msra.mxu0 %v1726
  %1748 = vmatpush.msra.mxu0 %v1725
  %1749 = vmatpush.msra.mxu0 %v1724
  %1750 = vmatpush.msra.mxu0 %v1723
  %1751 = vmatpush.msra.mxu0 %v1722
  %1752 = vmatpush.msra.mxu0 %v1721
  %1753 = vmatmul.f32.gmra.mxu0 %v1656
  %v1754 = vpop.f32.mrf.mxu0
  %v1755 = vadd.f32 0.0, %v1754
  %1756 = vmatmul.f32.gmra.mxu0 %v1657
  %v1757 = vpop.f32.mrf.mxu0
  %v1758 = vadd.f32 0.0, %v1757
  %1759 = vmatmul.f32.gmra.mxu0 %v1658
  %v1760 = vpop.f32.mrf.mxu0
  %v1761 = vadd.f32 0.0, %v1760
  %1762 = vmatmul.f32.gmra.mxu0 %v1659
  %v1763 = vpop.f32.mrf.mxu0
  %v1764 = vadd.f32 0.0, %v1763
  %1765 = vmatmul.f32.gmra.mxu0 %v1660
  %v1766 = vpop.f32.mrf.mxu0
  %v1767 = vadd.f32 0.0, %v1766
  %1768 = vmatmul.f32.gmra.mxu0 %v1661
  %v1769 = vpop.f32.mrf.mxu0
  %v1770 = vadd.f32 0.0, %v1769
  %1771 = vmatmul.f32.gmra.mxu0 %v1662
  %v1772 = vpop.f32.mrf.mxu0
  %v1773 = vadd.f32 0.0, %v1772
  %1774 = vmatmul.f32.gmra.mxu0 %v1663
  %v1775 = vpop.f32.mrf.mxu0
  %v1776 = vadd.f32 0.0, %v1775
  %1777 = vmatmul.f32.gmra.mxu0 %v1664
  %v1778 = vpop.f32.mrf.mxu0
  %v1779 = vadd.f32 0.0, %v1778
  %1780 = vmatmul.f32.gmra.mxu0 %v1665
  %v1781 = vpop.f32.mrf.mxu0
  %v1782 = vadd.f32 0.0, %v1781
  %1783 = vmatmul.f32.gmra.mxu0 %v1666
  %v1784 = vpop.f32.mrf.mxu0
  %v1785 = vadd.f32 0.0, %v1784
  %1786 = vmatmul.f32.gmra.mxu0 %v1667
  %v1787 = vpop.f32.mrf.mxu0
  %v1788 = vadd.f32 0.0, %v1787
  %1789 = vmatmul.f32.gmra.mxu0 %v1668
  %v1790 = vpop.f32.mrf.mxu0
  %v1791 = vadd.f32 0.0, %v1790
  %1792 = vmatmul.f32.gmra.mxu0 %v1669
  %v1793 = vpop.f32.mrf.mxu0
  %v1794 = vadd.f32 0.0, %v1793
  %1795 = vmatmul.f32.gmra.mxu0 %v1670
  %v1796 = vpop.f32.mrf.mxu0
  %v1797 = vadd.f32 0.0, %v1796
  %1798 = vmatmul.f32.gmra.mxu0 %v1671
  %v1799 = vpop.f32.mrf.mxu0
  %v1800 = vadd.f32 0.0, %v1799
  %1801 = vmatmul.f32.gmra.mxu0 %v1672
  %v1802 = vpop.f32.mrf.mxu0
  %v1803 = vadd.f32 0.0, %v1802
  %1804 = vmatmul.f32.gmra.mxu0 %v1673
  %v1805 = vpop.f32.mrf.mxu0
  %v1806 = vadd.f32 0.0, %v1805
  %1807 = vmatmul.f32.gmra.mxu0 %v1674
  %v1808 = vpop.f32.mrf.mxu0
  %v1809 = vadd.f32 0.0, %v1808
  %1810 = vmatmul.f32.gmra.mxu0 %v1675
  %v1811 = vpop.f32.mrf.mxu0
  %v1812 = vadd.f32 0.0, %v1811
  %1813 = vmatmul.f32.gmra.mxu0 %v1676
  %v1814 = vpop.f32.mrf.mxu0
  %v1815 = vadd.f32 0.0, %v1814
  %1816 = vmatmul.f32.gmra.mxu0 %v1677
  %v1817 = vpop.f32.mrf.mxu0
  %v1818 = vadd.f32 0.0, %v1817
  %1819 = vmatmul.f32.gmra.mxu0 %v1678
  %v1820 = vpop.f32.mrf.mxu0
  %v1821 = vadd.f32 0.0, %v1820
  %1822 = vmatmul.f32.gmra.mxu0 %v1679
  %v1823 = vpop.f32.mrf.mxu0
  %v1824 = vadd.f32 0.0, %v1823
  %1825 = vmatmul.f32.gmra.mxu0 %v1680
  %v1826 = vpop.f32.mrf.mxu0
  %v1827 = vadd.f32 0.0, %v1826
  %1828 = vmatmul.f32.gmra.mxu0 %v1681
  %v1829 = vpop.f32.mrf.mxu0
  %v1830 = vadd.f32 0.0, %v1829
  %1831 = vmatmul.f32.gmra.mxu0 %v1682
  %v1832 = vpop.f32.mrf.mxu0
  %v1833 = vadd.f32 0.0, %v1832
  %1834 = vmatmul.f32.gmra.mxu0 %v1683
  %v1835 = vpop.f32.mrf.mxu0
  %v1836 = vadd.f32 0.0, %v1835
  %1837 = vmatmul.f32.gmra.mxu0 %v1684
  %v1838 = vpop.f32.mrf.mxu0
  %v1839 = vadd.f32 0.0, %v1838
  %1840 = vmatmul.f32.gmra.mxu0 %v1685
  %v1841 = vpop.f32.mrf.mxu0
  %v1842 = vadd.f32 0.0, %v1841
  %1843 = vmatmul.f32.gmra.mxu0 %v1686
  %v1844 = vpop.f32.mrf.mxu0
  %v1845 = vadd.f32 0.0, %v1844
  %1846 = vmatmul.f32.gmra.mxu0 %v1687
  %v1847 = vpop.f32.mrf.mxu0
  %v1848 = vadd.f32 0.0, %v1847
  %1849 = vmatmul.f32.gmra.mxu0 %v1688
  %v1850 = vpop.f32.mrf.mxu0
  %v1851 = vadd.f32 0.0, %v1850
  %1852 = vmatmul.f32.gmra.mxu0 %v1689
  %v1853 = vpop.f32.mrf.mxu0
  %v1854 = vadd.f32 0.0, %v1853
  %1855 = vmatmul.f32.gmra.mxu0 %v1690
  %v1856 = vpop.f32.mrf.mxu0
  %v1857 = vadd.f32 0.0, %v1856
  %1858 = vmatmul.f32.gmra.mxu0 %v1691
  %v1859 = vpop.f32.mrf.mxu0
  %v1860 = vadd.f32 0.0, %v1859
  %1861 = vmatmul.f32.gmra.mxu0 %v1692
  %v1862 = vpop.f32.mrf.mxu0
  %v1863 = vadd.f32 0.0, %v1862
  %1864 = vmatmul.f32.gmra.mxu0 %v1693
  %v1865 = vpop.f32.mrf.mxu0
  %v1866 = vadd.f32 0.0, %v1865
  %1867 = vmatmul.f32.gmra.mxu0 %v1694
  %v1868 = vpop.f32.mrf.mxu0
  %v1869 = vadd.f32 0.0, %v1868
  %1870 = vmatmul.f32.gmra.mxu0 %v1695
  %v1871 = vpop.f32.mrf.mxu0
  %v1872 = vadd.f32 0.0, %v1871
  %1873 = vmatmul.f32.gmra.mxu0 %v1696
  %v1874 = vpop.f32.mrf.mxu0
  %v1875 = vadd.f32 0.0, %v1874
  %1876 = vmatmul.f32.gmra.mxu0 %v1697
  %v1877 = vpop.f32.mrf.mxu0
  %v1878 = vadd.f32 0.0, %v1877
  %1879 = vmatmul.f32.gmra.mxu0 %v1698
  %v1880 = vpop.f32.mrf.mxu0
  %v1881 = vadd.f32 0.0, %v1880
  %1882 = vmatmul.f32.gmra.mxu0 %v1699
  %v1883 = vpop.f32.mrf.mxu0
  %v1884 = vadd.f32 0.0, %v1883
  %1885 = vmatmul.f32.gmra.mxu0 %v1700
  %v1886 = vpop.f32.mrf.mxu0
  %v1887 = vadd.f32 0.0, %v1886
  %1888 = vmatmul.f32.gmra.mxu0 %v1701
  %v1889 = vpop.f32.mrf.mxu0
  %v1890 = vadd.f32 0.0, %v1889
  %1891 = vmatmul.f32.gmra.mxu0 %v1702
  %v1892 = vpop.f32.mrf.mxu0
  %v1893 = vadd.f32 0.0, %v1892
  %1894 = vmatmul.f32.gmra.mxu0 %v1703
  %v1895 = vpop.f32.mrf.mxu0
  %v1896 = vadd.f32 0.0, %v1895
  %1897 = vmatmul.f32.gmra.mxu0 %v1704
  %v1898 = vpop.f32.mrf.mxu0
  %v1899 = vadd.f32 0.0, %v1898
  %1900 = vmatmul.f32.gmra.mxu0 %v1705
  %v1901 = vpop.f32.mrf.mxu0
  %v1902 = vadd.f32 0.0, %v1901
  %1903 = vmatmul.f32.gmra.mxu0 %v1706
  %v1904 = vpop.f32.mrf.mxu0
  %v1905 = vadd.f32 0.0, %v1904
  %1906 = vmatmul.f32.gmra.mxu0 %v1707
  %v1907 = vpop.f32.mrf.mxu0
  %v1908 = vadd.f32 0.0, %v1907
  %1909 = vmatmul.f32.gmra.mxu0 %v1708
  %v1910 = vpop.f32.mrf.mxu0
  %v1911 = vadd.f32 0.0, %v1910
  %1912 = vmatmul.f32.gmra.mxu0 %v1709
  %v1913 = vpop.f32.mrf.mxu0
  %v1914 = vadd.f32 0.0, %v1913
  %1915 = vmatmul.f32.gmra.mxu0 %v1710
  %v1916 = vpop.f32.mrf.mxu0
  %v1917 = vadd.f32 0.0, %v1916
  %1918 = vmatmul.f32.gmra.mxu0 %v1711
  %v1919 = vpop.f32.mrf.mxu0
  %v1920 = vadd.f32 0.0, %v1919
  %1921 = vmatmul.f32.gmra.mxu0 %v1712
  %v1922 = vpop.f32.mrf.mxu0
  %v1923 = vadd.f32 0.0, %v1922
  %1924 = vmatmul.f32.gmra.mxu0 %v1713
  %v1925 = vpop.f32.mrf.mxu0
  %v1926 = vadd.f32 0.0, %v1925
  %1927 = vmatmul.f32.gmra.mxu0 %v1714
  %v1928 = vpop.f32.mrf.mxu0
  %v1929 = vadd.f32 0.0, %v1928
  %1930 = vmatmul.f32.gmra.mxu0 %v1715
  %v1931 = vpop.f32.mrf.mxu0
  %v1932 = vadd.f32 0.0, %v1931
  %1933 = vmatmul.f32.gmra.mxu0 %v1716
  %v1934 = vpop.f32.mrf.mxu0
  %v1935 = vadd.f32 0.0, %v1934
  %1936 = vmatmul.f32.gmra.mxu0 %v1717
  %v1937 = vpop.f32.mrf.mxu0
  %v1938 = vadd.f32 0.0, %v1937
  %1939 = vmatmul.f32.gmra.mxu0 %v1718
  %v1940 = vpop.f32.mrf.mxu0
  %v1941 = vadd.f32 0.0, %v1940
  %1942 = vmatmul.f32.gmra.mxu0 %v1719
  %v1943 = vpop.f32.mrf.mxu0
  %v1944 = vadd.f32 0.0, %v1943
  %1945 = vdwg.mxu0
  %v1946 = vadd.f32 %v1592, %v1755
  %v1947 = vadd.f32 %v1593, %v1758
  %v1948 = vadd.f32 %v1594, %v1761
  %v1949 = vadd.f32 %v1595, %v1764
  %v1950 = vadd.f32 %v1596, %v1767
  %v1951 = vadd.f32 %v1597, %v1770
  %v1952 = vadd.f32 %v1598, %v1773
  %v1953 = vadd.f32 %v1599, %v1776
  %v1954 = vadd.f32 %v1600, %v1779
  %v1955 = vadd.f32 %v1601, %v1782
  %v1956 = vadd.f32 %v1602, %v1785
  %v1957 = vadd.f32 %v1603, %v1788
  %v1958 = vadd.f32 %v1604, %v1791
  %v1959 = vadd.f32 %v1605, %v1794
  %v1960 = vadd.f32 %v1606, %v1797
  %v1961 = vadd.f32 %v1607, %v1800
  %v1962 = vadd.f32 %v1608, %v1803
  %v1963 = vadd.f32 %v1609, %v1806
  %v1964 = vadd.f32 %v1610, %v1809
  %v1965 = vadd.f32 %v1611, %v1812
  %v1966 = vadd.f32 %v1612, %v1815
  %v1967 = vadd.f32 %v1613, %v1818
  %v1968 = vadd.f32 %v1614, %v1821
  %v1969 = vadd.f32 %v1615, %v1824
  %v1970 = vadd.f32 %v1616, %v1827
  %v1971 = vadd.f32 %v1617, %v1830
  %v1972 = vadd.f32 %v1618, %v1833
  %v1973 = vadd.f32 %v1619, %v1836
  %v1974 = vadd.f32 %v1620, %v1839
  %v1975 = vadd.f32 %v1621, %v1842
  %v1976 = vadd.f32 %v1622, %v1845
  %v1977 = vadd.f32 %v1623, %v1848
  %v1978 = vadd.f32 %v1624, %v1851
  %v1979 = vadd.f32 %v1625, %v1854
  %v1980 = vadd.f32 %v1626, %v1857
  %v1981 = vadd.f32 %v1627, %v1860
  %v1982 = vadd.f32 %v1628, %v1863
  %v1983 = vadd.f32 %v1629, %v1866
  %v1984 = vadd.f32 %v1630, %v1869
  %v1985 = vadd.f32 %v1631, %v1872
  %v1986 = vadd.f32 %v1632, %v1875
  %v1987 = vadd.f32 %v1633, %v1878
  %v1988 = vadd.f32 %v1634, %v1881
  %v1989 = vadd.f32 %v1635, %v1884
  %v1990 = vadd.f32 %v1636, %v1887
  %v1991 = vadd.f32 %v1637, %v1890
  %v1992 = vadd.f32 %v1638, %v1893
  %v1993 = vadd.f32 %v1639, %v1896
  %v1994 = vadd.f32 %v1640, %v1899
  %v1995 = vadd.f32 %v1641, %v1902
  %v1996 = vadd.f32 %v1642, %v1905
  %v1997 = vadd.f32 %v1643, %v1908
  %v1998 = vadd.f32 %v1644, %v1911
  %v1999 = vadd.f32 %v1645, %v1914
  %v2000 = vadd.f32 %v1646, %v1917
  %v2001 = vadd.f32 %v1647, %v1920
  %v2002 = vadd.f32 %v1648, %v1923
  %v2003 = vadd.f32 %v1649, %v1926
  %v2004 = vadd.f32 %v1650, %v1929
  %v2005 = vadd.f32 %v1651, %v1932
  %v2006 = vadd.f32 %v1652, %v1935
  %v2007 = vadd.f32 %v1653, %v1938
  %v2008 = vadd.f32 %v1654, %v1941
  %v2009 = vadd.f32 %v1655, %v1944
  %s2010 = scalar_lea.vmem %s0, 48
  %v2011 = vld [vmem:[%s2010] sm:$0xff]
  %v2012 = vld [vmem:[%s2010 + $0x8] sm:$0xff]
  %v2013 = vld [vmem:[%s2010 + $0x18] sm:$0xff]
  %v2014 = vld [vmem:[%s2010 + $0x20] sm:$0xff]
  %v2015 = vld [vmem:[%s2010 + $0x30] sm:$0xff]
  %v2016 = vld [vmem:[%s2010 + $0x38] sm:$0xff]
  %v2017 = vld [vmem:[%s2010 + $0x48] sm:$0xff]
  %v2018 = vld [vmem:[%s2010 + $0x50] sm:$0xff]
  %v2019 = vld [vmem:[%s2010 + $0x60] sm:$0xff]
  %v2020 = vld [vmem:[%s2010 + $0x68] sm:$0xff]
  %v2021 = vld [vmem:[%s2010 + $0x78] sm:$0xff]
  %v2022 = vld [vmem:[%s2010 + $0x80] sm:$0xff]
  %v2023 = vld [vmem:[%s2010 + $0x90] sm:$0xff]
  %v2024 = vld [vmem:[%s2010 + $0x98] sm:$0xff]
  %v2025 = vld [vmem:[%s2010 + $0xa8] sm:$0xff]
  %v2026 = vld [vmem:[%s2010 + $0xb0] sm:$0xff]
  %v2027 = vld [vmem:[%s2010 + $0xc0] sm:$0xff]
  %v2028 = vld [vmem:[%s2010 + $0xc8] sm:$0xff]
  %v2029 = vld [vmem:[%s2010 + $0xd8] sm:$0xff]
  %v2030 = vld [vmem:[%s2010 + $0xe0] sm:$0xff]
  %v2031 = vld [vmem:[%s2010 + $0xf0] sm:$0xff]
  %v2032 = vld [vmem:[%s2010 + $0xf8] sm:$0xff]
  %v2033 = vld [vmem:[%s2010 + $0x108] sm:$0xff]
  %v2034 = vld [vmem:[%s2010 + $0x110] sm:$0xff]
  %v2035 = vld [vmem:[%s2010 + $0x120] sm:$0xff]
  %v2036 = vld [vmem:[%s2010 + $0x128] sm:$0xff]
  %v2037 = vld [vmem:[%s2010 + $0x138] sm:$0xff]
  %v2038 = vld [vmem:[%s2010 + $0x140] sm:$0xff]
  %v2039 = vld [vmem:[%s2010 + $0x150] sm:$0xff]
  %v2040 = vld [vmem:[%s2010 + $0x158] sm:$0xff]
  %v2041 = vld [vmem:[%s2010 + $0x168] sm:$0xff]
  %v2042 = vld [vmem:[%s2010 + $0x170] sm:$0xff]
  %v2043 = vld [vmem:[%s2010 + $0x1b0] sm:$0xff]
  %v2044 = vld [vmem:[%s2010 + $0x1b8] sm:$0xff]
  %v2045 = vld [vmem:[%s2010 + $0x1c8] sm:$0xff]
  %v2046 = vld [vmem:[%s2010 + $0x1d0] sm:$0xff]
  %v2047 = vld [vmem:[%s2010 + $0x1e0] sm:$0xff]
  %v2048 = vld [vmem:[%s2010 + $0x1e8] sm:$0xff]
  %v2049 = vld [vmem:[%s2010 + $0x1f8] sm:$0xff]
  %v2050 = vld [vmem:[%s2010 + $0x200] sm:$0xff]
  %v2051 = vld [vmem:[%s2010 + $0x210] sm:$0xff]
  %v2052 = vld [vmem:[%s2010 + $0x218] sm:$0xff]
  %v2053 = vld [vmem:[%s2010 + $0x228] sm:$0xff]
  %v2054 = vld [vmem:[%s2010 + $0x230] sm:$0xff]
  %v2055 = vld [vmem:[%s2010 + $0x240] sm:$0xff]
  %v2056 = vld [vmem:[%s2010 + $0x248] sm:$0xff]
  %v2057 = vld [vmem:[%s2010 + $0x258] sm:$0xff]
  %v2058 = vld [vmem:[%s2010 + $0x260] sm:$0xff]
  %v2059 = vld [vmem:[%s2010 + $0x270] sm:$0xff]
  %v2060 = vld [vmem:[%s2010 + $0x278] sm:$0xff]
  %v2061 = vld [vmem:[%s2010 + $0x288] sm:$0xff]
  %v2062 = vld [vmem:[%s2010 + $0x290] sm:$0xff]
  %v2063 = vld [vmem:[%s2010 + $0x2a0] sm:$0xff]
  %v2064 = vld [vmem:[%s2010 + $0x2a8] sm:$0xff]
  %v2065 = vld [vmem:[%s2010 + $0x2b8] sm:$0xff]
  %v2066 = vld [vmem:[%s2010 + $0x2c0] sm:$0xff]
  %v2067 = vld [vmem:[%s2010 + $0x2d0] sm:$0xff]
  %v2068 = vld [vmem:[%s2010 + $0x2d8] sm:$0xff]
  %v2069 = vld [vmem:[%s2010 + $0x2e8] sm:$0xff]
  %v2070 = vld [vmem:[%s2010 + $0x2f0] sm:$0xff]
  %v2071 = vld [vmem:[%s2010 + $0x300] sm:$0xff]
  %v2072 = vld [vmem:[%s2010 + $0x308] sm:$0xff]
  %v2073 = vld [vmem:[%s2010 + $0x318] sm:$0xff]
  %v2074 = vld [vmem:[%s2010 + $0x320] sm:$0xff]
  %s2075 = scalar_lea.vmem %s1, 768
  %v2076 = vld [vmem:[%s2075] sm:$0xff]
  %v2077 = vld [vmem:[%s2075 + $0x8] sm:$0xff]
  %v2078 = vld [vmem:[%s2075 + $0x10] sm:$0xff]
  %v2079 = vld [vmem:[%s2075 + $0x18] sm:$0xff]
  %v2080 = vld [vmem:[%s2075 + $0x20] sm:$0xff]
  %v2081 = vld [vmem:[%s2075 + $0x28] sm:$0xff]
  %v2082 = vld [vmem:[%s2075 + $0x30] sm:$0xff]
  %v2083 = vld [vmem:[%s2075 + $0x38] sm:$0xff]
  %v2084 = vld [vmem:[%s2075 + $0x40] sm:$0xff]
  %v2085 = vld [vmem:[%s2075 + $0x48] sm:$0xff]
  %v2086 = vld [vmem:[%s2075 + $0x50] sm:$0xff]
  %v2087 = vld [vmem:[%s2075 + $0x58] sm:$0xff]
  %v2088 = vld [vmem:[%s2075 + $0x60] sm:$0xff]
  %v2089 = vld [vmem:[%s2075 + $0x68] sm:$0xff]
  %v2090 = vld [vmem:[%s2075 + $0x70] sm:$0xff]
  %v2091 = vld [vmem:[%s2075 + $0x78] sm:$0xff]
  %2092 = vmatpush.msra.mxu0 %v2091
  %2093 = vmatpush.msra.mxu0 %v2090
  %2094 = vmatpush.msra.mxu0 %v2089
  %2095 = vmatpush.msra.mxu0 %v2088
  %2096 = vmatpush.msra.mxu0 %v2087
  %2097 = vmatpush.msra.mxu0 %v2086
  %2098 = vmatpush.msra.mxu0 %v2085
  %2099 = vmatpush.msra.mxu0 %v2084
  %2100 = vmatpush.msra.mxu0 %v2083
  %2101 = vmatpush.msra.mxu0 %v2082
  %2102 = vmatpush.msra.mxu0 %v2081
  %2103 = vmatpush.msra.mxu0 %v2080
  %2104 = vmatpush.msra.mxu0 %v2079
  %2105 = vmatpush.msra.mxu0 %v2078
  %2106 = vmatpush.msra.mxu0 %v2077
  %2107 = vmatpush.msra.mxu0 %v2076
  %2108 = vmatmul.f32.gmra.mxu0 %v2011
  %v2109 = vpop.f32.mrf.mxu0
  %v2110 = vadd.f32 0.0, %v2109
  %2111 = vmatmul.f32.gmra.mxu0 %v2012
  %v2112 = vpop.f32.mrf.mxu0
  %v2113 = vadd.f32 0.0, %v2112
  %2114 = vmatmul.f32.gmra.mxu0 %v2013
  %v2115 = vpop.f32.mrf.mxu0
  %v2116 = vadd.f32 0.0, %v2115
  %2117 = vmatmul.f32.gmra.mxu0 %v2014
  %v2118 = vpop.f32.mrf.mxu0
  %v2119 = vadd.f32 0.0, %v2118
  %2120 = vmatmul.f32.gmra.mxu0 %v2015
  %v2121 = vpop.f32.mrf.mxu0
  %v2122 = vadd.f32 0.0, %v2121
  %2123 = vmatmul.f32.gmra.mxu0 %v2016
  %v2124 = vpop.f32.mrf.mxu0
  %v2125 = vadd.f32 0.0, %v2124
  %2126 = vmatmul.f32.gmra.mxu0 %v2017
  %v2127 = vpop.f32.mrf.mxu0
  %v2128 = vadd.f32 0.0, %v2127
  %2129 = vmatmul.f32.gmra.mxu0 %v2018
  %v2130 = vpop.f32.mrf.mxu0
  %v2131 = vadd.f32 0.0, %v2130
  %2132 = vmatmul.f32.gmra.mxu0 %v2019
  %v2133 = vpop.f32.mrf.mxu0
  %v2134 = vadd.f32 0.0, %v2133
  %2135 = vmatmul.f32.gmra.mxu0 %v2020
  %v2136 = vpop.f32.mrf.mxu0
  %v2137 = vadd.f32 0.0, %v2136
  %2138 = vmatmul.f32.gmra.mxu0 %v2021
  %v2139 = vpop.f32.mrf.mxu0
  %v2140 = vadd.f32 0.0, %v2139
  %2141 = vmatmul.f32.gmra.mxu0 %v2022
  %v2142 = vpop.f32.mrf.mxu0
  %v2143 = vadd.f32 0.0, %v2142
  %2144 = vmatmul.f32.gmra.mxu0 %v2023
  %v2145 = vpop.f32.mrf.mxu0
  %v2146 = vadd.f32 0.0, %v2145
  %2147 = vmatmul.f32.gmra.mxu0 %v2024
  %v2148 = vpop.f32.mrf.mxu0
  %v2149 = vadd.f32 0.0, %v2148
  %2150 = vmatmul.f32.gmra.mxu0 %v2025
  %v2151 = vpop.f32.mrf.mxu0
  %v2152 = vadd.f32 0.0, %v2151
  %2153 = vmatmul.f32.gmra.mxu0 %v2026
  %v2154 = vpop.f32.mrf.mxu0
  %v2155 = vadd.f32 0.0, %v2154
  %2156 = vmatmul.f32.gmra.mxu0 %v2027
  %v2157 = vpop.f32.mrf.mxu0
  %v2158 = vadd.f32 0.0, %v2157
  %2159 = vmatmul.f32.gmra.mxu0 %v2028
  %v2160 = vpop.f32.mrf.mxu0
  %v2161 = vadd.f32 0.0, %v2160
  %2162 = vmatmul.f32.gmra.mxu0 %v2029
  %v2163 = vpop.f32.mrf.mxu0
  %v2164 = vadd.f32 0.0, %v2163
  %2165 = vmatmul.f32.gmra.mxu0 %v2030
  %v2166 = vpop.f32.mrf.mxu0
  %v2167 = vadd.f32 0.0, %v2166
  %2168 = vmatmul.f32.gmra.mxu0 %v2031
  %v2169 = vpop.f32.mrf.mxu0
  %v2170 = vadd.f32 0.0, %v2169
  %2171 = vmatmul.f32.gmra.mxu0 %v2032
  %v2172 = vpop.f32.mrf.mxu0
  %v2173 = vadd.f32 0.0, %v2172
  %2174 = vmatmul.f32.gmra.mxu0 %v2033
  %v2175 = vpop.f32.mrf.mxu0
  %v2176 = vadd.f32 0.0, %v2175
  %2177 = vmatmul.f32.gmra.mxu0 %v2034
  %v2178 = vpop.f32.mrf.mxu0
  %v2179 = vadd.f32 0.0, %v2178
  %2180 = vmatmul.f32.gmra.mxu0 %v2035
  %v2181 = vpop.f32.mrf.mxu0
  %v2182 = vadd.f32 0.0, %v2181
  %2183 = vmatmul.f32.gmra.mxu0 %v2036
  %v2184 = vpop.f32.mrf.mxu0
  %v2185 = vadd.f32 0.0, %v2184
  %2186 = vmatmul.f32.gmra.mxu0 %v2037
  %v2187 = vpop.f32.mrf.mxu0
  %v2188 = vadd.f32 0.0, %v2187
  %2189 = vmatmul.f32.gmra.mxu0 %v2038
  %v2190 = vpop.f32.mrf.mxu0
  %v2191 = vadd.f32 0.0, %v2190
  %2192 = vmatmul.f32.gmra.mxu0 %v2039
  %v2193 = vpop.f32.mrf.mxu0
  %v2194 = vadd.f32 0.0, %v2193
  %2195 = vmatmul.f32.gmra.mxu0 %v2040
  %v2196 = vpop.f32.mrf.mxu0
  %v2197 = vadd.f32 0.0, %v2196
  %2198 = vmatmul.f32.gmra.mxu0 %v2041
  %v2199 = vpop.f32.mrf.mxu0
  %v2200 = vadd.f32 0.0, %v2199
  %2201 = vmatmul.f32.gmra.mxu0 %v2042
  %v2202 = vpop.f32.mrf.mxu0
  %v2203 = vadd.f32 0.0, %v2202
  %2204 = vmatmul.f32.gmra.mxu0 %v2043
  %v2205 = vpop.f32.mrf.mxu0
  %v2206 = vadd.f32 0.0, %v2205
  %2207 = vmatmul.f32.gmra.mxu0 %v2044
  %v2208 = vpop.f32.mrf.mxu0
  %v2209 = vadd.f32 0.0, %v2208
  %2210 = vmatmul.f32.gmra.mxu0 %v2045
  %v2211 = vpop.f32.mrf.mxu0
  %v2212 = vadd.f32 0.0, %v2211
  %2213 = vmatmul.f32.gmra.mxu0 %v2046
  %v2214 = vpop.f32.mrf.mxu0
  %v2215 = vadd.f32 0.0, %v2214
  %2216 = vmatmul.f32.gmra.mxu0 %v2047
  %v2217 = vpop.f32.mrf.mxu0
  %v2218 = vadd.f32 0.0, %v2217
  %2219 = vmatmul.f32.gmra.mxu0 %v2048
  %v2220 = vpop.f32.mrf.mxu0
  %v2221 = vadd.f32 0.0, %v2220
  %2222 = vmatmul.f32.gmra.mxu0 %v2049
  %v2223 = vpop.f32.mrf.mxu0
  %v2224 = vadd.f32 0.0, %v2223
  %2225 = vmatmul.f32.gmra.mxu0 %v2050
  %v2226 = vpop.f32.mrf.mxu0
  %v2227 = vadd.f32 0.0, %v2226
  %2228 = vmatmul.f32.gmra.mxu0 %v2051
  %v2229 = vpop.f32.mrf.mxu0
  %v2230 = vadd.f32 0.0, %v2229
  %2231 = vmatmul.f32.gmra.mxu0 %v2052
  %v2232 = vpop.f32.mrf.mxu0
  %v2233 = vadd.f32 0.0, %v2232
  %2234 = vmatmul.f32.gmra.mxu0 %v2053
  %v2235 = vpop.f32.mrf.mxu0
  %v2236 = vadd.f32 0.0, %v2235
  %2237 = vmatmul.f32.gmra.mxu0 %v2054
  %v2238 = vpop.f32.mrf.mxu0
  %v2239 = vadd.f32 0.0, %v2238
  %2240 = vmatmul.f32.gmra.mxu0 %v2055
  %v2241 = vpop.f32.mrf.mxu0
  %v2242 = vadd.f32 0.0, %v2241
  %2243 = vmatmul.f32.gmra.mxu0 %v2056
  %v2244 = vpop.f32.mrf.mxu0
  %v2245 = vadd.f32 0.0, %v2244
  %2246 = vmatmul.f32.gmra.mxu0 %v2057
  %v2247 = vpop.f32.mrf.mxu0
  %v2248 = vadd.f32 0.0, %v2247
  %2249 = vmatmul.f32.gmra.mxu0 %v2058
  %v2250 = vpop.f32.mrf.mxu0
  %v2251 = vadd.f32 0.0, %v2250
  %2252 = vmatmul.f32.gmra.mxu0 %v2059
  %v2253 = vpop.f32.mrf.mxu0
  %v2254 = vadd.f32 0.0, %v2253
  %2255 = vmatmul.f32.gmra.mxu0 %v2060
  %v2256 = vpop.f32.mrf.mxu0
  %v2257 = vadd.f32 0.0, %v2256
  %2258 = vmatmul.f32.gmra.mxu0 %v2061
  %v2259 = vpop.f32.mrf.mxu0
  %v2260 = vadd.f32 0.0, %v2259
  %2261 = vmatmul.f32.gmra.mxu0 %v2062
  %v2262 = vpop.f32.mrf.mxu0
  %v2263 = vadd.f32 0.0, %v2262
  %2264 = vmatmul.f32.gmra.mxu0 %v2063
  %v2265 = vpop.f32.mrf.mxu0
  %v2266 = vadd.f32 0.0, %v2265
  %2267 = vmatmul.f32.gmra.mxu0 %v2064
  %v2268 = vpop.f32.mrf.mxu0
  %v2269 = vadd.f32 0.0, %v2268
  %2270 = vmatmul.f32.gmra.mxu0 %v2065
  %v2271 = vpop.f32.mrf.mxu0
  %v2272 = vadd.f32 0.0, %v2271
  %2273 = vmatmul.f32.gmra.mxu0 %v2066
  %v2274 = vpop.f32.mrf.mxu0
  %v2275 = vadd.f32 0.0, %v2274
  %2276 = vmatmul.f32.gmra.mxu0 %v2067
  %v2277 = vpop.f32.mrf.mxu0
  %v2278 = vadd.f32 0.0, %v2277
  %2279 = vmatmul.f32.gmra.mxu0 %v2068
  %v2280 = vpop.f32.mrf.mxu0
  %v2281 = vadd.f32 0.0, %v2280
  %2282 = vmatmul.f32.gmra.mxu0 %v2069
  %v2283 = vpop.f32.mrf.mxu0
  %v2284 = vadd.f32 0.0, %v2283
  %2285 = vmatmul.f32.gmra.mxu0 %v2070
  %v2286 = vpop.f32.mrf.mxu0
  %v2287 = vadd.f32 0.0, %v2286
  %2288 = vmatmul.f32.gmra.mxu0 %v2071
  %v2289 = vpop.f32.mrf.mxu0
  %v2290 = vadd.f32 0.0, %v2289
  %2291 = vmatmul.f32.gmra.mxu0 %v2072
  %v2292 = vpop.f32.mrf.mxu0
  %v2293 = vadd.f32 0.0, %v2292
  %2294 = vmatmul.f32.gmra.mxu0 %v2073
  %v2295 = vpop.f32.mrf.mxu0
  %v2296 = vadd.f32 0.0, %v2295
  %2297 = vmatmul.f32.gmra.mxu0 %v2074
  %v2298 = vpop.f32.mrf.mxu0
  %v2299 = vadd.f32 0.0, %v2298
  %2300 = vdwg.mxu0
  %v2301 = vadd.f32 %v1946, %v2110
  %v2302 = vadd.f32 %v1947, %v2113
  %v2303 = vadd.f32 %v1948, %v2116
  %v2304 = vadd.f32 %v1949, %v2119
  %v2305 = vadd.f32 %v1950, %v2122
  %v2306 = vadd.f32 %v1951, %v2125
  %v2307 = vadd.f32 %v1952, %v2128
  %v2308 = vadd.f32 %v1953, %v2131
  %v2309 = vadd.f32 %v1954, %v2134
  %v2310 = vadd.f32 %v1955, %v2137
  %v2311 = vadd.f32 %v1956, %v2140
  %v2312 = vadd.f32 %v1957, %v2143
  %v2313 = vadd.f32 %v1958, %v2146
  %v2314 = vadd.f32 %v1959, %v2149
  %v2315 = vadd.f32 %v1960, %v2152
  %v2316 = vadd.f32 %v1961, %v2155
  %v2317 = vadd.f32 %v1962, %v2158
  %v2318 = vadd.f32 %v1963, %v2161
  %v2319 = vadd.f32 %v1964, %v2164
  %v2320 = vadd.f32 %v1965, %v2167
  %v2321 = vadd.f32 %v1966, %v2170
  %v2322 = vadd.f32 %v1967, %v2173
  %v2323 = vadd.f32 %v1968, %v2176
  %v2324 = vadd.f32 %v1969, %v2179
  %v2325 = vadd.f32 %v1970, %v2182
  %v2326 = vadd.f32 %v1971, %v2185
  %v2327 = vadd.f32 %v1972, %v2188
  %v2328 = vadd.f32 %v1973, %v2191
  %v2329 = vadd.f32 %v1974, %v2194
  %v2330 = vadd.f32 %v1975, %v2197
  %v2331 = vadd.f32 %v1976, %v2200
  %v2332 = vadd.f32 %v1977, %v2203
  %v2333 = vadd.f32 %v1978, %v2206
  %v2334 = vadd.f32 %v1979, %v2209
  %v2335 = vadd.f32 %v1980, %v2212
  %v2336 = vadd.f32 %v1981, %v2215
  %v2337 = vadd.f32 %v1982, %v2218
  %v2338 = vadd.f32 %v1983, %v2221
  %v2339 = vadd.f32 %v1984, %v2224
  %v2340 = vadd.f32 %v1985, %v2227
  %v2341 = vadd.f32 %v1986, %v2230
  %v2342 = vadd.f32 %v1987, %v2233
  %v2343 = vadd.f32 %v1988, %v2236
  %v2344 = vadd.f32 %v1989, %v2239
  %v2345 = vadd.f32 %v1990, %v2242
  %v2346 = vadd.f32 %v1991, %v2245
  %v2347 = vadd.f32 %v1992, %v2248
  %v2348 = vadd.f32 %v1993, %v2251
  %v2349 = vadd.f32 %v1994, %v2254
  %v2350 = vadd.f32 %v1995, %v2257
  %v2351 = vadd.f32 %v1996, %v2260
  %v2352 = vadd.f32 %v1997, %v2263
  %v2353 = vadd.f32 %v1998, %v2266
  %v2354 = vadd.f32 %v1999, %v2269
  %v2355 = vadd.f32 %v2000, %v2272
  %v2356 = vadd.f32 %v2001, %v2275
  %v2357 = vadd.f32 %v2002, %v2278
  %v2358 = vadd.f32 %v2003, %v2281
  %v2359 = vadd.f32 %v2004, %v2284
  %v2360 = vadd.f32 %v2005, %v2287
  %v2361 = vadd.f32 %v2006, %v2290
  %v2362 = vadd.f32 %v2007, %v2293
  %v2363 = vadd.f32 %v2008, %v2296
  %v2364 = vadd.f32 %v2009, %v2299
  %v2365 = vld [vmem:[%s2010 + $0x1] sm:$0xff]
  %v2366 = vld [vmem:[%s2010 + $0x9] sm:$0xff]
  %v2367 = vld [vmem:[%s2010 + $0x19] sm:$0xff]
  %v2368 = vld [vmem:[%s2010 + $0x21] sm:$0xff]
  %v2369 = vld [vmem:[%s2010 + $0x31] sm:$0xff]
  %v2370 = vld [vmem:[%s2010 + $0x39] sm:$0xff]
  %v2371 = vld [vmem:[%s2010 + $0x49] sm:$0xff]
  %v2372 = vld [vmem:[%s2010 + $0x51] sm:$0xff]
  %v2373 = vld [vmem:[%s2010 + $0x61] sm:$0xff]
  %v2374 = vld [vmem:[%s2010 + $0x69] sm:$0xff]
  %v2375 = vld [vmem:[%s2010 + $0x79] sm:$0xff]
  %v2376 = vld [vmem:[%s2010 + $0x81] sm:$0xff]
  %v2377 = vld [vmem:[%s2010 + $0x91] sm:$0xff]
  %v2378 = vld [vmem:[%s2010 + $0x99] sm:$0xff]
  %v2379 = vld [vmem:[%s2010 + $0xa9] sm:$0xff]
  %v2380 = vld [vmem:[%s2010 + $0xb1] sm:$0xff]
  %v2381 = vld [vmem:[%s2010 + $0xc1] sm:$0xff]
  %v2382 = vld [vmem:[%s2010 + $0xc9] sm:$0xff]
  %v2383 = vld [vmem:[%s2010 + $0xd9] sm:$0xff]
  %v2384 = vld [vmem:[%s2010 + $0xe1] sm:$0xff]
  %v2385 = vld [vmem:[%s2010 + $0xf1] sm:$0xff]
  %v2386 = vld [vmem:[%s2010 + $0xf9] sm:$0xff]
  %v2387 = vld [vmem:[%s2010 + $0x109] sm:$0xff]
  %v2388 = vld [vmem:[%s2010 + $0x111] sm:$0xff]
  %v2389 = vld [vmem:[%s2010 + $0x121] sm:$0xff]
  %v2390 = vld [vmem:[%s2010 + $0x129] sm:$0xff]
  %v2391 = vld [vmem:[%s2010 + $0x139] sm:$0xff]
  %v2392 = vld [vmem:[%s2010 + $0x141] sm:$0xff]
  %v2393 = vld [vmem:[%s2010 + $0x151] sm:$0xff]
  %v2394 = vld [vmem:[%s2010 + $0x159] sm:$0xff]
  %v2395 = vld [vmem:[%s2010 + $0x169] sm:$0xff]
  %v2396 = vld [vmem:[%s2010 + $0x171] sm:$0xff]
  %v2397 = vld [vmem:[%s2010 + $0x1b1] sm:$0xff]
  %v2398 = vld [vmem:[%s2010 + $0x1b9] sm:$0xff]
  %v2399 = vld [vmem:[%s2010 + $0x1c9] sm:$0xff]
  %v2400 = vld [vmem:[%s2010 + $0x1d1] sm:$0xff]
  %v2401 = vld [vmem:[%s2010 + $0x1e1] sm:$0xff]
  %v2402 = vld [vmem:[%s2010 + $0x1e9] sm:$0xff]
  %v2403 = vld [vmem:[%s2010 + $0x1f9] sm:$0xff]
  %v2404 = vld [vmem:[%s2010 + $0x201] sm:$0xff]
  %v2405 = vld [vmem:[%s2010 + $0x211] sm:$0xff]
  %v2406 = vld [vmem:[%s2010 + $0x219] sm:$0xff]
  %v2407 = vld [vmem:[%s2010 + $0x229] sm:$0xff]
  %v2408 = vld [vmem:[%s2010 + $0x231] sm:$0xff]
  %v2409 = vld [vmem:[%s2010 + $0x241] sm:$0xff]
  %v2410 = vld [vmem:[%s2010 + $0x249] sm:$0xff]
  %v2411 = vld [vmem:[%s2010 + $0x259] sm:$0xff]
  %v2412 = vld [vmem:[%s2010 + $0x261] sm:$0xff]
  %v2413 = vld [vmem:[%s2010 + $0x271] sm:$0xff]
  %v2414 = vld [vmem:[%s2010 + $0x279] sm:$0xff]
  %v2415 = vld [vmem:[%s2010 + $0x289] sm:$0xff]
  %v2416 = vld [vmem:[%s2010 + $0x291] sm:$0xff]
  %v2417 = vld [vmem:[%s2010 + $0x2a1] sm:$0xff]
  %v2418 = vld [vmem:[%s2010 + $0x2a9] sm:$0xff]
  %v2419 = vld [vmem:[%s2010 + $0x2b9] sm:$0xff]
  %v2420 = vld [vmem:[%s2010 + $0x2c1] sm:$0xff]
  %v2421 = vld [vmem:[%s2010 + $0x2d1] sm:$0xff]
  %v2422 = vld [vmem:[%s2010 + $0x2d9] sm:$0xff]
  %v2423 = vld [vmem:[%s2010 + $0x2e9] sm:$0xff]
  %v2424 = vld [vmem:[%s2010 + $0x2f1] sm:$0xff]
  %v2425 = vld [vmem:[%s2010 + $0x301] sm:$0xff]
  %v2426 = vld [vmem:[%s2010 + $0x309] sm:$0xff]
  %v2427 = vld [vmem:[%s2010 + $0x319] sm:$0xff]
  %v2428 = vld [vmem:[%s2010 + $0x321] sm:$0xff]
  %s2429 = scalar_lea.vmem %s1, 896
  %v2430 = vld [vmem:[%s2429] sm:$0xff]
  %v2431 = vld [vmem:[%s2429 + $0x8] sm:$0xff]
  %v2432 = vld [vmem:[%s2429 + $0x10] sm:$0xff]
  %v2433 = vld [vmem:[%s2429 + $0x18] sm:$0xff]
  %v2434 = vld [vmem:[%s2429 + $0x20] sm:$0xff]
  %v2435 = vld [vmem:[%s2429 + $0x28] sm:$0xff]
  %v2436 = vld [vmem:[%s2429 + $0x30] sm:$0xff]
  %v2437 = vld [vmem:[%s2429 + $0x38] sm:$0xff]
  %v2438 = vld [vmem:[%s2429 + $0x40] sm:$0xff]
  %v2439 = vld [vmem:[%s2429 + $0x48] sm:$0xff]
  %v2440 = vld [vmem:[%s2429 + $0x50] sm:$0xff]
  %v2441 = vld [vmem:[%s2429 + $0x58] sm:$0xff]
  %v2442 = vld [vmem:[%s2429 + $0x60] sm:$0xff]
  %v2443 = vld [vmem:[%s2429 + $0x68] sm:$0xff]
  %v2444 = vld [vmem:[%s2429 + $0x70] sm:$0xff]
  %v2445 = vld [vmem:[%s2429 + $0x78] sm:$0xff]
  %2446 = vmatpush.msra.mxu0 %v2445
  %2447 = vmatpush.msra.mxu0 %v2444
  %2448 = vmatpush.msra.mxu0 %v2443
  %2449 = vmatpush.msra.mxu0 %v2442
  %2450 = vmatpush.msra.mxu0 %v2441
  %2451 = vmatpush.msra.mxu0 %v2440
  %2452 = vmatpush.msra.mxu0 %v2439
  %2453 = vmatpush.msra.mxu0 %v2438
  %2454 = vmatpush.msra.mxu0 %v2437
  %2455 = vmatpush.msra.mxu0 %v2436
  %2456 = vmatpush.msra.mxu0 %v2435
  %2457 = vmatpush.msra.mxu0 %v2434
  %2458 = vmatpush.msra.mxu0 %v2433
  %2459 = vmatpush.msra.mxu0 %v2432
  %2460 = vmatpush.msra.mxu0 %v2431
  %2461 = vmatpush.msra.mxu0 %v2430
  %2462 = vmatmul.f32.gmra.mxu0 %v2365
  %v2463 = vpop.f32.mrf.mxu0
  %v2464 = vadd.f32 0.0, %v2463
  %2465 = vmatmul.f32.gmra.mxu0 %v2366
  %v2466 = vpop.f32.mrf.mxu0
  %v2467 = vadd.f32 0.0, %v2466
  %2468 = vmatmul.f32.gmra.mxu0 %v2367
  %v2469 = vpop.f32.mrf.mxu0
  %v2470 = vadd.f32 0.0, %v2469
  %2471 = vmatmul.f32.gmra.mxu0 %v2368
  %v2472 = vpop.f32.mrf.mxu0
  %v2473 = vadd.f32 0.0, %v2472
  %2474 = vmatmul.f32.gmra.mxu0 %v2369
  %v2475 = vpop.f32.mrf.mxu0
  %v2476 = vadd.f32 0.0, %v2475
  %2477 = vmatmul.f32.gmra.mxu0 %v2370
  %v2478 = vpop.f32.mrf.mxu0
  %v2479 = vadd.f32 0.0, %v2478
  %2480 = vmatmul.f32.gmra.mxu0 %v2371
  %v2481 = vpop.f32.mrf.mxu0
  %v2482 = vadd.f32 0.0, %v2481
  %2483 = vmatmul.f32.gmra.mxu0 %v2372
  %v2484 = vpop.f32.mrf.mxu0
  %v2485 = vadd.f32 0.0, %v2484
  %2486 = vmatmul.f32.gmra.mxu0 %v2373
  %v2487 = vpop.f32.mrf.mxu0
  %v2488 = vadd.f32 0.0, %v2487
  %2489 = vmatmul.f32.gmra.mxu0 %v2374
  %v2490 = vpop.f32.mrf.mxu0
  %v2491 = vadd.f32 0.0, %v2490
  %2492 = vmatmul.f32.gmra.mxu0 %v2375
  %v2493 = vpop.f32.mrf.mxu0
  %v2494 = vadd.f32 0.0, %v2493
  %2495 = vmatmul.f32.gmra.mxu0 %v2376
  %v2496 = vpop.f32.mrf.mxu0
  %v2497 = vadd.f32 0.0, %v2496
  %2498 = vmatmul.f32.gmra.mxu0 %v2377
  %v2499 = vpop.f32.mrf.mxu0
  %v2500 = vadd.f32 0.0, %v2499
  %2501 = vmatmul.f32.gmra.mxu0 %v2378
  %v2502 = vpop.f32.mrf.mxu0
  %v2503 = vadd.f32 0.0, %v2502
  %2504 = vmatmul.f32.gmra.mxu0 %v2379
  %v2505 = vpop.f32.mrf.mxu0
  %v2506 = vadd.f32 0.0, %v2505
  %2507 = vmatmul.f32.gmra.mxu0 %v2380
  %v2508 = vpop.f32.mrf.mxu0
  %v2509 = vadd.f32 0.0, %v2508
  %2510 = vmatmul.f32.gmra.mxu0 %v2381
  %v2511 = vpop.f32.mrf.mxu0
  %v2512 = vadd.f32 0.0, %v2511
  %2513 = vmatmul.f32.gmra.mxu0 %v2382
  %v2514 = vpop.f32.mrf.mxu0
  %v2515 = vadd.f32 0.0, %v2514
  %2516 = vmatmul.f32.gmra.mxu0 %v2383
  %v2517 = vpop.f32.mrf.mxu0
  %v2518 = vadd.f32 0.0, %v2517
  %2519 = vmatmul.f32.gmra.mxu0 %v2384
  %v2520 = vpop.f32.mrf.mxu0
  %v2521 = vadd.f32 0.0, %v2520
  %2522 = vmatmul.f32.gmra.mxu0 %v2385
  %v2523 = vpop.f32.mrf.mxu0
  %v2524 = vadd.f32 0.0, %v2523
  %2525 = vmatmul.f32.gmra.mxu0 %v2386
  %v2526 = vpop.f32.mrf.mxu0
  %v2527 = vadd.f32 0.0, %v2526
  %2528 = vmatmul.f32.gmra.mxu0 %v2387
  %v2529 = vpop.f32.mrf.mxu0
  %v2530 = vadd.f32 0.0, %v2529
  %2531 = vmatmul.f32.gmra.mxu0 %v2388
  %v2532 = vpop.f32.mrf.mxu0
  %v2533 = vadd.f32 0.0, %v2532
  %2534 = vmatmul.f32.gmra.mxu0 %v2389
  %v2535 = vpop.f32.mrf.mxu0
  %v2536 = vadd.f32 0.0, %v2535
  %2537 = vmatmul.f32.gmra.mxu0 %v2390
  %v2538 = vpop.f32.mrf.mxu0
  %v2539 = vadd.f32 0.0, %v2538
  %2540 = vmatmul.f32.gmra.mxu0 %v2391
  %v2541 = vpop.f32.mrf.mxu0
  %v2542 = vadd.f32 0.0, %v2541
  %2543 = vmatmul.f32.gmra.mxu0 %v2392
  %v2544 = vpop.f32.mrf.mxu0
  %v2545 = vadd.f32 0.0, %v2544
  %2546 = vmatmul.f32.gmra.mxu0 %v2393
  %v2547 = vpop.f32.mrf.mxu0
  %v2548 = vadd.f32 0.0, %v2547
  %2549 = vmatmul.f32.gmra.mxu0 %v2394
  %v2550 = vpop.f32.mrf.mxu0
  %v2551 = vadd.f32 0.0, %v2550
  %2552 = vmatmul.f32.gmra.mxu0 %v2395
  %v2553 = vpop.f32.mrf.mxu0
  %v2554 = vadd.f32 0.0, %v2553
  %2555 = vmatmul.f32.gmra.mxu0 %v2396
  %v2556 = vpop.f32.mrf.mxu0
  %v2557 = vadd.f32 0.0, %v2556
  %2558 = vmatmul.f32.gmra.mxu0 %v2397
  %v2559 = vpop.f32.mrf.mxu0
  %v2560 = vadd.f32 0.0, %v2559
  %2561 = vmatmul.f32.gmra.mxu0 %v2398
  %v2562 = vpop.f32.mrf.mxu0
  %v2563 = vadd.f32 0.0, %v2562
  %2564 = vmatmul.f32.gmra.mxu0 %v2399
  %v2565 = vpop.f32.mrf.mxu0
  %v2566 = vadd.f32 0.0, %v2565
  %2567 = vmatmul.f32.gmra.mxu0 %v2400
  %v2568 = vpop.f32.mrf.mxu0
  %v2569 = vadd.f32 0.0, %v2568
  %2570 = vmatmul.f32.gmra.mxu0 %v2401
  %v2571 = vpop.f32.mrf.mxu0
  %v2572 = vadd.f32 0.0, %v2571
  %2573 = vmatmul.f32.gmra.mxu0 %v2402
  %v2574 = vpop.f32.mrf.mxu0
  %v2575 = vadd.f32 0.0, %v2574
  %2576 = vmatmul.f32.gmra.mxu0 %v2403
  %v2577 = vpop.f32.mrf.mxu0
  %v2578 = vadd.f32 0.0, %v2577
  %2579 = vmatmul.f32.gmra.mxu0 %v2404
  %v2580 = vpop.f32.mrf.mxu0
  %v2581 = vadd.f32 0.0, %v2580
  %2582 = vmatmul.f32.gmra.mxu0 %v2405
  %v2583 = vpop.f32.mrf.mxu0
  %v2584 = vadd.f32 0.0, %v2583
  %2585 = vmatmul.f32.gmra.mxu0 %v2406
  %v2586 = vpop.f32.mrf.mxu0
  %v2587 = vadd.f32 0.0, %v2586
  %2588 = vmatmul.f32.gmra.mxu0 %v2407
  %v2589 = vpop.f32.mrf.mxu0
  %v2590 = vadd.f32 0.0, %v2589
  %2591 = vmatmul.f32.gmra.mxu0 %v2408
  %v2592 = vpop.f32.mrf.mxu0
  %v2593 = vadd.f32 0.0, %v2592
  %2594 = vmatmul.f32.gmra.mxu0 %v2409
  %v2595 = vpop.f32.mrf.mxu0
  %v2596 = vadd.f32 0.0, %v2595
  %2597 = vmatmul.f32.gmra.mxu0 %v2410
  %v2598 = vpop.f32.mrf.mxu0
  %v2599 = vadd.f32 0.0, %v2598
  %2600 = vmatmul.f32.gmra.mxu0 %v2411
  %v2601 = vpop.f32.mrf.mxu0
  %v2602 = vadd.f32 0.0, %v2601
  %2603 = vmatmul.f32.gmra.mxu0 %v2412
  %v2604 = vpop.f32.mrf.mxu0
  %v2605 = vadd.f32 0.0, %v2604
  %2606 = vmatmul.f32.gmra.mxu0 %v2413
  %v2607 = vpop.f32.mrf.mxu0
  %v2608 = vadd.f32 0.0, %v2607
  %2609 = vmatmul.f32.gmra.mxu0 %v2414
  %v2610 = vpop.f32.mrf.mxu0
  %v2611 = vadd.f32 0.0, %v2610
  %2612 = vmatmul.f32.gmra.mxu0 %v2415
  %v2613 = vpop.f32.mrf.mxu0
  %v2614 = vadd.f32 0.0, %v2613
  %2615 = vmatmul.f32.gmra.mxu0 %v2416
  %v2616 = vpop.f32.mrf.mxu0
  %v2617 = vadd.f32 0.0, %v2616
  %2618 = vmatmul.f32.gmra.mxu0 %v2417
  %v2619 = vpop.f32.mrf.mxu0
  %v2620 = vadd.f32 0.0, %v2619
  %2621 = vmatmul.f32.gmra.mxu0 %v2418
  %v2622 = vpop.f32.mrf.mxu0
  %v2623 = vadd.f32 0.0, %v2622
  %2624 = vmatmul.f32.gmra.mxu0 %v2419
  %v2625 = vpop.f32.mrf.mxu0
  %v2626 = vadd.f32 0.0, %v2625
  %2627 = vmatmul.f32.gmra.mxu0 %v2420
  %v2628 = vpop.f32.mrf.mxu0
  %v2629 = vadd.f32 0.0, %v2628
  %2630 = vmatmul.f32.gmra.mxu0 %v2421
  %v2631 = vpop.f32.mrf.mxu0
  %v2632 = vadd.f32 0.0, %v2631
  %2633 = vmatmul.f32.gmra.mxu0 %v2422
  %v2634 = vpop.f32.mrf.mxu0
  %v2635 = vadd.f32 0.0, %v2634
  %2636 = vmatmul.f32.gmra.mxu0 %v2423
  %v2637 = vpop.f32.mrf.mxu0
  %v2638 = vadd.f32 0.0, %v2637
  %2639 = vmatmul.f32.gmra.mxu0 %v2424
  %v2640 = vpop.f32.mrf.mxu0
  %v2641 = vadd.f32 0.0, %v2640
  %2642 = vmatmul.f32.gmra.mxu0 %v2425
  %v2643 = vpop.f32.mrf.mxu0
  %v2644 = vadd.f32 0.0, %v2643
  %2645 = vmatmul.f32.gmra.mxu0 %v2426
  %v2646 = vpop.f32.mrf.mxu0
  %v2647 = vadd.f32 0.0, %v2646
  %2648 = vmatmul.f32.gmra.mxu0 %v2427
  %v2649 = vpop.f32.mrf.mxu0
  %v2650 = vadd.f32 0.0, %v2649
  %2651 = vmatmul.f32.gmra.mxu0 %v2428
  %v2652 = vpop.f32.mrf.mxu0
  %v2653 = vadd.f32 0.0, %v2652
  %2654 = vdwg.mxu0
  %v2655 = vadd.f32 %v2301, %v2464
  %v2656 = vadd.f32 %v2302, %v2467
  %v2657 = vadd.f32 %v2303, %v2470
  %v2658 = vadd.f32 %v2304, %v2473
  %v2659 = vadd.f32 %v2305, %v2476
  %v2660 = vadd.f32 %v2306, %v2479
  %v2661 = vadd.f32 %v2307, %v2482
  %v2662 = vadd.f32 %v2308, %v2485
  %v2663 = vadd.f32 %v2309, %v2488
  %v2664 = vadd.f32 %v2310, %v2491
  %v2665 = vadd.f32 %v2311, %v2494
  %v2666 = vadd.f32 %v2312, %v2497
  %v2667 = vadd.f32 %v2313, %v2500
  %v2668 = vadd.f32 %v2314, %v2503
  %v2669 = vadd.f32 %v2315, %v2506
  %v2670 = vadd.f32 %v2316, %v2509
  %v2671 = vadd.f32 %v2317, %v2512
  %v2672 = vadd.f32 %v2318, %v2515
  %v2673 = vadd.f32 %v2319, %v2518
  %v2674 = vadd.f32 %v2320, %v2521
  %v2675 = vadd.f32 %v2321, %v2524
  %v2676 = vadd.f32 %v2322, %v2527
  %v2677 = vadd.f32 %v2323, %v2530
  %v2678 = vadd.f32 %v2324, %v2533
  %v2679 = vadd.f32 %v2325, %v2536
  %v2680 = vadd.f32 %v2326, %v2539
  %v2681 = vadd.f32 %v2327, %v2542
  %v2682 = vadd.f32 %v2328, %v2545
  %v2683 = vadd.f32 %v2329, %v2548
  %v2684 = vadd.f32 %v2330, %v2551
  %v2685 = vadd.f32 %v2331, %v2554
  %v2686 = vadd.f32 %v2332, %v2557
  %v2687 = vadd.f32 %v2333, %v2560
  %v2688 = vadd.f32 %v2334, %v2563
  %v2689 = vadd.f32 %v2335, %v2566
  %v2690 = vadd.f32 %v2336, %v2569
  %v2691 = vadd.f32 %v2337, %v2572
  %v2692 = vadd.f32 %v2338, %v2575
  %v2693 = vadd.f32 %v2339, %v2578
  %v2694 = vadd.f32 %v2340, %v2581
  %v2695 = vadd.f32 %v2341, %v2584
  %v2696 = vadd.f32 %v2342, %v2587
  %v2697 = vadd.f32 %v2343, %v2590
  %v2698 = vadd.f32 %v2344, %v2593
  %v2699 = vadd.f32 %v2345, %v2596
  %v2700 = vadd.f32 %v2346, %v2599
  %v2701 = vadd.f32 %v2347, %v2602
  %v2702 = vadd.f32 %v2348, %v2605
  %v2703 = vadd.f32 %v2349, %v2608
  %v2704 = vadd.f32 %v2350, %v2611
  %v2705 = vadd.f32 %v2351, %v2614
  %v2706 = vadd.f32 %v2352, %v2617
  %v2707 = vadd.f32 %v2353, %v2620
  %v2708 = vadd.f32 %v2354, %v2623
  %v2709 = vadd.f32 %v2355, %v2626
  %v2710 = vadd.f32 %v2356, %v2629
  %v2711 = vadd.f32 %v2357, %v2632
  %v2712 = vadd.f32 %v2358, %v2635
  %v2713 = vadd.f32 %v2359, %v2638
  %v2714 = vadd.f32 %v2360, %v2641
  %v2715 = vadd.f32 %v2361, %v2644
  %v2716 = vadd.f32 %v2362, %v2647
  %v2717 = vadd.f32 %v2363, %v2650
  %v2718 = vadd.f32 %v2364, %v2653
  %v2719 = vld [vmem:[%s2010 + $0x2] sm:$0xff]
  %v2720 = vld [vmem:[%s2010 + $0xa] sm:$0xff]
  %v2721 = vld [vmem:[%s2010 + $0x1a] sm:$0xff]
  %v2722 = vld [vmem:[%s2010 + $0x22] sm:$0xff]
  %v2723 = vld [vmem:[%s2010 + $0x32] sm:$0xff]
  %v2724 = vld [vmem:[%s2010 + $0x3a] sm:$0xff]
  %v2725 = vld [vmem:[%s2010 + $0x4a] sm:$0xff]
  %v2726 = vld [vmem:[%s2010 + $0x52] sm:$0xff]
  %v2727 = vld [vmem:[%s2010 + $0x62] sm:$0xff]
  %v2728 = vld [vmem:[%s2010 + $0x6a] sm:$0xff]
  %v2729 = vld [vmem:[%s2010 + $0x7a] sm:$0xff]
  %v2730 = vld [vmem:[%s2010 + $0x82] sm:$0xff]
  %v2731 = vld [vmem:[%s2010 + $0x92] sm:$0xff]
  %v2732 = vld [vmem:[%s2010 + $0x9a] sm:$0xff]
  %v2733 = vld [vmem:[%s2010 + $0xaa] sm:$0xff]
  %v2734 = vld [vmem:[%s2010 + $0xb2] sm:$0xff]
  %v2735 = vld [vmem:[%s2010 + $0xc2] sm:$0xff]
  %v2736 = vld [vmem:[%s2010 + $0xca] sm:$0xff]
  %v2737 = vld [vmem:[%s2010 + $0xda] sm:$0xff]
  %v2738 = vld [vmem:[%s2010 + $0xe2] sm:$0xff]
  %v2739 = vld [vmem:[%s2010 + $0xf2] sm:$0xff]
  %v2740 = vld [vmem:[%s2010 + $0xfa] sm:$0xff]
  %v2741 = vld [vmem:[%s2010 + $0x10a] sm:$0xff]
  %v2742 = vld [vmem:[%s2010 + $0x112] sm:$0xff]
  %v2743 = vld [vmem:[%s2010 + $0x122] sm:$0xff]
  %v2744 = vld [vmem:[%s2010 + $0x12a] sm:$0xff]
  %v2745 = vld [vmem:[%s2010 + $0x13a] sm:$0xff]
  %v2746 = vld [vmem:[%s2010 + $0x142] sm:$0xff]
  %v2747 = vld [vmem:[%s2010 + $0x152] sm:$0xff]
  %v2748 = vld [vmem:[%s2010 + $0x15a] sm:$0xff]
  %v2749 = vld [vmem:[%s2010 + $0x16a] sm:$0xff]
  %v2750 = vld [vmem:[%s2010 + $0x172] sm:$0xff]
  %v2751 = vld [vmem:[%s2010 + $0x1b2] sm:$0xff]
  %v2752 = vld [vmem:[%s2010 + $0x1ba] sm:$0xff]
  %v2753 = vld [vmem:[%s2010 + $0x1ca] sm:$0xff]
  %v2754 = vld [vmem:[%s2010 + $0x1d2] sm:$0xff]
  %v2755 = vld [vmem:[%s2010 + $0x1e2] sm:$0xff]
  %v2756 = vld [vmem:[%s2010 + $0x1ea] sm:$0xff]
  %v2757 = vld [vmem:[%s2010 + $0x1fa] sm:$0xff]
  %v2758 = vld [vmem:[%s2010 + $0x202] sm:$0xff]
  %v2759 = vld [vmem:[%s2010 + $0x212] sm:$0xff]
  %v2760 = vld [vmem:[%s2010 + $0x21a] sm:$0xff]
  %v2761 = vld [vmem:[%s2010 + $0x22a] sm:$0xff]
  %v2762 = vld [vmem:[%s2010 + $0x232] sm:$0xff]
  %v2763 = vld [vmem:[%s2010 + $0x242] sm:$0xff]
  %v2764 = vld [vmem:[%s2010 + $0x24a] sm:$0xff]
  %v2765 = vld [vmem:[%s2010 + $0x25a] sm:$0xff]
  %v2766 = vld [vmem:[%s2010 + $0x262] sm:$0xff]
  %v2767 = vld [vmem:[%s2010 + $0x272] sm:$0xff]
  %v2768 = vld [vmem:[%s2010 + $0x27a] sm:$0xff]
  %v2769 = vld [vmem:[%s2010 + $0x28a] sm:$0xff]
  %v2770 = vld [vmem:[%s2010 + $0x292] sm:$0xff]
  %v2771 = vld [vmem:[%s2010 + $0x2a2] sm:$0xff]
  %v2772 = vld [vmem:[%s2010 + $0x2aa] sm:$0xff]
  %v2773 = vld [vmem:[%s2010 + $0x2ba] sm:$0xff]
  %v2774 = vld [vmem:[%s2010 + $0x2c2] sm:$0xff]
  %v2775 = vld [vmem:[%s2010 + $0x2d2] sm:$0xff]
  %v2776 = vld [vmem:[%s2010 + $0x2da] sm:$0xff]
  %v2777 = vld [vmem:[%s2010 + $0x2ea] sm:$0xff]
  %v2778 = vld [vmem:[%s2010 + $0x2f2] sm:$0xff]
  %v2779 = vld [vmem:[%s2010 + $0x302] sm:$0xff]
  %v2780 = vld [vmem:[%s2010 + $0x30a] sm:$0xff]
  %v2781 = vld [vmem:[%s2010 + $0x31a] sm:$0xff]
  %v2782 = vld [vmem:[%s2010 + $0x322] sm:$0xff]
  %s2783 = scalar_lea.vmem %s1, 1024
  %v2784 = vld [vmem:[%s2783] sm:$0xff]
  %v2785 = vld [vmem:[%s2783 + $0x8] sm:$0xff]
  %v2786 = vld [vmem:[%s2783 + $0x10] sm:$0xff]
  %v2787 = vld [vmem:[%s2783 + $0x18] sm:$0xff]
  %v2788 = vld [vmem:[%s2783 + $0x20] sm:$0xff]
  %v2789 = vld [vmem:[%s2783 + $0x28] sm:$0xff]
  %v2790 = vld [vmem:[%s2783 + $0x30] sm:$0xff]
  %v2791 = vld [vmem:[%s2783 + $0x38] sm:$0xff]
  %v2792 = vld [vmem:[%s2783 + $0x40] sm:$0xff]
  %v2793 = vld [vmem:[%s2783 + $0x48] sm:$0xff]
  %v2794 = vld [vmem:[%s2783 + $0x50] sm:$0xff]
  %v2795 = vld [vmem:[%s2783 + $0x58] sm:$0xff]
  %v2796 = vld [vmem:[%s2783 + $0x60] sm:$0xff]
  %v2797 = vld [vmem:[%s2783 + $0x68] sm:$0xff]
  %v2798 = vld [vmem:[%s2783 + $0x70] sm:$0xff]
  %v2799 = vld [vmem:[%s2783 + $0x78] sm:$0xff]
  %2800 = vmatpush.msra.mxu0 %v2799
  %2801 = vmatpush.msra.mxu0 %v2798
  %2802 = vmatpush.msra.mxu0 %v2797
  %2803 = vmatpush.msra.mxu0 %v2796
  %2804 = vmatpush.msra.mxu0 %v2795
  %2805 = vmatpush.msra.mxu0 %v2794
  %2806 = vmatpush.msra.mxu0 %v2793
  %2807 = vmatpush.msra.mxu0 %v2792
  %2808 = vmatpush.msra.mxu0 %v2791
  %2809 = vmatpush.msra.mxu0 %v2790
  %2810 = vmatpush.msra.mxu0 %v2789
  %2811 = vmatpush.msra.mxu0 %v2788
  %2812 = vmatpush.msra.mxu0 %v2787
  %2813 = vmatpush.msra.mxu0 %v2786
  %2814 = vmatpush.msra.mxu0 %v2785
  %2815 = vmatpush.msra.mxu0 %v2784
  %2816 = vmatmul.f32.gmra.mxu0 %v2719
  %v2817 = vpop.f32.mrf.mxu0
  %v2818 = vadd.f32 0.0, %v2817
  %2819 = vmatmul.f32.gmra.mxu0 %v2720
  %v2820 = vpop.f32.mrf.mxu0
  %v2821 = vadd.f32 0.0, %v2820
  %2822 = vmatmul.f32.gmra.mxu0 %v2721
  %v2823 = vpop.f32.mrf.mxu0
  %v2824 = vadd.f32 0.0, %v2823
  %2825 = vmatmul.f32.gmra.mxu0 %v2722
  %v2826 = vpop.f32.mrf.mxu0
  %v2827 = vadd.f32 0.0, %v2826
  %2828 = vmatmul.f32.gmra.mxu0 %v2723
  %v2829 = vpop.f32.mrf.mxu0
  %v2830 = vadd.f32 0.0, %v2829
  %2831 = vmatmul.f32.gmra.mxu0 %v2724
  %v2832 = vpop.f32.mrf.mxu0
  %v2833 = vadd.f32 0.0, %v2832
  %2834 = vmatmul.f32.gmra.mxu0 %v2725
  %v2835 = vpop.f32.mrf.mxu0
  %v2836 = vadd.f32 0.0, %v2835
  %2837 = vmatmul.f32.gmra.mxu0 %v2726
  %v2838 = vpop.f32.mrf.mxu0
  %v2839 = vadd.f32 0.0, %v2838
  %2840 = vmatmul.f32.gmra.mxu0 %v2727
  %v2841 = vpop.f32.mrf.mxu0
  %v2842 = vadd.f32 0.0, %v2841
  %2843 = vmatmul.f32.gmra.mxu0 %v2728
  %v2844 = vpop.f32.mrf.mxu0
  %v2845 = vadd.f32 0.0, %v2844
  %2846 = vmatmul.f32.gmra.mxu0 %v2729
  %v2847 = vpop.f32.mrf.mxu0
  %v2848 = vadd.f32 0.0, %v2847
  %2849 = vmatmul.f32.gmra.mxu0 %v2730
  %v2850 = vpop.f32.mrf.mxu0
  %v2851 = vadd.f32 0.0, %v2850
  %2852 = vmatmul.f32.gmra.mxu0 %v2731
  %v2853 = vpop.f32.mrf.mxu0
  %v2854 = vadd.f32 0.0, %v2853
  %2855 = vmatmul.f32.gmra.mxu0 %v2732
  %v2856 = vpop.f32.mrf.mxu0
  %v2857 = vadd.f32 0.0, %v2856
  %2858 = vmatmul.f32.gmra.mxu0 %v2733
  %v2859 = vpop.f32.mrf.mxu0
  %v2860 = vadd.f32 0.0, %v2859
  %2861 = vmatmul.f32.gmra.mxu0 %v2734
  %v2862 = vpop.f32.mrf.mxu0
  %v2863 = vadd.f32 0.0, %v2862
  %2864 = vmatmul.f32.gmra.mxu0 %v2735
  %v2865 = vpop.f32.mrf.mxu0
  %v2866 = vadd.f32 0.0, %v2865
  %2867 = vmatmul.f32.gmra.mxu0 %v2736
  %v2868 = vpop.f32.mrf.mxu0
  %v2869 = vadd.f32 0.0, %v2868
  %2870 = vmatmul.f32.gmra.mxu0 %v2737
  %v2871 = vpop.f32.mrf.mxu0
  %v2872 = vadd.f32 0.0, %v2871
  %2873 = vmatmul.f32.gmra.mxu0 %v2738
  %v2874 = vpop.f32.mrf.mxu0
  %v2875 = vadd.f32 0.0, %v2874
  %2876 = vmatmul.f32.gmra.mxu0 %v2739
  %v2877 = vpop.f32.mrf.mxu0
  %v2878 = vadd.f32 0.0, %v2877
  %2879 = vmatmul.f32.gmra.mxu0 %v2740
  %v2880 = vpop.f32.mrf.mxu0
  %v2881 = vadd.f32 0.0, %v2880
  %2882 = vmatmul.f32.gmra.mxu0 %v2741
  %v2883 = vpop.f32.mrf.mxu0
  %v2884 = vadd.f32 0.0, %v2883
  %2885 = vmatmul.f32.gmra.mxu0 %v2742
  %v2886 = vpop.f32.mrf.mxu0
  %v2887 = vadd.f32 0.0, %v2886
  %2888 = vmatmul.f32.gmra.mxu0 %v2743
  %v2889 = vpop.f32.mrf.mxu0
  %v2890 = vadd.f32 0.0, %v2889
  %2891 = vmatmul.f32.gmra.mxu0 %v2744
  %v2892 = vpop.f32.mrf.mxu0
  %v2893 = vadd.f32 0.0, %v2892
  %2894 = vmatmul.f32.gmra.mxu0 %v2745
  %v2895 = vpop.f32.mrf.mxu0
  %v2896 = vadd.f32 0.0, %v2895
  %2897 = vmatmul.f32.gmra.mxu0 %v2746
  %v2898 = vpop.f32.mrf.mxu0
  %v2899 = vadd.f32 0.0, %v2898
  %2900 = vmatmul.f32.gmra.mxu0 %v2747
  %v2901 = vpop.f32.mrf.mxu0
  %v2902 = vadd.f32 0.0, %v2901
  %2903 = vmatmul.f32.gmra.mxu0 %v2748
  %v2904 = vpop.f32.mrf.mxu0
  %v2905 = vadd.f32 0.0, %v2904
  %2906 = vmatmul.f32.gmra.mxu0 %v2749
  %v2907 = vpop.f32.mrf.mxu0
  %v2908 = vadd.f32 0.0, %v2907
  %2909 = vmatmul.f32.gmra.mxu0 %v2750
  %v2910 = vpop.f32.mrf.mxu0
  %v2911 = vadd.f32 0.0, %v2910
  %2912 = vmatmul.f32.gmra.mxu0 %v2751
  %v2913 = vpop.f32.mrf.mxu0
  %v2914 = vadd.f32 0.0, %v2913
  %2915 = vmatmul.f32.gmra.mxu0 %v2752
  %v2916 = vpop.f32.mrf.mxu0
  %v2917 = vadd.f32 0.0, %v2916
  %2918 = vmatmul.f32.gmra.mxu0 %v2753
  %v2919 = vpop.f32.mrf.mxu0
  %v2920 = vadd.f32 0.0, %v2919
  %2921 = vmatmul.f32.gmra.mxu0 %v2754
  %v2922 = vpop.f32.mrf.mxu0
  %v2923 = vadd.f32 0.0, %v2922
  %2924 = vmatmul.f32.gmra.mxu0 %v2755
  %v2925 = vpop.f32.mrf.mxu0
  %v2926 = vadd.f32 0.0, %v2925
  %2927 = vmatmul.f32.gmra.mxu0 %v2756
  %v2928 = vpop.f32.mrf.mxu0
  %v2929 = vadd.f32 0.0, %v2928
  %2930 = vmatmul.f32.gmra.mxu0 %v2757
  %v2931 = vpop.f32.mrf.mxu0
  %v2932 = vadd.f32 0.0, %v2931
  %2933 = vmatmul.f32.gmra.mxu0 %v2758
  %v2934 = vpop.f32.mrf.mxu0
  %v2935 = vadd.f32 0.0, %v2934
  %2936 = vmatmul.f32.gmra.mxu0 %v2759
  %v2937 = vpop.f32.mrf.mxu0
  %v2938 = vadd.f32 0.0, %v2937
  %2939 = vmatmul.f32.gmra.mxu0 %v2760
  %v2940 = vpop.f32.mrf.mxu0
  %v2941 = vadd.f32 0.0, %v2940
  %2942 = vmatmul.f32.gmra.mxu0 %v2761
  %v2943 = vpop.f32.mrf.mxu0
  %v2944 = vadd.f32 0.0, %v2943
  %2945 = vmatmul.f32.gmra.mxu0 %v2762
  %v2946 = vpop.f32.mrf.mxu0
  %v2947 = vadd.f32 0.0, %v2946
  %2948 = vmatmul.f32.gmra.mxu0 %v2763
  %v2949 = vpop.f32.mrf.mxu0
  %v2950 = vadd.f32 0.0, %v2949
  %2951 = vmatmul.f32.gmra.mxu0 %v2764
  %v2952 = vpop.f32.mrf.mxu0
  %v2953 = vadd.f32 0.0, %v2952
  %2954 = vmatmul.f32.gmra.mxu0 %v2765
  %v2955 = vpop.f32.mrf.mxu0
  %v2956 = vadd.f32 0.0, %v2955
  %2957 = vmatmul.f32.gmra.mxu0 %v2766
  %v2958 = vpop.f32.mrf.mxu0
  %v2959 = vadd.f32 0.0, %v2958
  %2960 = vmatmul.f32.gmra.mxu0 %v2767
  %v2961 = vpop.f32.mrf.mxu0
  %v2962 = vadd.f32 0.0, %v2961
  %2963 = vmatmul.f32.gmra.mxu0 %v2768
  %v2964 = vpop.f32.mrf.mxu0
  %v2965 = vadd.f32 0.0, %v2964
  %2966 = vmatmul.f32.gmra.mxu0 %v2769
  %v2967 = vpop.f32.mrf.mxu0
  %v2968 = vadd.f32 0.0, %v2967
  %2969 = vmatmul.f32.gmra.mxu0 %v2770
  %v2970 = vpop.f32.mrf.mxu0
  %v2971 = vadd.f32 0.0, %v2970
  %2972 = vmatmul.f32.gmra.mxu0 %v2771
  %v2973 = vpop.f32.mrf.mxu0
  %v2974 = vadd.f32 0.0, %v2973
  %2975 = vmatmul.f32.gmra.mxu0 %v2772
  %v2976 = vpop.f32.mrf.mxu0
  %v2977 = vadd.f32 0.0, %v2976
  %2978 = vmatmul.f32.gmra.mxu0 %v2773
  %v2979 = vpop.f32.mrf.mxu0
  %v2980 = vadd.f32 0.0, %v2979
  %2981 = vmatmul.f32.gmra.mxu0 %v2774
  %v2982 = vpop.f32.mrf.mxu0
  %v2983 = vadd.f32 0.0, %v2982
  %2984 = vmatmul.f32.gmra.mxu0 %v2775
  %v2985 = vpop.f32.mrf.mxu0
  %v2986 = vadd.f32 0.0, %v2985
  %2987 = vmatmul.f32.gmra.mxu0 %v2776
  %v2988 = vpop.f32.mrf.mxu0
  %v2989 = vadd.f32 0.0, %v2988
  %2990 = vmatmul.f32.gmra.mxu0 %v2777
  %v2991 = vpop.f32.mrf.mxu0
  %v2992 = vadd.f32 0.0, %v2991
  %2993 = vmatmul.f32.gmra.mxu0 %v2778
  %v2994 = vpop.f32.mrf.mxu0
  %v2995 = vadd.f32 0.0, %v2994
  %2996 = vmatmul.f32.gmra.mxu0 %v2779
  %v2997 = vpop.f32.mrf.mxu0
  %v2998 = vadd.f32 0.0, %v2997
  %2999 = vmatmul.f32.gmra.mxu0 %v2780
  %v3000 = vpop.f32.mrf.mxu0
  %v3001 = vadd.f32 0.0, %v3000
  %3002 = vmatmul.f32.gmra.mxu0 %v2781
  %v3003 = vpop.f32.mrf.mxu0
  %v3004 = vadd.f32 0.0, %v3003
  %3005 = vmatmul.f32.gmra.mxu0 %v2782
  %v3006 = vpop.f32.mrf.mxu0
  %v3007 = vadd.f32 0.0, %v3006
  %3008 = vdwg.mxu0
  %v3009 = vadd.f32 %v2655, %v2818
  %v3010 = vadd.f32 %v2656, %v2821
  %v3011 = vadd.f32 %v2657, %v2824
  %v3012 = vadd.f32 %v2658, %v2827
  %v3013 = vadd.f32 %v2659, %v2830
  %v3014 = vadd.f32 %v2660, %v2833
  %v3015 = vadd.f32 %v2661, %v2836
  %v3016 = vadd.f32 %v2662, %v2839
  %v3017 = vadd.f32 %v2663, %v2842
  %v3018 = vadd.f32 %v2664, %v2845
  %v3019 = vadd.f32 %v2665, %v2848
  %v3020 = vadd.f32 %v2666, %v2851
  %v3021 = vadd.f32 %v2667, %v2854
  %v3022 = vadd.f32 %v2668, %v2857
  %v3023 = vadd.f32 %v2669, %v2860
  %v3024 = vadd.f32 %v2670, %v2863
  %v3025 = vadd.f32 %v2671, %v2866
  %v3026 = vadd.f32 %v2672, %v2869
  %v3027 = vadd.f32 %v2673, %v2872
  %v3028 = vadd.f32 %v2674, %v2875
  %v3029 = vadd.f32 %v2675, %v2878
  %v3030 = vadd.f32 %v2676, %v2881
  %v3031 = vadd.f32 %v2677, %v2884
  %v3032 = vadd.f32 %v2678, %v2887
  %v3033 = vadd.f32 %v2679, %v2890
  %v3034 = vadd.f32 %v2680, %v2893
  %v3035 = vadd.f32 %v2681, %v2896
  %v3036 = vadd.f32 %v2682, %v2899
  %v3037 = vadd.f32 %v2683, %v2902
  %v3038 = vadd.f32 %v2684, %v2905
  %v3039 = vadd.f32 %v2685, %v2908
  %v3040 = vadd.f32 %v2686, %v2911
  %v3041 = vadd.f32 %v2687, %v2914
  %v3042 = vadd.f32 %v2688, %v2917
  %v3043 = vadd.f32 %v2689, %v2920
  %v3044 = vadd.f32 %v2690, %v2923
  %v3045 = vadd.f32 %v2691, %v2926
  %v3046 = vadd.f32 %v2692, %v2929
  %v3047 = vadd.f32 %v2693, %v2932
  %v3048 = vadd.f32 %v2694, %v2935
  %v3049 = vadd.f32 %v2695, %v2938
  %v3050 = vadd.f32 %v2696, %v2941
  %v3051 = vadd.f32 %v2697, %v2944
  %v3052 = vadd.f32 %v2698, %v2947
  %v3053 = vadd.f32 %v2699, %v2950
  %v3054 = vadd.f32 %v2700, %v2953
  %v3055 = vadd.f32 %v2701, %v2956
  %v3056 = vadd.f32 %v2702, %v2959
  %v3057 = vadd.f32 %v2703, %v2962
  %v3058 = vadd.f32 %v2704, %v2965
  %v3059 = vadd.f32 %v2705, %v2968
  %v3060 = vadd.f32 %v2706, %v2971
  %v3061 = vadd.f32 %v2707, %v2974
  %v3062 = vadd.f32 %v2708, %v2977
  %v3063 = vadd.f32 %v2709, %v2980
  %v3064 = vadd.f32 %v2710, %v2983
  %v3065 = vadd.f32 %v2711, %v2986
  %v3066 = vadd.f32 %v2712, %v2989
  %v3067 = vadd.f32 %v2713, %v2992
  %v3068 = vadd.f32 %v2714, %v2995
  %v3069 = vadd.f32 %v2715, %v2998
  %v3070 = vadd.f32 %v2716, %v3001
  %v3071 = vadd.f32 %v2717, %v3004
  %v3072 = vadd.f32 %v2718, %v3007
  %v3073 = vld [vmem:[%s2] sm:$0x1]
  %v3075 = vperm.slane %v3073, 0
  %v3077 = vadd.f32 %v3009, %v3075
  %v3078 = vadd.f32 %v3010, %v3075
  %v3079 = vadd.f32 %v3011, %v3075
  %v3080 = vadd.f32 %v3012, %v3075
  %v3081 = vadd.f32 %v3013, %v3075
  %v3082 = vadd.f32 %v3014, %v3075
  %v3083 = vadd.f32 %v3015, %v3075
  %v3084 = vadd.f32 %v3016, %v3075
  %v3085 = vadd.f32 %v3017, %v3075
  %v3086 = vadd.f32 %v3018, %v3075
  %v3087 = vadd.f32 %v3019, %v3075
  %v3088 = vadd.f32 %v3020, %v3075
  %v3089 = vadd.f32 %v3021, %v3075
  %v3090 = vadd.f32 %v3022, %v3075
  %v3091 = vadd.f32 %v3023, %v3075
  %v3092 = vadd.f32 %v3024, %v3075
  %v3093 = vadd.f32 %v3025, %v3075
  %v3094 = vadd.f32 %v3026, %v3075
  %v3095 = vadd.f32 %v3027, %v3075
  %v3096 = vadd.f32 %v3028, %v3075
  %v3097 = vadd.f32 %v3029, %v3075
  %v3098 = vadd.f32 %v3030, %v3075
  %v3099 = vadd.f32 %v3031, %v3075
  %v3100 = vadd.f32 %v3032, %v3075
  %v3101 = vadd.f32 %v3033, %v3075
  %v3102 = vadd.f32 %v3034, %v3075
  %v3103 = vadd.f32 %v3035, %v3075
  %v3104 = vadd.f32 %v3036, %v3075
  %v3105 = vadd.f32 %v3037, %v3075
  %v3106 = vadd.f32 %v3038, %v3075
  %v3107 = vadd.f32 %v3039, %v3075
  %v3108 = vadd.f32 %v3040, %v3075
  %v3109 = vadd.f32 %v3041, %v3075
  %v3110 = vadd.f32 %v3042, %v3075
  %v3111 = vadd.f32 %v3043, %v3075
  %v3112 = vadd.f32 %v3044, %v3075
  %v3113 = vadd.f32 %v3045, %v3075
  %v3114 = vadd.f32 %v3046, %v3075
  %v3115 = vadd.f32 %v3047, %v3075
  %v3116 = vadd.f32 %v3048, %v3075
  %v3117 = vadd.f32 %v3049, %v3075
  %v3118 = vadd.f32 %v3050, %v3075
  %v3119 = vadd.f32 %v3051, %v3075
  %v3120 = vadd.f32 %v3052, %v3075
  %v3121 = vadd.f32 %v3053, %v3075
  %v3122 = vadd.f32 %v3054, %v3075
  %v3123 = vadd.f32 %v3055, %v3075
  %v3124 = vadd.f32 %v3056, %v3075
  %v3125 = vadd.f32 %v3057, %v3075
  %v3126 = vadd.f32 %v3058, %v3075
  %v3127 = vadd.f32 %v3059, %v3075
  %v3128 = vadd.f32 %v3060, %v3075
  %v3129 = vadd.f32 %v3061, %v3075
  %v3130 = vadd.f32 %v3062, %v3075
  %v3131 = vadd.f32 %v3063, %v3075
  %v3132 = vadd.f32 %v3064, %v3075
  %v3133 = vadd.f32 %v3065, %v3075
  %v3134 = vadd.f32 %v3066, %v3075
  %v3135 = vadd.f32 %v3067, %v3075
  %v3136 = vadd.f32 %v3068, %v3075
  %v3137 = vadd.f32 %v3069, %v3075
  %v3138 = vadd.f32 %v3070, %v3075
  %v3139 = vadd.f32 %v3071, %v3075
  %v3140 = vadd.f32 %v3072, %v3075
  %vm3141 = vcmp.gt.f32.partialorder %v3077, 0.0
  %vm3142 = vcmp.gt.f32.partialorder %v3078, 0.0
  %vm3143 = vcmp.gt.f32.partialorder %v3079, 0.0
  %vm3144 = vcmp.gt.f32.partialorder %v3080, 0.0
  %vm3145 = vcmp.gt.f32.partialorder %v3081, 0.0
  %vm3146 = vcmp.gt.f32.partialorder %v3082, 0.0
  %vm3147 = vcmp.gt.f32.partialorder %v3083, 0.0
  %vm3148 = vcmp.gt.f32.partialorder %v3084, 0.0
  %vm3149 = vcmp.gt.f32.partialorder %v3085, 0.0
  %vm3150 = vcmp.gt.f32.partialorder %v3086, 0.0
  %vm3151 = vcmp.gt.f32.partialorder %v3087, 0.0
  %vm3152 = vcmp.gt.f32.partialorder %v3088, 0.0
  %vm3153 = vcmp.gt.f32.partialorder %v3089, 0.0
  %vm3154 = vcmp.gt.f32.partialorder %v3090, 0.0
  %vm3155 = vcmp.gt.f32.partialorder %v3091, 0.0
  %vm3156 = vcmp.gt.f32.partialorder %v3092, 0.0
  %vm3157 = vcmp.gt.f32.partialorder %v3093, 0.0
  %vm3158 = vcmp.gt.f32.partialorder %v3094, 0.0
  %vm3159 = vcmp.gt.f32.partialorder %v3095, 0.0
  %vm3160 = vcmp.gt.f32.partialorder %v3096, 0.0
  %vm3161 = vcmp.gt.f32.partialorder %v3097, 0.0
  %vm3162 = vcmp.gt.f32.partialorder %v3098, 0.0
  %vm3163 = vcmp.gt.f32.partialorder %v3099, 0.0
  %vm3164 = vcmp.gt.f32.partialorder %v3100, 0.0
  %vm3165 = vcmp.gt.f32.partialorder %v3101, 0.0
  %vm3166 = vcmp.gt.f32.partialorder %v3102, 0.0
  %vm3167 = vcmp.gt.f32.partialorder %v3103, 0.0
  %vm3168 = vcmp.gt.f32.partialorder %v3104, 0.0
  %vm3169 = vcmp.gt.f32.partialorder %v3105, 0.0
  %vm3170 = vcmp.gt.f32.partialorder %v3106, 0.0
  %vm3171 = vcmp.gt.f32.partialorder %v3107, 0.0
  %vm3172 = vcmp.gt.f32.partialorder %v3108, 0.0
  %vm3173 = vcmp.gt.f32.partialorder %v3109, 0.0
  %vm3174 = vcmp.gt.f32.partialorder %v3110, 0.0
  %vm3175 = vcmp.gt.f32.partialorder %v3111, 0.0
  %vm3176 = vcmp.gt.f32.partialorder %v3112, 0.0
  %vm3177 = vcmp.gt.f32.partialorder %v3113, 0.0
  %vm3178 = vcmp.gt.f32.partialorder %v3114, 0.0
  %vm3179 = vcmp.gt.f32.partialorder %v3115, 0.0
  %vm3180 = vcmp.gt.f32.partialorder %v3116, 0.0
  %vm3181 = vcmp.gt.f32.partialorder %v3117, 0.0
  %vm3182 = vcmp.gt.f32.partialorder %v3118, 0.0
  %vm3183 = vcmp.gt.f32.partialorder %v3119, 0.0
  %vm3184 = vcmp.gt.f32.partialorder %v3120, 0.0
  %vm3185 = vcmp.gt.f32.partialorder %v3121, 0.0
  %vm3186 = vcmp.gt.f32.partialorder %v3122, 0.0
  %vm3187 = vcmp.gt.f32.partialorder %v3123, 0.0
  %vm3188 = vcmp.gt.f32.partialorder %v3124, 0.0
  %vm3189 = vcmp.gt.f32.partialorder %v3125, 0.0
  %vm3190 = vcmp.gt.f32.partialorder %v3126, 0.0
  %vm3191 = vcmp.gt.f32.partialorder %v3127, 0.0
  %vm3192 = vcmp.gt.f32.partialorder %v3128, 0.0
  %vm3193 = vcmp.gt.f32.partialorder %v3129, 0.0
  %vm3194 = vcmp.gt.f32.partialorder %v3130, 0.0
  %vm3195 = vcmp.gt.f32.partialorder %v3131, 0.0
  %vm3196 = vcmp.gt.f32.partialorder %v3132, 0.0
  %vm3197 = vcmp.gt.f32.partialorder %v3133, 0.0
  %vm3198 = vcmp.gt.f32.partialorder %v3134, 0.0
  %vm3199 = vcmp.gt.f32.partialorder %v3135, 0.0
  %vm3200 = vcmp.gt.f32.partialorder %v3136, 0.0
  %vm3201 = vcmp.gt.f32.partialorder %v3137, 0.0
  %vm3202 = vcmp.gt.f32.partialorder %v3138, 0.0
  %vm3203 = vcmp.gt.f32.partialorder %v3139, 0.0
  %vm3204 = vcmp.gt.f32.partialorder %v3140, 0.0
  %v3205 = vmul.f32 %v3077, 0.1
  %v3206 = vmul.f32 %v3078, 0.1
  %v3207 = vmul.f32 %v3079, 0.1
  %v3208 = vmul.f32 %v3080, 0.1
  %v3209 = vmul.f32 %v3081, 0.1
  %v3210 = vmul.f32 %v3082, 0.1
  %v3211 = vmul.f32 %v3083, 0.1
  %v3212 = vmul.f32 %v3084, 0.1
  %v3213 = vmul.f32 %v3085, 0.1
  %v3214 = vmul.f32 %v3086, 0.1
  %v3215 = vmul.f32 %v3087, 0.1
  %v3216 = vmul.f32 %v3088, 0.1
  %v3217 = vmul.f32 %v3089, 0.1
  %v3218 = vmul.f32 %v3090, 0.1
  %v3219 = vmul.f32 %v3091, 0.1
  %v3220 = vmul.f32 %v3092, 0.1
  %v3221 = vmul.f32 %v3093, 0.1
  %v3222 = vmul.f32 %v3094, 0.1
  %v3223 = vmul.f32 %v3095, 0.1
  %v3224 = vmul.f32 %v3096, 0.1
  %v3225 = vmul.f32 %v3097, 0.1
  %v3226 = vmul.f32 %v3098, 0.1
  %v3227 = vmul.f32 %v3099, 0.1
  %v3228 = vmul.f32 %v3100, 0.1
  %v3229 = vmul.f32 %v3101, 0.1
  %v3230 = vmul.f32 %v3102, 0.1
  %v3231 = vmul.f32 %v3103, 0.1
  %v3232 = vmul.f32 %v3104, 0.1
  %v3233 = vmul.f32 %v3105, 0.1
  %v3234 = vmul.f32 %v3106, 0.1
  %v3235 = vmul.f32 %v3107, 0.1
  %v3236 = vmul.f32 %v3108, 0.1
  %v3237 = vmul.f32 %v3109, 0.1
  %v3238 = vmul.f32 %v3110, 0.1
  %v3239 = vmul.f32 %v3111, 0.1
  %v3240 = vmul.f32 %v3112, 0.1
  %v3241 = vmul.f32 %v3113, 0.1
  %v3242 = vmul.f32 %v3114, 0.1
  %v3243 = vmul.f32 %v3115, 0.1
  %v3244 = vmul.f32 %v3116, 0.1
  %v3245 = vmul.f32 %v3117, 0.1
  %v3246 = vmul.f32 %v3118, 0.1
  %v3247 = vmul.f32 %v3119, 0.1
  %v3248 = vmul.f32 %v3120, 0.1
  %v3249 = vmul.f32 %v3121, 0.1
  %v3250 = vmul.f32 %v3122, 0.1
  %v3251 = vmul.f32 %v3123, 0.1
  %v3252 = vmul.f32 %v3124, 0.1
  %v3253 = vmul.f32 %v3125, 0.1
  %v3254 = vmul.f32 %v3126, 0.1
  %v3255 = vmul.f32 %v3127, 0.1
  %v3256 = vmul.f32 %v3128, 0.1
  %v3257 = vmul.f32 %v3129, 0.1
  %v3258 = vmul.f32 %v3130, 0.1
  %v3259 = vmul.f32 %v3131, 0.1
  %v3260 = vmul.f32 %v3132, 0.1
  %v3261 = vmul.f32 %v3133, 0.1
  %v3262 = vmul.f32 %v3134, 0.1
  %v3263 = vmul.f32 %v3135, 0.1
  %v3264 = vmul.f32 %v3136, 0.1
  %v3265 = vmul.f32 %v3137, 0.1
  %v3266 = vmul.f32 %v3138, 0.1
  %v3267 = vmul.f32 %v3139, 0.1
  %v3268 = vmul.f32 %v3140, 0.1
  %v3269 = vsel %vm3141, %v3077, %v3205
  %v3270 = vsel %vm3142, %v3078, %v3206
  %v3271 = vsel %vm3143, %v3079, %v3207
  %v3272 = vsel %vm3144, %v3080, %v3208
  %v3273 = vsel %vm3145, %v3081, %v3209
  %v3274 = vsel %vm3146, %v3082, %v3210
  %v3275 = vsel %vm3147, %v3083, %v3211
  %v3276 = vsel %vm3148, %v3084, %v3212
  %v3277 = vsel %vm3149, %v3085, %v3213
  %v3278 = vsel %vm3150, %v3086, %v3214
  %v3279 = vsel %vm3151, %v3087, %v3215
  %v3280 = vsel %vm3152, %v3088, %v3216
  %v3281 = vsel %vm3153, %v3089, %v3217
  %v3282 = vsel %vm3154, %v3090, %v3218
  %v3283 = vsel %vm3155, %v3091, %v3219
  %v3284 = vsel %vm3156, %v3092, %v3220
  %v3285 = vsel %vm3157, %v3093, %v3221
  %v3286 = vsel %vm3158, %v3094, %v3222
  %v3287 = vsel %vm3159, %v3095, %v3223
  %v3288 = vsel %vm3160, %v3096, %v3224
  %v3289 = vsel %vm3161, %v3097, %v3225
  %v3290 = vsel %vm3162, %v3098, %v3226
  %v3291 = vsel %vm3163, %v3099, %v3227
  %v3292 = vsel %vm3164, %v3100, %v3228
  %v3293 = vsel %vm3165, %v3101, %v3229
  %v3294 = vsel %vm3166, %v3102, %v3230
  %v3295 = vsel %vm3167, %v3103, %v3231
  %v3296 = vsel %vm3168, %v3104, %v3232
  %v3297 = vsel %vm3169, %v3105, %v3233
  %v3298 = vsel %vm3170, %v3106, %v3234
  %v3299 = vsel %vm3171, %v3107, %v3235
  %v3300 = vsel %vm3172, %v3108, %v3236
  %v3301 = vsel %vm3173, %v3109, %v3237
  %v3302 = vsel %vm3174, %v3110, %v3238
  %v3303 = vsel %vm3175, %v3111, %v3239
  %v3304 = vsel %vm3176, %v3112, %v3240
  %v3305 = vsel %vm3177, %v3113, %v3241
  %v3306 = vsel %vm3178, %v3114, %v3242
  %v3307 = vsel %vm3179, %v3115, %v3243
  %v3308 = vsel %vm3180, %v3116, %v3244
  %v3309 = vsel %vm3181, %v3117, %v3245
  %v3310 = vsel %vm3182, %v3118, %v3246
  %v3311 = vsel %vm3183, %v3119, %v3247
  %v3312 = vsel %vm3184, %v3120, %v3248
  %v3313 = vsel %vm3185, %v3121, %v3249
  %v3314 = vsel %vm3186, %v3122, %v3250
  %v3315 = vsel %vm3187, %v3123, %v3251
  %v3316 = vsel %vm3188, %v3124, %v3252
  %v3317 = vsel %vm3189, %v3125, %v3253
  %v3318 = vsel %vm3190, %v3126, %v3254
  %v3319 = vsel %vm3191, %v3127, %v3255
  %v3320 = vsel %vm3192, %v3128, %v3256
  %v3321 = vsel %vm3193, %v3129, %v3257
  %v3322 = vsel %vm3194, %v3130, %v3258
  %v3323 = vsel %vm3195, %v3131, %v3259
  %v3324 = vsel %vm3196, %v3132, %v3260
  %v3325 = vsel %vm3197, %v3133, %v3261
  %v3326 = vsel %vm3198, %v3134, %v3262
  %v3327 = vsel %vm3199, %v3135, %v3263
  %v3328 = vsel %vm3200, %v3136, %v3264
  %v3329 = vsel %vm3201, %v3137, %v3265
  %v3330 = vsel %vm3202, %v3138, %v3266
  %v3331 = vsel %vm3203, %v3139, %v3267
  %v3332 = vsel %vm3204, %v3140, %v3268
  %3333 = vst [vmem:[%s3] sm:$0xff] %v3269
  %3334 = vst [vmem:[%s3 + $0x8] sm:$0xff] %v3270
  %3335 = vst [vmem:[%s3 + $0x10] sm:$0xff] %v3271
  %3336 = vst [vmem:[%s3 + $0x18] sm:$0xff] %v3272
  %3337 = vst [vmem:[%s3 + $0x20] sm:$0xff] %v3273
  %3338 = vst [vmem:[%s3 + $0x28] sm:$0xff] %v3274
  %3339 = vst [vmem:[%s3 + $0x30] sm:$0xff] %v3275
  %3340 = vst [vmem:[%s3 + $0x38] sm:$0xff] %v3276
  %3341 = vst [vmem:[%s3 + $0x40] sm:$0xff] %v3277
  %3342 = vst [vmem:[%s3 + $0x48] sm:$0xff] %v3278
  %3343 = vst [vmem:[%s3 + $0x50] sm:$0xff] %v3279
  %3344 = vst [vmem:[%s3 + $0x58] sm:$0xff] %v3280
  %3345 = vst [vmem:[%s3 + $0x60] sm:$0xff] %v3281
  %3346 = vst [vmem:[%s3 + $0x68] sm:$0xff] %v3282
  %3347 = vst [vmem:[%s3 + $0x70] sm:$0xff] %v3283
  %3348 = vst [vmem:[%s3 + $0x78] sm:$0xff] %v3284
  %3349 = vst [vmem:[%s3 + $0x80] sm:$0xff] %v3285
  %3350 = vst [vmem:[%s3 + $0x88] sm:$0xff] %v3286
  %3351 = vst [vmem:[%s3 + $0x90] sm:$0xff] %v3287
  %3352 = vst [vmem:[%s3 + $0x98] sm:$0xff] %v3288
  %3353 = vst [vmem:[%s3 + $0xa0] sm:$0xff] %v3289
  %3354 = vst [vmem:[%s3 + $0xa8] sm:$0xff] %v3290
  %3355 = vst [vmem:[%s3 + $0xb0] sm:$0xff] %v3291
  %3356 = vst [vmem:[%s3 + $0xb8] sm:$0xff] %v3292
  %3357 = vst [vmem:[%s3 + $0xc0] sm:$0xff] %v3293
  %3358 = vst [vmem:[%s3 + $0xc8] sm:$0xff] %v3294
  %3359 = vst [vmem:[%s3 + $0xd0] sm:$0xff] %v3295
  %3360 = vst [vmem:[%s3 + $0xd8] sm:$0xff] %v3296
  %3361 = vst [vmem:[%s3 + $0xe0] sm:$0xff] %v3297
  %3362 = vst [vmem:[%s3 + $0xe8] sm:$0xff] %v3298
  %3363 = vst [vmem:[%s3 + $0xf0] sm:$0xff] %v3299
  %3364 = vst [vmem:[%s3 + $0xf8] sm:$0xff] %v3300
  %3365 = vst [vmem:[%s3 + $0x100] sm:$0xff] %v3301
  %3366 = vst [vmem:[%s3 + $0x108] sm:$0xff] %v3302
  %3367 = vst [vmem:[%s3 + $0x110] sm:$0xff] %v3303
  %3368 = vst [vmem:[%s3 + $0x118] sm:$0xff] %v3304
  %3369 = vst [vmem:[%s3 + $0x120] sm:$0xff] %v3305
  %3370 = vst [vmem:[%s3 + $0x128] sm:$0xff] %v3306
  %3371 = vst [vmem:[%s3 + $0x130] sm:$0xff] %v3307
  %3372 = vst [vmem:[%s3 + $0x138] sm:$0xff] %v3308
  %3373 = vst [vmem:[%s3 + $0x140] sm:$0xff] %v3309
  %3374 = vst [vmem:[%s3 + $0x148] sm:$0xff] %v3310
  %3375 = vst [vmem:[%s3 + $0x150] sm:$0xff] %v3311
  %3376 = vst [vmem:[%s3 + $0x158] sm:$0xff] %v3312
  %3377 = vst [vmem:[%s3 + $0x160] sm:$0xff] %v3313
  %3378 = vst [vmem:[%s3 + $0x168] sm:$0xff] %v3314
  %3379 = vst [vmem:[%s3 + $0x170] sm:$0xff] %v3315
  %3380 = vst [vmem:[%s3 + $0x178] sm:$0xff] %v3316
  %3381 = vst [vmem:[%s3 + $0x180] sm:$0xff] %v3317
  %3382 = vst [vmem:[%s3 + $0x188] sm:$0xff] %v3318
  %3383 = vst [vmem:[%s3 + $0x190] sm:$0xff] %v3319
  %3384 = vst [vmem:[%s3 + $0x198] sm:$0xff] %v3320
  %3385 = vst [vmem:[%s3 + $0x1a0] sm:$0xff] %v3321
  %3386 = vst [vmem:[%s3 + $0x1a8] sm:$0xff] %v3322
  %3387 = vst [vmem:[%s3 + $0x1b0] sm:$0xff] %v3323
  %3388 = vst [vmem:[%s3 + $0x1b8] sm:$0xff] %v3324
  %3389 = vst [vmem:[%s3 + $0x1c0] sm:$0xff] %v3325
  %3390 = vst [vmem:[%s3 + $0x1c8] sm:$0xff] %v3326
  %3391 = vst [vmem:[%s3 + $0x1d0] sm:$0xff] %v3327
  %3392 = vst [vmem:[%s3 + $0x1d8] sm:$0xff] %v3328
  %3393 = vst [vmem:[%s3 + $0x1e0] sm:$0xff] %v3329
  %3394 = vst [vmem:[%s3 + $0x1e8] sm:$0xff] %v3330
  %3395 = vst [vmem:[%s3 + $0x1f0] sm:$0xff] %v3331
  %3396 = vst [vmem:[%s3 + $0x1f8] sm:$0xff] %v3332
  // Predicated region
  $region14: #{darknet_forward.6} parent=0 // pred_check
    _
  $region15: #{darknet_forward.6} parent=0 // pred_check_branch
    %3398 = sbr.rel (0) target = $region17
  $region16: #{darknet_forward.6} parent=0 // pred_region
    _
  $region17: #{darknet_forward.6} parent=0 // pred_fallthru
    _
  // Predicated region
  $region18: #{darknet_forward.6} parent=0 // pred_check
    _
  $region19: #{darknet_forward.6} parent=0 // pred_check_branch
    %3400 = sbr.rel (0) target = $region21
  $region20: #{darknet_forward.6} parent=0 // pred_region
    _
  $region21: #{darknet_forward.6} parent=0 // pred_fallthru
    _

// kernel: darknet_forward.11
$region0: #{darknet_forward.11}
  #allocation0 [shape = 'u32[]', space=smem, size = 0x4, offset = 0x4, fixed_abs, tag = 'smem constant byte address 0x4 - core index']
  #allocation1 [shape = 'u32[72,128]{1,0:T(1,128)}', space=vmem, size = 0x9000, scoped, tag = 'internal scratch']
  %s0 = inlined_call_operand.vmem [shape: f32[1,2,16,16,128], index: 0, kind: input, shape index: {}]
  %s1 = inlined_call_operand.vmem [shape: f32[1,128,128], index: 1, kind: input, shape index: {}]
  %s2 = inlined_call_operand.vmem [shape: f32[1,128], index: 2, kind: input, shape index: {}]
  %s3 = inlined_call_operand.vmem [shape: f32[4,128], index: 3, kind: input, shape index: {}]
  %s4 = inlined_call_operand.vmem [shape: f32[2,16,16,128], index: 4, kind: output, shape index: {}]
  %s5 = sld [smem:[#allocation0]]
  $region26: #{darknet_forward.11} parent=0
    _
  %s7 = ssub.s32 1, %s5
  %s8 = scalar_select 0, %s7, %s5
  // Predicated region
  $region2: #{darknet_forward.11} parent=0 // pred_check
    _
  $region3: #{darknet_forward.11} parent=0 // pred_check_branch
    %10 = sbr.rel (0) target = $region5
  $region4: #{darknet_forward.11} parent=0 // pred_region
    _
  $region5: #{darknet_forward.11} parent=0 // pred_fallthru
    _
  // Predicated region
  $region6: #{darknet_forward.11} parent=0 // pred_check
    _
  $region7: #{darknet_forward.11} parent=0 // pred_check_branch
    %12 = sbr.rel (0) target = $region9
  $region8: #{darknet_forward.11} parent=0 // pred_region
    _
  $region9: #{darknet_forward.11} parent=0 // pred_fallthru
    _
  // Predicated region
  $region10: #{darknet_forward.11} parent=0 // pred_check
    _
  $region11: #{darknet_forward.11} parent=0 // pred_check_branch
    %14 = sbr.rel (0) target = $region13
  $region12: #{darknet_forward.11} parent=0 // pred_region
    _
  $region13: #{darknet_forward.11} parent=0 // pred_fallthru
    _
  // Predicated region
  $region14: #{darknet_forward.11} parent=0 // pred_check
    _
  $region15: #{darknet_forward.11} parent=0 // pred_check_branch
    %16 = sbr.rel (0) target = $region17
  $region16: #{darknet_forward.11} parent=0 // pred_region
    _
  $region17: #{darknet_forward.11} parent=0 // pred_fallthru
    _
  %v17 = vld [vmem:[%s0] sm:$0xff]
  %v18 = vld [vmem:[%s0 + $0x8] sm:$0xff]
  %v19 = vld [vmem:[%s0 + $0x10] sm:$0xff]
  %v20 = vld [vmem:[%s0 + $0x18] sm:$0xff]
  %v21 = vld [vmem:[%s0 + $0x20] sm:$0xff]
  %v22 = vld [vmem:[%s0 + $0x28] sm:$0xff]
  %v23 = vld [vmem:[%s0 + $0x30] sm:$0xff]
  %v24 = vld [vmem:[%s0 + $0x38] sm:$0xff]
  %v25 = vld [vmem:[%s0 + $0x40] sm:$0xff]
  %v26 = vld [vmem:[%s0 + $0x48] sm:$0xff]
  %v27 = vld [vmem:[%s0 + $0x50] sm:$0xff]
  %v28 = vld [vmem:[%s0 + $0x58] sm:$0xff]
  %v29 = vld [vmem:[%s0 + $0x60] sm:$0xff]
  %v30 = vld [vmem:[%s0 + $0x68] sm:$0xff]
  %v31 = vld [vmem:[%s0 + $0x70] sm:$0xff]
  %v32 = vld [vmem:[%s0 + $0x78] sm:$0xff]
  %v33 = vld [vmem:[%s0 + $0x80] sm:$0xff]
  %v34 = vld [vmem:[%s0 + $0x88] sm:$0xff]
  %v35 = vld [vmem:[%s0 + $0x90] sm:$0xff]
  %v36 = vld [vmem:[%s0 + $0x98] sm:$0xff]
  %v37 = vld [vmem:[%s0 + $0xa0] sm:$0xff]
  %v38 = vld [vmem:[%s0 + $0xa8] sm:$0xff]
  %v39 = vld [vmem:[%s0 + $0xb0] sm:$0xff]
  %v40 = vld [vmem:[%s0 + $0xb8] sm:$0xff]
  %v41 = vld [vmem:[%s0 + $0xc0] sm:$0xff]
  %v42 = vld [vmem:[%s0 + $0xc8] sm:$0xff]
  %v43 = vld [vmem:[%s0 + $0xd0] sm:$0xff]
  %v44 = vld [vmem:[%s0 + $0xd8] sm:$0xff]
  %v45 = vld [vmem:[%s0 + $0xe0] sm:$0xff]
  %v46 = vld [vmem:[%s0 + $0xe8] sm:$0xff]
  %v47 = vld [vmem:[%s0 + $0xf0] sm:$0xff]
  %v48 = vld [vmem:[%s0 + $0xf8] sm:$0xff]
  %v49 = vld [vmem:[%s0 + $0x100] sm:$0xff]
  %v50 = vld [vmem:[%s0 + $0x108] sm:$0xff]
  %v51 = vld [vmem:[%s0 + $0x110] sm:$0xff]
  %v52 = vld [vmem:[%s0 + $0x118] sm:$0xff]
  %v53 = vld [vmem:[%s0 + $0x120] sm:$0xff]
  %v54 = vld [vmem:[%s0 + $0x128] sm:$0xff]
  %v55 = vld [vmem:[%s0 + $0x130] sm:$0xff]
  %v56 = vld [vmem:[%s0 + $0x138] sm:$0xff]
  %v57 = vld [vmem:[%s0 + $0x140] sm:$0xff]
  %v58 = vld [vmem:[%s0 + $0x148] sm:$0xff]
  %v59 = vld [vmem:[%s0 + $0x150] sm:$0xff]
  %v60 = vld [vmem:[%s0 + $0x158] sm:$0xff]
  %v61 = vld [vmem:[%s0 + $0x160] sm:$0xff]
  %v62 = vld [vmem:[%s0 + $0x168] sm:$0xff]
  %v63 = vld [vmem:[%s0 + $0x170] sm:$0xff]
  %v64 = vld [vmem:[%s0 + $0x178] sm:$0xff]
  %v65 = vld [vmem:[%s0 + $0x180] sm:$0xff]
  %v66 = vld [vmem:[%s0 + $0x188] sm:$0xff]
  %v67 = vld [vmem:[%s0 + $0x190] sm:$0xff]
  %v68 = vld [vmem:[%s0 + $0x198] sm:$0xff]
  %v69 = vld [vmem:[%s0 + $0x1a0] sm:$0xff]
  %v70 = vld [vmem:[%s0 + $0x1a8] sm:$0xff]
  %v71 = vld [vmem:[%s0 + $0x1b0] sm:$0xff]
  %v72 = vld [vmem:[%s0 + $0x1b8] sm:$0xff]
  %v73 = vld [vmem:[%s0 + $0x1c0] sm:$0xff]
  %v74 = vld [vmem:[%s0 + $0x1c8] sm:$0xff]
  %v75 = vld [vmem:[%s0 + $0x1d0] sm:$0xff]
  %v76 = vld [vmem:[%s0 + $0x1d8] sm:$0xff]
  %v77 = vld [vmem:[%s0 + $0x1e0] sm:$0xff]
  %v78 = vld [vmem:[%s0 + $0x1e8] sm:$0xff]
  %v79 = vld [vmem:[%s0 + $0x1f0] sm:$0xff]
  %v80 = vld [vmem:[%s0 + $0x1f8] sm:$0xff]
  %v81 = vld [vmem:[%s1] sm:$0xff]
  %v82 = vld [vmem:[%s1 + $0x8] sm:$0xff]
  %v83 = vld [vmem:[%s1 + $0x10] sm:$0xff]
  %v84 = vld [vmem:[%s1 + $0x18] sm:$0xff]
  %v85 = vld [vmem:[%s1 + $0x20] sm:$0xff]
  %v86 = vld [vmem:[%s1 + $0x28] sm:$0xff]
  %v87 = vld [vmem:[%s1 + $0x30] sm:$0xff]
  %v88 = vld [vmem:[%s1 + $0x38] sm:$0xff]
  %v89 = vld [vmem:[%s1 + $0x40] sm:$0xff]
  %v90 = vld [vmem:[%s1 + $0x48] sm:$0xff]
  %v91 = vld [vmem:[%s1 + $0x50] sm:$0xff]
  %v92 = vld [vmem:[%s1 + $0x58] sm:$0xff]
  %v93 = vld [vmem:[%s1 + $0x60] sm:$0xff]
  %v94 = vld [vmem:[%s1 + $0x68] sm:$0xff]
  %v95 = vld [vmem:[%s1 + $0x70] sm:$0xff]
  %v96 = vld [vmem:[%s1 + $0x78] sm:$0xff]
  %v97 = vld [vmem:[%s2] sm:$0x1]
  %v99 = vperm.slane %v97, 0
  %101 = vmatpush.msra.mxu0 %v96
  %102 = vmatpush.msra.mxu0 %v95
  %103 = vmatpush.msra.mxu0 %v94
  %104 = vmatpush.msra.mxu0 %v93
  %105 = vmatpush.msra.mxu0 %v92
  %106 = vmatpush.msra.mxu0 %v91
  %107 = vmatpush.msra.mxu0 %v90
  %108 = vmatpush.msra.mxu0 %v89
  %109 = vmatpush.msra.mxu0 %v88
  %110 = vmatpush.msra.mxu0 %v87
  %111 = vmatpush.msra.mxu0 %v86
  %112 = vmatpush.msra.mxu0 %v85
  %113 = vmatpush.msra.mxu0 %v84
  %114 = vmatpush.msra.mxu0 %v83
  %115 = vmatpush.msra.mxu0 %v82
  %116 = vmatpush.msra.mxu0 %v81
  %117 = vmatmul.f32.gmra.mxu0 %v17
  %v118 = vpop.f32.mrf.mxu0
  %v119 = vadd.f32 %v99, %v118
  %120 = vmatmul.f32.gmra.mxu0 %v18
  %v121 = vpop.f32.mrf.mxu0
  %v122 = vadd.f32 %v99, %v121
  %123 = vmatmul.f32.gmra.mxu0 %v19
  %v124 = vpop.f32.mrf.mxu0
  %v125 = vadd.f32 %v99, %v124
  %126 = vmatmul.f32.gmra.mxu0 %v20
  %v127 = vpop.f32.mrf.mxu0
  %v128 = vadd.f32 %v99, %v127
  %129 = vmatmul.f32.gmra.mxu0 %v21
  %v130 = vpop.f32.mrf.mxu0
  %v131 = vadd.f32 %v99, %v130
  %132 = vmatmul.f32.gmra.mxu0 %v22
  %v133 = vpop.f32.mrf.mxu0
  %v134 = vadd.f32 %v99, %v133
  %135 = vmatmul.f32.gmra.mxu0 %v23
  %v136 = vpop.f32.mrf.mxu0
  %v137 = vadd.f32 %v99, %v136
  %138 = vmatmul.f32.gmra.mxu0 %v24
  %v139 = vpop.f32.mrf.mxu0
  %v140 = vadd.f32 %v99, %v139
  %141 = vmatmul.f32.gmra.mxu0 %v25
  %v142 = vpop.f32.mrf.mxu0
  %v143 = vadd.f32 %v99, %v142
  %144 = vmatmul.f32.gmra.mxu0 %v26
  %v145 = vpop.f32.mrf.mxu0
  %v146 = vadd.f32 %v99, %v145
  %147 = vmatmul.f32.gmra.mxu0 %v27
  %v148 = vpop.f32.mrf.mxu0
  %v149 = vadd.f32 %v99, %v148
  %150 = vmatmul.f32.gmra.mxu0 %v28
  %v151 = vpop.f32.mrf.mxu0
  %v152 = vadd.f32 %v99, %v151
  %153 = vmatmul.f32.gmra.mxu0 %v29
  %v154 = vpop.f32.mrf.mxu0
  %v155 = vadd.f32 %v99, %v154
  %156 = vmatmul.f32.gmra.mxu0 %v30
  %v157 = vpop.f32.mrf.mxu0
  %v158 = vadd.f32 %v99, %v157
  %159 = vmatmul.f32.gmra.mxu0 %v31
  %v160 = vpop.f32.mrf.mxu0
  %v161 = vadd.f32 %v99, %v160
  %162 = vmatmul.f32.gmra.mxu0 %v32
  %v163 = vpop.f32.mrf.mxu0
  %v164 = vadd.f32 %v99, %v163
  %165 = vmatmul.f32.gmra.mxu0 %v33
  %v166 = vpop.f32.mrf.mxu0
  %v167 = vadd.f32 %v99, %v166
  %168 = vmatmul.f32.gmra.mxu0 %v34
  %v169 = vpop.f32.mrf.mxu0
  %v170 = vadd.f32 %v99, %v169
  %171 = vmatmul.f32.gmra.mxu0 %v35
  %v172 = vpop.f32.mrf.mxu0
  %v173 = vadd.f32 %v99, %v172
  %174 = vmatmul.f32.gmra.mxu0 %v36
  %v175 = vpop.f32.mrf.mxu0
  %v176 = vadd.f32 %v99, %v175
  %177 = vmatmul.f32.gmra.mxu0 %v37
  %v178 = vpop.f32.mrf.mxu0
  %v179 = vadd.f32 %v99, %v178
  %180 = vmatmul.f32.gmra.mxu0 %v38
  %v181 = vpop.f32.mrf.mxu0
  %v182 = vadd.f32 %v99, %v181
  %183 = vmatmul.f32.gmra.mxu0 %v39
  %v184 = vpop.f32.mrf.mxu0
  %v185 = vadd.f32 %v99, %v184
  %186 = vmatmul.f32.gmra.mxu0 %v40
  %v187 = vpop.f32.mrf.mxu0
  %v188 = vadd.f32 %v99, %v187
  %189 = vmatmul.f32.gmra.mxu0 %v41
  %v190 = vpop.f32.mrf.mxu0
  %v191 = vadd.f32 %v99, %v190
  %192 = vmatmul.f32.gmra.mxu0 %v42
  %v193 = vpop.f32.mrf.mxu0
  %v194 = vadd.f32 %v99, %v193
  %195 = vmatmul.f32.gmra.mxu0 %v43
  %v196 = vpop.f32.mrf.mxu0
  %v197 = vadd.f32 %v99, %v196
  %198 = vmatmul.f32.gmra.mxu0 %v44
  %v199 = vpop.f32.mrf.mxu0
  %v200 = vadd.f32 %v99, %v199
  %201 = vmatmul.f32.gmra.mxu0 %v45
  %v202 = vpop.f32.mrf.mxu0
  %v203 = vadd.f32 %v99, %v202
  %204 = vmatmul.f32.gmra.mxu0 %v46
  %v205 = vpop.f32.mrf.mxu0
  %v206 = vadd.f32 %v99, %v205
  %207 = vmatmul.f32.gmra.mxu0 %v47
  %v208 = vpop.f32.mrf.mxu0
  %v209 = vadd.f32 %v99, %v208
  %210 = vmatmul.f32.gmra.mxu0 %v48
  %v211 = vpop.f32.mrf.mxu0
  %v212 = vadd.f32 %v99, %v211
  %213 = vmatmul.f32.gmra.mxu0 %v49
  %v214 = vpop.f32.mrf.mxu0
  %v215 = vadd.f32 %v99, %v214
  %216 = vmatmul.f32.gmra.mxu0 %v50
  %v217 = vpop.f32.mrf.mxu0
  %v218 = vadd.f32 %v99, %v217
  %219 = vmatmul.f32.gmra.mxu0 %v51
  %v220 = vpop.f32.mrf.mxu0
  %v221 = vadd.f32 %v99, %v220
  %222 = vmatmul.f32.gmra.mxu0 %v52
  %v223 = vpop.f32.mrf.mxu0
  %v224 = vadd.f32 %v99, %v223
  %225 = vmatmul.f32.gmra.mxu0 %v53
  %v226 = vpop.f32.mrf.mxu0
  %v227 = vadd.f32 %v99, %v226
  %228 = vmatmul.f32.gmra.mxu0 %v54
  %v229 = vpop.f32.mrf.mxu0
  %v230 = vadd.f32 %v99, %v229
  %231 = vmatmul.f32.gmra.mxu0 %v55
  %v232 = vpop.f32.mrf.mxu0
  %v233 = vadd.f32 %v99, %v232
  %234 = vmatmul.f32.gmra.mxu0 %v56
  %v235 = vpop.f32.mrf.mxu0
  %v236 = vadd.f32 %v99, %v235
  %237 = vmatmul.f32.gmra.mxu0 %v57
  %v238 = vpop.f32.mrf.mxu0
  %v239 = vadd.f32 %v99, %v238
  %240 = vmatmul.f32.gmra.mxu0 %v58
  %v241 = vpop.f32.mrf.mxu0
  %v242 = vadd.f32 %v99, %v241
  %243 = vmatmul.f32.gmra.mxu0 %v59
  %v244 = vpop.f32.mrf.mxu0
  %v245 = vadd.f32 %v99, %v244
  %246 = vmatmul.f32.gmra.mxu0 %v60
  %v247 = vpop.f32.mrf.mxu0
  %v248 = vadd.f32 %v99, %v247
  %249 = vmatmul.f32.gmra.mxu0 %v61
  %v250 = vpop.f32.mrf.mxu0
  %v251 = vadd.f32 %v99, %v250
  %252 = vmatmul.f32.gmra.mxu0 %v62
  %v253 = vpop.f32.mrf.mxu0
  %v254 = vadd.f32 %v99, %v253
  %255 = vmatmul.f32.gmra.mxu0 %v63
  %v256 = vpop.f32.mrf.mxu0
  %v257 = vadd.f32 %v99, %v256
  %258 = vmatmul.f32.gmra.mxu0 %v64
  %v259 = vpop.f32.mrf.mxu0
  %v260 = vadd.f32 %v99, %v259
  %261 = vmatmul.f32.gmra.mxu0 %v65
  %v262 = vpop.f32.mrf.mxu0
  %v263 = vadd.f32 %v99, %v262
  %264 = vmatmul.f32.gmra.mxu0 %v66
  %v265 = vpop.f32.mrf.mxu0
  %v266 = vadd.f32 %v99, %v265
  %267 = vmatmul.f32.gmra.mxu0 %v67
  %v268 = vpop.f32.mrf.mxu0
  %v269 = vadd.f32 %v99, %v268
  %270 = vmatmul.f32.gmra.mxu0 %v68
  %v271 = vpop.f32.mrf.mxu0
  %v272 = vadd.f32 %v99, %v271
  %273 = vmatmul.f32.gmra.mxu0 %v69
  %v274 = vpop.f32.mrf.mxu0
  %v275 = vadd.f32 %v99, %v274
  %276 = vmatmul.f32.gmra.mxu0 %v70
  %v277 = vpop.f32.mrf.mxu0
  %v278 = vadd.f32 %v99, %v277
  %279 = vmatmul.f32.gmra.mxu0 %v71
  %v280 = vpop.f32.mrf.mxu0
  %v281 = vadd.f32 %v99, %v280
  %282 = vmatmul.f32.gmra.mxu0 %v72
  %v283 = vpop.f32.mrf.mxu0
  %v284 = vadd.f32 %v99, %v283
  %285 = vmatmul.f32.gmra.mxu0 %v73
  %v286 = vpop.f32.mrf.mxu0
  %v287 = vadd.f32 %v99, %v286
  %288 = vmatmul.f32.gmra.mxu0 %v74
  %v289 = vpop.f32.mrf.mxu0
  %v290 = vadd.f32 %v99, %v289
  %291 = vmatmul.f32.gmra.mxu0 %v75
  %v292 = vpop.f32.mrf.mxu0
  %v293 = vadd.f32 %v99, %v292
  %294 = vmatmul.f32.gmra.mxu0 %v76
  %v295 = vpop.f32.mrf.mxu0
  %v296 = vadd.f32 %v99, %v295
  %297 = vmatmul.f32.gmra.mxu0 %v77
  %v298 = vpop.f32.mrf.mxu0
  %v299 = vadd.f32 %v99, %v298
  %300 = vmatmul.f32.gmra.mxu0 %v78
  %v301 = vpop.f32.mrf.mxu0
  %v302 = vadd.f32 %v99, %v301
  %303 = vmatmul.f32.gmra.mxu0 %v79
  %v304 = vpop.f32.mrf.mxu0
  %v305 = vadd.f32 %v99, %v304
  %306 = vmatmul.f32.gmra.mxu0 %v80
  %v307 = vpop.f32.mrf.mxu0
  %v308 = vadd.f32 %v99, %v307
  %309 = vdwg.mxu0
  %v310 = vld [vmem:[%s3] sm:$0x1]
  %v311 = vld [vmem:[%s3 + $0x1] sm:$0x1]
  %v312 = vld [vmem:[%s3 + $0x2] sm:$0x1]
  %v313 = vld [vmem:[%s3 + $0x3] sm:$0x1]
  %v314 = vlaneseq
  %v315 = vshrl.u32 %v314, 7
  %v316 = vadd.s32 %v315, 8
  %v317 = vcvt.s32.f32 %v315
  %v318 = vcvt.s32.f32 %v316
  %v319 = vcvt.s32.f32 0
  %v320 = vcvt.s32.f32 1
  %v321 = vcvt.s32.f32 2
  %v322 = vcvt.s32.f32 3
  %v323 = vcvt.s32.f32 4
  %v324 = vcvt.s32.f32 5
  %v325 = vcvt.s32.f32 6
  %v326 = vcvt.s32.f32 7
  %v327 = vcvt.s32.f32 8
  %v328 = vcvt.s32.f32 9
  %v329 = vcvt.s32.f32 10
  %v330 = vcvt.s32.f32 11
  %v331 = vcvt.s32.f32 12
  %v332 = vcvt.s32.f32 13
  %v333 = vcvt.s32.f32 14
  %v334 = vcvt.s32.f32 15
  %v335 = vxor.u32 %v119, 2147483648
  %v336 = vxor.u32 %v122, 2147483648
  %v337 = vxor.u32 %v125, 2147483648
  %v338 = vxor.u32 %v128, 2147483648
  %v339 = vxor.u32 %v131, 2147483648
  %v340 = vxor.u32 %v134, 2147483648
  %v341 = vxor.u32 %v137, 2147483648
  %v342 = vxor.u32 %v140, 2147483648
  %v343 = vxor.u32 %v143, 2147483648
  %v344 = vxor.u32 %v146, 2147483648
  %v345 = vxor.u32 %v149, 2147483648
  %v346 = vxor.u32 %v152, 2147483648
  %v347 = vxor.u32 %v155, 2147483648
  %v348 = vxor.u32 %v158, 2147483648
  %v349 = vxor.u32 %v161, 2147483648
  %v350 = vxor.u32 %v164, 2147483648
  %v351 = vxor.u32 %v167, 2147483648
  %v352 = vxor.u32 %v170, 2147483648
  %v353 = vxor.u32 %v173, 2147483648
  %v354 = vxor.u32 %v176, 2147483648
  %v355 = vxor.u32 %v179, 2147483648
  %v356 = vxor.u32 %v182, 2147483648
  %v357 = vxor.u32 %v185, 2147483648
  %v358 = vxor.u32 %v188, 2147483648
  %v359 = vxor.u32 %v191, 2147483648
  %v360 = vxor.u32 %v194, 2147483648
  %v361 = vxor.u32 %v197, 2147483648
  %v362 = vxor.u32 %v200, 2147483648
  %v363 = vxor.u32 %v203, 2147483648
  %v364 = vxor.u32 %v206, 2147483648
  %v365 = vxor.u32 %v209, 2147483648
  %v366 = vxor.u32 %v212, 2147483648
  %v367 = vxor.u32 %v215, 2147483648
  %v368 = vxor.u32 %v218, 2147483648
  %v369 = vxor.u32 %v221, 2147483648
  %v370 = vxor.u32 %v224, 2147483648
  %v371 = vxor.u32 %v227, 2147483648
  %v372 = vxor.u32 %v230, 2147483648
  %v373 = vxor.u32 %v233, 2147483648
  %v374 = vxor.u32 %v236, 2147483648
  %v375 = vxor.u32 %v239, 2147483648
  %v376 = vxor.u32 %v242, 2147483648
  %v377 = vxor.u32 %v245, 2147483648
  %v378 = vxor.u32 %v248, 2147483648
  %v379 = vxor.u32 %v251, 2147483648
  %v380 = vxor.u32 %v254, 2147483648
  %v381 = vxor.u32 %v257, 2147483648
  %v382 = vxor.u32 %v260, 2147483648
  %v383 = vxor.u32 %v263, 2147483648
  %v384 = vxor.u32 %v266, 2147483648
  %v385 = vxor.u32 %v269, 2147483648
  %v386 = vxor.u32 %v272, 2147483648
  %v387 = vxor.u32 %v275, 2147483648
  %v388 = vxor.u32 %v278, 2147483648
  %v389 = vxor.u32 %v281, 2147483648
  %v390 = vxor.u32 %v284, 2147483648
  %v391 = vxor.u32 %v287, 2147483648
  %v392 = vxor.u32 %v290, 2147483648
  %v393 = vxor.u32 %v293, 2147483648
  %v394 = vxor.u32 %v296, 2147483648
  %v395 = vxor.u32 %v299, 2147483648
  %v396 = vxor.u32 %v302, 2147483648
  %v397 = vxor.u32 %v305, 2147483648
  %v398 = vxor.u32 %v308, 2147483648
  %v399 = vmul.f32 %v335, 1.442695
  %v400 = vpow.pop %v399
  %v401 = vmul.f32 %v336, 1.442695
  %v402 = vpow.pop %v401
  %v403 = vmul.f32 %v337, 1.442695
  %v404 = vpow.pop %v403
  %v405 = vmul.f32 %v338, 1.442695
  %v406 = vpow.pop %v405
  %v407 = vmul.f32 %v339, 1.442695
  %v408 = vpow.pop %v407
  %v409 = vmul.f32 %v340, 1.442695
  %v410 = vpow.pop %v409
  %v411 = vmul.f32 %v341, 1.442695
  %v412 = vpow.pop %v411
  %v413 = vmul.f32 %v342, 1.442695
  %v414 = vpow.pop %v413
  %v415 = vmul.f32 %v343, 1.442695
  %v416 = vpow.pop %v415
  %v417 = vmul.f32 %v344, 1.442695
  %v418 = vpow.pop %v417
  %v419 = vmul.f32 %v345, 1.442695
  %v420 = vpow.pop %v419
  %v421 = vmul.f32 %v346, 1.442695
  %v422 = vpow.pop %v421
  %v423 = vmul.f32 %v347, 1.442695
  %v424 = vpow.pop %v423
  %v425 = vmul.f32 %v348, 1.442695
  %v426 = vpow.pop %v425
  %v427 = vmul.f32 %v349, 1.442695
  %v428 = vpow.pop %v427
  %v429 = vmul.f32 %v350, 1.442695
  %v430 = vpow.pop %v429
  %v431 = vmul.f32 %v351, 1.442695
  %v432 = vpow.pop %v431
  %v433 = vmul.f32 %v352, 1.442695
  %v434 = vpow.pop %v433
  %v435 = vmul.f32 %v353, 1.442695
  %v436 = vpow.pop %v435
  %v437 = vmul.f32 %v354, 1.442695
  %v438 = vpow.pop %v437
  %v439 = vmul.f32 %v355, 1.442695
  %v440 = vpow.pop %v439
  %v441 = vmul.f32 %v356, 1.442695
  %v442 = vpow.pop %v441
  %v443 = vmul.f32 %v357, 1.442695
  %v444 = vpow.pop %v443
  %v445 = vmul.f32 %v358, 1.442695
  %v446 = vpow.pop %v445
  %v447 = vmul.f32 %v359, 1.442695
  %v448 = vpow.pop %v447
  %v449 = vmul.f32 %v360, 1.442695
  %v450 = vpow.pop %v449
  %v451 = vmul.f32 %v361, 1.442695
  %v452 = vpow.pop %v451
  %v453 = vmul.f32 %v362, 1.442695
  %v454 = vpow.pop %v453
  %v455 = vmul.f32 %v363, 1.442695
  %v456 = vpow.pop %v455
  %v457 = vmul.f32 %v364, 1.442695
  %v458 = vpow.pop %v457
  %v459 = vmul.f32 %v365, 1.442695
  %v460 = vpow.pop %v459
  %v461 = vmul.f32 %v366, 1.442695
  %v462 = vpow.pop %v461
  %v463 = vmul.f32 %v367, 1.442695
  %v464 = vpow.pop %v463
  %v465 = vmul.f32 %v368, 1.442695
  %v466 = vpow.pop %v465
  %v467 = vmul.f32 %v369, 1.442695
  %v468 = vpow.pop %v467
  %v469 = vmul.f32 %v370, 1.442695
  %v470 = vpow.pop %v469
  %v471 = vmul.f32 %v371, 1.442695
  %v472 = vpow.pop %v471
  %v473 = vmul.f32 %v372, 1.442695
  %v474 = vpow.pop %v473
  %v475 = vmul.f32 %v373, 1.442695
  %v476 = vpow.pop %v475
  %v477 = vmul.f32 %v374, 1.442695
  %v478 = vpow.pop %v477
  %v479 = vmul.f32 %v375, 1.442695
  %v480 = vpow.pop %v479
  %v481 = vmul.f32 %v376, 1.442695
  %v482 = vpow.pop %v481
  %v483 = vmul.f32 %v377, 1.442695
  %v484 = vpow.pop %v483
  %v485 = vmul.f32 %v378, 1.442695
  %v486 = vpow.pop %v485
  %v487 = vmul.f32 %v379, 1.442695
  %v488 = vpow.pop %v487
  %v489 = vmul.f32 %v380, 1.442695
  %v490 = vpow.pop %v489
  %v491 = vmul.f32 %v381, 1.442695
  %v492 = vpow.pop %v491
  %v493 = vmul.f32 %v382, 1.442695
  %v494 = vpow.pop %v493
  %v495 = vmul.f32 %v383, 1.442695
  %v496 = vpow.pop %v495
  %v497 = vmul.f32 %v384, 1.442695
  %v498 = vpow.pop %v497
  %v499 = vmul.f32 %v385, 1.442695
  %v500 = vpow.pop %v499
  %v501 = vmul.f32 %v386, 1.442695
  %v502 = vpow.pop %v501
  %v503 = vmul.f32 %v387, 1.442695
  %v504 = vpow.pop %v503
  %v505 = vmul.f32 %v388, 1.442695
  %v506 = vpow.pop %v505
  %v507 = vmul.f32 %v389, 1.442695
  %v508 = vpow.pop %v507
  %v509 = vmul.f32 %v390, 1.442695
  %v510 = vpow.pop %v509
  %v511 = vmul.f32 %v391, 1.442695
  %v512 = vpow.pop %v511
  %v513 = vmul.f32 %v392, 1.442695
  %v514 = vpow.pop %v513
  %v515 = vmul.f32 %v393, 1.442695
  %v516 = vpow.pop %v515
  %v517 = vmul.f32 %v394, 1.442695
  %v518 = vpow.pop %v517
  %v519 = vmul.f32 %v395, 1.442695
  %v520 = vpow.pop %v519
  %v521 = vmul.f32 %v396, 1.442695
  %v522 = vpow.pop %v521
  %v523 = vmul.f32 %v397, 1.442695
  %v524 = vpow.pop %v523
  %v525 = vmul.f32 %v398, 1.442695
  %v526 = vpow.pop %v525
  %v527 = vadd.f32 %v400, 1.0
  %v528 = vadd.f32 %v402, 1.0
  %v529 = vadd.f32 %v404, 1.0
  %v530 = vadd.f32 %v406, 1.0
  %v531 = vadd.f32 %v408, 1.0
  %v532 = vadd.f32 %v410, 1.0
  %v533 = vadd.f32 %v412, 1.0
  %v534 = vadd.f32 %v414, 1.0
  %v535 = vadd.f32 %v416, 1.0
  %v536 = vadd.f32 %v418, 1.0
  %v537 = vadd.f32 %v420, 1.0
  %v538 = vadd.f32 %v422, 1.0
  %v539 = vadd.f32 %v424, 1.0
  %v540 = vadd.f32 %v426, 1.0
  %v541 = vadd.f32 %v428, 1.0
  %v542 = vadd.f32 %v430, 1.0
  %v543 = vadd.f32 %v432, 1.0
  %v544 = vadd.f32 %v434, 1.0
  %v545 = vadd.f32 %v436, 1.0
  %v546 = vadd.f32 %v438, 1.0
  %v547 = vadd.f32 %v440, 1.0
  %v548 = vadd.f32 %v442, 1.0
  %v549 = vadd.f32 %v444, 1.0
  %v550 = vadd.f32 %v446, 1.0
  %v551 = vadd.f32 %v448, 1.0
  %v552 = vadd.f32 %v450, 1.0
  %v553 = vadd.f32 %v452, 1.0
  %v554 = vadd.f32 %v454, 1.0
  %v555 = vadd.f32 %v456, 1.0
  %v556 = vadd.f32 %v458, 1.0
  %v557 = vadd.f32 %v460, 1.0
  %v558 = vadd.f32 %v462, 1.0
  %v559 = vadd.f32 %v464, 1.0
  %v560 = vadd.f32 %v466, 1.0
  %v561 = vadd.f32 %v468, 1.0
  %v562 = vadd.f32 %v470, 1.0
  %v563 = vadd.f32 %v472, 1.0
  %v564 = vadd.f32 %v474, 1.0
  %v565 = vadd.f32 %v476, 1.0
  %v566 = vadd.f32 %v478, 1.0
  %v567 = vadd.f32 %v480, 1.0
  %v568 = vadd.f32 %v482, 1.0
  %v569 = vadd.f32 %v484, 1.0
  %v570 = vadd.f32 %v486, 1.0
  %v571 = vadd.f32 %v488, 1.0
  %v572 = vadd.f32 %v490, 1.0
  %v573 = vadd.f32 %v492, 1.0
  %v574 = vadd.f32 %v494, 1.0
  %v575 = vadd.f32 %v496, 1.0
  %v576 = vadd.f32 %v498, 1.0
  %v577 = vadd.f32 %v500, 1.0
  %v578 = vadd.f32 %v502, 1.0
  %v579 = vadd.f32 %v504, 1.0
  %v580 = vadd.f32 %v506, 1.0
  %v581 = vadd.f32 %v508, 1.0
  %v582 = vadd.f32 %v510, 1.0
  %v583 = vadd.f32 %v512, 1.0
  %v584 = vadd.f32 %v514, 1.0
  %v585 = vadd.f32 %v516, 1.0
  %v586 = vadd.f32 %v518, 1.0
  %v587 = vadd.f32 %v520, 1.0
  %v588 = vadd.f32 %v522, 1.0
  %v589 = vadd.f32 %v524, 1.0
  %v590 = vadd.f32 %v526, 1.0
  %v591 = vrcp.pop %v527
  %v592 = vmul.f32 %v527, %v591
  %v593 = vsub.f32 1.0, %v592
  %v594 = vmul.f32 %v591, %v593
  %v595 = vadd.f32 %v591, %v594
  %vm596 = vweird.f32 %v527
  %vm597 = vweird.f32 %v591
  %vm598 = vmor %vm596, %vm597
  %v599 = vsel %vm598, %v591, %v595
  %v600 = vand.u32 2147483647, %v527
  %vm601 = vcmp.eq.f32.partialorder %v600, 8.507059e+37
  %v602 = vand.u32 %v527, 2147483648
  %v603 = vor.u32 1.1754944e-38, %v602
  %v604 = vsel %vm601, %v603, %v599
  %v605 = vmul.f32 1.0, %v604
  %v606 = vrcp.pop %v528
  %v607 = vmul.f32 %v528, %v606
  %v608 = vsub.f32 1.0, %v607
  %v609 = vmul.f32 %v606, %v608
  %v610 = vadd.f32 %v606, %v609
  %vm611 = vweird.f32 %v528
  %vm612 = vweird.f32 %v606
  %vm613 = vmor %vm611, %vm612
  %v614 = vsel %vm613, %v606, %v610
  %v615 = vand.u32 2147483647, %v528
  %vm616 = vcmp.eq.f32.partialorder %v615, 8.507059e+37
  %v617 = vand.u32 %v528, 2147483648
  %v618 = vor.u32 1.1754944e-38, %v617
  %v619 = vsel %vm616, %v618, %v614
  %v620 = vmul.f32 1.0, %v619
  %v621 = vrcp.pop %v529
  %v622 = vmul.f32 %v529, %v621
  %v623 = vsub.f32 1.0, %v622
  %v624 = vmul.f32 %v621, %v623
  %v625 = vadd.f32 %v621, %v624
  %vm626 = vweird.f32 %v529
  %vm627 = vweird.f32 %v621
  %vm628 = vmor %vm626, %vm627
  %v629 = vsel %vm628, %v621, %v625
  %v630 = vand.u32 2147483647, %v529
  %vm631 = vcmp.eq.f32.partialorder %v630, 8.507059e+37
  %v632 = vand.u32 %v529, 2147483648
  %v633 = vor.u32 1.1754944e-38, %v632
  %v634 = vsel %vm631, %v633, %v629
  %v635 = vmul.f32 1.0, %v634
  %v636 = vrcp.pop %v530
  %v637 = vmul.f32 %v530, %v636
  %v638 = vsub.f32 1.0, %v637
  %v639 = vmul.f32 %v636, %v638
  %v640 = vadd.f32 %v636, %v639
  %vm641 = vweird.f32 %v530
  %vm642 = vweird.f32 %v636
  %vm643 = vmor %vm641, %vm642
  %v644 = vsel %vm643, %v636, %v640
  %v645 = vand.u32 2147483647, %v530
  %vm646 = vcmp.eq.f32.partialorder %v645, 8.507059e+37
  %v647 = vand.u32 %v530, 2147483648
  %v648 = vor.u32 1.1754944e-38, %v647
  %v649 = vsel %vm646, %v648, %v644
  %v650 = vmul.f32 1.0, %v649
  %v651 = vrcp.pop %v531
  %v652 = vmul.f32 %v531, %v651
  %v653 = vsub.f32 1.0, %v652
  %v654 = vmul.f32 %v651, %v653
  %v655 = vadd.f32 %v651, %v654
  %vm656 = vweird.f32 %v531
  %vm657 = vweird.f32 %v651
  %vm658 = vmor %vm656, %vm657
  %v659 = vsel %vm658, %v651, %v655
  %v660 = vand.u32 2147483647, %v531
  %vm661 = vcmp.eq.f32.partialorder %v660, 8.507059e+37
  %v662 = vand.u32 %v531, 2147483648
  %v663 = vor.u32 1.1754944e-38, %v662
  %v664 = vsel %vm661, %v663, %v659
  %v665 = vmul.f32 1.0, %v664
  %v666 = vrcp.pop %v532
  %v667 = vmul.f32 %v532, %v666
  %v668 = vsub.f32 1.0, %v667
  %v669 = vmul.f32 %v666, %v668
  %v670 = vadd.f32 %v666, %v669
  %vm671 = vweird.f32 %v532
  %vm672 = vweird.f32 %v666
  %vm673 = vmor %vm671, %vm672
  %v674 = vsel %vm673, %v666, %v670
  %v675 = vand.u32 2147483647, %v532
  %vm676 = vcmp.eq.f32.partialorder %v675, 8.507059e+37
  %v677 = vand.u32 %v532, 2147483648
  %v678 = vor.u32 1.1754944e-38, %v677
  %v679 = vsel %vm676, %v678, %v674
  %v680 = vmul.f32 1.0, %v679
  %v681 = vrcp.pop %v533
  %v682 = vmul.f32 %v533, %v681
  %v683 = vsub.f32 1.0, %v682
  %v684 = vmul.f32 %v681, %v683
  %v685 = vadd.f32 %v681, %v684
  %vm686 = vweird.f32 %v533
  %vm687 = vweird.f32 %v681
  %vm688 = vmor %vm686, %vm687
  %v689 = vsel %vm688, %v681, %v685
  %v690 = vand.u32 2147483647, %v533
  %vm691 = vcmp.eq.f32.partialorder %v690, 8.507059e+37
  %v692 = vand.u32 %v533, 2147483648
  %v693 = vor.u32 1.1754944e-38, %v692
  %v694 = vsel %vm691, %v693, %v689
  %v695 = vmul.f32 1.0, %v694
  %v696 = vrcp.pop %v534
  %v697 = vmul.f32 %v534, %v696
  %v698 = vsub.f32 1.0, %v697
  %v699 = vmul.f32 %v696, %v698
  %v700 = vadd.f32 %v696, %v699
  %vm701 = vweird.f32 %v534
  %vm702 = vweird.f32 %v696
  %vm703 = vmor %vm701, %vm702
  %v704 = vsel %vm703, %v696, %v700
  %v705 = vand.u32 2147483647, %v534
  %vm706 = vcmp.eq.f32.partialorder %v705, 8.507059e+37
  %v707 = vand.u32 %v534, 2147483648
  %v708 = vor.u32 1.1754944e-38, %v707
  %v709 = vsel %vm706, %v708, %v704
  %v710 = vmul.f32 1.0, %v709
  %v711 = vrcp.pop %v535
  %v712 = vmul.f32 %v535, %v711
  %v713 = vsub.f32 1.0, %v712
  %v714 = vmul.f32 %v711, %v713
  %v715 = vadd.f32 %v711, %v714
  %vm716 = vweird.f32 %v535
  %vm717 = vweird.f32 %v711
  %vm718 = vmor %vm716, %vm717
  %v719 = vsel %vm718, %v711, %v715
  %v720 = vand.u32 2147483647, %v535
  %vm721 = vcmp.eq.f32.partialorder %v720, 8.507059e+37
  %v722 = vand.u32 %v535, 2147483648
  %v723 = vor.u32 1.1754944e-38, %v722
  %v724 = vsel %vm721, %v723, %v719
  %v725 = vmul.f32 1.0, %v724
  %v726 = vrcp.pop %v536
  %v727 = vmul.f32 %v536, %v726
  %v728 = vsub.f32 1.0, %v727
  %v729 = vmul.f32 %v726, %v728
  %v730 = vadd.f32 %v726, %v729
  %vm731 = vweird.f32 %v536
  %vm732 = vweird.f32 %v726
  %vm733 = vmor %vm731, %vm732
  %v734 = vsel %vm733, %v726, %v730
  %v735 = vand.u32 2147483647, %v536
  %vm736 = vcmp.eq.f32.partialorder %v735, 8.507059e+37
  %v737 = vand.u32 %v536, 2147483648
  %v738 = vor.u32 1.1754944e-38, %v737
  %v739 = vsel %vm736, %v738, %v734
  %v740 = vmul.f32 1.0, %v739
  %v741 = vrcp.pop %v537
  %v742 = vmul.f32 %v537, %v741
  %v743 = vsub.f32 1.0, %v742
  %v744 = vmul.f32 %v741, %v743
  %v745 = vadd.f32 %v741, %v744
  %vm746 = vweird.f32 %v537
  %vm747 = vweird.f32 %v741
  %vm748 = vmor %vm746, %vm747
  %v749 = vsel %vm748, %v741, %v745
  %v750 = vand.u32 2147483647, %v537
  %vm751 = vcmp.eq.f32.partialorder %v750, 8.507059e+37
  %v752 = vand.u32 %v537, 2147483648
  %v753 = vor.u32 1.1754944e-38, %v752
  %v754 = vsel %vm751, %v753, %v749
  %v755 = vmul.f32 1.0, %v754
  %v756 = vrcp.pop %v538
  %v757 = vmul.f32 %v538, %v756
  %v758 = vsub.f32 1.0, %v757
  %v759 = vmul.f32 %v756, %v758
  %v760 = vadd.f32 %v756, %v759
  %vm761 = vweird.f32 %v538
  %vm762 = vweird.f32 %v756
  %vm763 = vmor %vm761, %vm762
  %v764 = vsel %vm763, %v756, %v760
  %v765 = vand.u32 2147483647, %v538
  %vm766 = vcmp.eq.f32.partialorder %v765, 8.507059e+37
  %v767 = vand.u32 %v538, 2147483648
  %v768 = vor.u32 1.1754944e-38, %v767
  %v769 = vsel %vm766, %v768, %v764
  %v770 = vmul.f32 1.0, %v769
  %v771 = vrcp.pop %v539
  %v772 = vmul.f32 %v539, %v771
  %v773 = vsub.f32 1.0, %v772
  %v774 = vmul.f32 %v771, %v773
  %v775 = vadd.f32 %v771, %v774
  %vm776 = vweird.f32 %v539
  %vm777 = vweird.f32 %v771
  %vm778 = vmor %vm776, %vm777
  %v779 = vsel %vm778, %v771, %v775
  %v780 = vand.u32 2147483647, %v539
  %vm781 = vcmp.eq.f32.partialorder %v780, 8.507059e+37
  %v782 = vand.u32 %v539, 2147483648
  %v783 = vor.u32 1.1754944e-38, %v782
  %v784 = vsel %vm781, %v783, %v779
  %v785 = vmul.f32 1.0, %v784
  %v786 = vrcp.pop %v540
  %v787 = vmul.f32 %v540, %v786
  %v788 = vsub.f32 1.0, %v787
  %v789 = vmul.f32 %v786, %v788
  %v790 = vadd.f32 %v786, %v789
  %vm791 = vweird.f32 %v540
  %vm792 = vweird.f32 %v786
  %vm793 = vmor %vm791, %vm792
  %v794 = vsel %vm793, %v786, %v790
  %v795 = vand.u32 2147483647, %v540
  %vm796 = vcmp.eq.f32.partialorder %v795, 8.507059e+37
  %v797 = vand.u32 %v540, 2147483648
  %v798 = vor.u32 1.1754944e-38, %v797
  %v799 = vsel %vm796, %v798, %v794
  %v800 = vmul.f32 1.0, %v799
  %v801 = vrcp.pop %v541
  %v802 = vmul.f32 %v541, %v801
  %v803 = vsub.f32 1.0, %v802
  %v804 = vmul.f32 %v801, %v803
  %v805 = vadd.f32 %v801, %v804
  %vm806 = vweird.f32 %v541
  %vm807 = vweird.f32 %v801
  %vm808 = vmor %vm806, %vm807
  %v809 = vsel %vm808, %v801, %v805
  %v810 = vand.u32 2147483647, %v541
  %vm811 = vcmp.eq.f32.partialorder %v810, 8.507059e+37
  %v812 = vand.u32 %v541, 2147483648
  %v813 = vor.u32 1.1754944e-38, %v812
  %v814 = vsel %vm811, %v813, %v809
  %v815 = vmul.f32 1.0, %v814
  %v816 = vrcp.pop %v542
  %v817 = vmul.f32 %v542, %v816
  %v818 = vsub.f32 1.0, %v817
  %v819 = vmul.f32 %v816, %v818
  %v820 = vadd.f32 %v816, %v819
  %vm821 = vweird.f32 %v542
  %vm822 = vweird.f32 %v816
  %vm823 = vmor %vm821, %vm822
  %v824 = vsel %vm823, %v816, %v820
  %v825 = vand.u32 2147483647, %v542
  %vm826 = vcmp.eq.f32.partialorder %v825, 8.507059e+37
  %v827 = vand.u32 %v542, 2147483648
  %v828 = vor.u32 1.1754944e-38, %v827
  %v829 = vsel %vm826, %v828, %v824
  %v830 = vmul.f32 1.0, %v829
  %v831 = vrcp.pop %v543
  %v832 = vmul.f32 %v543, %v831
  %v833 = vsub.f32 1.0, %v832
  %v834 = vmul.f32 %v831, %v833
  %v835 = vadd.f32 %v831, %v834
  %vm836 = vweird.f32 %v543
  %vm837 = vweird.f32 %v831
  %vm838 = vmor %vm836, %vm837
  %v839 = vsel %vm838, %v831, %v835
  %v840 = vand.u32 2147483647, %v543
  %vm841 = vcmp.eq.f32.partialorder %v840, 8.507059e+37
  %v842 = vand.u32 %v543, 2147483648
  %v843 = vor.u32 1.1754944e-38, %v842
  %v844 = vsel %vm841, %v843, %v839
  %v845 = vmul.f32 1.0, %v844
  %v846 = vrcp.pop %v544
  %v847 = vmul.f32 %v544, %v846
  %v848 = vsub.f32 1.0, %v847
  %v849 = vmul.f32 %v846, %v848
  %v850 = vadd.f32 %v846, %v849
  %vm851 = vweird.f32 %v544
  %vm852 = vweird.f32 %v846
  %vm853 = vmor %vm851, %vm852
  %v854 = vsel %vm853, %v846, %v850
  %v855 = vand.u32 2147483647, %v544
  %vm856 = vcmp.eq.f32.partialorder %v855, 8.507059e+37
  %v857 = vand.u32 %v544, 2147483648
  %v858 = vor.u32 1.1754944e-38, %v857
  %v859 = vsel %vm856, %v858, %v854
  %v860 = vmul.f32 1.0, %v859
  %v861 = vrcp.pop %v545
  %v862 = vmul.f32 %v545, %v861
  %v863 = vsub.f32 1.0, %v862
  %v864 = vmul.f32 %v861, %v863
  %v865 = vadd.f32 %v861, %v864
  %vm866 = vweird.f32 %v545
  %vm867 = vweird.f32 %v861
  %vm868 = vmor %vm866, %vm867
  %v869 = vsel %vm868, %v861, %v865
  %v870 = vand.u32 2147483647, %v545
  %vm871 = vcmp.eq.f32.partialorder %v870, 8.507059e+37
  %v872 = vand.u32 %v545, 2147483648
  %v873 = vor.u32 1.1754944e-38, %v872
  %v874 = vsel %vm871, %v873, %v869
  %v875 = vmul.f32 1.0, %v874
  %v876 = vrcp.pop %v546
  %v877 = vmul.f32 %v546, %v876
  %v878 = vsub.f32 1.0, %v877
  %v879 = vmul.f32 %v876, %v878
  %v880 = vadd.f32 %v876, %v879
  %vm881 = vweird.f32 %v546
  %vm882 = vweird.f32 %v876
  %vm883 = vmor %vm881, %vm882
  %v884 = vsel %vm883, %v876, %v880
  %v885 = vand.u32 2147483647, %v546
  %vm886 = vcmp.eq.f32.partialorder %v885, 8.507059e+37
  %v887 = vand.u32 %v546, 2147483648
  %v888 = vor.u32 1.1754944e-38, %v887
  %v889 = vsel %vm886, %v888, %v884
  %v890 = vmul.f32 1.0, %v889
  %v891 = vrcp.pop %v547
  %v892 = vmul.f32 %v547, %v891
  %v893 = vsub.f32 1.0, %v892
  %v894 = vmul.f32 %v891, %v893
  %v895 = vadd.f32 %v891, %v894
  %vm896 = vweird.f32 %v547
  %vm897 = vweird.f32 %v891
  %vm898 = vmor %vm896, %vm897
  %v899 = vsel %vm898, %v891, %v895
  %v900 = vand.u32 2147483647, %v547
  %vm901 = vcmp.eq.f32.partialorder %v900, 8.507059e+37
  %v902 = vand.u32 %v547, 2147483648
  %v903 = vor.u32 1.1754944e-38, %v902
  %v904 = vsel %vm901, %v903, %v899
  %v905 = vmul.f32 1.0, %v904
  %v906 = vrcp.pop %v548
  %v907 = vmul.f32 %v548, %v906
  %v908 = vsub.f32 1.0, %v907
  %v909 = vmul.f32 %v906, %v908
  %v910 = vadd.f32 %v906, %v909
  %vm911 = vweird.f32 %v548
  %vm912 = vweird.f32 %v906
  %vm913 = vmor %vm911, %vm912
  %v914 = vsel %vm913, %v906, %v910
  %v915 = vand.u32 2147483647, %v548
  %vm916 = vcmp.eq.f32.partialorder %v915, 8.507059e+37
  %v917 = vand.u32 %v548, 2147483648
  %v918 = vor.u32 1.1754944e-38, %v917
  %v919 = vsel %vm916, %v918, %v914
  %v920 = vmul.f32 1.0, %v919
  %v921 = vrcp.pop %v549
  %v922 = vmul.f32 %v549, %v921
  %v923 = vsub.f32 1.0, %v922
  %v924 = vmul.f32 %v921, %v923
  %v925 = vadd.f32 %v921, %v924
  %vm926 = vweird.f32 %v549
  %vm927 = vweird.f32 %v921
  %vm928 = vmor %vm926, %vm927
  %v929 = vsel %vm928, %v921, %v925
  %v930 = vand.u32 2147483647, %v549
  %vm931 = vcmp.eq.f32.partialorder %v930, 8.507059e+37
  %v932 = vand.u32 %v549, 2147483648
  %v933 = vor.u32 1.1754944e-38, %v932
  %v934 = vsel %vm931, %v933, %v929
  %v935 = vmul.f32 1.0, %v934
  %v936 = vrcp.pop %v550
  %v937 = vmul.f32 %v550, %v936
  %v938 = vsub.f32 1.0, %v937
  %v939 = vmul.f32 %v936, %v938
  %v940 = vadd.f32 %v936, %v939
  %vm941 = vweird.f32 %v550
  %vm942 = vweird.f32 %v936
  %vm943 = vmor %vm941, %vm942
  %v944 = vsel %vm943, %v936, %v940
  %v945 = vand.u32 2147483647, %v550
  %vm946 = vcmp.eq.f32.partialorder %v945, 8.507059e+37
  %v947 = vand.u32 %v550, 2147483648
  %v948 = vor.u32 1.1754944e-38, %v947
  %v949 = vsel %vm946, %v948, %v944
  %v950 = vmul.f32 1.0, %v949
  %v951 = vrcp.pop %v551
  %v952 = vmul.f32 %v551, %v951
  %v953 = vsub.f32 1.0, %v952
  %v954 = vmul.f32 %v951, %v953
  %v955 = vadd.f32 %v951, %v954
  %vm956 = vweird.f32 %v551
  %vm957 = vweird.f32 %v951
  %vm958 = vmor %vm956, %vm957
  %v959 = vsel %vm958, %v951, %v955
  %v960 = vand.u32 2147483647, %v551
  %vm961 = vcmp.eq.f32.partialorder %v960, 8.507059e+37
  %v962 = vand.u32 %v551, 2147483648
  %v963 = vor.u32 1.1754944e-38, %v962
  %v964 = vsel %vm961, %v963, %v959
  %v965 = vmul.f32 1.0, %v964
  %v966 = vrcp.pop %v552
  %v967 = vmul.f32 %v552, %v966
  %v968 = vsub.f32 1.0, %v967
  %v969 = vmul.f32 %v966, %v968
  %v970 = vadd.f32 %v966, %v969
  %vm971 = vweird.f32 %v552
  %vm972 = vweird.f32 %v966
  %vm973 = vmor %vm971, %vm972
  %v974 = vsel %vm973, %v966, %v970
  %v975 = vand.u32 2147483647, %v552
  %vm976 = vcmp.eq.f32.partialorder %v975, 8.507059e+37
  %v977 = vand.u32 %v552, 2147483648
  %v978 = vor.u32 1.1754944e-38, %v977
  %v979 = vsel %vm976, %v978, %v974
  %v980 = vmul.f32 1.0, %v979
  %v981 = vrcp.pop %v553
  %v982 = vmul.f32 %v553, %v981
  %v983 = vsub.f32 1.0, %v982
  %v984 = vmul.f32 %v981, %v983
  %v985 = vadd.f32 %v981, %v984
  %vm986 = vweird.f32 %v553
  %vm987 = vweird.f32 %v981
  %vm988 = vmor %vm986, %vm987
  %v989 = vsel %vm988, %v981, %v985
  %v990 = vand.u32 2147483647, %v553
  %vm991 = vcmp.eq.f32.partialorder %v990, 8.507059e+37
  %v992 = vand.u32 %v553, 2147483648
  %v993 = vor.u32 1.1754944e-38, %v992
  %v994 = vsel %vm991, %v993, %v989
  %v995 = vmul.f32 1.0, %v994
  %v996 = vrcp.pop %v554
  %v997 = vmul.f32 %v554, %v996
  %v998 = vsub.f32 1.0, %v997
  %v999 = vmul.f32 %v996, %v998
  %v1000 = vadd.f32 %v996, %v999
  %vm1001 = vweird.f32 %v554
  %vm1002 = vweird.f32 %v996
  %vm1003 = vmor %vm1001, %vm1002
  %v1004 = vsel %vm1003, %v996, %v1000
  %v1005 = vand.u32 2147483647, %v554
  %vm1006 = vcmp.eq.f32.partialorder %v1005, 8.507059e+37
  %v1007 = vand.u32 %v554, 2147483648
  %v1008 = vor.u32 1.1754944e-38, %v1007
  %v1009 = vsel %vm1006, %v1008, %v1004
  %v1010 = vmul.f32 1.0, %v1009
  %v1011 = vrcp.pop %v555
  %v1012 = vmul.f32 %v555, %v1011
  %v1013 = vsub.f32 1.0, %v1012
  %v1014 = vmul.f32 %v1011, %v1013
  %v1015 = vadd.f32 %v1011, %v1014
  %vm1016 = vweird.f32 %v555
  %vm1017 = vweird.f32 %v1011
  %vm1018 = vmor %vm1016, %vm1017
  %v1019 = vsel %vm1018, %v1011, %v1015
  %v1020 = vand.u32 2147483647, %v555
  %vm1021 = vcmp.eq.f32.partialorder %v1020, 8.507059e+37
  %v1022 = vand.u32 %v555, 2147483648
  %v1023 = vor.u32 1.1754944e-38, %v1022
  %v1024 = vsel %vm1021, %v1023, %v1019
  %v1025 = vmul.f32 1.0, %v1024
  %v1026 = vrcp.pop %v556
  %v1027 = vmul.f32 %v556, %v1026
  %v1028 = vsub.f32 1.0, %v1027
  %v1029 = vmul.f32 %v1026, %v1028
  %v1030 = vadd.f32 %v1026, %v1029
  %vm1031 = vweird.f32 %v556
  %vm1032 = vweird.f32 %v1026
  %vm1033 = vmor %vm1031, %vm1032
  %v1034 = vsel %vm1033, %v1026, %v1030
  %v1035 = vand.u32 2147483647, %v556
  %vm1036 = vcmp.eq.f32.partialorder %v1035, 8.507059e+37
  %v1037 = vand.u32 %v556, 2147483648
  %v1038 = vor.u32 1.1754944e-38, %v1037
  %v1039 = vsel %vm1036, %v1038, %v1034
  %v1040 = vmul.f32 1.0, %v1039
  %v1041 = vrcp.pop %v557
  %v1042 = vmul.f32 %v557, %v1041
  %v1043 = vsub.f32 1.0, %v1042
  %v1044 = vmul.f32 %v1041, %v1043
  %v1045 = vadd.f32 %v1041, %v1044
  %vm1046 = vweird.f32 %v557
  %vm1047 = vweird.f32 %v1041
  %vm1048 = vmor %vm1046, %vm1047
  %v1049 = vsel %vm1048, %v1041, %v1045
  %v1050 = vand.u32 2147483647, %v557
  %vm1051 = vcmp.eq.f32.partialorder %v1050, 8.507059e+37
  %v1052 = vand.u32 %v557, 2147483648
  %v1053 = vor.u32 1.1754944e-38, %v1052
  %v1054 = vsel %vm1051, %v1053, %v1049
  %v1055 = vmul.f32 1.0, %v1054
  %v1056 = vrcp.pop %v558
  %v1057 = vmul.f32 %v558, %v1056
  %v1058 = vsub.f32 1.0, %v1057
  %v1059 = vmul.f32 %v1056, %v1058
  %v1060 = vadd.f32 %v1056, %v1059
  %vm1061 = vweird.f32 %v558
  %vm1062 = vweird.f32 %v1056
  %vm1063 = vmor %vm1061, %vm1062
  %v1064 = vsel %vm1063, %v1056, %v1060
  %v1065 = vand.u32 2147483647, %v558
  %vm1066 = vcmp.eq.f32.partialorder %v1065, 8.507059e+37
  %v1067 = vand.u32 %v558, 2147483648
  %v1068 = vor.u32 1.1754944e-38, %v1067
  %v1069 = vsel %vm1066, %v1068, %v1064
  %v1070 = vmul.f32 1.0, %v1069
  %v1071 = vrcp.pop %v559
  %v1072 = vmul.f32 %v559, %v1071
  %v1073 = vsub.f32 1.0, %v1072
  %v1074 = vmul.f32 %v1071, %v1073
  %v1075 = vadd.f32 %v1071, %v1074
  %vm1076 = vweird.f32 %v559
  %vm1077 = vweird.f32 %v1071
  %vm1078 = vmor %vm1076, %vm1077
  %v1079 = vsel %vm1078, %v1071, %v1075
  %v1080 = vand.u32 2147483647, %v559
  %vm1081 = vcmp.eq.f32.partialorder %v1080, 8.507059e+37
  %v1082 = vand.u32 %v559, 2147483648
  %v1083 = vor.u32 1.1754944e-38, %v1082
  %v1084 = vsel %vm1081, %v1083, %v1079
  %v1085 = vmul.f32 1.0, %v1084
  %v1086 = vrcp.pop %v560
  %v1087 = vmul.f32 %v560, %v1086
  %v1088 = vsub.f32 1.0, %v1087
  %v1089 = vmul.f32 %v1086, %v1088
  %v1090 = vadd.f32 %v1086, %v1089
  %vm1091 = vweird.f32 %v560
  %vm1092 = vweird.f32 %v1086
  %vm1093 = vmor %vm1091, %vm1092
  %v1094 = vsel %vm1093, %v1086, %v1090
  %v1095 = vand.u32 2147483647, %v560
  %vm1096 = vcmp.eq.f32.partialorder %v1095, 8.507059e+37
  %v1097 = vand.u32 %v560, 2147483648
  %v1098 = vor.u32 1.1754944e-38, %v1097
  %v1099 = vsel %vm1096, %v1098, %v1094
  %v1100 = vmul.f32 1.0, %v1099
  %v1101 = vrcp.pop %v561
  %v1102 = vmul.f32 %v561, %v1101
  %v1103 = vsub.f32 1.0, %v1102
  %v1104 = vmul.f32 %v1101, %v1103
  %v1105 = vadd.f32 %v1101, %v1104
  %vm1106 = vweird.f32 %v561
  %vm1107 = vweird.f32 %v1101
  %vm1108 = vmor %vm1106, %vm1107
  %v1109 = vsel %vm1108, %v1101, %v1105
  %v1110 = vand.u32 2147483647, %v561
  %vm1111 = vcmp.eq.f32.partialorder %v1110, 8.507059e+37
  %v1112 = vand.u32 %v561, 2147483648
  %v1113 = vor.u32 1.1754944e-38, %v1112
  %v1114 = vsel %vm1111, %v1113, %v1109
  %v1115 = vmul.f32 1.0, %v1114
  %v1116 = vrcp.pop %v562
  %v1117 = vmul.f32 %v562, %v1116
  %v1118 = vsub.f32 1.0, %v1117
  %v1119 = vmul.f32 %v1116, %v1118
  %v1120 = vadd.f32 %v1116, %v1119
  %vm1121 = vweird.f32 %v562
  %vm1122 = vweird.f32 %v1116
  %vm1123 = vmor %vm1121, %vm1122
  %v1124 = vsel %vm1123, %v1116, %v1120
  %v1125 = vand.u32 2147483647, %v562
  %vm1126 = vcmp.eq.f32.partialorder %v1125, 8.507059e+37
  %v1127 = vand.u32 %v562, 2147483648
  %v1128 = vor.u32 1.1754944e-38, %v1127
  %v1129 = vsel %vm1126, %v1128, %v1124
  %v1130 = vmul.f32 1.0, %v1129
  %v1131 = vrcp.pop %v563
  %v1132 = vmul.f32 %v563, %v1131
  %v1133 = vsub.f32 1.0, %v1132
  %v1134 = vmul.f32 %v1131, %v1133
  %v1135 = vadd.f32 %v1131, %v1134
  %vm1136 = vweird.f32 %v563
  %vm1137 = vweird.f32 %v1131
  %vm1138 = vmor %vm1136, %vm1137
  %v1139 = vsel %vm1138, %v1131, %v1135
  %v1140 = vand.u32 2147483647, %v563
  %vm1141 = vcmp.eq.f32.partialorder %v1140, 8.507059e+37
  %v1142 = vand.u32 %v563, 2147483648
  %v1143 = vor.u32 1.1754944e-38, %v1142
  %v1144 = vsel %vm1141, %v1143, %v1139
  %v1145 = vmul.f32 1.0, %v1144
  %v1146 = vrcp.pop %v564
  %v1147 = vmul.f32 %v564, %v1146
  %v1148 = vsub.f32 1.0, %v1147
  %v1149 = vmul.f32 %v1146, %v1148
  %v1150 = vadd.f32 %v1146, %v1149
  %vm1151 = vweird.f32 %v564
  %vm1152 = vweird.f32 %v1146
  %vm1153 = vmor %vm1151, %vm1152
  %v1154 = vsel %vm1153, %v1146, %v1150
  %v1155 = vand.u32 2147483647, %v564
  %vm1156 = vcmp.eq.f32.partialorder %v1155, 8.507059e+37
  %v1157 = vand.u32 %v564, 2147483648
  %v1158 = vor.u32 1.1754944e-38, %v1157
  %v1159 = vsel %vm1156, %v1158, %v1154
  %v1160 = vmul.f32 1.0, %v1159
  %v1161 = vrcp.pop %v565
  %v1162 = vmul.f32 %v565, %v1161
  %v1163 = vsub.f32 1.0, %v1162
  %v1164 = vmul.f32 %v1161, %v1163
  %v1165 = vadd.f32 %v1161, %v1164
  %vm1166 = vweird.f32 %v565
  %vm1167 = vweird.f32 %v1161
  %vm1168 = vmor %vm1166, %vm1167
  %v1169 = vsel %vm1168, %v1161, %v1165
  %v1170 = vand.u32 2147483647, %v565
  %vm1171 = vcmp.eq.f32.partialorder %v1170, 8.507059e+37
  %v1172 = vand.u32 %v565, 2147483648
  %v1173 = vor.u32 1.1754944e-38, %v1172
  %v1174 = vsel %vm1171, %v1173, %v1169
  %v1175 = vmul.f32 1.0, %v1174
  %v1176 = vrcp.pop %v566
  %v1177 = vmul.f32 %v566, %v1176
  %v1178 = vsub.f32 1.0, %v1177
  %v1179 = vmul.f32 %v1176, %v1178
  %v1180 = vadd.f32 %v1176, %v1179
  %vm1181 = vweird.f32 %v566
  %vm1182 = vweird.f32 %v1176
  %vm1183 = vmor %vm1181, %vm1182
  %v1184 = vsel %vm1183, %v1176, %v1180
  %v1185 = vand.u32 2147483647, %v566
  %vm1186 = vcmp.eq.f32.partialorder %v1185, 8.507059e+37
  %v1187 = vand.u32 %v566, 2147483648
  %v1188 = vor.u32 1.1754944e-38, %v1187
  %v1189 = vsel %vm1186, %v1188, %v1184
  %v1190 = vmul.f32 1.0, %v1189
  %v1191 = vrcp.pop %v567
  %v1192 = vmul.f32 %v567, %v1191
  %v1193 = vsub.f32 1.0, %v1192
  %v1194 = vmul.f32 %v1191, %v1193
  %v1195 = vadd.f32 %v1191, %v1194
  %vm1196 = vweird.f32 %v567
  %vm1197 = vweird.f32 %v1191
  %vm1198 = vmor %vm1196, %vm1197
  %v1199 = vsel %vm1198, %v1191, %v1195
  %v1200 = vand.u32 2147483647, %v567
  %vm1201 = vcmp.eq.f32.partialorder %v1200, 8.507059e+37
  %v1202 = vand.u32 %v567, 2147483648
  %v1203 = vor.u32 1.1754944e-38, %v1202
  %v1204 = vsel %vm1201, %v1203, %v1199
  %v1205 = vmul.f32 1.0, %v1204
  %v1206 = vrcp.pop %v568
  %v1207 = vmul.f32 %v568, %v1206
  %v1208 = vsub.f32 1.0, %v1207
  %v1209 = vmul.f32 %v1206, %v1208
  %v1210 = vadd.f32 %v1206, %v1209
  %vm1211 = vweird.f32 %v568
  %vm1212 = vweird.f32 %v1206
  %vm1213 = vmor %vm1211, %vm1212
  %v1214 = vsel %vm1213, %v1206, %v1210
  %v1215 = vand.u32 2147483647, %v568
  %vm1216 = vcmp.eq.f32.partialorder %v1215, 8.507059e+37
  %v1217 = vand.u32 %v568, 2147483648
  %v1218 = vor.u32 1.1754944e-38, %v1217
  %v1219 = vsel %vm1216, %v1218, %v1214
  %v1220 = vmul.f32 1.0, %v1219
  %v1221 = vrcp.pop %v569
  %v1222 = vmul.f32 %v569, %v1221
  %v1223 = vsub.f32 1.0, %v1222
  %v1224 = vmul.f32 %v1221, %v1223
  %v1225 = vadd.f32 %v1221, %v1224
  %vm1226 = vweird.f32 %v569
  %vm1227 = vweird.f32 %v1221
  %vm1228 = vmor %vm1226, %vm1227
  %v1229 = vsel %vm1228, %v1221, %v1225
  %v1230 = vand.u32 2147483647, %v569
  %vm1231 = vcmp.eq.f32.partialorder %v1230, 8.507059e+37
  %v1232 = vand.u32 %v569, 2147483648
  %v1233 = vor.u32 1.1754944e-38, %v1232
  %v1234 = vsel %vm1231, %v1233, %v1229
  %v1235 = vmul.f32 1.0, %v1234
  %v1236 = vrcp.pop %v570
  %v1237 = vmul.f32 %v570, %v1236
  %v1238 = vsub.f32 1.0, %v1237
  %v1239 = vmul.f32 %v1236, %v1238
  %v1240 = vadd.f32 %v1236, %v1239
  %vm1241 = vweird.f32 %v570
  %vm1242 = vweird.f32 %v1236
  %vm1243 = vmor %vm1241, %vm1242
  %v1244 = vsel %vm1243, %v1236, %v1240
  %v1245 = vand.u32 2147483647, %v570
  %vm1246 = vcmp.eq.f32.partialorder %v1245, 8.507059e+37
  %v1247 = vand.u32 %v570, 2147483648
  %v1248 = vor.u32 1.1754944e-38, %v1247
  %v1249 = vsel %vm1246, %v1248, %v1244
  %v1250 = vmul.f32 1.0, %v1249
  %v1251 = vrcp.pop %v571
  %v1252 = vmul.f32 %v571, %v1251
  %v1253 = vsub.f32 1.0, %v1252
  %v1254 = vmul.f32 %v1251, %v1253
  %v1255 = vadd.f32 %v1251, %v1254
  %vm1256 = vweird.f32 %v571
  %vm1257 = vweird.f32 %v1251
  %vm1258 = vmor %vm1256, %vm1257
  %v1259 = vsel %vm1258, %v1251, %v1255
  %v1260 = vand.u32 2147483647, %v571
  %vm1261 = vcmp.eq.f32.partialorder %v1260, 8.507059e+37
  %v1262 = vand.u32 %v571, 2147483648
  %v1263 = vor.u32 1.1754944e-38, %v1262
  %v1264 = vsel %vm1261, %v1263, %v1259
  %v1265 = vmul.f32 1.0, %v1264
  %v1266 = vrcp.pop %v572
  %v1267 = vmul.f32 %v572, %v1266
  %v1268 = vsub.f32 1.0, %v1267
  %v1269 = vmul.f32 %v1266, %v1268
  %v1270 = vadd.f32 %v1266, %v1269
  %vm1271 = vweird.f32 %v572
  %vm1272 = vweird.f32 %v1266
  %vm1273 = vmor %vm1271, %vm1272
  %v1274 = vsel %vm1273, %v1266, %v1270
  %v1275 = vand.u32 2147483647, %v572
  %vm1276 = vcmp.eq.f32.partialorder %v1275, 8.507059e+37
  %v1277 = vand.u32 %v572, 2147483648
  %v1278 = vor.u32 1.1754944e-38, %v1277
  %v1279 = vsel %vm1276, %v1278, %v1274
  %v1280 = vmul.f32 1.0, %v1279
  %v1281 = vrcp.pop %v573
  %v1282 = vmul.f32 %v573, %v1281
  %v1283 = vsub.f32 1.0, %v1282
  %v1284 = vmul.f32 %v1281, %v1283
  %v1285 = vadd.f32 %v1281, %v1284
  %vm1286 = vweird.f32 %v573
  %vm1287 = vweird.f32 %v1281
  %vm1288 = vmor %vm1286, %vm1287
  %v1289 = vsel %vm1288, %v1281, %v1285
  %v1290 = vand.u32 2147483647, %v573
  %vm1291 = vcmp.eq.f32.partialorder %v1290, 8.507059e+37
  %v1292 = vand.u32 %v573, 2147483648
  %v1293 = vor.u32 1.1754944e-38, %v1292
  %v1294 = vsel %vm1291, %v1293, %v1289
  %v1295 = vmul.f32 1.0, %v1294
  %v1296 = vrcp.pop %v574
  %v1297 = vmul.f32 %v574, %v1296
  %v1298 = vsub.f32 1.0, %v1297
  %v1299 = vmul.f32 %v1296, %v1298
  %v1300 = vadd.f32 %v1296, %v1299
  %vm1301 = vweird.f32 %v574
  %vm1302 = vweird.f32 %v1296
  %vm1303 = vmor %vm1301, %vm1302
  %v1304 = vsel %vm1303, %v1296, %v1300
  %v1305 = vand.u32 2147483647, %v574
  %vm1306 = vcmp.eq.f32.partialorder %v1305, 8.507059e+37
  %v1307 = vand.u32 %v574, 2147483648
  %v1308 = vor.u32 1.1754944e-38, %v1307
  %v1309 = vsel %vm1306, %v1308, %v1304
  %v1310 = vmul.f32 1.0, %v1309
  %v1311 = vrcp.pop %v575
  %v1312 = vmul.f32 %v575, %v1311
  %v1313 = vsub.f32 1.0, %v1312
  %v1314 = vmul.f32 %v1311, %v1313
  %v1315 = vadd.f32 %v1311, %v1314
  %vm1316 = vweird.f32 %v575
  %vm1317 = vweird.f32 %v1311
  %vm1318 = vmor %vm1316, %vm1317
  %v1319 = vsel %vm1318, %v1311, %v1315
  %v1320 = vand.u32 2147483647, %v575
  %vm1321 = vcmp.eq.f32.partialorder %v1320, 8.507059e+37
  %v1322 = vand.u32 %v575, 2147483648
  %v1323 = vor.u32 1.1754944e-38, %v1322
  %v1324 = vsel %vm1321, %v1323, %v1319
  %v1325 = vmul.f32 1.0, %v1324
  %v1326 = vrcp.pop %v576
  %v1327 = vmul.f32 %v576, %v1326
  %v1328 = vsub.f32 1.0, %v1327
  %v1329 = vmul.f32 %v1326, %v1328
  %v1330 = vadd.f32 %v1326, %v1329
  %vm1331 = vweird.f32 %v576
  %vm1332 = vweird.f32 %v1326
  %vm1333 = vmor %vm1331, %vm1332
  %v1334 = vsel %vm1333, %v1326, %v1330
  %v1335 = vand.u32 2147483647, %v576
  %vm1336 = vcmp.eq.f32.partialorder %v1335, 8.507059e+37
  %v1337 = vand.u32 %v576, 2147483648
  %v1338 = vor.u32 1.1754944e-38, %v1337
  %v1339 = vsel %vm1336, %v1338, %v1334
  %v1340 = vmul.f32 1.0, %v1339
  %v1341 = vrcp.pop %v577
  %v1342 = vmul.f32 %v577, %v1341
  %v1343 = vsub.f32 1.0, %v1342
  %v1344 = vmul.f32 %v1341, %v1343
  %v1345 = vadd.f32 %v1341, %v1344
  %vm1346 = vweird.f32 %v577
  %vm1347 = vweird.f32 %v1341
  %vm1348 = vmor %vm1346, %vm1347
  %v1349 = vsel %vm1348, %v1341, %v1345
  %v1350 = vand.u32 2147483647, %v577
  %vm1351 = vcmp.eq.f32.partialorder %v1350, 8.507059e+37
  %v1352 = vand.u32 %v577, 2147483648
  %v1353 = vor.u32 1.1754944e-38, %v1352
  %v1354 = vsel %vm1351, %v1353, %v1349
  %v1355 = vmul.f32 1.0, %v1354
  %v1356 = vrcp.pop %v578
  %v1357 = vmul.f32 %v578, %v1356
  %v1358 = vsub.f32 1.0, %v1357
  %v1359 = vmul.f32 %v1356, %v1358
  %v1360 = vadd.f32 %v1356, %v1359
  %vm1361 = vweird.f32 %v578
  %vm1362 = vweird.f32 %v1356
  %vm1363 = vmor %vm1361, %vm1362
  %v1364 = vsel %vm1363, %v1356, %v1360
  %v1365 = vand.u32 2147483647, %v578
  %vm1366 = vcmp.eq.f32.partialorder %v1365, 8.507059e+37
  %v1367 = vand.u32 %v578, 2147483648
  %v1368 = vor.u32 1.1754944e-38, %v1367
  %v1369 = vsel %vm1366, %v1368, %v1364
  %v1370 = vmul.f32 1.0, %v1369
  %v1371 = vrcp.pop %v579
  %v1372 = vmul.f32 %v579, %v1371
  %v1373 = vsub.f32 1.0, %v1372
  %v1374 = vmul.f32 %v1371, %v1373
  %v1375 = vadd.f32 %v1371, %v1374
  %vm1376 = vweird.f32 %v579
  %vm1377 = vweird.f32 %v1371
  %vm1378 = vmor %vm1376, %vm1377
  %v1379 = vsel %vm1378, %v1371, %v1375
  %v1380 = vand.u32 2147483647, %v579
  %vm1381 = vcmp.eq.f32.partialorder %v1380, 8.507059e+37
  %v1382 = vand.u32 %v579, 2147483648
  %v1383 = vor.u32 1.1754944e-38, %v1382
  %v1384 = vsel %vm1381, %v1383, %v1379
  %v1385 = vmul.f32 1.0, %v1384
  %v1386 = vrcp.pop %v580
  %v1387 = vmul.f32 %v580, %v1386
  %v1388 = vsub.f32 1.0, %v1387
  %v1389 = vmul.f32 %v1386, %v1388
  %v1390 = vadd.f32 %v1386, %v1389
  %vm1391 = vweird.f32 %v580
  %vm1392 = vweird.f32 %v1386
  %vm1393 = vmor %vm1391, %vm1392
  %v1394 = vsel %vm1393, %v1386, %v1390
  %v1395 = vand.u32 2147483647, %v580
  %vm1396 = vcmp.eq.f32.partialorder %v1395, 8.507059e+37
  %v1397 = vand.u32 %v580, 2147483648
  %v1398 = vor.u32 1.1754944e-38, %v1397
  %v1399 = vsel %vm1396, %v1398, %v1394
  %v1400 = vmul.f32 1.0, %v1399
  %v1401 = vrcp.pop %v581
  %v1402 = vmul.f32 %v581, %v1401
  %v1403 = vsub.f32 1.0, %v1402
  %v1404 = vmul.f32 %v1401, %v1403
  %v1405 = vadd.f32 %v1401, %v1404
  %vm1406 = vweird.f32 %v581
  %vm1407 = vweird.f32 %v1401
  %vm1408 = vmor %vm1406, %vm1407
  %v1409 = vsel %vm1408, %v1401, %v1405
  %v1410 = vand.u32 2147483647, %v581
  %vm1411 = vcmp.eq.f32.partialorder %v1410, 8.507059e+37
  %v1412 = vand.u32 %v581, 2147483648
  %v1413 = vor.u32 1.1754944e-38, %v1412
  %v1414 = vsel %vm1411, %v1413, %v1409
  %v1415 = vmul.f32 1.0, %v1414
  %v1416 = vrcp.pop %v582
  %v1417 = vmul.f32 %v582, %v1416
  %v1418 = vsub.f32 1.0, %v1417
  %v1419 = vmul.f32 %v1416, %v1418
  %v1420 = vadd.f32 %v1416, %v1419
  %vm1421 = vweird.f32 %v582
  %vm1422 = vweird.f32 %v1416
  %vm1423 = vmor %vm1421, %vm1422
  %v1424 = vsel %vm1423, %v1416, %v1420
  %v1425 = vand.u32 2147483647, %v582
  %vm1426 = vcmp.eq.f32.partialorder %v1425, 8.507059e+37
  %v1427 = vand.u32 %v582, 2147483648
  %v1428 = vor.u32 1.1754944e-38, %v1427
  %v1429 = vsel %vm1426, %v1428, %v1424
  %v1430 = vmul.f32 1.0, %v1429
  %v1431 = vrcp.pop %v583
  %v1432 = vmul.f32 %v583, %v1431
  %v1433 = vsub.f32 1.0, %v1432
  %v1434 = vmul.f32 %v1431, %v1433
  %v1435 = vadd.f32 %v1431, %v1434
  %vm1436 = vweird.f32 %v583
  %vm1437 = vweird.f32 %v1431
  %vm1438 = vmor %vm1436, %vm1437
  %v1439 = vsel %vm1438, %v1431, %v1435
  %v1440 = vand.u32 2147483647, %v583
  %vm1441 = vcmp.eq.f32.partialorder %v1440, 8.507059e+37
  %v1442 = vand.u32 %v583, 2147483648
  %v1443 = vor.u32 1.1754944e-38, %v1442
  %v1444 = vsel %vm1441, %v1443, %v1439
  %v1445 = vmul.f32 1.0, %v1444
  %v1446 = vrcp.pop %v584
  %v1447 = vmul.f32 %v584, %v1446
  %v1448 = vsub.f32 1.0, %v1447
  %v1449 = vmul.f32 %v1446, %v1448
  %v1450 = vadd.f32 %v1446, %v1449
  %vm1451 = vweird.f32 %v584
  %vm1452 = vweird.f32 %v1446
  %vm1453 = vmor %vm1451, %vm1452
  %v1454 = vsel %vm1453, %v1446, %v1450
  %v1455 = vand.u32 2147483647, %v584
  %vm1456 = vcmp.eq.f32.partialorder %v1455, 8.507059e+37
  %v1457 = vand.u32 %v584, 2147483648
  %v1458 = vor.u32 1.1754944e-38, %v1457
  %v1459 = vsel %vm1456, %v1458, %v1454
  %v1460 = vmul.f32 1.0, %v1459
  %v1461 = vrcp.pop %v585
  %v1462 = vmul.f32 %v585, %v1461
  %v1463 = vsub.f32 1.0, %v1462
  %v1464 = vmul.f32 %v1461, %v1463
  %v1465 = vadd.f32 %v1461, %v1464
  %vm1466 = vweird.f32 %v585
  %vm1467 = vweird.f32 %v1461
  %vm1468 = vmor %vm1466, %vm1467
  %v1469 = vsel %vm1468, %v1461, %v1465
  %v1470 = vand.u32 2147483647, %v585
  %vm1471 = vcmp.eq.f32.partialorder %v1470, 8.507059e+37
  %v1472 = vand.u32 %v585, 2147483648
  %v1473 = vor.u32 1.1754944e-38, %v1472
  %v1474 = vsel %vm1471, %v1473, %v1469
  %v1475 = vmul.f32 1.0, %v1474
  %v1476 = vrcp.pop %v586
  %v1477 = vmul.f32 %v586, %v1476
  %v1478 = vsub.f32 1.0, %v1477
  %v1479 = vmul.f32 %v1476, %v1478
  %v1480 = vadd.f32 %v1476, %v1479
  %vm1481 = vweird.f32 %v586
  %vm1482 = vweird.f32 %v1476
  %vm1483 = vmor %vm1481, %vm1482
  %v1484 = vsel %vm1483, %v1476, %v1480
  %v1485 = vand.u32 2147483647, %v586
  %vm1486 = vcmp.eq.f32.partialorder %v1485, 8.507059e+37
  %v1487 = vand.u32 %v586, 2147483648
  %v1488 = vor.u32 1.1754944e-38, %v1487
  %v1489 = vsel %vm1486, %v1488, %v1484
  %v1490 = vmul.f32 1.0, %v1489
  %v1491 = vrcp.pop %v587
  %v1492 = vmul.f32 %v587, %v1491
  %v1493 = vsub.f32 1.0, %v1492
  %v1494 = vmul.f32 %v1491, %v1493
  %v1495 = vadd.f32 %v1491, %v1494
  %vm1496 = vweird.f32 %v587
  %vm1497 = vweird.f32 %v1491
  %vm1498 = vmor %vm1496, %vm1497
  %v1499 = vsel %vm1498, %v1491, %v1495
  %v1500 = vand.u32 2147483647, %v587
  %vm1501 = vcmp.eq.f32.partialorder %v1500, 8.507059e+37
  %v1502 = vand.u32 %v587, 2147483648
  %v1503 = vor.u32 1.1754944e-38, %v1502
  %v1504 = vsel %vm1501, %v1503, %v1499
  %v1505 = vmul.f32 1.0, %v1504
  %v1506 = vrcp.pop %v588
  %v1507 = vmul.f32 %v588, %v1506
  %v1508 = vsub.f32 1.0, %v1507
  %v1509 = vmul.f32 %v1506, %v1508
  %v1510 = vadd.f32 %v1506, %v1509
  %vm1511 = vweird.f32 %v588
  %vm1512 = vweird.f32 %v1506
  %vm1513 = vmor %vm1511, %vm1512
  %v1514 = vsel %vm1513, %v1506, %v1510
  %v1515 = vand.u32 2147483647, %v588
  %vm1516 = vcmp.eq.f32.partialorder %v1515, 8.507059e+37
  %v1517 = vand.u32 %v588, 2147483648
  %v1518 = vor.u32 1.1754944e-38, %v1517
  %v1519 = vsel %vm1516, %v1518, %v1514
  %v1520 = vmul.f32 1.0, %v1519
  %v1521 = vrcp.pop %v589
  %v1522 = vmul.f32 %v589, %v1521
  %v1523 = vsub.f32 1.0, %v1522
  %v1524 = vmul.f32 %v1521, %v1523
  %v1525 = vadd.f32 %v1521, %v1524
  %vm1526 = vweird.f32 %v589
  %vm1527 = vweird.f32 %v1521
  %vm1528 = vmor %vm1526, %vm1527
  %v1529 = vsel %vm1528, %v1521, %v1525
  %v1530 = vand.u32 2147483647, %v589
  %vm1531 = vcmp.eq.f32.partialorder %v1530, 8.507059e+37
  %v1532 = vand.u32 %v589, 2147483648
  %v1533 = vor.u32 1.1754944e-38, %v1532
  %v1534 = vsel %vm1531, %v1533, %v1529
  %v1535 = vmul.f32 1.0, %v1534
  %v1536 = vrcp.pop %v590
  %v1537 = vmul.f32 %v590, %v1536
  %v1538 = vsub.f32 1.0, %v1537
  %v1539 = vmul.f32 %v1536, %v1538
  %v1540 = vadd.f32 %v1536, %v1539
  %vm1541 = vweird.f32 %v590
  %vm1542 = vweird.f32 %v1536
  %vm1543 = vmor %vm1541, %vm1542
  %v1544 = vsel %vm1543, %v1536, %v1540
  %v1545 = vand.u32 2147483647, %v590
  %vm1546 = vcmp.eq.f32.partialorder %v1545, 8.507059e+37
  %v1547 = vand.u32 %v590, 2147483648
  %v1548 = vor.u32 1.1754944e-38, %v1547
  %v1549 = vsel %vm1546, %v1548, %v1544
  %v1550 = vmul.f32 1.0, %v1549
  %v1551 = vadd.f32 %v310, %v311
  %v1552 = vperm.slane %v310, 0
  %v1553 = vmul.f32 %v1552, %v317
  %v1554 = vmul.f32 %v1552, %v318
  %v1555 = vadd.f32 %v605, %v1553
  %v1556 = vadd.f32 %v620, %v1554
  %v1557 = vadd.f32 %v635, %v1553
  %v1558 = vadd.f32 %v650, %v1554
  %v1559 = vadd.f32 %v665, %v1553
  %v1560 = vadd.f32 %v680, %v1554
  %v1561 = vadd.f32 %v695, %v1553
  %v1562 = vadd.f32 %v710, %v1554
  %v1563 = vadd.f32 %v725, %v1553
  %v1564 = vadd.f32 %v740, %v1554
  %v1565 = vadd.f32 %v755, %v1553
  %v1566 = vadd.f32 %v770, %v1554
  %v1567 = vadd.f32 %v785, %v1553
  %v1568 = vadd.f32 %v800, %v1554
  %v1569 = vadd.f32 %v815, %v1553
  %v1570 = vadd.f32 %v830, %v1554
  %v1571 = vadd.f32 %v845, %v1553
  %v1572 = vadd.f32 %v860, %v1554
  %v1573 = vadd.f32 %v875, %v1553
  %v1574 = vadd.f32 %v890, %v1554
  %v1575 = vadd.f32 %v905, %v1553
  %v1576 = vadd.f32 %v920, %v1554
  %v1577 = vadd.f32 %v935, %v1553
  %v1578 = vadd.f32 %v950, %v1554
  %v1579 = vadd.f32 %v965, %v1553
  %v1580 = vadd.f32 %v980, %v1554
  %v1581 = vadd.f32 %v995, %v1553
  %v1582 = vadd.f32 %v1010, %v1554
  %v1583 = vadd.f32 %v1025, %v1553
  %v1584 = vadd.f32 %v1040, %v1554
  %v1585 = vadd.f32 %v1055, %v1553
  %v1586 = vadd.f32 %v1070, %v1554
  %v1587 = vadd.f32 %v1085, %v1553
  %v1588 = vadd.f32 %v1100, %v1554
  %v1589 = vadd.f32 %v1115, %v1553
  %v1590 = vadd.f32 %v1130, %v1554
  %v1591 = vadd.f32 %v1145, %v1553
  %v1592 = vadd.f32 %v1160, %v1554
  %v1593 = vadd.f32 %v1175, %v1553
  %v1594 = vadd.f32 %v1190, %v1554
  %v1595 = vadd.f32 %v1205, %v1553
  %v1596 = vadd.f32 %v1220, %v1554
  %v1597 = vadd.f32 %v1235, %v1553
  %v1598 = vadd.f32 %v1250, %v1554
  %v1599 = vadd.f32 %v1265, %v1553
  %v1600 = vadd.f32 %v1280, %v1554
  %v1601 = vadd.f32 %v1295, %v1553
  %v1602 = vadd.f32 %v1310, %v1554
  %v1603 = vadd.f32 %v1325, %v1553
  %v1604 = vadd.f32 %v1340, %v1554
  %v1605 = vadd.f32 %v1355, %v1553
  %v1606 = vadd.f32 %v1370, %v1554
  %v1607 = vadd.f32 %v1385, %v1553
  %v1608 = vadd.f32 %v1400, %v1554
  %v1609 = vadd.f32 %v1415, %v1553
  %v1610 = vadd.f32 %v1430, %v1554
  %v1611 = vadd.f32 %v1445, %v1553
  %v1612 = vadd.f32 %v1460, %v1554
  %v1613 = vadd.f32 %v1475, %v1553
  %v1614 = vadd.f32 %v1490, %v1554
  %v1615 = vadd.f32 %v1505, %v1553
  %v1616 = vadd.f32 %v1520, %v1554
  %v1617 = vadd.f32 %v1535, %v1553
  %v1618 = vadd.f32 %v1550, %v1554
  %v1619 = vperm.slane %v311, 0
  %v1620 = vmul.f32 %v1619, %v319
  %v1621 = vmul.f32 %v1619, %v320
  %v1622 = vmul.f32 %v1619, %v321
  %v1623 = vmul.f32 %v1619, %v322
  %v1624 = vmul.f32 %v1619, %v323
  %v1625 = vmul.f32 %v1619, %v324
  %v1626 = vmul.f32 %v1619, %v325
  %v1627 = vmul.f32 %v1619, %v326
  %v1628 = vmul.f32 %v1619, %v327
  %v1629 = vmul.f32 %v1619, %v328
  %v1630 = vmul.f32 %v1619, %v329
  %v1631 = vmul.f32 %v1619, %v330
  %v1632 = vmul.f32 %v1619, %v331
  %v1633 = vmul.f32 %v1619, %v332
  %v1634 = vmul.f32 %v1619, %v333
  %v1635 = vmul.f32 %v1619, %v334
  %v1636 = vadd.f32 %v1555, %v1620
  %v1637 = vadd.f32 %v1556, %v1620
  %v1638 = vadd.f32 %v1557, %v1621
  %v1639 = vadd.f32 %v1558, %v1621
  %v1640 = vadd.f32 %v1559, %v1622
  %v1641 = vadd.f32 %v1560, %v1622
  %v1642 = vadd.f32 %v1561, %v1623
  %v1643 = vadd.f32 %v1562, %v1623
  %v1644 = vadd.f32 %v1563, %v1624
  %v1645 = vadd.f32 %v1564, %v1624
  %v1646 = vadd.f32 %v1565, %v1625
  %v1647 = vadd.f32 %v1566, %v1625
  %v1648 = vadd.f32 %v1567, %v1626
  %v1649 = vadd.f32 %v1568, %v1626
  %v1650 = vadd.f32 %v1569, %v1627
  %v1651 = vadd.f32 %v1570, %v1627
  %v1652 = vadd.f32 %v1571, %v1628
  %v1653 = vadd.f32 %v1572, %v1628
  %v1654 = vadd.f32 %v1573, %v1629
  %v1655 = vadd.f32 %v1574, %v1629
  %v1656 = vadd.f32 %v1575, %v1630
  %v1657 = vadd.f32 %v1576, %v1630
  %v1658 = vadd.f32 %v1577, %v1631
  %v1659 = vadd.f32 %v1578, %v1631
  %v1660 = vadd.f32 %v1579, %v1632
  %v1661 = vadd.f32 %v1580, %v1632
  %v1662 = vadd.f32 %v1581, %v1633
  %v1663 = vadd.f32 %v1582, %v1633
  %v1664 = vadd.f32 %v1583, %v1634
  %v1665 = vadd.f32 %v1584, %v1634
  %v1666 = vadd.f32 %v1585, %v1635
  %v1667 = vadd.f32 %v1586, %v1635
  %v1668 = vadd.f32 %v1587, %v1620
  %v1669 = vadd.f32 %v1588, %v1620
  %v1670 = vadd.f32 %v1589, %v1621
  %v1671 = vadd.f32 %v1590, %v1621
  %v1672 = vadd.f32 %v1591, %v1622
  %v1673 = vadd.f32 %v1592, %v1622
  %v1674 = vadd.f32 %v1593, %v1623
  %v1675 = vadd.f32 %v1594, %v1623
  %v1676 = vadd.f32 %v1595, %v1624
  %v1677 = vadd.f32 %v1596, %v1624
  %v1678 = vadd.f32 %v1597, %v1625
  %v1679 = vadd.f32 %v1598, %v1625
  %v1680 = vadd.f32 %v1599, %v1626
  %v1681 = vadd.f32 %v1600, %v1626
  %v1682 = vadd.f32 %v1601, %v1627
  %v1683 = vadd.f32 %v1602, %v1627
  %v1684 = vadd.f32 %v1603, %v1628
  %v1685 = vadd.f32 %v1604, %v1628
  %v1686 = vadd.f32 %v1605, %v1629
  %v1687 = vadd.f32 %v1606, %v1629
  %v1688 = vadd.f32 %v1607, %v1630
  %v1689 = vadd.f32 %v1608, %v1630
  %v1690 = vadd.f32 %v1609, %v1631
  %v1691 = vadd.f32 %v1610, %v1631
  %v1692 = vadd.f32 %v1611, %v1632
  %v1693 = vadd.f32 %v1612, %v1632
  %v1694 = vadd.f32 %v1613, %v1633
  %v1695 = vadd.f32 %v1614, %v1633
  %v1696 = vadd.f32 %v1615, %v1634
  %v1697 = vadd.f32 %v1616, %v1634
  %v1698 = vadd.f32 %v1617, %v1635
  %v1699 = vadd.f32 %v1618, %v1635
  %v1700 = vperm.slane %v312, 0
  %v1701 = vmul.f32 %v119, %v1700
  %v1702 = vmul.f32 %v122, %v1700
  %v1703 = vmul.f32 %v125, %v1700
  %v1704 = vmul.f32 %v128, %v1700
  %v1705 = vmul.f32 %v131, %v1700
  %v1706 = vmul.f32 %v134, %v1700
  %v1707 = vmul.f32 %v137, %v1700
  %v1708 = vmul.f32 %v140, %v1700
  %v1709 = vmul.f32 %v143, %v1700
  %v1710 = vmul.f32 %v146, %v1700
  %v1711 = vmul.f32 %v149, %v1700
  %v1712 = vmul.f32 %v152, %v1700
  %v1713 = vmul.f32 %v155, %v1700
  %v1714 = vmul.f32 %v158, %v1700
  %v1715 = vmul.f32 %v161, %v1700
  %v1716 = vmul.f32 %v164, %v1700
  %v1717 = vmul.f32 %v167, %v1700
  %v1718 = vmul.f32 %v170, %v1700
  %v1719 = vmul.f32 %v173, %v1700
  %v1720 = vmul.f32 %v176, %v1700
  %v1721 = vmul.f32 %v179, %v1700
  %v1722 = vmul.f32 %v182, %v1700
  %v1723 = vmul.f32 %v185, %v1700
  %v1724 = vmul.f32 %v188, %v1700
  %v1725 = vmul.f32 %v191, %v1700
  %v1726 = vmul.f32 %v194, %v1700
  %v1727 = vmul.f32 %v197, %v1700
  %v1728 = vmul.f32 %v200, %v1700
  %v1729 = vmul.f32 %v203, %v1700
  %v1730 = vmul.f32 %v206, %v1700
  %v1731 = vmul.f32 %v209, %v1700
  %v1732 = vmul.f32 %v212, %v1700
  %v1733 = vmul.f32 %v215, %v1700
  %v1734 = vmul.f32 %v218, %v1700
  %v1735 = vmul.f32 %v221, %v1700
  %v1736 = vmul.f32 %v224, %v1700
  %v1737 = vmul.f32 %v227, %v1700
  %v1738 = vmul.f32 %v230, %v1700
  %v1739 = vmul.f32 %v233, %v1700
  %v1740 = vmul.f32 %v236, %v1700
  %v1741 = vmul.f32 %v239, %v1700
  %v1742 = vmul.f32 %v242, %v1700
  %v1743 = vmul.f32 %v245, %v1700
  %v1744 = vmul.f32 %v248, %v1700
  %v1745 = vmul.f32 %v251, %v1700
  %v1746 = vmul.f32 %v254, %v1700
  %v1747 = vmul.f32 %v257, %v1700
  %v1748 = vmul.f32 %v260, %v1700
  %v1749 = vmul.f32 %v263, %v1700
  %v1750 = vmul.f32 %v266, %v1700
  %v1751 = vmul.f32 %v269, %v1700
  %v1752 = vmul.f32 %v272, %v1700
  %v1753 = vmul.f32 %v275, %v1700
  %v1754 = vmul.f32 %v278, %v1700
  %v1755 = vmul.f32 %v281, %v1700
  %v1756 = vmul.f32 %v284, %v1700
  %v1757 = vmul.f32 %v287, %v1700
  %v1758 = vmul.f32 %v290, %v1700
  %v1759 = vmul.f32 %v293, %v1700
  %v1760 = vmul.f32 %v296, %v1700
  %v1761 = vmul.f32 %v299, %v1700
  %v1762 = vmul.f32 %v302, %v1700
  %v1763 = vmul.f32 %v305, %v1700
  %v1764 = vmul.f32 %v308, %v1700
  %v1765 = vmul.f32 %v1701, 1.442695
  %v1766 = vpow.pop %v1765
  %v1767 = vmul.f32 %v1702, 1.442695
  %v1768 = vpow.pop %v1767
  %v1769 = vmul.f32 %v1703, 1.442695
  %v1770 = vpow.pop %v1769
  %v1771 = vmul.f32 %v1704, 1.442695
  %v1772 = vpow.pop %v1771
  %v1773 = vmul.f32 %v1705, 1.442695
  %v1774 = vpow.pop %v1773
  %v1775 = vmul.f32 %v1706, 1.442695
  %v1776 = vpow.pop %v1775
  %v1777 = vmul.f32 %v1707, 1.442695
  %v1778 = vpow.pop %v1777
  %v1779 = vmul.f32 %v1708, 1.442695
  %v1780 = vpow.pop %v1779
  %v1781 = vmul.f32 %v1709, 1.442695
  %v1782 = vpow.pop %v1781
  %v1783 = vmul.f32 %v1710, 1.442695
  %v1784 = vpow.pop %v1783
  %v1785 = vmul.f32 %v1711, 1.442695
  %v1786 = vpow.pop %v1785
  %v1787 = vmul.f32 %v1712, 1.442695
  %v1788 = vpow.pop %v1787
  %v1789 = vmul.f32 %v1713, 1.442695
  %v1790 = vpow.pop %v1789
  %v1791 = vmul.f32 %v1714, 1.442695
  %v1792 = vpow.pop %v1791
  %v1793 = vmul.f32 %v1715, 1.442695
  %v1794 = vpow.pop %v1793
  %v1795 = vmul.f32 %v1716, 1.442695
  %v1796 = vpow.pop %v1795
  %v1797 = vmul.f32 %v1717, 1.442695
  %v1798 = vpow.pop %v1797
  %v1799 = vmul.f32 %v1718, 1.442695
  %v1800 = vpow.pop %v1799
  %v1801 = vmul.f32 %v1719, 1.442695
  %v1802 = vpow.pop %v1801
  %v1803 = vmul.f32 %v1720, 1.442695
  %v1804 = vpow.pop %v1803
  %v1805 = vmul.f32 %v1721, 1.442695
  %v1806 = vpow.pop %v1805
  %v1807 = vmul.f32 %v1722, 1.442695
  %v1808 = vpow.pop %v1807
  %v1809 = vmul.f32 %v1723, 1.442695
  %v1810 = vpow.pop %v1809
  %v1811 = vmul.f32 %v1724, 1.442695
  %v1812 = vpow.pop %v1811
  %v1813 = vmul.f32 %v1725, 1.442695
  %v1814 = vpow.pop %v1813
  %v1815 = vmul.f32 %v1726, 1.442695
  %v1816 = vpow.pop %v1815
  %v1817 = vmul.f32 %v1727, 1.442695
  %v1818 = vpow.pop %v1817
  %v1819 = vmul.f32 %v1728, 1.442695
  %v1820 = vpow.pop %v1819
  %v1821 = vmul.f32 %v1729, 1.442695
  %v1822 = vpow.pop %v1821
  %v1823 = vmul.f32 %v1730, 1.442695
  %v1824 = vpow.pop %v1823
  %v1825 = vmul.f32 %v1731, 1.442695
  %v1826 = vpow.pop %v1825
  %v1827 = vmul.f32 %v1732, 1.442695
  %v1828 = vpow.pop %v1827
  %v1829 = vmul.f32 %v1733, 1.442695
  %v1830 = vpow.pop %v1829
  %v1831 = vmul.f32 %v1734, 1.442695
  %v1832 = vpow.pop %v1831
  %v1833 = vmul.f32 %v1735, 1.442695
  %v1834 = vpow.pop %v1833
  %v1835 = vmul.f32 %v1736, 1.442695
  %v1836 = vpow.pop %v1835
  %v1837 = vmul.f32 %v1737, 1.442695
  %v1838 = vpow.pop %v1837
  %v1839 = vmul.f32 %v1738, 1.442695
  %v1840 = vpow.pop %v1839
  %v1841 = vmul.f32 %v1739, 1.442695
  %v1842 = vpow.pop %v1841
  %v1843 = vmul.f32 %v1740, 1.442695
  %v1844 = vpow.pop %v1843
  %v1845 = vmul.f32 %v1741, 1.442695
  %v1846 = vpow.pop %v1845
  %v1847 = vmul.f32 %v1742, 1.442695
  %v1848 = vpow.pop %v1847
  %v1849 = vmul.f32 %v1743, 1.442695
  %v1850 = vpow.pop %v1849
  %v1851 = vmul.f32 %v1744, 1.442695
  %v1852 = vpow.pop %v1851
  %v1853 = vmul.f32 %v1745, 1.442695
  %v1854 = vpow.pop %v1853
  %v1855 = vmul.f32 %v1746, 1.442695
  %v1856 = vpow.pop %v1855
  %v1857 = vmul.f32 %v1747, 1.442695
  %v1858 = vpow.pop %v1857
  %v1859 = vmul.f32 %v1748, 1.442695
  %v1860 = vpow.pop %v1859
  %v1861 = vmul.f32 %v1749, 1.442695
  %v1862 = vpow.pop %v1861
  %v1863 = vmul.f32 %v1750, 1.442695
  %v1864 = vpow.pop %v1863
  %v1865 = vmul.f32 %v1751, 1.442695
  %v1866 = vpow.pop %v1865
  %v1867 = vmul.f32 %v1752, 1.442695
  %v1868 = vpow.pop %v1867
  %v1869 = vmul.f32 %v1753, 1.442695
  %v1870 = vpow.pop %v1869
  %v1871 = vmul.f32 %v1754, 1.442695
  %v1872 = vpow.pop %v1871
  %v1873 = vmul.f32 %v1755, 1.442695
  %v1874 = vpow.pop %v1873
  %v1875 = vmul.f32 %v1756, 1.442695
  %v1876 = vpow.pop %v1875
  %v1877 = vmul.f32 %v1757, 1.442695
  %v1878 = vpow.pop %v1877
  %v1879 = vmul.f32 %v1758, 1.442695
  %v1880 = vpow.pop %v1879
  %v1881 = vmul.f32 %v1759, 1.442695
  %v1882 = vpow.pop %v1881
  %v1883 = vmul.f32 %v1760, 1.442695
  %v1884 = vpow.pop %v1883
  %v1885 = vmul.f32 %v1761, 1.442695
  %v1886 = vpow.pop %v1885
  %v1887 = vmul.f32 %v1762, 1.442695
  %v1888 = vpow.pop %v1887
  %v1889 = vmul.f32 %v1763, 1.442695
  %v1890 = vpow.pop %v1889
  %v1891 = vmul.f32 %v1764, 1.442695
  %v1892 = vpow.pop %v1891
  %v1893 = vperm.slane %v313, 0
  %v1894 = vmul.f32 %v1766, %v1893
  %v1895 = vmul.f32 %v1768, %v1893
  %v1896 = vmul.f32 %v1770, %v1893
  %v1897 = vmul.f32 %v1772, %v1893
  %v1898 = vmul.f32 %v1774, %v1893
  %v1899 = vmul.f32 %v1776, %v1893
  %v1900 = vmul.f32 %v1778, %v1893
  %v1901 = vmul.f32 %v1780, %v1893
  %v1902 = vmul.f32 %v1782, %v1893
  %v1903 = vmul.f32 %v1784, %v1893
  %v1904 = vmul.f32 %v1786, %v1893
  %v1905 = vmul.f32 %v1788, %v1893
  %v1906 = vmul.f32 %v1790, %v1893
  %v1907 = vmul.f32 %v1792, %v1893
  %v1908 = vmul.f32 %v1794, %v1893
  %v1909 = vmul.f32 %v1796, %v1893
  %v1910 = vmul.f32 %v1798, %v1893
  %v1911 = vmul.f32 %v1800, %v1893
  %v1912 = vmul.f32 %v1802, %v1893
  %v1913 = vmul.f32 %v1804, %v1893
  %v1914 = vmul.f32 %v1806, %v1893
  %v1915 = vmul.f32 %v1808, %v1893
  %v1916 = vmul.f32 %v1810, %v1893
  %v1917 = vmul.f32 %v1812, %v1893
  %v1918 = vmul.f32 %v1814, %v1893
  %v1919 = vmul.f32 %v1816, %v1893
  %v1920 = vmul.f32 %v1818, %v1893
  %v1921 = vmul.f32 %v1820, %v1893
  %v1922 = vmul.f32 %v1822, %v1893
  %v1923 = vmul.f32 %v1824, %v1893
  %v1924 = vmul.f32 %v1826, %v1893
  %v1925 = vmul.f32 %v1828, %v1893
  %v1926 = vmul.f32 %v1830, %v1893
  %v1927 = vmul.f32 %v1832, %v1893
  %v1928 = vmul.f32 %v1834, %v1893
  %v1929 = vmul.f32 %v1836, %v1893
  %v1930 = vmul.f32 %v1838, %v1893
  %v1931 = vmul.f32 %v1840, %v1893
  %v1932 = vmul.f32 %v1842, %v1893
  %v1933 = vmul.f32 %v1844, %v1893
  %v1934 = vmul.f32 %v1846, %v1893
  %v1935 = vmul.f32 %v1848, %v1893
  %v1936 = vmul.f32 %v1850, %v1893
  %v1937 = vmul.f32 %v1852, %v1893
  %v1938 = vmul.f32 %v1854, %v1893
  %v1939 = vmul.f32 %v1856, %v1893
  %v1940 = vmul.f32 %v1858, %v1893
  %v1941 = vmul.f32 %v1860, %v1893
  %v1942 = vmul.f32 %v1862, %v1893
  %v1943 = vmul.f32 %v1864, %v1893
  %v1944 = vmul.f32 %v1866, %v1893
  %v1945 = vmul.f32 %v1868, %v1893
  %v1946 = vmul.f32 %v1870, %v1893
  %v1947 = vmul.f32 %v1872, %v1893
  %v1948 = vmul.f32 %v1874, %v1893
  %v1949 = vmul.f32 %v1876, %v1893
  %v1950 = vmul.f32 %v1878, %v1893
  %v1951 = vmul.f32 %v1880, %v1893
  %v1952 = vmul.f32 %v1882, %v1893
  %v1953 = vmul.f32 %v1884, %v1893
  %v1954 = vmul.f32 %v1886, %v1893
  %v1955 = vmul.f32 %v1888, %v1893
  %v1956 = vmul.f32 %v1890, %v1893
  %v1957 = vmul.f32 %v1892, %v1893
  %v1958 = vperm.slane %v1551, 0
  %v1959 = vmul.f32 %v1958, %v1636
  %v1960 = vmul.f32 %v1958, %v1637
  %v1961 = vmul.f32 %v1958, %v1638
  %v1962 = vmul.f32 %v1958, %v1639
  %v1963 = vmul.f32 %v1958, %v1640
  %v1964 = vmul.f32 %v1958, %v1641
  %v1965 = vmul.f32 %v1958, %v1642
  %v1966 = vmul.f32 %v1958, %v1643
  %v1967 = vmul.f32 %v1958, %v1644
  %v1968 = vmul.f32 %v1958, %v1645
  %v1969 = vmul.f32 %v1958, %v1646
  %v1970 = vmul.f32 %v1958, %v1647
  %v1971 = vmul.f32 %v1958, %v1648
  %v1972 = vmul.f32 %v1958, %v1649
  %v1973 = vmul.f32 %v1958, %v1650
  %v1974 = vmul.f32 %v1958, %v1651
  %v1975 = vmul.f32 %v1958, %v1652
  %v1976 = vmul.f32 %v1958, %v1653
  %v1977 = vmul.f32 %v1958, %v1654
  %v1978 = vmul.f32 %v1958, %v1655
  %v1979 = vmul.f32 %v1958, %v1656
  %v1980 = vmul.f32 %v1958, %v1657
  %v1981 = vmul.f32 %v1958, %v1658
  %v1982 = vmul.f32 %v1958, %v1659
  %v1983 = vmul.f32 %v1958, %v1660
  %v1984 = vmul.f32 %v1958, %v1661
  %v1985 = vmul.f32 %v1958, %v1662
  %v1986 = vmul.f32 %v1958, %v1663
  %v1987 = vmul.f32 %v1958, %v1664
  %v1988 = vmul.f32 %v1958, %v1665
  %v1989 = vmul.f32 %v1958, %v1666
  %v1990 = vmul.f32 %v1958, %v1667
  %v1991 = vmul.f32 %v1958, %v1668
  %v1992 = vmul.f32 %v1958, %v1669
  %v1993 = vmul.f32 %v1958, %v1670
  %v1994 = vmul.f32 %v1958, %v1671
  %v1995 = vmul.f32 %v1958, %v1672
  %v1996 = vmul.f32 %v1958, %v1673
  %v1997 = vmul.f32 %v1958, %v1674
  %v1998 = vmul.f32 %v1958, %v1675
  %v1999 = vmul.f32 %v1958, %v1676
  %v2000 = vmul.f32 %v1958, %v1677
  %v2001 = vmul.f32 %v1958, %v1678
  %v2002 = vmul.f32 %v1958, %v1679
  %v2003 = vmul.f32 %v1958, %v1680
  %v2004 = vmul.f32 %v1958, %v1681
  %v2005 = vmul.f32 %v1958, %v1682
  %v2006 = vmul.f32 %v1958, %v1683
  %v2007 = vmul.f32 %v1958, %v1684
  %v2008 = vmul.f32 %v1958, %v1685
  %v2009 = vmul.f32 %v1958, %v1686
  %v2010 = vmul.f32 %v1958, %v1687
  %v2011 = vmul.f32 %v1958, %v1688
  %v2012 = vmul.f32 %v1958, %v1689
  %v2013 = vmul.f32 %v1958, %v1690
  %v2014 = vmul.f32 %v1958, %v1691
  %v2015 = vmul.f32 %v1958, %v1692
  %v2016 = vmul.f32 %v1958, %v1693
  %v2017 = vmul.f32 %v1958, %v1694
  %v2018 = vmul.f32 %v1958, %v1695
  %v2019 = vmul.f32 %v1958, %v1696
  %v2020 = vmul.f32 %v1958, %v1697
  %v2021 = vmul.f32 %v1958, %v1698
  %v2022 = vmul.f32 %v1958, %v1699
  %v2023 = vmul.f32 %v1700, %v1894
  %v2024 = vmul.f32 %v1700, %v1895
  %v2025 = vmul.f32 %v1700, %v1896
  %v2026 = vmul.f32 %v1700, %v1897
  %v2027 = vmul.f32 %v1700, %v1898
  %v2028 = vmul.f32 %v1700, %v1899
  %v2029 = vmul.f32 %v1700, %v1900
  %v2030 = vmul.f32 %v1700, %v1901
  %v2031 = vmul.f32 %v1700, %v1902
  %v2032 = vmul.f32 %v1700, %v1903
  %v2033 = vmul.f32 %v1700, %v1904
  %v2034 = vmul.f32 %v1700, %v1905
  %v2035 = vmul.f32 %v1700, %v1906
  %v2036 = vmul.f32 %v1700, %v1907
  %v2037 = vmul.f32 %v1700, %v1908
  %v2038 = vmul.f32 %v1700, %v1909
  %v2039 = vmul.f32 %v1700, %v1910
  %v2040 = vmul.f32 %v1700, %v1911
  %v2041 = vmul.f32 %v1700, %v1912
  %v2042 = vmul.f32 %v1700, %v1913
  %v2043 = vmul.f32 %v1700, %v1914
  %v2044 = vmul.f32 %v1700, %v1915
  %v2045 = vmul.f32 %v1700, %v1916
  %v2046 = vmul.f32 %v1700, %v1917
  %v2047 = vmul.f32 %v1700, %v1918
  %v2048 = vmul.f32 %v1700, %v1919
  %v2049 = vmul.f32 %v1700, %v1920
  %v2050 = vmul.f32 %v1700, %v1921
  %v2051 = vmul.f32 %v1700, %v1922
  %v2052 = vmul.f32 %v1700, %v1923
  %v2053 = vmul.f32 %v1700, %v1924
  %v2054 = vmul.f32 %v1700, %v1925
  %v2055 = vmul.f32 %v1700, %v1926
  %v2056 = vmul.f32 %v1700, %v1927
  %v2057 = vmul.f32 %v1700, %v1928
  %v2058 = vmul.f32 %v1700, %v1929
  %v2059 = vmul.f32 %v1700, %v1930
  %v2060 = vmul.f32 %v1700, %v1931
  %v2061 = vmul.f32 %v1700, %v1932
  %v2062 = vmul.f32 %v1700, %v1933
  %v2063 = vmul.f32 %v1700, %v1934
  %v2064 = vmul.f32 %v1700, %v1935
  %v2065 = vmul.f32 %v1700, %v1936
  %v2066 = vmul.f32 %v1700, %v1937
  %v2067 = vmul.f32 %v1700, %v1938
  %v2068 = vmul.f32 %v1700, %v1939
  %v2069 = vmul.f32 %v1700, %v1940
  %v2070 = vmul.f32 %v1700, %v1941
  %v2071 = vmul.f32 %v1700, %v1942
  %v2072 = vmul.f32 %v1700, %v1943
  %v2073 = vmul.f32 %v1700, %v1944
  %v2074 = vmul.f32 %v1700, %v1945
  %v2075 = vmul.f32 %v1700, %v1946
  %v2076 = vmul.f32 %v1700, %v1947
  %v2077 = vmul.f32 %v1700, %v1948
  %v2078 = vmul.f32 %v1700, %v1949
  %v2079 = vmul.f32 %v1700, %v1950
  %v2080 = vmul.f32 %v1700, %v1951
  %v2081 = vmul.f32 %v1700, %v1952
  %v2082 = vmul.f32 %v1700, %v1953
  %v2083 = vmul.f32 %v1700, %v1954
  %v2084 = vmul.f32 %v1700, %v1955
  %v2085 = vmul.f32 %v1700, %v1956
  %v2086 = vmul.f32 %v1700, %v1957
  %v2087 = vadd.f32 %v1959, %v2023
  %v2088 = vadd.f32 %v1960, %v2024
  %v2089 = vadd.f32 %v1961, %v2025
  %v2090 = vadd.f32 %v1962, %v2026
  %v2091 = vadd.f32 %v1963, %v2027
  %v2092 = vadd.f32 %v1964, %v2028
  %v2093 = vadd.f32 %v1965, %v2029
  %v2094 = vadd.f32 %v1966, %v2030
  %v2095 = vadd.f32 %v1967, %v2031
  %v2096 = vadd.f32 %v1968, %v2032
  %v2097 = vadd.f32 %v1969, %v2033
  %v2098 = vadd.f32 %v1970, %v2034
  %v2099 = vadd.f32 %v1971, %v2035
  %v2100 = vadd.f32 %v1972, %v2036
  %v2101 = vadd.f32 %v1973, %v2037
  %v2102 = vadd.f32 %v1974, %v2038
  %v2103 = vadd.f32 %v1975, %v2039
  %v2104 = vadd.f32 %v1976, %v2040
  %v2105 = vadd.f32 %v1977, %v2041
  %v2106 = vadd.f32 %v1978, %v2042
  %v2107 = vadd.f32 %v1979, %v2043
  %v2108 = vadd.f32 %v1980, %v2044
  %v2109 = vadd.f32 %v1981, %v2045
  %v2110 = vadd.f32 %v1982, %v2046
  %v2111 = vadd.f32 %v1983, %v2047
  %v2112 = vadd.f32 %v1984, %v2048
  %v2113 = vadd.f32 %v1985, %v2049
  %v2114 = vadd.f32 %v1986, %v2050
  %v2115 = vadd.f32 %v1987, %v2051
  %v2116 = vadd.f32 %v1988, %v2052
  %v2117 = vadd.f32 %v1989, %v2053
  %v2118 = vadd.f32 %v1990, %v2054
  %v2119 = vadd.f32 %v1991, %v2055
  %v2120 = vadd.f32 %v1992, %v2056
  %v2121 = vadd.f32 %v1993, %v2057
  %v2122 = vadd.f32 %v1994, %v2058
  %v2123 = vadd.f32 %v1995, %v2059
  %v2124 = vadd.f32 %v1996, %v2060
  %v2125 = vadd.f32 %v1997, %v2061
  %v2126 = vadd.f32 %v1998, %v2062
  %v2127 = vadd.f32 %v1999, %v2063
  %v2128 = vadd.f32 %v2000, %v2064
  %v2129 = vadd.f32 %v2001, %v2065
  %v2130 = vadd.f32 %v2002, %v2066
  %v2131 = vadd.f32 %v2003, %v2067
  %v2132 = vadd.f32 %v2004, %v2068
  %v2133 = vadd.f32 %v2005, %v2069
  %v2134 = vadd.f32 %v2006, %v2070
  %v2135 = vadd.f32 %v2007, %v2071
  %v2136 = vadd.f32 %v2008, %v2072
  %v2137 = vadd.f32 %v2009, %v2073
  %v2138 = vadd.f32 %v2010, %v2074
  %v2139 = vadd.f32 %v2011, %v2075
  %v2140 = vadd.f32 %v2012, %v2076
  %v2141 = vadd.f32 %v2013, %v2077
  %v2142 = vadd.f32 %v2014, %v2078
  %v2143 = vadd.f32 %v2015, %v2079
  %v2144 = vadd.f32 %v2016, %v2080
  %v2145 = vadd.f32 %v2017, %v2081
  %v2146 = vadd.f32 %v2018, %v2082
  %v2147 = vadd.f32 %v2019, %v2083
  %v2148 = vadd.f32 %v2020, %v2084
  %v2149 = vadd.f32 %v2021, %v2085
  %v2150 = vadd.f32 %v2022, %v2086
  %v2151 = vsub.f32 1.0, %v1551
  %v2152 = vsub.f32 %v2151, %v312
  %v2153 = vperm.slane %v2152, 0
  %v2154 = vmul.f32 %v2153, %v605
  %v2155 = vmul.f32 %v2153, %v620
  %v2156 = vmul.f32 %v2153, %v635
  %v2157 = vmul.f32 %v2153, %v650
  %v2158 = vmul.f32 %v2153, %v665
  %v2159 = vmul.f32 %v2153, %v680
  %v2160 = vmul.f32 %v2153, %v695
  %v2161 = vmul.f32 %v2153, %v710
  %v2162 = vmul.f32 %v2153, %v725
  %v2163 = vmul.f32 %v2153, %v740
  %v2164 = vmul.f32 %v2153, %v755
  %v2165 = vmul.f32 %v2153, %v770
  %v2166 = vmul.f32 %v2153, %v785
  %v2167 = vmul.f32 %v2153, %v800
  %v2168 = vmul.f32 %v2153, %v815
  %v2169 = vmul.f32 %v2153, %v830
  %v2170 = vmul.f32 %v2153, %v845
  %v2171 = vmul.f32 %v2153, %v860
  %v2172 = vmul.f32 %v2153, %v875
  %v2173 = vmul.f32 %v2153, %v890
  %v2174 = vmul.f32 %v2153, %v905
  %v2175 = vmul.f32 %v2153, %v920
  %v2176 = vmul.f32 %v2153, %v935
  %v2177 = vmul.f32 %v2153, %v950
  %v2178 = vmul.f32 %v2153, %v965
  %v2179 = vmul.f32 %v2153, %v980
  %v2180 = vmul.f32 %v2153, %v995
  %v2181 = vmul.f32 %v2153, %v1010
  %v2182 = vmul.f32 %v2153, %v1025
  %v2183 = vmul.f32 %v2153, %v1040
  %v2184 = vmul.f32 %v2153, %v1055
  %v2185 = vmul.f32 %v2153, %v1070
  %v2186 = vmul.f32 %v2153, %v1085
  %v2187 = vmul.f32 %v2153, %v1100
  %v2188 = vmul.f32 %v2153, %v1115
  %v2189 = vmul.f32 %v2153, %v1130
  %v2190 = vmul.f32 %v2153, %v1145
  %v2191 = vmul.f32 %v2153, %v1160
  %v2192 = vmul.f32 %v2153, %v1175
  %v2193 = vmul.f32 %v2153, %v1190
  %v2194 = vmul.f32 %v2153, %v1205
  %v2195 = vmul.f32 %v2153, %v1220
  %v2196 = vmul.f32 %v2153, %v1235
  %v2197 = vmul.f32 %v2153, %v1250
  %v2198 = vmul.f32 %v2153, %v1265
  %v2199 = vmul.f32 %v2153, %v1280
  %v2200 = vmul.f32 %v2153, %v1295
  %v2201 = vmul.f32 %v2153, %v1310
  %v2202 = vmul.f32 %v2153, %v1325
  %v2203 = vmul.f32 %v2153, %v1340
  %v2204 = vmul.f32 %v2153, %v1355
  %v2205 = vmul.f32 %v2153, %v1370
  %v2206 = vmul.f32 %v2153, %v1385
  %v2207 = vmul.f32 %v2153, %v1400
  %v2208 = vmul.f32 %v2153, %v1415
  %v2209 = vmul.f32 %v2153, %v1430
  %v2210 = vmul.f32 %v2153, %v1445
  %v2211 = vmul.f32 %v2153, %v1460
  %v2212 = vmul.f32 %v2153, %v1475
  %v2213 = vmul.f32 %v2153, %v1490
  %v2214 = vmul.f32 %v2153, %v1505
  %v2215 = vmul.f32 %v2153, %v1520
  %v2216 = vmul.f32 %v2153, %v1535
  %v2217 = vmul.f32 %v2153, %v1550
  %v2218 = vadd.f32 %v2087, %v2154
  %v2219 = vadd.f32 %v2088, %v2155
  %v2220 = vadd.f32 %v2089, %v2156
  %v2221 = vadd.f32 %v2090, %v2157
  %v2222 = vadd.f32 %v2091, %v2158
  %v2223 = vadd.f32 %v2092, %v2159
  %v2224 = vadd.f32 %v2093, %v2160
  %v2225 = vadd.f32 %v2094, %v2161
  %v2226 = vadd.f32 %v2095, %v2162
  %v2227 = vadd.f32 %v2096, %v2163
  %v2228 = vadd.f32 %v2097, %v2164
  %v2229 = vadd.f32 %v2098, %v2165
  %v2230 = vadd.f32 %v2099, %v2166
  %v2231 = vadd.f32 %v2100, %v2167
  %v2232 = vadd.f32 %v2101, %v2168
  %v2233 = vadd.f32 %v2102, %v2169
  %v2234 = vadd.f32 %v2103, %v2170
  %v2235 = vadd.f32 %v2104, %v2171
  %v2236 = vadd.f32 %v2105, %v2172
  %v2237 = vadd.f32 %v2106, %v2173
  %v2238 = vadd.f32 %v2107, %v2174
  %v2239 = vadd.f32 %v2108, %v2175
  %v2240 = vadd.f32 %v2109, %v2176
  %v2241 = vadd.f32 %v2110, %v2177
  %v2242 = vadd.f32 %v2111, %v2178
  %v2243 = vadd.f32 %v2112, %v2179
  %v2244 = vadd.f32 %v2113, %v2180
  %v2245 = vadd.f32 %v2114, %v2181
  %v2246 = vadd.f32 %v2115, %v2182
  %v2247 = vadd.f32 %v2116, %v2183
  %v2248 = vadd.f32 %v2117, %v2184
  %v2249 = vadd.f32 %v2118, %v2185
  %v2250 = vadd.f32 %v2119, %v2186
  %v2251 = vadd.f32 %v2120, %v2187
  %v2252 = vadd.f32 %v2121, %v2188
  %v2253 = vadd.f32 %v2122, %v2189
  %v2254 = vadd.f32 %v2123, %v2190
  %v2255 = vadd.f32 %v2124, %v2191
  %v2256 = vadd.f32 %v2125, %v2192
  %v2257 = vadd.f32 %v2126, %v2193
  %v2258 = vadd.f32 %v2127, %v2194
  %v2259 = vadd.f32 %v2128, %v2195
  %v2260 = vadd.f32 %v2129, %v2196
  %v2261 = vadd.f32 %v2130, %v2197
  %v2262 = vadd.f32 %v2131, %v2198
  %v2263 = vadd.f32 %v2132, %v2199
  %v2264 = vadd.f32 %v2133, %v2200
  %v2265 = vadd.f32 %v2134, %v2201
  %v2266 = vadd.f32 %v2135, %v2202
  %v2267 = vadd.f32 %v2136, %v2203
  %v2268 = vadd.f32 %v2137, %v2204
  %v2269 = vadd.f32 %v2138, %v2205
  %v2270 = vadd.f32 %v2139, %v2206
  %v2271 = vadd.f32 %v2140, %v2207
  %v2272 = vadd.f32 %v2141, %v2208
  %v2273 = vadd.f32 %v2142, %v2209
  %v2274 = vadd.f32 %v2143, %v2210
  %v2275 = vadd.f32 %v2144, %v2211
  %v2276 = vadd.f32 %v2145, %v2212
  %v2277 = vadd.f32 %v2146, %v2213
  %v2278 = vadd.f32 %v2147, %v2214
  %v2279 = vadd.f32 %v2148, %v2215
  %v2280 = vadd.f32 %v2149, %v2216
  %v2281 = vadd.f32 %v2150, %v2217
  %2282 = vst [vmem:[%s4] sm:$0xff] %v2218
  %2283 = vst [vmem:[%s4 + $0x8] sm:$0xff] %v2219
  %2284 = vst [vmem:[%s4 + $0x10] sm:$0xff] %v2220
  %2285 = vst [vmem:[%s4 + $0x18] sm:$0xff] %v2221
  %2286 = vst [vmem:[%s4 + $0x20] sm:$0xff] %v2222
  %2287 = vst [vmem:[%s4 + $0x28] sm:$0xff] %v2223
  %2288 = vst [vmem:[%s4 + $0x30] sm:$0xff] %v2224
  %2289 = vst [vmem:[%s4 + $0x38] sm:$0xff] %v2225
  %2290 = vst [vmem:[%s4 + $0x40] sm:$0xff] %v2226
  %2291 = vst [vmem:[%s4 + $0x48] sm:$0xff] %v2227
  %2292 = vst [vmem:[%s4 + $0x50] sm:$0xff] %v2228
  %2293 = vst [vmem:[%s4 + $0x58] sm:$0xff] %v2229
  %2294 = vst [vmem:[%s4 + $0x60] sm:$0xff] %v2230
  %2295 = vst [vmem:[%s4 + $0x68] sm:$0xff] %v2231
  %2296 = vst [vmem:[%s4 + $0x70] sm:$0xff] %v2232
  %2297 = vst [vmem:[%s4 + $0x78] sm:$0xff] %v2233
  %2298 = vst [vmem:[%s4 + $0x80] sm:$0xff] %v2234
  %2299 = vst [vmem:[%s4 + $0x88] sm:$0xff] %v2235
  %2300 = vst [vmem:[%s4 + $0x90] sm:$0xff] %v2236
  %2301 = vst [vmem:[%s4 + $0x98] sm:$0xff] %v2237
  %2302 = vst [vmem:[%s4 + $0xa0] sm:$0xff] %v2238
  %2303 = vst [vmem:[%s4 + $0xa8] sm:$0xff] %v2239
  %2304 = vst [vmem:[%s4 + $0xb0] sm:$0xff] %v2240
  %2305 = vst [vmem:[%s4 + $0xb8] sm:$0xff] %v2241
  %2306 = vst [vmem:[%s4 + $0xc0] sm:$0xff] %v2242
  %2307 = vst [vmem:[%s4 + $0xc8] sm:$0xff] %v2243
  %2308 = vst [vmem:[%s4 + $0xd0] sm:$0xff] %v2244
  %2309 = vst [vmem:[%s4 + $0xd8] sm:$0xff] %v2245
  %2310 = vst [vmem:[%s4 + $0xe0] sm:$0xff] %v2246
  %2311 = vst [vmem:[%s4 + $0xe8] sm:$0xff] %v2247
  %2312 = vst [vmem:[%s4 + $0xf0] sm:$0xff] %v2248
  %2313 = vst [vmem:[%s4 + $0xf8] sm:$0xff] %v2249
  %2314 = vst [vmem:[%s4 + $0x100] sm:$0xff] %v2250
  %2315 = vst [vmem:[%s4 + $0x108] sm:$0xff] %v2251
  %2316 = vst [vmem:[%s4 + $0x110] sm:$0xff] %v2252
  %2317 = vst [vmem:[%s4 + $0x118] sm:$0xff] %v2253
  %2318 = vst [vmem:[%s4 + $0x120] sm:$0xff] %v2254
  %2319 = vst [vmem:[%s4 + $0x128] sm:$0xff] %v2255
  %2320 = vst [vmem:[%s4 + $0x130] sm:$0xff] %v2256
  %2321 = vst [vmem:[%s4 + $0x138] sm:$0xff] %v2257
  %2322 = vst [vmem:[%s4 + $0x140] sm:$0xff] %v2258
  %2323 = vst [vmem:[%s4 + $0x148] sm:$0xff] %v2259
  %2324 = vst [vmem:[%s4 + $0x150] sm:$0xff] %v2260
  %2325 = vst [vmem:[%s4 + $0x158] sm:$0xff] %v2261
  %2326 = vst [vmem:[%s4 + $0x160] sm:$0xff] %v2262
  %2327 = vst [vmem:[%s4 + $0x168] sm:$0xff] %v2263
  %2328 = vst [vmem:[%s4 + $0x170] sm:$0xff] %v2264
  %2329 = vst [vmem:[%s4 + $0x178] sm:$0xff] %v2265
  %2330 = vst [vmem:[%s4 + $0x180] sm:$0xff] %v2266
  %2331 = vst [vmem:[%s4 + $0x188] sm:$0xff] %v2267
  %2332 = vst [vmem:[%s4 + $0x190] sm:$0xff] %v2268
  %2333 = vst [vmem:[%s4 + $0x198] sm:$0xff] %v2269
  %2334 = vst [vmem:[%s4 + $0x1a0] sm:$0xff] %v2270
  %2335 = vst [vmem:[%s4 + $0x1a8] sm:$0xff] %v2271
  %2336 = vst [vmem:[%s4 + $0x1b0] sm:$0xff] %v2272
  %2337 = vst [vmem:[%s4 + $0x1b8] sm:$0xff] %v2273
  %2338 = vst [vmem:[%s4 + $0x1c0] sm:$0xff] %v2274
  %2339 = vst [vmem:[%s4 + $0x1c8] sm:$0xff] %v2275
  %2340 = vst [vmem:[%s4 + $0x1d0] sm:$0xff] %v2276
  %2341 = vst [vmem:[%s4 + $0x1d8] sm:$0xff] %v2277
  %2342 = vst [vmem:[%s4 + $0x1e0] sm:$0xff] %v2278
  %2343 = vst [vmem:[%s4 + $0x1e8] sm:$0xff] %v2279
  %2344 = vst [vmem:[%s4 + $0x1f0] sm:$0xff] %v2280
  %2345 = vst [vmem:[%s4 + $0x1f8] sm:$0xff] %v2281
  // Predicated region
  $region18: #{darknet_forward.11} parent=0 // pred_check
    _
  $region19: #{darknet_forward.11} parent=0 // pred_check_branch
    %2347 = sbr.rel (0) target = $region21
  $region20: #{darknet_forward.11} parent=0 // pred_region
    _
  $region21: #{darknet_forward.11} parent=0 // pred_fallthru
    _
  // Predicated region
  $region22: #{darknet_forward.11} parent=0 // pred_check
    _
  $region23: #{darknet_forward.11} parent=0 // pred_check_branch
    %2349 = sbr.rel (0) target = $region25
  $region24: #{darknet_forward.11} parent=0 // pred_region
    _
  $region25: #{darknet_forward.11} parent=0 // pred_fallthru
    _

// kernel: darknet_forward.9
$region0: #{darknet_forward.9}
  #allocation0 [shape = 'u32[]', space=smem, size = 0x4, offset = 0x4, fixed_abs, tag = 'smem constant byte address 0x4 - core index']
  #allocation1 [shape = 'u32[72,128]{1,0:T(1,128)}', space=vmem, size = 0x9000, scoped, tag = 'internal scratch']
  %s0 = inlined_call_operand.vmem [shape: f32[1,2,8,8,128], index: 0, kind: input, shape index: {}]
  %s1 = inlined_call_operand.vmem [shape: f32[1,128,128], index: 1, kind: input, shape index: {}]
  %s2 = inlined_call_operand.vmem [shape: f32[1,128], index: 2, kind: input, shape index: {}]
  %s3 = inlined_call_operand.vmem [shape: f32[4,128], index: 3, kind: input, shape index: {}]
  %s4 = inlined_call_operand.vmem [shape: f32[2,8,8,128], index: 4, kind: output, shape index: {}]
  %s5 = sld [smem:[#allocation0]]
  $region26: #{darknet_forward.9} parent=0
    _
  %s7 = ssub.s32 1, %s5
  %s8 = scalar_select 0, %s7, %s5
  // Predicated region
  $region2: #{darknet_forward.9} parent=0 // pred_check
    _
  $region3: #{darknet_forward.9} parent=0 // pred_check_branch
    %10 = sbr.rel (0) target = $region5
  $region4: #{darknet_forward.9} parent=0 // pred_region
    _
  $region5: #{darknet_forward.9} parent=0 // pred_fallthru
    _
  // Predicated region
  $region6: #{darknet_forward.9} parent=0 // pred_check
    _
  $region7: #{darknet_forward.9} parent=0 // pred_check_branch
    %12 = sbr.rel (0) target = $region9
  $region8: #{darknet_forward.9} parent=0 // pred_region
    _
  $region9: #{darknet_forward.9} parent=0 // pred_fallthru
    _
  // Predicated region
  $region10: #{darknet_forward.9} parent=0 // pred_check
    _
  $region11: #{darknet_forward.9} parent=0 // pred_check_branch
    %14 = sbr.rel (0) target = $region13
  $region12: #{darknet_forward.9} parent=0 // pred_region
    _
  $region13: #{darknet_forward.9} parent=0 // pred_fallthru
    _
  // Predicated region
  $region14: #{darknet_forward.9} parent=0 // pred_check
    _
  $region15: #{darknet_forward.9} parent=0 // pred_check_branch
    %16 = sbr.rel (0) target = $region17
  $region16: #{darknet_forward.9} parent=0 // pred_region
    _
  $region17: #{darknet_forward.9} parent=0 // pred_fallthru
    _
  %v17 = vld [vmem:[%s0] sm:$0xff]
  %v18 = vld [vmem:[%s0 + $0x8] sm:$0xff]
  %v19 = vld [vmem:[%s0 + $0x10] sm:$0xff]
  %v20 = vld [vmem:[%s0 + $0x18] sm:$0xff]
  %v21 = vld [vmem:[%s0 + $0x20] sm:$0xff]
  %v22 = vld [vmem:[%s0 + $0x28] sm:$0xff]
  %v23 = vld [vmem:[%s0 + $0x30] sm:$0xff]
  %v24 = vld [vmem:[%s0 + $0x38] sm:$0xff]
  %v25 = vld [vmem:[%s0 + $0x40] sm:$0xff]
  %v26 = vld [vmem:[%s0 + $0x48] sm:$0xff]
  %v27 = vld [vmem:[%s0 + $0x50] sm:$0xff]
  %v28 = vld [vmem:[%s0 + $0x58] sm:$0xff]
  %v29 = vld [vmem:[%s0 + $0x60] sm:$0xff]
  %v30 = vld [vmem:[%s0 + $0x68] sm:$0xff]
  %v31 = vld [vmem:[%s0 + $0x70] sm:$0xff]
  %v32 = vld [vmem:[%s0 + $0x78] sm:$0xff]
  %v33 = vld [vmem:[%s1] sm:$0xff]
  %v34 = vld [vmem:[%s1 + $0x8] sm:$0xff]
  %v35 = vld [vmem:[%s1 + $0x10] sm:$0xff]
  %v36 = vld [vmem:[%s1 + $0x18] sm:$0xff]
  %v37 = vld [vmem:[%s1 + $0x20] sm:$0xff]
  %v38 = vld [vmem:[%s1 + $0x28] sm:$0xff]
  %v39 = vld [vmem:[%s1 + $0x30] sm:$0xff]
  %v40 = vld [vmem:[%s1 + $0x38] sm:$0xff]
  %v41 = vld [vmem:[%s1 + $0x40] sm:$0xff]
  %v42 = vld [vmem:[%s1 + $0x48] sm:$0xff]
  %v43 = vld [vmem:[%s1 + $0x50] sm:$0xff]
  %v44 = vld [vmem:[%s1 + $0x58] sm:$0xff]
  %v45 = vld [vmem:[%s1 + $0x60] sm:$0xff]
  %v46 = vld [vmem:[%s1 + $0x68] sm:$0xff]
  %v47 = vld [vmem:[%s1 + $0x70] sm:$0xff]
  %v48 = vld [vmem:[%s1 + $0x78] sm:$0xff]
  %v49 = vld [vmem:[%s2] sm:$0x1]
  %v51 = vperm.slane %v49, 0
  %53 = vmatpush.msra.mxu0 %v48
  %54 = vmatpush.msra.mxu0 %v47
  %55 = vmatpush.msra.mxu0 %v46
  %56 = vmatpush.msra.mxu0 %v45
  %57 = vmatpush.msra.mxu0 %v44
  %58 = vmatpush.msra.mxu0 %v43
  %59 = vmatpush.msra.mxu0 %v42
  %60 = vmatpush.msra.mxu0 %v41
  %61 = vmatpush.msra.mxu0 %v40
  %62 = vmatpush.msra.mxu0 %v39
  %63 = vmatpush.msra.mxu0 %v38
  %64 = vmatpush.msra.mxu0 %v37
  %65 = vmatpush.msra.mxu0 %v36
  %66 = vmatpush.msra.mxu0 %v35
  %67 = vmatpush.msra.mxu0 %v34
  %68 = vmatpush.msra.mxu0 %v33
  %69 = vmatmul.f32.gmra.mxu0 %v17
  %v70 = vpop.f32.mrf.mxu0
  %v71 = vadd.f32 %v51, %v70
  %72 = vmatmul.f32.gmra.mxu0 %v18
  %v73 = vpop.f32.mrf.mxu0
  %v74 = vadd.f32 %v51, %v73
  %75 = vmatmul.f32.gmra.mxu0 %v19
  %v76 = vpop.f32.mrf.mxu0
  %v77 = vadd.f32 %v51, %v76
  %78 = vmatmul.f32.gmra.mxu0 %v20
  %v79 = vpop.f32.mrf.mxu0
  %v80 = vadd.f32 %v51, %v79
  %81 = vmatmul.f32.gmra.mxu0 %v21
  %v82 = vpop.f32.mrf.mxu0
  %v83 = vadd.f32 %v51, %v82
  %84 = vmatmul.f32.gmra.mxu0 %v22
  %v85 = vpop.f32.mrf.mxu0
  %v86 = vadd.f32 %v51, %v85
  %87 = vmatmul.f32.gmra.mxu0 %v23
  %v88 = vpop.f32.mrf.mxu0
  %v89 = vadd.f32 %v51, %v88
  %90 = vmatmul.f32.gmra.mxu0 %v24
  %v91 = vpop.f32.mrf.mxu0
  %v92 = vadd.f32 %v51, %v91
  %93 = vmatmul.f32.gmra.mxu0 %v25
  %v94 = vpop.f32.mrf.mxu0
  %v95 = vadd.f32 %v51, %v94
  %96 = vmatmul.f32.gmra.mxu0 %v26
  %v97 = vpop.f32.mrf.mxu0
  %v98 = vadd.f32 %v51, %v97
  %99 = vmatmul.f32.gmra.mxu0 %v27
  %v100 = vpop.f32.mrf.mxu0
  %v101 = vadd.f32 %v51, %v100
  %102 = vmatmul.f32.gmra.mxu0 %v28
  %v103 = vpop.f32.mrf.mxu0
  %v104 = vadd.f32 %v51, %v103
  %105 = vmatmul.f32.gmra.mxu0 %v29
  %v106 = vpop.f32.mrf.mxu0
  %v107 = vadd.f32 %v51, %v106
  %108 = vmatmul.f32.gmra.mxu0 %v30
  %v109 = vpop.f32.mrf.mxu0
  %v110 = vadd.f32 %v51, %v109
  %111 = vmatmul.f32.gmra.mxu0 %v31
  %v112 = vpop.f32.mrf.mxu0
  %v113 = vadd.f32 %v51, %v112
  %114 = vmatmul.f32.gmra.mxu0 %v32
  %v115 = vpop.f32.mrf.mxu0
  %v116 = vadd.f32 %v51, %v115
  %117 = vdwg.mxu0
  %v118 = vld [vmem:[%s3] sm:$0x1]
  %v119 = vld [vmem:[%s3 + $0x1] sm:$0x1]
  %v120 = vld [vmem:[%s3 + $0x2] sm:$0x1]
  %v121 = vld [vmem:[%s3 + $0x3] sm:$0x1]
  %v122 = vlaneseq
  %v123 = vshrl.u32 %v122, 7
  %v124 = vcvt.s32.f32 %v123
  %v125 = vcvt.s32.f32 0
  %v126 = vcvt.s32.f32 1
  %v127 = vcvt.s32.f32 2
  %v128 = vcvt.s32.f32 3
  %v129 = vcvt.s32.f32 4
  %v130 = vcvt.s32.f32 5
  %v131 = vcvt.s32.f32 6
  %v132 = vcvt.s32.f32 7
  %v133 = vxor.u32 %v71, 2147483648
  %v134 = vxor.u32 %v74, 2147483648
  %v135 = vxor.u32 %v77, 2147483648
  %v136 = vxor.u32 %v80, 2147483648
  %v137 = vxor.u32 %v83, 2147483648
  %v138 = vxor.u32 %v86, 2147483648
  %v139 = vxor.u32 %v89, 2147483648
  %v140 = vxor.u32 %v92, 2147483648
  %v141 = vxor.u32 %v95, 2147483648
  %v142 = vxor.u32 %v98, 2147483648
  %v143 = vxor.u32 %v101, 2147483648
  %v144 = vxor.u32 %v104, 2147483648
  %v145 = vxor.u32 %v107, 2147483648
  %v146 = vxor.u32 %v110, 2147483648
  %v147 = vxor.u32 %v113, 2147483648
  %v148 = vxor.u32 %v116, 2147483648
  %v149 = vmul.f32 %v133, 1.442695
  %v150 = vpow.pop %v149
  %v151 = vmul.f32 %v134, 1.442695
  %v152 = vpow.pop %v151
  %v153 = vmul.f32 %v135, 1.442695
  %v154 = vpow.pop %v153
  %v155 = vmul.f32 %v136, 1.442695
  %v156 = vpow.pop %v155
  %v157 = vmul.f32 %v137, 1.442695
  %v158 = vpow.pop %v157
  %v159 = vmul.f32 %v138, 1.442695
  %v160 = vpow.pop %v159
  %v161 = vmul.f32 %v139, 1.442695
  %v162 = vpow.pop %v161
  %v163 = vmul.f32 %v140, 1.442695
  %v164 = vpow.pop %v163
  %v165 = vmul.f32 %v141, 1.442695
  %v166 = vpow.pop %v165
  %v167 = vmul.f32 %v142, 1.442695
  %v168 = vpow.pop %v167
  %v169 = vmul.f32 %v143, 1.442695
  %v170 = vpow.pop %v169
  %v171 = vmul.f32 %v144, 1.442695
  %v172 = vpow.pop %v171
  %v173 = vmul.f32 %v145, 1.442695
  %v174 = vpow.pop %v173
  %v175 = vmul.f32 %v146, 1.442695
  %v176 = vpow.pop %v175
  %v177 = vmul.f32 %v147, 1.442695
  %v178 = vpow.pop %v177
  %v179 = vmul.f32 %v148, 1.442695
  %v180 = vpow.pop %v179
  %v181 = vadd.f32 %v150, 1.0
  %v182 = vadd.f32 %v152, 1.0
  %v183 = vadd.f32 %v154, 1.0
  %v184 = vadd.f32 %v156, 1.0
  %v185 = vadd.f32 %v158, 1.0
  %v186 = vadd.f32 %v160, 1.0
  %v187 = vadd.f32 %v162, 1.0
  %v188 = vadd.f32 %v164, 1.0
  %v189 = vadd.f32 %v166, 1.0
  %v190 = vadd.f32 %v168, 1.0
  %v191 = vadd.f32 %v170, 1.0
  %v192 = vadd.f32 %v172, 1.0
  %v193 = vadd.f32 %v174, 1.0
  %v194 = vadd.f32 %v176, 1.0
  %v195 = vadd.f32 %v178, 1.0
  %v196 = vadd.f32 %v180, 1.0
  %v197 = vrcp.pop %v181
  %v198 = vmul.f32 %v181, %v197
  %v199 = vsub.f32 1.0, %v198
  %v200 = vmul.f32 %v197, %v199
  %v201 = vadd.f32 %v197, %v200
  %vm202 = vweird.f32 %v181
  %vm203 = vweird.f32 %v197
  %vm204 = vmor %vm202, %vm203
  %v205 = vsel %vm204, %v197, %v201
  %v206 = vand.u32 2147483647, %v181
  %vm207 = vcmp.eq.f32.partialorder %v206, 8.507059e+37
  %v208 = vand.u32 %v181, 2147483648
  %v209 = vor.u32 1.1754944e-38, %v208
  %v210 = vsel %vm207, %v209, %v205
  %v211 = vmul.f32 1.0, %v210
  %v212 = vrcp.pop %v182
  %v213 = vmul.f32 %v182, %v212
  %v214 = vsub.f32 1.0, %v213
  %v215 = vmul.f32 %v212, %v214
  %v216 = vadd.f32 %v212, %v215
  %vm217 = vweird.f32 %v182
  %vm218 = vweird.f32 %v212
  %vm219 = vmor %vm217, %vm218
  %v220 = vsel %vm219, %v212, %v216
  %v221 = vand.u32 2147483647, %v182
  %vm222 = vcmp.eq.f32.partialorder %v221, 8.507059e+37
  %v223 = vand.u32 %v182, 2147483648
  %v224 = vor.u32 1.1754944e-38, %v223
  %v225 = vsel %vm222, %v224, %v220
  %v226 = vmul.f32 1.0, %v225
  %v227 = vrcp.pop %v183
  %v228 = vmul.f32 %v183, %v227
  %v229 = vsub.f32 1.0, %v228
  %v230 = vmul.f32 %v227, %v229
  %v231 = vadd.f32 %v227, %v230
  %vm232 = vweird.f32 %v183
  %vm233 = vweird.f32 %v227
  %vm234 = vmor %vm232, %vm233
  %v235 = vsel %vm234, %v227, %v231
  %v236 = vand.u32 2147483647, %v183
  %vm237 = vcmp.eq.f32.partialorder %v236, 8.507059e+37
  %v238 = vand.u32 %v183, 2147483648
  %v239 = vor.u32 1.1754944e-38, %v238
  %v240 = vsel %vm237, %v239, %v235
  %v241 = vmul.f32 1.0, %v240
  %v242 = vrcp.pop %v184
  %v243 = vmul.f32 %v184, %v242
  %v244 = vsub.f32 1.0, %v243
  %v245 = vmul.f32 %v242, %v244
  %v246 = vadd.f32 %v242, %v245
  %vm247 = vweird.f32 %v184
  %vm248 = vweird.f32 %v242
  %vm249 = vmor %vm247, %vm248
  %v250 = vsel %vm249, %v242, %v246
  %v251 = vand.u32 2147483647, %v184
  %vm252 = vcmp.eq.f32.partialorder %v251, 8.507059e+37
  %v253 = vand.u32 %v184, 2147483648
  %v254 = vor.u32 1.1754944e-38, %v253
  %v255 = vsel %vm252, %v254, %v250
  %v256 = vmul.f32 1.0, %v255
  %v257 = vrcp.pop %v185
  %v258 = vmul.f32 %v185, %v257
  %v259 = vsub.f32 1.0, %v258
  %v260 = vmul.f32 %v257, %v259
  %v261 = vadd.f32 %v257, %v260
  %vm262 = vweird.f32 %v185
  %vm263 = vweird.f32 %v257
  %vm264 = vmor %vm262, %vm263
  %v265 = vsel %vm264, %v257, %v261
  %v266 = vand.u32 2147483647, %v185
  %vm267 = vcmp.eq.f32.partialorder %v266, 8.507059e+37
  %v268 = vand.u32 %v185, 2147483648
  %v269 = vor.u32 1.1754944e-38, %v268
  %v270 = vsel %vm267, %v269, %v265
  %v271 = vmul.f32 1.0, %v270
  %v272 = vrcp.pop %v186
  %v273 = vmul.f32 %v186, %v272
  %v274 = vsub.f32 1.0, %v273
  %v275 = vmul.f32 %v272, %v274
  %v276 = vadd.f32 %v272, %v275
  %vm277 = vweird.f32 %v186
  %vm278 = vweird.f32 %v272
  %vm279 = vmor %vm277, %vm278
  %v280 = vsel %vm279, %v272, %v276
  %v281 = vand.u32 2147483647, %v186
  %vm282 = vcmp.eq.f32.partialorder %v281, 8.507059e+37
  %v283 = vand.u32 %v186, 2147483648
  %v284 = vor.u32 1.1754944e-38, %v283
  %v285 = vsel %vm282, %v284, %v280
  %v286 = vmul.f32 1.0, %v285
  %v287 = vrcp.pop %v187
  %v288 = vmul.f32 %v187, %v287
  %v289 = vsub.f32 1.0, %v288
  %v290 = vmul.f32 %v287, %v289
  %v291 = vadd.f32 %v287, %v290
  %vm292 = vweird.f32 %v187
  %vm293 = vweird.f32 %v287
  %vm294 = vmor %vm292, %vm293
  %v295 = vsel %vm294, %v287, %v291
  %v296 = vand.u32 2147483647, %v187
  %vm297 = vcmp.eq.f32.partialorder %v296, 8.507059e+37
  %v298 = vand.u32 %v187, 2147483648
  %v299 = vor.u32 1.1754944e-38, %v298
  %v300 = vsel %vm297, %v299, %v295
  %v301 = vmul.f32 1.0, %v300
  %v302 = vrcp.pop %v188
  %v303 = vmul.f32 %v188, %v302
  %v304 = vsub.f32 1.0, %v303
  %v305 = vmul.f32 %v302, %v304
  %v306 = vadd.f32 %v302, %v305
  %vm307 = vweird.f32 %v188
  %vm308 = vweird.f32 %v302
  %vm309 = vmor %vm307, %vm308
  %v310 = vsel %vm309, %v302, %v306
  %v311 = vand.u32 2147483647, %v188
  %vm312 = vcmp.eq.f32.partialorder %v311, 8.507059e+37
  %v313 = vand.u32 %v188, 2147483648
  %v314 = vor.u32 1.1754944e-38, %v313
  %v315 = vsel %vm312, %v314, %v310
  %v316 = vmul.f32 1.0, %v315
  %v317 = vrcp.pop %v189
  %v318 = vmul.f32 %v189, %v317
  %v319 = vsub.f32 1.0, %v318
  %v320 = vmul.f32 %v317, %v319
  %v321 = vadd.f32 %v317, %v320
  %vm322 = vweird.f32 %v189
  %vm323 = vweird.f32 %v317
  %vm324 = vmor %vm322, %vm323
  %v325 = vsel %vm324, %v317, %v321
  %v326 = vand.u32 2147483647, %v189
  %vm327 = vcmp.eq.f32.partialorder %v326, 8.507059e+37
  %v328 = vand.u32 %v189, 2147483648
  %v329 = vor.u32 1.1754944e-38, %v328
  %v330 = vsel %vm327, %v329, %v325
  %v331 = vmul.f32 1.0, %v330
  %v332 = vrcp.pop %v190
  %v333 = vmul.f32 %v190, %v332
  %v334 = vsub.f32 1.0, %v333
  %v335 = vmul.f32 %v332, %v334
  %v336 = vadd.f32 %v332, %v335
  %vm337 = vweird.f32 %v190
  %vm338 = vweird.f32 %v332
  %vm339 = vmor %vm337, %vm338
  %v340 = vsel %vm339, %v332, %v336
  %v341 = vand.u32 2147483647, %v190
  %vm342 = vcmp.eq.f32.partialorder %v341, 8.507059e+37
  %v343 = vand.u32 %v190, 2147483648
  %v344 = vor.u32 1.1754944e-38, %v343
  %v345 = vsel %vm342, %v344, %v340
  %v346 = vmul.f32 1.0, %v345
  %v347 = vrcp.pop %v191
  %v348 = vmul.f32 %v191, %v347
  %v349 = vsub.f32 1.0, %v348
  %v350 = vmul.f32 %v347, %v349
  %v351 = vadd.f32 %v347, %v350
  %vm352 = vweird.f32 %v191
  %vm353 = vweird.f32 %v347
  %vm354 = vmor %vm352, %vm353
  %v355 = vsel %vm354, %v347, %v351
  %v356 = vand.u32 2147483647, %v191
  %vm357 = vcmp.eq.f32.partialorder %v356, 8.507059e+37
  %v358 = vand.u32 %v191, 2147483648
  %v359 = vor.u32 1.1754944e-38, %v358
  %v360 = vsel %vm357, %v359, %v355
  %v361 = vmul.f32 1.0, %v360
  %v362 = vrcp.pop %v192
  %v363 = vmul.f32 %v192, %v362
  %v364 = vsub.f32 1.0, %v363
  %v365 = vmul.f32 %v362, %v364
  %v366 = vadd.f32 %v362, %v365
  %vm367 = vweird.f32 %v192
  %vm368 = vweird.f32 %v362
  %vm369 = vmor %vm367, %vm368
  %v370 = vsel %vm369, %v362, %v366
  %v371 = vand.u32 2147483647, %v192
  %vm372 = vcmp.eq.f32.partialorder %v371, 8.507059e+37
  %v373 = vand.u32 %v192, 2147483648
  %v374 = vor.u32 1.1754944e-38, %v373
  %v375 = vsel %vm372, %v374, %v370
  %v376 = vmul.f32 1.0, %v375
  %v377 = vrcp.pop %v193
  %v378 = vmul.f32 %v193, %v377
  %v379 = vsub.f32 1.0, %v378
  %v380 = vmul.f32 %v377, %v379
  %v381 = vadd.f32 %v377, %v380
  %vm382 = vweird.f32 %v193
  %vm383 = vweird.f32 %v377
  %vm384 = vmor %vm382, %vm383
  %v385 = vsel %vm384, %v377, %v381
  %v386 = vand.u32 2147483647, %v193
  %vm387 = vcmp.eq.f32.partialorder %v386, 8.507059e+37
  %v388 = vand.u32 %v193, 2147483648
  %v389 = vor.u32 1.1754944e-38, %v388
  %v390 = vsel %vm387, %v389, %v385
  %v391 = vmul.f32 1.0, %v390
  %v392 = vrcp.pop %v194
  %v393 = vmul.f32 %v194, %v392
  %v394 = vsub.f32 1.0, %v393
  %v395 = vmul.f32 %v392, %v394
  %v396 = vadd.f32 %v392, %v395
  %vm397 = vweird.f32 %v194
  %vm398 = vweird.f32 %v392
  %vm399 = vmor %vm397, %vm398
  %v400 = vsel %vm399, %v392, %v396
  %v401 = vand.u32 2147483647, %v194
  %vm402 = vcmp.eq.f32.partialorder %v401, 8.507059e+37
  %v403 = vand.u32 %v194, 2147483648
  %v404 = vor.u32 1.1754944e-38, %v403
  %v405 = vsel %vm402, %v404, %v400
  %v406 = vmul.f32 1.0, %v405
  %v407 = vrcp.pop %v195
  %v408 = vmul.f32 %v195, %v407
  %v409 = vsub.f32 1.0, %v408
  %v410 = vmul.f32 %v407, %v409
  %v411 = vadd.f32 %v407, %v410
  %vm412 = vweird.f32 %v195
  %vm413 = vweird.f32 %v407
  %vm414 = vmor %vm412, %vm413
  %v415 = vsel %vm414, %v407, %v411
  %v416 = vand.u32 2147483647, %v195
  %vm417 = vcmp.eq.f32.partialorder %v416, 8.507059e+37
  %v418 = vand.u32 %v195, 2147483648
  %v419 = vor.u32 1.1754944e-38, %v418
  %v420 = vsel %vm417, %v419, %v415
  %v421 = vmul.f32 1.0, %v420
  %v422 = vrcp.pop %v196
  %v423 = vmul.f32 %v196, %v422
  %v424 = vsub.f32 1.0, %v423
  %v425 = vmul.f32 %v422, %v424
  %v426 = vadd.f32 %v422, %v425
  %vm427 = vweird.f32 %v196
  %vm428 = vweird.f32 %v422
  %vm429 = vmor %vm427, %vm428
  %v430 = vsel %vm429, %v422, %v426
  %v431 = vand.u32 2147483647, %v196
  %vm432 = vcmp.eq.f32.partialorder %v431, 8.507059e+37
  %v433 = vand.u32 %v196, 2147483648
  %v434 = vor.u32 1.1754944e-38, %v433
  %v435 = vsel %vm432, %v434, %v430
  %v436 = vmul.f32 1.0, %v435
  %v437 = vadd.f32 %v118, %v119
  %v438 = vperm.slane %v118, 0
  %v439 = vmul.f32 %v438, %v124
  %v440 = vadd.f32 %v211, %v439
  %v441 = vadd.f32 %v226, %v439
  %v442 = vadd.f32 %v241, %v439
  %v443 = vadd.f32 %v256, %v439
  %v444 = vadd.f32 %v271, %v439
  %v445 = vadd.f32 %v286, %v439
  %v446 = vadd.f32 %v301, %v439
  %v447 = vadd.f32 %v316, %v439
  %v448 = vadd.f32 %v331, %v439
  %v449 = vadd.f32 %v346, %v439
  %v450 = vadd.f32 %v361, %v439
  %v451 = vadd.f32 %v376, %v439
  %v452 = vadd.f32 %v391, %v439
  %v453 = vadd.f32 %v406, %v439
  %v454 = vadd.f32 %v421, %v439
  %v455 = vadd.f32 %v436, %v439
  %v456 = vperm.slane %v119, 0
  %v457 = vmul.f32 %v456, %v125
  %v458 = vmul.f32 %v456, %v126
  %v459 = vmul.f32 %v456, %v127
  %v460 = vmul.f32 %v456, %v128
  %v461 = vmul.f32 %v456, %v129
  %v462 = vmul.f32 %v456, %v130
  %v463 = vmul.f32 %v456, %v131
  %v464 = vmul.f32 %v456, %v132
  %v465 = vadd.f32 %v440, %v457
  %v466 = vadd.f32 %v441, %v458
  %v467 = vadd.f32 %v442, %v459
  %v468 = vadd.f32 %v443, %v460
  %v469 = vadd.f32 %v444, %v461
  %v470 = vadd.f32 %v445, %v462
  %v471 = vadd.f32 %v446, %v463
  %v472 = vadd.f32 %v447, %v464
  %v473 = vadd.f32 %v448, %v457
  %v474 = vadd.f32 %v449, %v458
  %v475 = vadd.f32 %v450, %v459
  %v476 = vadd.f32 %v451, %v460
  %v477 = vadd.f32 %v452, %v461
  %v478 = vadd.f32 %v453, %v462
  %v479 = vadd.f32 %v454, %v463
  %v480 = vadd.f32 %v455, %v464
  %v481 = vmul.f32 %v465, 2.0
  %v482 = vmul.f32 %v466, 2.0
  %v483 = vmul.f32 %v467, 2.0
  %v484 = vmul.f32 %v468, 2.0
  %v485 = vmul.f32 %v469, 2.0
  %v486 = vmul.f32 %v470, 2.0
  %v487 = vmul.f32 %v471, 2.0
  %v488 = vmul.f32 %v472, 2.0
  %v489 = vmul.f32 %v473, 2.0
  %v490 = vmul.f32 %v474, 2.0
  %v491 = vmul.f32 %v475, 2.0
  %v492 = vmul.f32 %v476, 2.0
  %v493 = vmul.f32 %v477, 2.0
  %v494 = vmul.f32 %v478, 2.0
  %v495 = vmul.f32 %v479, 2.0
  %v496 = vmul.f32 %v480, 2.0
  %v497 = vperm.slane %v120, 0
  %v498 = vmul.f32 %v71, %v497
  %v499 = vmul.f32 %v74, %v497
  %v500 = vmul.f32 %v77, %v497
  %v501 = vmul.f32 %v80, %v497
  %v502 = vmul.f32 %v83, %v497
  %v503 = vmul.f32 %v86, %v497
  %v504 = vmul.f32 %v89, %v497
  %v505 = vmul.f32 %v92, %v497
  %v506 = vmul.f32 %v95, %v497
  %v507 = vmul.f32 %v98, %v497
  %v508 = vmul.f32 %v101, %v497
  %v509 = vmul.f32 %v104, %v497
  %v510 = vmul.f32 %v107, %v497
  %v511 = vmul.f32 %v110, %v497
  %v512 = vmul.f32 %v113, %v497
  %v513 = vmul.f32 %v116, %v497
  %v514 = vmul.f32 %v498, 1.442695
  %v515 = vpow.pop %v514
  %v516 = vmul.f32 %v499, 1.442695
  %v517 = vpow.pop %v516
  %v518 = vmul.f32 %v500, 1.442695
  %v519 = vpow.pop %v518
  %v520 = vmul.f32 %v501, 1.442695
  %v521 = vpow.pop %v520
  %v522 = vmul.f32 %v502, 1.442695
  %v523 = vpow.pop %v522
  %v524 = vmul.f32 %v503, 1.442695
  %v525 = vpow.pop %v524
  %v526 = vmul.f32 %v504, 1.442695
  %v527 = vpow.pop %v526
  %v528 = vmul.f32 %v505, 1.442695
  %v529 = vpow.pop %v528
  %v530 = vmul.f32 %v506, 1.442695
  %v531 = vpow.pop %v530
  %v532 = vmul.f32 %v507, 1.442695
  %v533 = vpow.pop %v532
  %v534 = vmul.f32 %v508, 1.442695
  %v535 = vpow.pop %v534
  %v536 = vmul.f32 %v509, 1.442695
  %v537 = vpow.pop %v536
  %v538 = vmul.f32 %v510, 1.442695
  %v539 = vpow.pop %v538
  %v540 = vmul.f32 %v511, 1.442695
  %v541 = vpow.pop %v540
  %v542 = vmul.f32 %v512, 1.442695
  %v543 = vpow.pop %v542
  %v544 = vmul.f32 %v513, 1.442695
  %v545 = vpow.pop %v544
  %v546 = vperm.slane %v121, 0
  %v547 = vmul.f32 %v515, %v546
  %v548 = vmul.f32 %v517, %v546
  %v549 = vmul.f32 %v519, %v546
  %v550 = vmul.f32 %v521, %v546
  %v551 = vmul.f32 %v523, %v546
  %v552 = vmul.f32 %v525, %v546
  %v553 = vmul.f32 %v527, %v546
  %v554 = vmul.f32 %v529, %v546
  %v555 = vmul.f32 %v531, %v546
  %v556 = vmul.f32 %v533, %v546
  %v557 = vmul.f32 %v535, %v546
  %v558 = vmul.f32 %v537, %v546
  %v559 = vmul.f32 %v539, %v546
  %v560 = vmul.f32 %v541, %v546
  %v561 = vmul.f32 %v543, %v546
  %v562 = vmul.f32 %v545, %v546
  %v563 = vperm.slane %v437, 0
  %v564 = vmul.f32 %v563, %v481
  %v565 = vmul.f32 %v563, %v482
  %v566 = vmul.f32 %v563, %v483
  %v567 = vmul.f32 %v563, %v484
  %v568 = vmul.f32 %v563, %v485
  %v569 = vmul.f32 %v563, %v486
  %v570 = vmul.f32 %v563, %v487
  %v571 = vmul.f32 %v563, %v488
  %v572 = vmul.f32 %v563, %v489
  %v573 = vmul.f32 %v563, %v490
  %v574 = vmul.f32 %v563, %v491
  %v575 = vmul.f32 %v563, %v492
  %v576 = vmul.f32 %v563, %v493
  %v577 = vmul.f32 %v563, %v494
  %v578 = vmul.f32 %v563, %v495
  %v579 = vmul.f32 %v563, %v496
  %v580 = vmul.f32 %v497, %v547
  %v581 = vmul.f32 %v497, %v548
  %v582 = vmul.f32 %v497, %v549
  %v583 = vmul.f32 %v497, %v550
  %v584 = vmul.f32 %v497, %v551
  %v585 = vmul.f32 %v497, %v552
  %v586 = vmul.f32 %v497, %v553
  %v587 = vmul.f32 %v497, %v554
  %v588 = vmul.f32 %v497, %v555
  %v589 = vmul.f32 %v497, %v556
  %v590 = vmul.f32 %v497, %v557
  %v591 = vmul.f32 %v497, %v558
  %v592 = vmul.f32 %v497, %v559
  %v593 = vmul.f32 %v497, %v560
  %v594 = vmul.f32 %v497, %v561
  %v595 = vmul.f32 %v497, %v562
  %v596 = vadd.f32 %v564, %v580
  %v597 = vadd.f32 %v565, %v581
  %v598 = vadd.f32 %v566, %v582
  %v599 = vadd.f32 %v567, %v583
  %v600 = vadd.f32 %v568, %v584
  %v601 = vadd.f32 %v569, %v585
  %v602 = vadd.f32 %v570, %v586
  %v603 = vadd.f32 %v571, %v587
  %v604 = vadd.f32 %v572, %v588
  %v605 = vadd.f32 %v573, %v589
  %v606 = vadd.f32 %v574, %v590
  %v607 = vadd.f32 %v575, %v591
  %v608 = vadd.f32 %v576, %v592
  %v609 = vadd.f32 %v577, %v593
  %v610 = vadd.f32 %v578, %v594
  %v611 = vadd.f32 %v579, %v595
  %v612 = vsub.f32 1.0, %v437
  %v613 = vsub.f32 %v612, %v120
  %v614 = vperm.slane %v613, 0
  %v615 = vmul.f32 %v614, %v211
  %v616 = vmul.f32 %v614, %v226
  %v617 = vmul.f32 %v614, %v241
  %v618 = vmul.f32 %v614, %v256
  %v619 = vmul.f32 %v614, %v271
  %v620 = vmul.f32 %v614, %v286
  %v621 = vmul.f32 %v614, %v301
  %v622 = vmul.f32 %v614, %v316
  %v623 = vmul.f32 %v614, %v331
  %v624 = vmul.f32 %v614, %v346
  %v625 = vmul.f32 %v614, %v361
  %v626 = vmul.f32 %v614, %v376
  %v627 = vmul.f32 %v614, %v391
  %v628 = vmul.f32 %v614, %v406
  %v629 = vmul.f32 %v614, %v421
  %v630 = vmul.f32 %v614, %v436
  %v631 = vadd.f32 %v596, %v615
  %v632 = vadd.f32 %v597, %v616
  %v633 = vadd.f32 %v598, %v617
  %v634 = vadd.f32 %v599, %v618
  %v635 = vadd.f32 %v600, %v619
  %v636 = vadd.f32 %v601, %v620
  %v637 = vadd.f32 %v602, %v621
  %v638 = vadd.f32 %v603, %v622
  %v639 = vadd.f32 %v604, %v623
  %v640 = vadd.f32 %v605, %v624
  %v641 = vadd.f32 %v606, %v625
  %v642 = vadd.f32 %v607, %v626
  %v643 = vadd.f32 %v608, %v627
  %v644 = vadd.f32 %v609, %v628
  %v645 = vadd.f32 %v610, %v629
  %v646 = vadd.f32 %v611, %v630
  %647 = vst [vmem:[%s4] sm:$0xff] %v631
  %648 = vst [vmem:[%s4 + $0x8] sm:$0xff] %v632
  %649 = vst [vmem:[%s4 + $0x10] sm:$0xff] %v633
  %650 = vst [vmem:[%s4 + $0x18] sm:$0xff] %v634
  %651 = vst [vmem:[%s4 + $0x20] sm:$0xff] %v635
  %652 = vst [vmem:[%s4 + $0x28] sm:$0xff] %v636
  %653 = vst [vmem:[%s4 + $0x30] sm:$0xff] %v637
  %654 = vst [vmem:[%s4 + $0x38] sm:$0xff] %v638
  %655 = vst [vmem:[%s4 + $0x40] sm:$0xff] %v639
  %656 = vst [vmem:[%s4 + $0x48] sm:$0xff] %v640
  %657 = vst [vmem:[%s4 + $0x50] sm:$0xff] %v641
  %658 = vst [vmem:[%s4 + $0x58] sm:$0xff] %v642
  %659 = vst [vmem:[%s4 + $0x60] sm:$0xff] %v643
  %660 = vst [vmem:[%s4 + $0x68] sm:$0xff] %v644
  %661 = vst [vmem:[%s4 + $0x70] sm:$0xff] %v645
  %662 = vst [vmem:[%s4 + $0x78] sm:$0xff] %v646
  // Predicated region
  $region18: #{darknet_forward.9} parent=0 // pred_check
    _
  $region19: #{darknet_forward.9} parent=0 // pred_check_branch
    %664 = sbr.rel (0) target = $region21
  $region20: #{darknet_forward.9} parent=0 // pred_region
    _
  $region21: #{darknet_forward.9} parent=0 // pred_fallthru
    _
  // Predicated region
  $region22: #{darknet_forward.9} parent=0 // pred_check
    _
  $region23: #{darknet_forward.9} parent=0 // pred_check_branch
    %666 = sbr.rel (0) target = $region25
  $region24: #{darknet_forward.9} parent=0 // pred_region
    _
  $region25: #{darknet_forward.9} parent=0 // pred_fallthru
    _

</llo_original>
